<compile_context>
chip_gen: v7x
topology: tpu7x:2x2x1
jax: 0.10.0
libtpu: 0.0.40
codegen_flags: <defaults>
</compile_context>

<pallas_src>
import math

import jax
import jax.numpy as jnp
import numpy as np
from jax.experimental import pallas as pl
from jax.experimental.pallas import tpu as pltpu


# ---------------------------------------------------------------------------
# Fused kernel: one grid step per batch element, everything resident in VMEM.
# ---------------------------------------------------------------------------
def _make_fused_kernel(H, W, C, K, XPL):
    HW = H * W
    P = K // 2
    BASE = P * W + P            # lane of image[0,0] in the H-padded flat layout

    def kernel(x_ref, wt_ref, bias_ref, caw1_ref, caw2_ref, w2t_ref, bf2_ref,
               mask_ref, sa_ref, o_ref, xpad_ref, at_ref, spad_ref):
        f32 = jnp.float32
        bf16 = jnp.bfloat16

        x2 = x_ref[0]                                   # (C, HW) f32, lane-dense

        # ---- fused init|7x7|5x5|3x3|final1 conv -----------------------------
        # Scatter x once into the H-padded, row-stride-W flat layout (bf16).
        xpad_ref[...] = jnp.zeros((C, XPL), bf16)
        xpad_ref[:, BASE:BASE + HW] = x2.astype(bf16)

        # Transposed im2col: 49 lane-shifted slab copies, dx-validity masked so
        # horizontal taps never wrap into the neighbouring row's pixels.
        maskb = mask_ref[...].astype(bf16)              # (K, HW)
        for dy in range(K):
            for dx in range(K):
                t = dy * K + dx
                q0 = dy * W + dx
                at_ref[t * C:(t + 1) * C, :] = (
                    xpad_ref[:, q0:q0 + HW] * maskb[dx:dx + 1, :])

        conv = jnp.dot(wt_ref[...], at_ref[...],
                       preferred_element_type=f32)      # (C, HW)
        out = conv + bias_ref[...] + x2                 # + bias map + residual

        # ---- ChannelAttention (VPU/XLU, f32) --------------------------------
        avg = jnp.mean(out, axis=1, keepdims=True)      # (C, 1)
        mx = jnp.max(out, axis=1, keepdims=True)        # (C, 1)
        w1 = caw1_ref[...]                              # (C, Ch)   fc1
        w2 = caw2_ref[...]                              # (C, Ch)   fc2^T
        ha = jnp.maximum(jnp.sum(w1 * avg, axis=0, keepdims=True), 0.0)  # (1,Ch)
        hm = jnp.maximum(jnp.sum(w1 * mx, axis=0, keepdims=True), 0.0)
        ca_logit = (jnp.sum(w2 * ha, axis=1, keepdims=True)
                    + jnp.sum(w2 * hm, axis=1, keepdims=True))           # (C,1)
        ca = 1.0 / (1.0 + jnp.exp(-ca_logit))

        # ---- SpatialAttention: 7x7 conv on [mean_c, max_c] via 49 VPU taps ---
        spad_ref[...] = jnp.zeros((2, XPL), f32)
        amm = jnp.concatenate([jnp.mean(out, axis=0, keepdims=True),
                               jnp.max(out, axis=0, keepdims=True)], axis=0)
        spad_ref[:, BASE:BASE + HW] = amm               # (2, HW) scattered once
        logit = jnp.zeros((1, HW), f32)
        for dy in range(K):
            for dx in range(K):
                t = dy * K + dx
                q0 = dy * W + dx
                sl = spad_ref[:, q0:q0 + HW]            # (2, HW)
                logit = logit + (sa_ref[0, t] * sl[0:1, :]
                                 + sa_ref[1, t] * sl[1:2, :]) * mask_ref[dx:dx + 1, :]
        sa = 1.0 / (1.0 + jnp.exp(-logit))              # (1, HW)

        # ---- conv_1x1_final2 on [CA*out | SA*out] + residual -----------------
        cat2 = jnp.concatenate([out * ca, out * sa], axis=0).astype(bf16)  # (2C, HW)
        out2 = jnp.dot(w2t_ref[...], cat2, preferred_element_type=f32)     # (C, HW)
        o_ref[0] = (out2 + bf2_ref[...] + out).astype(o_ref.dtype)

    return kernel


# ---------------------------------------------------------------------------
# Full MultiScaleModule forward: NCHW I/O, single fused pallas_call.
# ---------------------------------------------------------------------------
def multiscale_forward(x_nchw, p):
    N, C, H, W = x_nchw.shape
    K = 7
    P = K // 2
    HW = H * W
    Ch = p['ca_w1'].shape[1]
    f32 = jnp.float32
    bf16 = jnp.bfloat16

    x3 = x_nchw.reshape(N, C, HW)                       # pure reshape, no transpose

    # ---- trace-time weight prep ---------------------------------------------
    def pad_to_k(wk):                                   # center-pad to 7x7
        q = (K - wk.shape[0]) // 2
        return jnp.pad(wk, ((q, q), (q, q), (0, 0), (0, 0)))

    wi2 = p['w_init'].reshape(C, C)                     # (cin, cmid)
    wbr = jnp.concatenate([p['w7'], pad_to_k(p['w5']), pad_to_k(p['w3'])],
                          axis=-1)                      # (K, K, Cmid, 3C)
    wf12 = p['wf1'].reshape(3 * C, C)                   # (3C, cout)
    # Linear fold: init(1x1) -> branch(7x7) -> final1(1x1)  ==  one 7x7 conv.
    wfused = jnp.einsum('im,yxmj,jo->yxio', wi2, wbr, wf12)      # (K,K,Cin,Cout)
    wt = wfused.reshape(K * K * C, C).T.astype(bf16)             # (Cout, K*K*Cin)

    # Per-pixel bias map: the b_init contribution depends on position because
    # zero-padding happens AFTER conv_1x1_init -> run the affine chain on x==0.
    HI = jax.lax.Precision.HIGHEST

    def convn(v, w, b, pad):
        out = jax.lax.conv_general_dilated(
            v, w, (1, 1), [(pad, pad), (pad, pad)],
            dimension_numbers=('NHWC', 'HWIO', 'NHWC'), precision=HI)
        return out + b

    h0 = jnp.broadcast_to(p['b_init'], (1, H, W, C)).astype(f32)
    cat0 = jnp.concatenate([convn(h0, p['w7'], p['b7'], 3),
                            convn(h0, p['w5'], p['b5'], 2),
                            convn(h0, p['w3'], p['b3'], 1)], axis=-1)
    bmap = jnp.einsum('nhwj,jo->nhwo', cat0, wf12) + p['bf1']    # (1,H,W,C)
    bias_chw = jnp.transpose(bmap[0], (2, 0, 1)).reshape(C, HW).astype(f32)

    # dx-validity mask for the flat (row-stride = W) shifted-tap trick.
    ox = np.arange(HW) % W
    dxs = np.arange(K)[:, None]
    mask = ((ox[None, :] + dxs - P >= 0) & (ox[None, :] + dxs - P < W))
    mask = jnp.asarray(mask.astype(np.float32))                  # (K, HW)

    ca_w1 = p['ca_w1'].astype(f32)                               # (C, Ch)
    ca_w2t = p['ca_w2'].T.astype(f32)                            # (C, Ch)
    w2t = p['wf2'].reshape(2 * C, C).T.astype(bf16)              # (C, 2C) [CA|SA]
    bf2 = p['bf2'].reshape(C, 1).astype(f32)
    sa_tab = jnp.stack([p['sa_w'][:, :, 0].reshape(-1),
                        p['sa_w'][:, :, 1].reshape(-1)]).astype(f32)  # (2, K*K)

    # Padded flat-lane extent: max read = (HW-1) + (K-1)*(W+1), round up to 128.
    XPL = ((HW + (K - 1) * (W + 1) + 127) // 128) * 128

    out3 = pl.pallas_call(
        _make_fused_kernel(H, W, C, K, XPL),
        out_shape=jax.ShapeDtypeStruct((N, C, HW), x_nchw.dtype),
        grid=(N,),
        in_specs=[
            pl.BlockSpec((1, C, HW), lambda n: (n, 0, 0)),        # x (C-major)
            pl.BlockSpec((C, K * K * C), lambda n: (0, 0)),       # fused 7x7 weight
            pl.BlockSpec((C, HW), lambda n: (0, 0)),              # fused bias map
            pl.BlockSpec((C, Ch), lambda n: (0, 0)),              # CA fc1
            pl.BlockSpec((C, Ch), lambda n: (0, 0)),              # CA fc2^T
            pl.BlockSpec((C, 2 * C), lambda n: (0, 0)),           # final2 weight^T
            pl.BlockSpec((C, 1), lambda n: (0, 0)),               # final2 bias
            pl.BlockSpec((K, HW), lambda n: (0, 0)),              # dx validity mask
            pl.BlockSpec(memory_space=pltpu.MemorySpace.SMEM),    # SA 7x7 taps
        ],
        out_specs=pl.BlockSpec((1, C, HW), lambda n: (n, 0, 0)),
        scratch_shapes=[
            pltpu.VMEM((C, XPL), jnp.bfloat16),          # H-padded flat input
            pltpu.VMEM((K * K * C, HW), jnp.bfloat16),   # transposed im2col operand
            pltpu.VMEM((2, XPL), jnp.float32),           # padded [mean_c, max_c]
        ],
        compiler_params=pltpu.CompilerParams(
            dimension_semantics=("parallel",)),
    )(x3, wt, bias_chw, ca_w1, ca_w2t, w2t, bf2, mask, sa_tab)

    return out3.reshape(N, C, H, W)


# ---------------------------------------------------------------------------
# Pure-JAX reference (mirrors the PyTorch NCHW forward) for validation.
# ---------------------------------------------------------------------------
def reference_forward(x, p):
    HI = jax.lax.Precision.HIGHEST

    def conv(v, w_hwio, b, pad):
        w = jnp.transpose(w_hwio, (3, 2, 0, 1))            # HWIO -> OIHW
        out = jax.lax.conv_general_dilated(
            v, w, (1, 1), [(pad, pad), (pad, pad)],
            dimension_numbers=('NCHW', 'OIHW', 'NCHW'), precision=HI)
        if b is not None:
            out = out + b[None, :, None, None]
        return out

    x_copy = x
    h = conv(x, p['w_init'], p['b_init'], 0)
    cat = jnp.concatenate([conv(h, p['w7'], p['b7'], 3),
                           conv(h, p['w5'], p['b5'], 2),
                           conv(h, p['w3'], p['b3'], 1)], axis=1)
    out = conv(cat, p['wf1'], p['bf1'], 0) + x_copy
    out_copy = out

    avg = jnp.mean(out, axis=(2, 3))
    mx = jnp.max(out, axis=(2, 3))

    def mlp(v):
        hdn = jnp.maximum(jnp.dot(v, p['ca_w1'], precision=HI), 0.0)
        return jnp.dot(hdn, p['ca_w2'], precision=HI)

    ca = jax.nn.sigmoid(mlp(avg) + mlp(mx))[:, :, None, None]

    s = jnp.concatenate([jnp.mean(out, axis=1, keepdims=True),
                         jnp.max(out, axis=1, keepdims=True)], axis=1)
    w_sa = jnp.transpose(p['sa_w'], (2, 0, 1))[None, :, :, :]   # (1,2,7,7)
    sa = jax.nn.sigmoid(jax.lax.conv_general_dilated(
        s, w_sa, (1, 1), [(3, 3), (3, 3)],
        dimension_numbers=('NCHW', 'OIHW', 'NCHW'), precision=HI))

    cat2 = jnp.concatenate([ca * out, sa * out], axis=1)
    return conv(cat2, p['wf2'], p['bf2'], 0) + out_copy


# ---------------------------------------------------------------------------
# Deterministic parameter init (shapes from the module's __init__).
# ---------------------------------------------------------------------------
def init_params(key, C):
    Ch = max(C // 16, 1)
    ks = jax.random.split(key, 16)

    def w(k, shape, fan_in):
        return jax.random.normal(k, shape, jnp.float32) / math.sqrt(fan_in)

    def b(k, n):
        return 0.1 * jax.random.normal(k, (n,), jnp.float32)

    return {
        'w_init': w(ks[0], (1, 1, C, C), C),          'b_init': b(ks[1], C),
        'w7':     w(ks[2], (7, 7, C, C), 49 * C),     'b7':     b(ks[3], C),
        'w5':     w(ks[4], (5, 5, C, C), 25 * C),     'b5':     b(ks[5], C),
        'w3':     w(ks[6], (3, 3, C, C), 9 * C),      'b3':     b(ks[7], C),
        'wf1':    w(ks[8], (1, 1, 3 * C, C), 3 * C),  'bf1':    b(ks[9], C),
        'ca_w1':  w(ks[10], (C, Ch), C),              # fc1 (no bias)
        'ca_w2':  w(ks[11], (Ch, C), Ch),             # fc2 (no bias)
        'sa_w':   w(ks[12], (7, 7, 2), 98),           # SA conv (no bias), HWI
        'wf2':    w(ks[13], (1, 1, 2 * C, C), 2 * C), 'bf2':    b(ks[14], C),
    }


if __name__ == "__main__":
    N, C, H, W = 2, 32, 16, 16   # in_channels == out_channels == 32 (ratio=16)
    key = jax.random.PRNGKey(0)
    kp, kx = jax.random.split(key)
    params = init_params(kp, C)
    x = jax.random.normal(kx, (N, C, H, W), jnp.float32)

    fwd = jax.jit(lambda a: multiscale_forward(a, params))
    y = jax.block_until_ready(fwd(x))

    y_ref = np.asarray(reference_forward(x, params))
    assert y.shape == (N, C, H, W), y.shape
    max_err = float(np.max(np.abs(np.asarray(y) - y_ref)))
    if not np.allclose(np.asarray(y), y_ref, atol=5e-2, rtol=5e-2):
        raise AssertionError(f"kernel mismatch vs reference, max abs err={max_err}")
    print("KERNEL_OK")
</pallas_src>

<mosaic_0001>
module attributes {stable_mosaic.version = 11 : i64} {
  func.func @kernel(%arg0: i32, %arg1: memref<1x32x256xf32, #tpu.memory_space<vmem>>, %arg2: memref<32x1568xbf16, #tpu.memory_space<vmem>>, %arg3: memref<32x256xf32, #tpu.memory_space<vmem>>, %arg4: memref<32x2xf32, #tpu.memory_space<vmem>>, %arg5: memref<32x2xf32, #tpu.memory_space<vmem>>, %arg6: memref<32x64xbf16, #tpu.memory_space<vmem>>, %arg7: memref<32x1xf32, #tpu.memory_space<vmem>>, %arg8: memref<7x256xf32, #tpu.memory_space<vmem>>, %arg9: memref<2x49xf32, #tpu.memory_space<smem>>, %arg10: memref<1x32x256xf32, #tpu.memory_space<vmem>>, %arg11: memref<32x384xbf16, #tpu.memory_space<vmem>>, %arg12: memref<1568x256xbf16, #tpu.memory_space<vmem>>, %arg13: memref<2x384xf32, #tpu.memory_space<vmem>>) attributes {dimension_semantics = [#tpu.dimension_semantics<parallel>], iteration_bounds = array<i64: 2>, scalar_prefetch = 0 : i64, scratch_operands = 3 : i64, tpu.core_type = #tpu.core_type<tc>, window_params = [{transform_indices = @transform_0, window_bounds = array<i64: 1, 32, 256>}, {pipeline_mode = #tpu.pipeline_mode<synchronous>, transform_indices = @transform_1, window_bounds = array<i64: 32, 1568>}, {pipeline_mode = #tpu.pipeline_mode<synchronous>, transform_indices = @transform_2, window_bounds = array<i64: 32, 256>}, {pipeline_mode = #tpu.pipeline_mode<synchronous>, transform_indices = @transform_3, window_bounds = array<i64: 32, 2>}, {pipeline_mode = #tpu.pipeline_mode<synchronous>, transform_indices = @transform_4, window_bounds = array<i64: 32, 2>}, {pipeline_mode = #tpu.pipeline_mode<synchronous>, transform_indices = @transform_5, window_bounds = array<i64: 32, 64>}, {pipeline_mode = #tpu.pipeline_mode<synchronous>, transform_indices = @transform_6, window_bounds = array<i64: 32, 1>}, {pipeline_mode = #tpu.pipeline_mode<synchronous>, transform_indices = @transform_7, window_bounds = array<i64: 7, 256>}, {transform_indices = @transform_8, window_bounds = array<i64: 2, 49>}, {transform_indices = @transform_9, window_bounds = array<i64: 1, 32, 256>}]} {
    %c0 = arith.constant 0 : index
    %c0_0 = arith.constant 0 : index
    %c0_1 = arith.constant 0 : index
    %0 = vector.load %arg1[%c0, %c0_0, %c0_1] : memref<1x32x256xf32, #tpu.memory_space<vmem>>, vector<1x32x256xf32>
    %1 = vector.shape_cast %0 : vector<1x32x256xf32> to vector<32x256xf32>
    %cst = arith.constant 0.000000e+00 : bf16
    %2 = vector.broadcast %cst : bf16 to vector<32x384xbf16>
    %c0_2 = arith.constant 0 : index
    %c0_3 = arith.constant 0 : index
    %3 = vector.load %arg11[%c0_2, %c0_3] : memref<32x384xbf16, #tpu.memory_space<vmem>>, vector<32x384xbf16>
    tpu.vector_store %arg11[%c0_2, %c0_3], %2 {strides = array<i32>} : memref<32x384xbf16, #tpu.memory_space<vmem>>, vector<32x384xbf16>,
    %4 = arith.truncf %1 : vector<32x256xf32> to vector<32x256xbf16>
    %c0_4 = arith.constant 0 : index
    %c51 = arith.constant 51 : index
    %5 = vector.load %arg11[%c0_4, %c51] : memref<32x384xbf16, #tpu.memory_space<vmem>>, vector<32x256xbf16>
    tpu.vector_store %arg11[%c0_4, %c51], %4 {strides = array<i32>} : memref<32x384xbf16, #tpu.memory_space<vmem>>, vector<32x256xbf16>,
    %c0_5 = arith.constant 0 : index
    %c0_6 = arith.constant 0 : index
    %6 = vector.load %arg8[%c0_5, %c0_6] : memref<7x256xf32, #tpu.memory_space<vmem>>, vector<7x256xf32>
    %7 = arith.truncf %6 : vector<7x256xf32> to vector<7x256xbf16>
    %c0_7 = arith.constant 0 : index
    %c0_8 = arith.constant 0 : index
    %8 = vector.load %arg11[%c0_7, %c0_8] : memref<32x384xbf16, #tpu.memory_space<vmem>>, vector<32x256xbf16>
    %9 = vector.extract_strided_slice %7 {offsets = [0, 0], sizes = [1, 256], strides = [1, 1]} : vector<7x256xbf16> to vector<1x256xbf16>
    %10 = vector.broadcast %9 : vector<1x256xbf16> to vector<32x256xbf16>
    %11 = arith.mulf %8, %10 : vector<32x256xbf16>
    %c0_9 = arith.constant 0 : index
    %c0_10 = arith.constant 0 : index
    %12 = vector.load %arg12[%c0_9, %c0_10] : memref<1568x256xbf16, #tpu.memory_space<vmem>>, vector<32x256xbf16>
    tpu.vector_store %arg12[%c0_9, %c0_10], %11 {strides = array<i32>} : memref<1568x256xbf16, #tpu.memory_space<vmem>>, vector<32x256xbf16>,
    %c0_11 = arith.constant 0 : index
    %c1 = arith.constant 1 : index
    %13 = vector.load %arg11[%c0_11, %c1] : memref<32x384xbf16, #tpu.memory_space<vmem>>, vector<32x256xbf16>
    %14 = vector.extract_strided_slice %7 {offsets = [1, 0], sizes = [1, 256], strides = [1, 1]} : vector<7x256xbf16> to vector<1x256xbf16>
    %15 = vector.broadcast %14 : vector<1x256xbf16> to vector<32x256xbf16>
    %16 = arith.mulf %13, %15 : vector<32x256xbf16>
    %c32 = arith.constant 32 : index
    %c0_12 = arith.constant 0 : index
    %17 = vector.load %arg12[%c32, %c0_12] : memref<1568x256xbf16, #tpu.memory_space<vmem>>, vector<32x256xbf16>
    tpu.vector_store %arg12[%c32, %c0_12], %16 {strides = array<i32>} : memref<1568x256xbf16, #tpu.memory_space<vmem>>, vector<32x256xbf16>,
    %c0_13 = arith.constant 0 : index
    %c2 = arith.constant 2 : index
    %18 = vector.load %arg11[%c0_13, %c2] : memref<32x384xbf16, #tpu.memory_space<vmem>>, vector<32x256xbf16>
    %19 = vector.extract_strided_slice %7 {offsets = [2, 0], sizes = [1, 256], strides = [1, 1]} : vector<7x256xbf16> to vector<1x256xbf16>
    %20 = vector.broadcast %19 : vector<1x256xbf16> to vector<32x256xbf16>
    %21 = arith.mulf %18, %20 : vector<32x256xbf16>
    %c64 = arith.constant 64 : index
    %c0_14 = arith.constant 0 : index
    %22 = vector.load %arg12[%c64, %c0_14] : memref<1568x256xbf16, #tpu.memory_space<vmem>>, vector<32x256xbf16>
    tpu.vector_store %arg12[%c64, %c0_14], %21 {strides = array<i32>} : memref<1568x256xbf16, #tpu.memory_space<vmem>>, vector<32x256xbf16>,
    %c0_15 = arith.constant 0 : index
    %c3 = arith.constant 3 : index
    %23 = vector.load %arg11[%c0_15, %c3] : memref<32x384xbf16, #tpu.memory_space<vmem>>, vector<32x256xbf16>
    %24 = vector.extract_strided_slice %7 {offsets = [3, 0], sizes = [1, 256], strides = [1, 1]} : vector<7x256xbf16> to vector<1x256xbf16>
    %25 = vector.broadcast %24 : vector<1x256xbf16> to vector<32x256xbf16>
    %26 = arith.mulf %23, %25 : vector<32x256xbf16>
    %c96 = arith.constant 96 : index
    %c0_16 = arith.constant 0 : index
    %27 = vector.load %arg12[%c96, %c0_16] : memref<1568x256xbf16, #tpu.memory_space<vmem>>, vector<32x256xbf16>
    tpu.vector_store %arg12[%c96, %c0_16], %26 {strides = array<i32>} : memref<1568x256xbf16, #tpu.memory_space<vmem>>, vector<32x256xbf16>,
    %c0_17 = arith.constant 0 : index
    %c4 = arith.constant 4 : index
    %28 = vector.load %arg11[%c0_17, %c4] : memref<32x384xbf16, #tpu.memory_space<vmem>>, vector<32x256xbf16>
    %29 = vector.extract_strided_slice %7 {offsets = [4, 0], sizes = [1, 256], strides = [1, 1]} : vector<7x256xbf16> to vector<1x256xbf16>
    %30 = vector.broadcast %29 : vector<1x256xbf16> to vector<32x256xbf16>
    %31 = arith.mulf %28, %30 : vector<32x256xbf16>
    %c128 = arith.constant 128 : index
    %c0_18 = arith.constant 0 : index
    %32 = vector.load %arg12[%c128, %c0_18] : memref<1568x256xbf16, #tpu.memory_space<vmem>>, vector<32x256xbf16>
    tpu.vector_store %arg12[%c128, %c0_18], %31 {strides = array<i32>} : memref<1568x256xbf16, #tpu.memory_space<vmem>>, vector<32x256xbf16>,
    %c0_19 = arith.constant 0 : index
    %c5 = arith.constant 5 : index
    %33 = vector.load %arg11[%c0_19, %c5] : memref<32x384xbf16, #tpu.memory_space<vmem>>, vector<32x256xbf16>
    %34 = vector.extract_strided_slice %7 {offsets = [5, 0], sizes = [1, 256], strides = [1, 1]} : vector<7x256xbf16> to vector<1x256xbf16>
    %35 = vector.broadcast %34 : vector<1x256xbf16> to vector<32x256xbf16>
    %36 = arith.mulf %33, %35 : vector<32x256xbf16>
    %c160 = arith.constant 160 : index
    %c0_20 = arith.constant 0 : index
    %37 = vector.load %arg12[%c160, %c0_20] : memref<1568x256xbf16, #tpu.memory_space<vmem>>, vector<32x256xbf16>
    tpu.vector_store %arg12[%c160, %c0_20], %36 {strides = array<i32>} : memref<1568x256xbf16, #tpu.memory_space<vmem>>, vector<32x256xbf16>,
    %c0_21 = arith.constant 0 : index
    %c6 = arith.constant 6 : index
    %38 = vector.load %arg11[%c0_21, %c6] : memref<32x384xbf16, #tpu.memory_space<vmem>>, vector<32x256xbf16>
    %39 = vector.extract_strided_slice %7 {offsets = [6, 0], sizes = [1, 256], strides = [1, 1]} : vector<7x256xbf16> to vector<1x256xbf16>
    %40 = vector.broadcast %39 : vector<1x256xbf16> to vector<32x256xbf16>
    %41 = arith.mulf %38, %40 : vector<32x256xbf16>
    %c192 = arith.constant 192 : index
    %c0_22 = arith.constant 0 : index
    %42 = vector.load %arg12[%c192, %c0_22] : memref<1568x256xbf16, #tpu.memory_space<vmem>>, vector<32x256xbf16>
    tpu.vector_store %arg12[%c192, %c0_22], %41 {strides = array<i32>} : memref<1568x256xbf16, #tpu.memory_space<vmem>>, vector<32x256xbf16>,
    %c0_23 = arith.constant 0 : index
    %c16 = arith.constant 16 : index
    %43 = vector.load %arg11[%c0_23, %c16] : memref<32x384xbf16, #tpu.memory_space<vmem>>, vector<32x256xbf16>
    %44 = vector.extract_strided_slice %7 {offsets = [0, 0], sizes = [1, 256], strides = [1, 1]} : vector<7x256xbf16> to vector<1x256xbf16>
    %45 = vector.broadcast %44 : vector<1x256xbf16> to vector<32x256xbf16>
    %46 = arith.mulf %43, %45 : vector<32x256xbf16>
    %c224 = arith.constant 224 : index
    %c0_24 = arith.constant 0 : index
    %47 = vector.load %arg12[%c224, %c0_24] : memref<1568x256xbf16, #tpu.memory_space<vmem>>, vector<32x256xbf16>
    tpu.vector_store %arg12[%c224, %c0_24], %46 {strides = array<i32>} : memref<1568x256xbf16, #tpu.memory_space<vmem>>, vector<32x256xbf16>,
    %c0_25 = arith.constant 0 : index
    %c17 = arith.constant 17 : index
    %48 = vector.load %arg11[%c0_25, %c17] : memref<32x384xbf16, #tpu.memory_space<vmem>>, vector<32x256xbf16>
    %49 = vector.extract_strided_slice %7 {offsets = [1, 0], sizes = [1, 256], strides = [1, 1]} : vector<7x256xbf16> to vector<1x256xbf16>
    %50 = vector.broadcast %49 : vector<1x256xbf16> to vector<32x256xbf16>
    %51 = arith.mulf %48, %50 : vector<32x256xbf16>
    %c256 = arith.constant 256 : index
    %c0_26 = arith.constant 0 : index
    %52 = vector.load %arg12[%c256, %c0_26] : memref<1568x256xbf16, #tpu.memory_space<vmem>>, vector<32x256xbf16>
    tpu.vector_store %arg12[%c256, %c0_26], %51 {strides = array<i32>} : memref<1568x256xbf16, #tpu.memory_space<vmem>>, vector<32x256xbf16>,
    %c0_27 = arith.constant 0 : index
    %c18 = arith.constant 18 : index
    %53 = vector.load %arg11[%c0_27, %c18] : memref<32x384xbf16, #tpu.memory_space<vmem>>, vector<32x256xbf16>
    %54 = vector.extract_strided_slice %7 {offsets = [2, 0], sizes = [1, 256], strides = [1, 1]} : vector<7x256xbf16> to vector<1x256xbf16>
    %55 = vector.broadcast %54 : vector<1x256xbf16> to vector<32x256xbf16>
    %56 = arith.mulf %53, %55 : vector<32x256xbf16>
    %c288 = arith.constant 288 : index
    %c0_28 = arith.constant 0 : index
    %57 = vector.load %arg12[%c288, %c0_28] : memref<1568x256xbf16, #tpu.memory_space<vmem>>, vector<32x256xbf16>
    tpu.vector_store %arg12[%c288, %c0_28], %56 {strides = array<i32>} : memref<1568x256xbf16, #tpu.memory_space<vmem>>, vector<32x256xbf16>,
    %c0_29 = arith.constant 0 : index
    %c19 = arith.constant 19 : index
    %58 = vector.load %arg11[%c0_29, %c19] : memref<32x384xbf16, #tpu.memory_space<vmem>>, vector<32x256xbf16>
    %59 = vector.extract_strided_slice %7 {offsets = [3, 0], sizes = [1, 256], strides = [1, 1]} : vector<7x256xbf16> to vector<1x256xbf16>
    %60 = vector.broadcast %59 : vector<1x256xbf16> to vector<32x256xbf16>
    %61 = arith.mulf %58, %60 : vector<32x256xbf16>
    %c320 = arith.constant 320 : index
    %c0_30 = arith.constant 0 : index
    %62 = vector.load %arg12[%c320, %c0_30] : memref<1568x256xbf16, #tpu.memory_space<vmem>>, vector<32x256xbf16>
    tpu.vector_store %arg12[%c320, %c0_30], %61 {strides = array<i32>} : memref<1568x256xbf16, #tpu.memory_space<vmem>>, vector<32x256xbf16>,
    %c0_31 = arith.constant 0 : index
    %c20 = arith.constant 20 : index
    %63 = vector.load %arg11[%c0_31, %c20] : memref<32x384xbf16, #tpu.memory_space<vmem>>, vector<32x256xbf16>
    %64 = vector.extract_strided_slice %7 {offsets = [4, 0], sizes = [1, 256], strides = [1, 1]} : vector<7x256xbf16> to vector<1x256xbf16>
    %65 = vector.broadcast %64 : vector<1x256xbf16> to vector<32x256xbf16>
    %66 = arith.mulf %63, %65 : vector<32x256xbf16>
    %c352 = arith.constant 352 : index
    %c0_32 = arith.constant 0 : index
    %67 = vector.load %arg12[%c352, %c0_32] : memref<1568x256xbf16, #tpu.memory_space<vmem>>, vector<32x256xbf16>
    tpu.vector_store %arg12[%c352, %c0_32], %66 {strides = array<i32>} : memref<1568x256xbf16, #tpu.memory_space<vmem>>, vector<32x256xbf16>,
    %c0_33 = arith.constant 0 : index
    %c21 = arith.constant 21 : index
    %68 = vector.load %arg11[%c0_33, %c21] : memref<32x384xbf16, #tpu.memory_space<vmem>>, vector<32x256xbf16>
    %69 = vector.extract_strided_slice %7 {offsets = [5, 0], sizes = [1, 256], strides = [1, 1]} : vector<7x256xbf16> to vector<1x256xbf16>
    %70 = vector.broadcast %69 : vector<1x256xbf16> to vector<32x256xbf16>
    %71 = arith.mulf %68, %70 : vector<32x256xbf16>
    %c384 = arith.constant 384 : index
    %c0_34 = arith.constant 0 : index
    %72 = vector.load %arg12[%c384, %c0_34] : memref<1568x256xbf16, #tpu.memory_space<vmem>>, vector<32x256xbf16>
    tpu.vector_store %arg12[%c384, %c0_34], %71 {strides = array<i32>} : memref<1568x256xbf16, #tpu.memory_space<vmem>>, vector<32x256xbf16>,
    %c0_35 = arith.constant 0 : index
    %c22 = arith.constant 22 : index
    %73 = vector.load %arg11[%c0_35, %c22] : memref<32x384xbf16, #tpu.memory_space<vmem>>, vector<32x256xbf16>
    %74 = vector.extract_strided_slice %7 {offsets = [6, 0], sizes = [1, 256], strides = [1, 1]} : vector<7x256xbf16> to vector<1x256xbf16>
    %75 = vector.broadcast %74 : vector<1x256xbf16> to vector<32x256xbf16>
    %76 = arith.mulf %73, %75 : vector<32x256xbf16>
    %c416 = arith.constant 416 : index
    %c0_36 = arith.constant 0 : index
    %77 = vector.load %arg12[%c416, %c0_36] : memref<1568x256xbf16, #tpu.memory_space<vmem>>, vector<32x256xbf16>
    tpu.vector_store %arg12[%c416, %c0_36], %76 {strides = array<i32>} : memref<1568x256xbf16, #tpu.memory_space<vmem>>, vector<32x256xbf16>,
    %c0_37 = arith.constant 0 : index
    %c32_38 = arith.constant 32 : index
    %78 = vector.load %arg11[%c0_37, %c32_38] : memref<32x384xbf16, #tpu.memory_space<vmem>>, vector<32x256xbf16>
    %79 = vector.extract_strided_slice %7 {offsets = [0, 0], sizes = [1, 256], strides = [1, 1]} : vector<7x256xbf16> to vector<1x256xbf16>
    %80 = vector.broadcast %79 : vector<1x256xbf16> to vector<32x256xbf16>
    %81 = arith.mulf %78, %80 : vector<32x256xbf16>
    %c448 = arith.constant 448 : index
    %c0_39 = arith.constant 0 : index
    %82 = vector.load %arg12[%c448, %c0_39] : memref<1568x256xbf16, #tpu.memory_space<vmem>>, vector<32x256xbf16>
    tpu.vector_store %arg12[%c448, %c0_39], %81 {strides = array<i32>} : memref<1568x256xbf16, #tpu.memory_space<vmem>>, vector<32x256xbf16>,
    %c0_40 = arith.constant 0 : index
    %c33 = arith.constant 33 : index
    %83 = vector.load %arg11[%c0_40, %c33] : memref<32x384xbf16, #tpu.memory_space<vmem>>, vector<32x256xbf16>
    %84 = vector.extract_strided_slice %7 {offsets = [1, 0], sizes = [1, 256], strides = [1, 1]} : vector<7x256xbf16> to vector<1x256xbf16>
    %85 = vector.broadcast %84 : vector<1x256xbf16> to vector<32x256xbf16>
    %86 = arith.mulf %83, %85 : vector<32x256xbf16>
    %c480 = arith.constant 480 : index
    %c0_41 = arith.constant 0 : index
    %87 = vector.load %arg12[%c480, %c0_41] : memref<1568x256xbf16, #tpu.memory_space<vmem>>, vector<32x256xbf16>
    tpu.vector_store %arg12[%c480, %c0_41], %86 {strides = array<i32>} : memref<1568x256xbf16, #tpu.memory_space<vmem>>, vector<32x256xbf16>,
    %c0_42 = arith.constant 0 : index
    %c34 = arith.constant 34 : index
    %88 = vector.load %arg11[%c0_42, %c34] : memref<32x384xbf16, #tpu.memory_space<vmem>>, vector<32x256xbf16>
    %89 = vector.extract_strided_slice %7 {offsets = [2, 0], sizes = [1, 256], strides = [1, 1]} : vector<7x256xbf16> to vector<1x256xbf16>
    %90 = vector.broadcast %89 : vector<1x256xbf16> to vector<32x256xbf16>
    %91 = arith.mulf %88, %90 : vector<32x256xbf16>
    %c512 = arith.constant 512 : index
    %c0_43 = arith.constant 0 : index
    %92 = vector.load %arg12[%c512, %c0_43] : memref<1568x256xbf16, #tpu.memory_space<vmem>>, vector<32x256xbf16>
    tpu.vector_store %arg12[%c512, %c0_43], %91 {strides = array<i32>} : memref<1568x256xbf16, #tpu.memory_space<vmem>>, vector<32x256xbf16>,
    %c0_44 = arith.constant 0 : index
    %c35 = arith.constant 35 : index
    %93 = vector.load %arg11[%c0_44, %c35] : memref<32x384xbf16, #tpu.memory_space<vmem>>, vector<32x256xbf16>
    %94 = vector.extract_strided_slice %7 {offsets = [3, 0], sizes = [1, 256], strides = [1, 1]} : vector<7x256xbf16> to vector<1x256xbf16>
    %95 = vector.broadcast %94 : vector<1x256xbf16> to vector<32x256xbf16>
    %96 = arith.mulf %93, %95 : vector<32x256xbf16>
    %c544 = arith.constant 544 : index
    %c0_45 = arith.constant 0 : index
    %97 = vector.load %arg12[%c544, %c0_45] : memref<1568x256xbf16, #tpu.memory_space<vmem>>, vector<32x256xbf16>
    tpu.vector_store %arg12[%c544, %c0_45], %96 {strides = array<i32>} : memref<1568x256xbf16, #tpu.memory_space<vmem>>, vector<32x256xbf16>,
    %c0_46 = arith.constant 0 : index
    %c36 = arith.constant 36 : index
    %98 = vector.load %arg11[%c0_46, %c36] : memref<32x384xbf16, #tpu.memory_space<vmem>>, vector<32x256xbf16>
    %99 = vector.extract_strided_slice %7 {offsets = [4, 0], sizes = [1, 256], strides = [1, 1]} : vector<7x256xbf16> to vector<1x256xbf16>
    %100 = vector.broadcast %99 : vector<1x256xbf16> to vector<32x256xbf16>
    %101 = arith.mulf %98, %100 : vector<32x256xbf16>
    %c576 = arith.constant 576 : index
    %c0_47 = arith.constant 0 : index
    %102 = vector.load %arg12[%c576, %c0_47] : memref<1568x256xbf16, #tpu.memory_space<vmem>>, vector<32x256xbf16>
    tpu.vector_store %arg12[%c576, %c0_47], %101 {strides = array<i32>} : memref<1568x256xbf16, #tpu.memory_space<vmem>>, vector<32x256xbf16>,
    %c0_48 = arith.constant 0 : index
    %c37 = arith.constant 37 : index
    %103 = vector.load %arg11[%c0_48, %c37] : memref<32x384xbf16, #tpu.memory_space<vmem>>, vector<32x256xbf16>
    %104 = vector.extract_strided_slice %7 {offsets = [5, 0], sizes = [1, 256], strides = [1, 1]} : vector<7x256xbf16> to vector<1x256xbf16>
    %105 = vector.broadcast %104 : vector<1x256xbf16> to vector<32x256xbf16>
    %106 = arith.mulf %103, %105 : vector<32x256xbf16>
    %c608 = arith.constant 608 : index
    %c0_49 = arith.constant 0 : index
    %107 = vector.load %arg12[%c608, %c0_49] : memref<1568x256xbf16, #tpu.memory_space<vmem>>, vector<32x256xbf16>
    tpu.vector_store %arg12[%c608, %c0_49], %106 {strides = array<i32>} : memref<1568x256xbf16, #tpu.memory_space<vmem>>, vector<32x256xbf16>,
    %c0_50 = arith.constant 0 : index
    %c38 = arith.constant 38 : index
    %108 = vector.load %arg11[%c0_50, %c38] : memref<32x384xbf16, #tpu.memory_space<vmem>>, vector<32x256xbf16>
    %109 = vector.extract_strided_slice %7 {offsets = [6, 0], sizes = [1, 256], strides = [1, 1]} : vector<7x256xbf16> to vector<1x256xbf16>
    %110 = vector.broadcast %109 : vector<1x256xbf16> to vector<32x256xbf16>
    %111 = arith.mulf %108, %110 : vector<32x256xbf16>
    %c640 = arith.constant 640 : index
    %c0_51 = arith.constant 0 : index
    %112 = vector.load %arg12[%c640, %c0_51] : memref<1568x256xbf16, #tpu.memory_space<vmem>>, vector<32x256xbf16>
    tpu.vector_store %arg12[%c640, %c0_51], %111 {strides = array<i32>} : memref<1568x256xbf16, #tpu.memory_space<vmem>>, vector<32x256xbf16>,
    %c0_52 = arith.constant 0 : index
    %c48 = arith.constant 48 : index
    %113 = vector.load %arg11[%c0_52, %c48] : memref<32x384xbf16, #tpu.memory_space<vmem>>, vector<32x256xbf16>
    %114 = vector.extract_strided_slice %7 {offsets = [0, 0], sizes = [1, 256], strides = [1, 1]} : vector<7x256xbf16> to vector<1x256xbf16>
    %115 = vector.broadcast %114 : vector<1x256xbf16> to vector<32x256xbf16>
    %116 = arith.mulf %113, %115 : vector<32x256xbf16>
    %c672 = arith.constant 672 : index
    %c0_53 = arith.constant 0 : index
    %117 = vector.load %arg12[%c672, %c0_53] : memref<1568x256xbf16, #tpu.memory_space<vmem>>, vector<32x256xbf16>
    tpu.vector_store %arg12[%c672, %c0_53], %116 {strides = array<i32>} : memref<1568x256xbf16, #tpu.memory_space<vmem>>, vector<32x256xbf16>,
    %c0_54 = arith.constant 0 : index
    %c49 = arith.constant 49 : index
    %118 = vector.load %arg11[%c0_54, %c49] : memref<32x384xbf16, #tpu.memory_space<vmem>>, vector<32x256xbf16>
    %119 = vector.extract_strided_slice %7 {offsets = [1, 0], sizes = [1, 256], strides = [1, 1]} : vector<7x256xbf16> to vector<1x256xbf16>
    %120 = vector.broadcast %119 : vector<1x256xbf16> to vector<32x256xbf16>
    %121 = arith.mulf %118, %120 : vector<32x256xbf16>
    %c704 = arith.constant 704 : index
    %c0_55 = arith.constant 0 : index
    %122 = vector.load %arg12[%c704, %c0_55] : memref<1568x256xbf16, #tpu.memory_space<vmem>>, vector<32x256xbf16>
    tpu.vector_store %arg12[%c704, %c0_55], %121 {strides = array<i32>} : memref<1568x256xbf16, #tpu.memory_space<vmem>>, vector<32x256xbf16>,
    %c0_56 = arith.constant 0 : index
    %c50 = arith.constant 50 : index
    %123 = vector.load %arg11[%c0_56, %c50] : memref<32x384xbf16, #tpu.memory_space<vmem>>, vector<32x256xbf16>
    %124 = vector.extract_strided_slice %7 {offsets = [2, 0], sizes = [1, 256], strides = [1, 1]} : vector<7x256xbf16> to vector<1x256xbf16>
    %125 = vector.broadcast %124 : vector<1x256xbf16> to vector<32x256xbf16>
    %126 = arith.mulf %123, %125 : vector<32x256xbf16>
    %c736 = arith.constant 736 : index
    %c0_57 = arith.constant 0 : index
    %127 = vector.load %arg12[%c736, %c0_57] : memref<1568x256xbf16, #tpu.memory_space<vmem>>, vector<32x256xbf16>
    tpu.vector_store %arg12[%c736, %c0_57], %126 {strides = array<i32>} : memref<1568x256xbf16, #tpu.memory_space<vmem>>, vector<32x256xbf16>,
    %c0_58 = arith.constant 0 : index
    %c51_59 = arith.constant 51 : index
    %128 = vector.load %arg11[%c0_58, %c51_59] : memref<32x384xbf16, #tpu.memory_space<vmem>>, vector<32x256xbf16>
    %129 = vector.extract_strided_slice %7 {offsets = [3, 0], sizes = [1, 256], strides = [1, 1]} : vector<7x256xbf16> to vector<1x256xbf16>
    %130 = vector.broadcast %129 : vector<1x256xbf16> to vector<32x256xbf16>
    %131 = arith.mulf %128, %130 : vector<32x256xbf16>
    %c768 = arith.constant 768 : index
    %c0_60 = arith.constant 0 : index
    %132 = vector.load %arg12[%c768, %c0_60] : memref<1568x256xbf16, #tpu.memory_space<vmem>>, vector<32x256xbf16>
    tpu.vector_store %arg12[%c768, %c0_60], %131 {strides = array<i32>} : memref<1568x256xbf16, #tpu.memory_space<vmem>>, vector<32x256xbf16>,
    %c0_61 = arith.constant 0 : index
    %c52 = arith.constant 52 : index
    %133 = vector.load %arg11[%c0_61, %c52] : memref<32x384xbf16, #tpu.memory_space<vmem>>, vector<32x256xbf16>
    %134 = vector.extract_strided_slice %7 {offsets = [4, 0], sizes = [1, 256], strides = [1, 1]} : vector<7x256xbf16> to vector<1x256xbf16>
    %135 = vector.broadcast %134 : vector<1x256xbf16> to vector<32x256xbf16>
    %136 = arith.mulf %133, %135 : vector<32x256xbf16>
    %c800 = arith.constant 800 : index
    %c0_62 = arith.constant 0 : index
    %137 = vector.load %arg12[%c800, %c0_62] : memref<1568x256xbf16, #tpu.memory_space<vmem>>, vector<32x256xbf16>
    tpu.vector_store %arg12[%c800, %c0_62], %136 {strides = array<i32>} : memref<1568x256xbf16, #tpu.memory_space<vmem>>, vector<32x256xbf16>,
    %c0_63 = arith.constant 0 : index
    %c53 = arith.constant 53 : index
    %138 = vector.load %arg11[%c0_63, %c53] : memref<32x384xbf16, #tpu.memory_space<vmem>>, vector<32x256xbf16>
    %139 = vector.extract_strided_slice %7 {offsets = [5, 0], sizes = [1, 256], strides = [1, 1]} : vector<7x256xbf16> to vector<1x256xbf16>
    %140 = vector.broadcast %139 : vector<1x256xbf16> to vector<32x256xbf16>
    %141 = arith.mulf %138, %140 : vector<32x256xbf16>
    %c832 = arith.constant 832 : index
    %c0_64 = arith.constant 0 : index
    %142 = vector.load %arg12[%c832, %c0_64] : memref<1568x256xbf16, #tpu.memory_space<vmem>>, vector<32x256xbf16>
    tpu.vector_store %arg12[%c832, %c0_64], %141 {strides = array<i32>} : memref<1568x256xbf16, #tpu.memory_space<vmem>>, vector<32x256xbf16>,
    %c0_65 = arith.constant 0 : index
    %c54 = arith.constant 54 : index
    %143 = vector.load %arg11[%c0_65, %c54] : memref<32x384xbf16, #tpu.memory_space<vmem>>, vector<32x256xbf16>
    %144 = vector.extract_strided_slice %7 {offsets = [6, 0], sizes = [1, 256], strides = [1, 1]} : vector<7x256xbf16> to vector<1x256xbf16>
    %145 = vector.broadcast %144 : vector<1x256xbf16> to vector<32x256xbf16>
    %146 = arith.mulf %143, %145 : vector<32x256xbf16>
    %c864 = arith.constant 864 : index
    %c0_66 = arith.constant 0 : index
    %147 = vector.load %arg12[%c864, %c0_66] : memref<1568x256xbf16, #tpu.memory_space<vmem>>, vector<32x256xbf16>
    tpu.vector_store %arg12[%c864, %c0_66], %146 {strides = array<i32>} : memref<1568x256xbf16, #tpu.memory_space<vmem>>, vector<32x256xbf16>,
    %c0_67 = arith.constant 0 : index
    %c64_68 = arith.constant 64 : index
    %148 = vector.load %arg11[%c0_67, %c64_68] : memref<32x384xbf16, #tpu.memory_space<vmem>>, vector<32x256xbf16>
    %149 = vector.extract_strided_slice %7 {offsets = [0, 0], sizes = [1, 256], strides = [1, 1]} : vector<7x256xbf16> to vector<1x256xbf16>
    %150 = vector.broadcast %149 : vector<1x256xbf16> to vector<32x256xbf16>
    %151 = arith.mulf %148, %150 : vector<32x256xbf16>
    %c896 = arith.constant 896 : index
    %c0_69 = arith.constant 0 : index
    %152 = vector.load %arg12[%c896, %c0_69] : memref<1568x256xbf16, #tpu.memory_space<vmem>>, vector<32x256xbf16>
    tpu.vector_store %arg12[%c896, %c0_69], %151 {strides = array<i32>} : memref<1568x256xbf16, #tpu.memory_space<vmem>>, vector<32x256xbf16>,
    %c0_70 = arith.constant 0 : index
    %c65 = arith.constant 65 : index
    %153 = vector.load %arg11[%c0_70, %c65] : memref<32x384xbf16, #tpu.memory_space<vmem>>, vector<32x256xbf16>
    %154 = vector.extract_strided_slice %7 {offsets = [1, 0], sizes = [1, 256], strides = [1, 1]} : vector<7x256xbf16> to vector<1x256xbf16>
    %155 = vector.broadcast %154 : vector<1x256xbf16> to vector<32x256xbf16>
    %156 = arith.mulf %153, %155 : vector<32x256xbf16>
    %c928 = arith.constant 928 : index
    %c0_71 = arith.constant 0 : index
    %157 = vector.load %arg12[%c928, %c0_71] : memref<1568x256xbf16, #tpu.memory_space<vmem>>, vector<32x256xbf16>
    tpu.vector_store %arg12[%c928, %c0_71], %156 {strides = array<i32>} : memref<1568x256xbf16, #tpu.memory_space<vmem>>, vector<32x256xbf16>,
    %c0_72 = arith.constant 0 : index
    %c66 = arith.constant 66 : index
    %158 = vector.load %arg11[%c0_72, %c66] : memref<32x384xbf16, #tpu.memory_space<vmem>>, vector<32x256xbf16>
    %159 = vector.extract_strided_slice %7 {offsets = [2, 0], sizes = [1, 256], strides = [1, 1]} : vector<7x256xbf16> to vector<1x256xbf16>
    %160 = vector.broadcast %159 : vector<1x256xbf16> to vector<32x256xbf16>
    %161 = arith.mulf %158, %160 : vector<32x256xbf16>
    %c960 = arith.constant 960 : index
    %c0_73 = arith.constant 0 : index
    %162 = vector.load %arg12[%c960, %c0_73] : memref<1568x256xbf16, #tpu.memory_space<vmem>>, vector<32x256xbf16>
    tpu.vector_store %arg12[%c960, %c0_73], %161 {strides = array<i32>} : memref<1568x256xbf16, #tpu.memory_space<vmem>>, vector<32x256xbf16>,
    %c0_74 = arith.constant 0 : index
    %c67 = arith.constant 67 : index
    %163 = vector.load %arg11[%c0_74, %c67] : memref<32x384xbf16, #tpu.memory_space<vmem>>, vector<32x256xbf16>
    %164 = vector.extract_strided_slice %7 {offsets = [3, 0], sizes = [1, 256], strides = [1, 1]} : vector<7x256xbf16> to vector<1x256xbf16>
    %165 = vector.broadcast %164 : vector<1x256xbf16> to vector<32x256xbf16>
    %166 = arith.mulf %163, %165 : vector<32x256xbf16>
    %c992 = arith.constant 992 : index
    %c0_75 = arith.constant 0 : index
    %167 = vector.load %arg12[%c992, %c0_75] : memref<1568x256xbf16, #tpu.memory_space<vmem>>, vector<32x256xbf16>
    tpu.vector_store %arg12[%c992, %c0_75], %166 {strides = array<i32>} : memref<1568x256xbf16, #tpu.memory_space<vmem>>, vector<32x256xbf16>,
    %c0_76 = arith.constant 0 : index
    %c68 = arith.constant 68 : index
    %168 = vector.load %arg11[%c0_76, %c68] : memref<32x384xbf16, #tpu.memory_space<vmem>>, vector<32x256xbf16>
    %169 = vector.extract_strided_slice %7 {offsets = [4, 0], sizes = [1, 256], strides = [1, 1]} : vector<7x256xbf16> to vector<1x256xbf16>
    %170 = vector.broadcast %169 : vector<1x256xbf16> to vector<32x256xbf16>
    %171 = arith.mulf %168, %170 : vector<32x256xbf16>
    %c1024 = arith.constant 1024 : index
    %c0_77 = arith.constant 0 : index
    %172 = vector.load %arg12[%c1024, %c0_77] : memref<1568x256xbf16, #tpu.memory_space<vmem>>, vector<32x256xbf16>
    tpu.vector_store %arg12[%c1024, %c0_77], %171 {strides = array<i32>} : memref<1568x256xbf16, #tpu.memory_space<vmem>>, vector<32x256xbf16>,
    %c0_78 = arith.constant 0 : index
    %c69 = arith.constant 69 : index
    %173 = vector.load %arg11[%c0_78, %c69] : memref<32x384xbf16, #tpu.memory_space<vmem>>, vector<32x256xbf16>
    %174 = vector.extract_strided_slice %7 {offsets = [5, 0], sizes = [1, 256], strides = [1, 1]} : vector<7x256xbf16> to vector<1x256xbf16>
    %175 = vector.broadcast %174 : vector<1x256xbf16> to vector<32x256xbf16>
    %176 = arith.mulf %173, %175 : vector<32x256xbf16>
    %c1056 = arith.constant 1056 : index
    %c0_79 = arith.constant 0 : index
    %177 = vector.load %arg12[%c1056, %c0_79] : memref<1568x256xbf16, #tpu.memory_space<vmem>>, vector<32x256xbf16>
    tpu.vector_store %arg12[%c1056, %c0_79], %176 {strides = array<i32>} : memref<1568x256xbf16, #tpu.memory_space<vmem>>, vector<32x256xbf16>,
    %c0_80 = arith.constant 0 : index
    %c70 = arith.constant 70 : index
    %178 = vector.load %arg11[%c0_80, %c70] : memref<32x384xbf16, #tpu.memory_space<vmem>>, vector<32x256xbf16>
    %179 = vector.extract_strided_slice %7 {offsets = [6, 0], sizes = [1, 256], strides = [1, 1]} : vector<7x256xbf16> to vector<1x256xbf16>
    %180 = vector.broadcast %179 : vector<1x256xbf16> to vector<32x256xbf16>
    %181 = arith.mulf %178, %180 : vector<32x256xbf16>
    %c1088 = arith.constant 1088 : index
    %c0_81 = arith.constant 0 : index
    %182 = vector.load %arg12[%c1088, %c0_81] : memref<1568x256xbf16, #tpu.memory_space<vmem>>, vector<32x256xbf16>
    tpu.vector_store %arg12[%c1088, %c0_81], %181 {strides = array<i32>} : memref<1568x256xbf16, #tpu.memory_space<vmem>>, vector<32x256xbf16>,
    %c0_82 = arith.constant 0 : index
    %c80 = arith.constant 80 : index
    %183 = vector.load %arg11[%c0_82, %c80] : memref<32x384xbf16, #tpu.memory_space<vmem>>, vector<32x256xbf16>
    %184 = vector.extract_strided_slice %7 {offsets = [0, 0], sizes = [1, 256], strides = [1, 1]} : vector<7x256xbf16> to vector<1x256xbf16>
    %185 = vector.broadcast %184 : vector<1x256xbf16> to vector<32x256xbf16>
    %186 = arith.mulf %183, %185 : vector<32x256xbf16>
    %c1120 = arith.constant 1120 : index
    %c0_83 = arith.constant 0 : index
    %187 = vector.load %arg12[%c1120, %c0_83] : memref<1568x256xbf16, #tpu.memory_space<vmem>>, vector<32x256xbf16>
    tpu.vector_store %arg12[%c1120, %c0_83], %186 {strides = array<i32>} : memref<1568x256xbf16, #tpu.memory_space<vmem>>, vector<32x256xbf16>,
    %c0_84 = arith.constant 0 : index
    %c81 = arith.constant 81 : index
    %188 = vector.load %arg11[%c0_84, %c81] : memref<32x384xbf16, #tpu.memory_space<vmem>>, vector<32x256xbf16>
    %189 = vector.extract_strided_slice %7 {offsets = [1, 0], sizes = [1, 256], strides = [1, 1]} : vector<7x256xbf16> to vector<1x256xbf16>
    %190 = vector.broadcast %189 : vector<1x256xbf16> to vector<32x256xbf16>
    %191 = arith.mulf %188, %190 : vector<32x256xbf16>
    %c1152 = arith.constant 1152 : index
    %c0_85 = arith.constant 0 : index
    %192 = vector.load %arg12[%c1152, %c0_85] : memref<1568x256xbf16, #tpu.memory_space<vmem>>, vector<32x256xbf16>
    tpu.vector_store %arg12[%c1152, %c0_85], %191 {strides = array<i32>} : memref<1568x256xbf16, #tpu.memory_space<vmem>>, vector<32x256xbf16>,
    %c0_86 = arith.constant 0 : index
    %c82 = arith.constant 82 : index
    %193 = vector.load %arg11[%c0_86, %c82] : memref<32x384xbf16, #tpu.memory_space<vmem>>, vector<32x256xbf16>
    %194 = vector.extract_strided_slice %7 {offsets = [2, 0], sizes = [1, 256], strides = [1, 1]} : vector<7x256xbf16> to vector<1x256xbf16>
    %195 = vector.broadcast %194 : vector<1x256xbf16> to vector<32x256xbf16>
    %196 = arith.mulf %193, %195 : vector<32x256xbf16>
    %c1184 = arith.constant 1184 : index
    %c0_87 = arith.constant 0 : index
    %197 = vector.load %arg12[%c1184, %c0_87] : memref<1568x256xbf16, #tpu.memory_space<vmem>>, vector<32x256xbf16>
    tpu.vector_store %arg12[%c1184, %c0_87], %196 {strides = array<i32>} : memref<1568x256xbf16, #tpu.memory_space<vmem>>, vector<32x256xbf16>,
    %c0_88 = arith.constant 0 : index
    %c83 = arith.constant 83 : index
    %198 = vector.load %arg11[%c0_88, %c83] : memref<32x384xbf16, #tpu.memory_space<vmem>>, vector<32x256xbf16>
    %199 = vector.extract_strided_slice %7 {offsets = [3, 0], sizes = [1, 256], strides = [1, 1]} : vector<7x256xbf16> to vector<1x256xbf16>
    %200 = vector.broadcast %199 : vector<1x256xbf16> to vector<32x256xbf16>
    %201 = arith.mulf %198, %200 : vector<32x256xbf16>
    %c1216 = arith.constant 1216 : index
    %c0_89 = arith.constant 0 : index
    %202 = vector.load %arg12[%c1216, %c0_89] : memref<1568x256xbf16, #tpu.memory_space<vmem>>, vector<32x256xbf16>
    tpu.vector_store %arg12[%c1216, %c0_89], %201 {strides = array<i32>} : memref<1568x256xbf16, #tpu.memory_space<vmem>>, vector<32x256xbf16>,
    %c0_90 = arith.constant 0 : index
    %c84 = arith.constant 84 : index
    %203 = vector.load %arg11[%c0_90, %c84] : memref<32x384xbf16, #tpu.memory_space<vmem>>, vector<32x256xbf16>
    %204 = vector.extract_strided_slice %7 {offsets = [4, 0], sizes = [1, 256], strides = [1, 1]} : vector<7x256xbf16> to vector<1x256xbf16>
    %205 = vector.broadcast %204 : vector<1x256xbf16> to vector<32x256xbf16>
    %206 = arith.mulf %203, %205 : vector<32x256xbf16>
    %c1248 = arith.constant 1248 : index
    %c0_91 = arith.constant 0 : index
    %207 = vector.load %arg12[%c1248, %c0_91] : memref<1568x256xbf16, #tpu.memory_space<vmem>>, vector<32x256xbf16>
    tpu.vector_store %arg12[%c1248, %c0_91], %206 {strides = array<i32>} : memref<1568x256xbf16, #tpu.memory_space<vmem>>, vector<32x256xbf16>,
    %c0_92 = arith.constant 0 : index
    %c85 = arith.constant 85 : index
    %208 = vector.load %arg11[%c0_92, %c85] : memref<32x384xbf16, #tpu.memory_space<vmem>>, vector<32x256xbf16>
    %209 = vector.extract_strided_slice %7 {offsets = [5, 0], sizes = [1, 256], strides = [1, 1]} : vector<7x256xbf16> to vector<1x256xbf16>
    %210 = vector.broadcast %209 : vector<1x256xbf16> to vector<32x256xbf16>
    %211 = arith.mulf %208, %210 : vector<32x256xbf16>
    %c1280 = arith.constant 1280 : index
    %c0_93 = arith.constant 0 : index
    %212 = vector.load %arg12[%c1280, %c0_93] : memref<1568x256xbf16, #tpu.memory_space<vmem>>, vector<32x256xbf16>
    tpu.vector_store %arg12[%c1280, %c0_93], %211 {strides = array<i32>} : memref<1568x256xbf16, #tpu.memory_space<vmem>>, vector<32x256xbf16>,
    %c0_94 = arith.constant 0 : index
    %c86 = arith.constant 86 : index
    %213 = vector.load %arg11[%c0_94, %c86] : memref<32x384xbf16, #tpu.memory_space<vmem>>, vector<32x256xbf16>
    %214 = vector.extract_strided_slice %7 {offsets = [6, 0], sizes = [1, 256], strides = [1, 1]} : vector<7x256xbf16> to vector<1x256xbf16>
    %215 = vector.broadcast %214 : vector<1x256xbf16> to vector<32x256xbf16>
    %216 = arith.mulf %213, %215 : vector<32x256xbf16>
    %c1312 = arith.constant 1312 : index
    %c0_95 = arith.constant 0 : index
    %217 = vector.load %arg12[%c1312, %c0_95] : memref<1568x256xbf16, #tpu.memory_space<vmem>>, vector<32x256xbf16>
    tpu.vector_store %arg12[%c1312, %c0_95], %216 {strides = array<i32>} : memref<1568x256xbf16, #tpu.memory_space<vmem>>, vector<32x256xbf16>,
    %c0_96 = arith.constant 0 : index
    %c96_97 = arith.constant 96 : index
    %218 = vector.load %arg11[%c0_96, %c96_97] : memref<32x384xbf16, #tpu.memory_space<vmem>>, vector<32x256xbf16>
    %219 = vector.extract_strided_slice %7 {offsets = [0, 0], sizes = [1, 256], strides = [1, 1]} : vector<7x256xbf16> to vector<1x256xbf16>
    %220 = vector.broadcast %219 : vector<1x256xbf16> to vector<32x256xbf16>
    %221 = arith.mulf %218, %220 : vector<32x256xbf16>
    %c1344 = arith.constant 1344 : index
    %c0_98 = arith.constant 0 : index
    %222 = vector.load %arg12[%c1344, %c0_98] : memref<1568x256xbf16, #tpu.memory_space<vmem>>, vector<32x256xbf16>
    tpu.vector_store %arg12[%c1344, %c0_98], %221 {strides = array<i32>} : memref<1568x256xbf16, #tpu.memory_space<vmem>>, vector<32x256xbf16>,
    %c0_99 = arith.constant 0 : index
    %c97 = arith.constant 97 : index
    %223 = vector.load %arg11[%c0_99, %c97] : memref<32x384xbf16, #tpu.memory_space<vmem>>, vector<32x256xbf16>
    %224 = vector.extract_strided_slice %7 {offsets = [1, 0], sizes = [1, 256], strides = [1, 1]} : vector<7x256xbf16> to vector<1x256xbf16>
    %225 = vector.broadcast %224 : vector<1x256xbf16> to vector<32x256xbf16>
    %226 = arith.mulf %223, %225 : vector<32x256xbf16>
    %c1376 = arith.constant 1376 : index
    %c0_100 = arith.constant 0 : index
    %227 = vector.load %arg12[%c1376, %c0_100] : memref<1568x256xbf16, #tpu.memory_space<vmem>>, vector<32x256xbf16>
    tpu.vector_store %arg12[%c1376, %c0_100], %226 {strides = array<i32>} : memref<1568x256xbf16, #tpu.memory_space<vmem>>, vector<32x256xbf16>,
    %c0_101 = arith.constant 0 : index
    %c98 = arith.constant 98 : index
    %228 = vector.load %arg11[%c0_101, %c98] : memref<32x384xbf16, #tpu.memory_space<vmem>>, vector<32x256xbf16>
    %229 = vector.extract_strided_slice %7 {offsets = [2, 0], sizes = [1, 256], strides = [1, 1]} : vector<7x256xbf16> to vector<1x256xbf16>
    %230 = vector.broadcast %229 : vector<1x256xbf16> to vector<32x256xbf16>
    %231 = arith.mulf %228, %230 : vector<32x256xbf16>
    %c1408 = arith.constant 1408 : index
    %c0_102 = arith.constant 0 : index
    %232 = vector.load %arg12[%c1408, %c0_102] : memref<1568x256xbf16, #tpu.memory_space<vmem>>, vector<32x256xbf16>
    tpu.vector_store %arg12[%c1408, %c0_102], %231 {strides = array<i32>} : memref<1568x256xbf16, #tpu.memory_space<vmem>>, vector<32x256xbf16>,
    %c0_103 = arith.constant 0 : index
    %c99 = arith.constant 99 : index
    %233 = vector.load %arg11[%c0_103, %c99] : memref<32x384xbf16, #tpu.memory_space<vmem>>, vector<32x256xbf16>
    %234 = vector.extract_strided_slice %7 {offsets = [3, 0], sizes = [1, 256], strides = [1, 1]} : vector<7x256xbf16> to vector<1x256xbf16>
    %235 = vector.broadcast %234 : vector<1x256xbf16> to vector<32x256xbf16>
    %236 = arith.mulf %233, %235 : vector<32x256xbf16>
    %c1440 = arith.constant 1440 : index
    %c0_104 = arith.constant 0 : index
    %237 = vector.load %arg12[%c1440, %c0_104] : memref<1568x256xbf16, #tpu.memory_space<vmem>>, vector<32x256xbf16>
    tpu.vector_store %arg12[%c1440, %c0_104], %236 {strides = array<i32>} : memref<1568x256xbf16, #tpu.memory_space<vmem>>, vector<32x256xbf16>,
    %c0_105 = arith.constant 0 : index
    %c100 = arith.constant 100 : index
    %238 = vector.load %arg11[%c0_105, %c100] : memref<32x384xbf16, #tpu.memory_space<vmem>>, vector<32x256xbf16>
    %239 = vector.extract_strided_slice %7 {offsets = [4, 0], sizes = [1, 256], strides = [1, 1]} : vector<7x256xbf16> to vector<1x256xbf16>
    %240 = vector.broadcast %239 : vector<1x256xbf16> to vector<32x256xbf16>
    %241 = arith.mulf %238, %240 : vector<32x256xbf16>
    %c1472 = arith.constant 1472 : index
    %c0_106 = arith.constant 0 : index
    %242 = vector.load %arg12[%c1472, %c0_106] : memref<1568x256xbf16, #tpu.memory_space<vmem>>, vector<32x256xbf16>
    tpu.vector_store %arg12[%c1472, %c0_106], %241 {strides = array<i32>} : memref<1568x256xbf16, #tpu.memory_space<vmem>>, vector<32x256xbf16>,
    %c0_107 = arith.constant 0 : index
    %c101 = arith.constant 101 : index
    %243 = vector.load %arg11[%c0_107, %c101] : memref<32x384xbf16, #tpu.memory_space<vmem>>, vector<32x256xbf16>
    %244 = vector.extract_strided_slice %7 {offsets = [5, 0], sizes = [1, 256], strides = [1, 1]} : vector<7x256xbf16> to vector<1x256xbf16>
    %245 = vector.broadcast %244 : vector<1x256xbf16> to vector<32x256xbf16>
    %246 = arith.mulf %243, %245 : vector<32x256xbf16>
    %c1504 = arith.constant 1504 : index
    %c0_108 = arith.constant 0 : index
    %247 = vector.load %arg12[%c1504, %c0_108] : memref<1568x256xbf16, #tpu.memory_space<vmem>>, vector<32x256xbf16>
    tpu.vector_store %arg12[%c1504, %c0_108], %246 {strides = array<i32>} : memref<1568x256xbf16, #tpu.memory_space<vmem>>, vector<32x256xbf16>,
    %c0_109 = arith.constant 0 : index
    %c102 = arith.constant 102 : index
    %248 = vector.load %arg11[%c0_109, %c102] : memref<32x384xbf16, #tpu.memory_space<vmem>>, vector<32x256xbf16>
    %249 = vector.extract_strided_slice %7 {offsets = [6, 0], sizes = [1, 256], strides = [1, 1]} : vector<7x256xbf16> to vector<1x256xbf16>
    %250 = vector.broadcast %249 : vector<1x256xbf16> to vector<32x256xbf16>
    %251 = arith.mulf %248, %250 : vector<32x256xbf16>
    %c1536 = arith.constant 1536 : index
    %c0_110 = arith.constant 0 : index
    %252 = vector.load %arg12[%c1536, %c0_110] : memref<1568x256xbf16, #tpu.memory_space<vmem>>, vector<32x256xbf16>
    tpu.vector_store %arg12[%c1536, %c0_110], %251 {strides = array<i32>} : memref<1568x256xbf16, #tpu.memory_space<vmem>>, vector<32x256xbf16>,
    %c0_111 = arith.constant 0 : index
    %c0_112 = arith.constant 0 : index
    %253 = vector.load %arg2[%c0_111, %c0_112] : memref<32x1568xbf16, #tpu.memory_space<vmem>>, vector<32x1568xbf16>
    %c0_113 = arith.constant 0 : index
    %c0_114 = arith.constant 0 : index
    %254 = vector.load %arg12[%c0_113, %c0_114] : memref<1568x256xbf16, #tpu.memory_space<vmem>>, vector<1568x256xbf16>
    %cst_115 = arith.constant dense<0.000000e+00> : vector<32x256xf32>
    %255 = tpu.matmul %253, %254, %cst_115 {dimension_numbers = #tpu.dot_dimension_numbers<[1], [0], [0], [1], [0, 0, 1, 1], [], []>} : vector<32x1568xbf16>, vector<1568x256xbf16>, vector<32x256xf32> -> vector<32x256xf32>
    %c0_116 = arith.constant 0 : index
    %c0_117 = arith.constant 0 : index
    %256 = vector.load %arg3[%c0_116, %c0_117] : memref<32x256xf32, #tpu.memory_space<vmem>>, vector<32x256xf32>
    %257 = arith.addf %255, %256 : vector<32x256xf32>
    %258 = arith.addf %257, %1 : vector<32x256xf32>
    %cst_118 = arith.constant dense<0.000000e+00> : vector<32xf32>
    %259 = vector.multi_reduction <add>, %258, %cst_118 [1] : vector<32x256xf32> to vector<32xf32>
    %260 = vector.shape_cast %259 : vector<32xf32> to vector<32x1xf32>
    %cst_119 = arith.constant 2.560000e+02 : f32
    %261 = vector.broadcast %cst_119 : f32 to vector<32x1xf32>
    %262 = arith.divf %260, %261 : vector<32x1xf32>
    %cst_120 = arith.constant dense<0xFF800000> : vector<32xf32>
    %263 = vector.multi_reduction <maximumf>, %258, %cst_120 [1] : vector<32x256xf32> to vector<32xf32>
    %264 = vector.shape_cast %263 : vector<32xf32> to vector<32x1xf32>
    %c0_121 = arith.constant 0 : index
    %c0_122 = arith.constant 0 : index
    %265 = vector.load %arg4[%c0_121, %c0_122] : memref<32x2xf32, #tpu.memory_space<vmem>>, vector<32x2xf32>
    %c0_123 = arith.constant 0 : index
    %c0_124 = arith.constant 0 : index
    %266 = vector.load %arg5[%c0_123, %c0_124] : memref<32x2xf32, #tpu.memory_space<vmem>>, vector<32x2xf32>
    %267 = vector.broadcast %262 : vector<32x1xf32> to vector<32x2xf32>
    %268 = arith.mulf %265, %267 : vector<32x2xf32>
    %cst_125 = arith.constant dense<0.000000e+00> : vector<2xf32>
    %269 = vector.multi_reduction <add>, %268, %cst_125 [0] : vector<32x2xf32> to vector<2xf32>
    %270 = vector.shape_cast %269 : vector<2xf32> to vector<1x2xf32>
    %cst_126 = arith.constant 0.000000e+00 : f32
    %271 = vector.broadcast %cst_126 : f32 to vector<1x2xf32>
    %272 = arith.maximumf %270, %271 : vector<1x2xf32>
    %273 = vector.broadcast %264 : vector<32x1xf32> to vector<32x2xf32>
    %274 = arith.mulf %265, %273 : vector<32x2xf32>
    %cst_127 = arith.constant dense<0.000000e+00> : vector<2xf32>
    %275 = vector.multi_reduction <add>, %274, %cst_127 [0] : vector<32x2xf32> to vector<2xf32>
    %276 = vector.shape_cast %275 : vector<2xf32> to vector<1x2xf32>
    %cst_128 = arith.constant 0.000000e+00 : f32
    %277 = vector.broadcast %cst_128 : f32 to vector<1x2xf32>
    %278 = arith.maximumf %276, %277 : vector<1x2xf32>
    %279 = vector.broadcast %272 : vector<1x2xf32> to vector<32x2xf32>
    %280 = arith.mulf %266, %279 : vector<32x2xf32>
    %cst_129 = arith.constant dense<0.000000e+00> : vector<32xf32>
    %281 = vector.multi_reduction <add>, %280, %cst_129 [1] : vector<32x2xf32> to vector<32xf32>
    %282 = vector.shape_cast %281 : vector<32xf32> to vector<32x1xf32>
    %283 = vector.broadcast %278 : vector<1x2xf32> to vector<32x2xf32>
    %284 = arith.mulf %266, %283 : vector<32x2xf32>
    %cst_130 = arith.constant dense<0.000000e+00> : vector<32xf32>
    %285 = vector.multi_reduction <add>, %284, %cst_130 [1] : vector<32x2xf32> to vector<32xf32>
    %286 = vector.shape_cast %285 : vector<32xf32> to vector<32x1xf32>
    %287 = arith.addf %282, %286 : vector<32x1xf32>
    %cst_131 = arith.constant 0.000000e+00 : f32
    %288 = vector.broadcast %cst_131 : f32 to vector<32x1xf32>
    %289 = arith.subf %288, %287 : vector<32x1xf32>
    %290 = math.exp %289 : vector<32x1xf32>
    %cst_132 = arith.constant 1.000000e+00 : f32
    %291 = vector.broadcast %cst_132 : f32 to vector<32x1xf32>
    %292 = arith.addf %291, %290 : vector<32x1xf32>
    %cst_133 = arith.constant 1.000000e+00 : f32
    %293 = vector.broadcast %cst_133 : f32 to vector<32x1xf32>
    %294 = arith.divf %293, %292 : vector<32x1xf32>
    %cst_134 = arith.constant 0.000000e+00 : f32
    %295 = vector.broadcast %cst_134 : f32 to vector<2x384xf32>
    %c0_135 = arith.constant 0 : index
    %c0_136 = arith.constant 0 : index
    %296 = vector.load %arg13[%c0_135, %c0_136] : memref<2x384xf32, #tpu.memory_space<vmem>>, vector<2x384xf32>
    tpu.vector_store %arg13[%c0_135, %c0_136], %295 {strides = array<i32>} : memref<2x384xf32, #tpu.memory_space<vmem>>, vector<2x384xf32>,
    %cst_137 = arith.constant dense<0.000000e+00> : vector<256xf32>
    %297 = vector.multi_reduction <add>, %258, %cst_137 [0] : vector<32x256xf32> to vector<256xf32>
    %298 = vector.shape_cast %297 : vector<256xf32> to vector<1x256xf32>
    %cst_138 = arith.constant 3.200000e+01 : f32
    %299 = vector.broadcast %cst_138 : f32 to vector<1x256xf32>
    %300 = arith.divf %298, %299 : vector<1x256xf32>
    %cst_139 = arith.constant dense<0xFF800000> : vector<256xf32>
    %301 = vector.multi_reduction <maximumf>, %258, %cst_139 [0] : vector<32x256xf32> to vector<256xf32>
    %302 = vector.shape_cast %301 : vector<256xf32> to vector<1x256xf32>
    %303 = tpu.concatenate %300, %302 in 0 : vector<1x256xf32>, vector<1x256xf32> -> vector<2x256xf32>
    %c0_140 = arith.constant 0 : index
    %c51_141 = arith.constant 51 : index
    %304 = vector.load %arg13[%c0_140, %c51_141] : memref<2x384xf32, #tpu.memory_space<vmem>>, vector<2x256xf32>
    tpu.vector_store %arg13[%c0_140, %c51_141], %303 {strides = array<i32>} : memref<2x384xf32, #tpu.memory_space<vmem>>, vector<2x256xf32>,
    %cst_142 = arith.constant 0.000000e+00 : f32
    %305 = vector.broadcast %cst_142 : f32 to vector<1x256xf32>
    %c0_143 = arith.constant 0 : index
    %c0_144 = arith.constant 0 : index
    %306 = vector.load %arg13[%c0_143, %c0_144] : memref<2x384xf32, #tpu.memory_space<vmem>>, vector<2x256xf32>
    %c0_145 = arith.constant 0 : index
    %c0_146 = arith.constant 0 : index
    %307 = memref.load %arg9[%c0_145, %c0_146] : memref<2x49xf32, #tpu.memory_space<smem>>
    %308 = vector.extract_strided_slice %306 {offsets = [0, 0], sizes = [1, 256], strides = [1, 1]} : vector<2x256xf32> to vector<1x256xf32>
    %309 = vector.broadcast %307 : f32 to vector<1x256xf32>
    %310 = arith.mulf %309, %308 : vector<1x256xf32>
    %c1_147 = arith.constant 1 : index
    %c0_148 = arith.constant 0 : index
    %311 = memref.load %arg9[%c1_147, %c0_148] : memref<2x49xf32, #tpu.memory_space<smem>>
    %312 = vector.extract_strided_slice %306 {offsets = [1, 0], sizes = [1, 256], strides = [1, 1]} : vector<2x256xf32> to vector<1x256xf32>
    %313 = vector.broadcast %311 : f32 to vector<1x256xf32>
    %314 = arith.mulf %313, %312 : vector<1x256xf32>
    %315 = arith.addf %310, %314 : vector<1x256xf32>
    %c0_149 = arith.constant 0 : index
    %c0_150 = arith.constant 0 : index
    %316 = vector.load %arg8[%c0_149, %c0_150] : memref<7x256xf32, #tpu.memory_space<vmem>>, vector<1x256xf32>
    %317 = arith.mulf %315, %316 : vector<1x256xf32>
    %318 = arith.addf %305, %317 : vector<1x256xf32>
    %c0_151 = arith.constant 0 : index
    %c1_152 = arith.constant 1 : index
    %319 = vector.load %arg13[%c0_151, %c1_152] : memref<2x384xf32, #tpu.memory_space<vmem>>, vector<2x256xf32>
    %c0_153 = arith.constant 0 : index
    %c1_154 = arith.constant 1 : index
    %320 = memref.load %arg9[%c0_153, %c1_154] : memref<2x49xf32, #tpu.memory_space<smem>>
    %321 = vector.extract_strided_slice %319 {offsets = [0, 0], sizes = [1, 256], strides = [1, 1]} : vector<2x256xf32> to vector<1x256xf32>
    %322 = vector.broadcast %320 : f32 to vector<1x256xf32>
    %323 = arith.mulf %322, %321 : vector<1x256xf32>
    %c1_155 = arith.constant 1 : index
    %c1_156 = arith.constant 1 : index
    %324 = memref.load %arg9[%c1_155, %c1_156] : memref<2x49xf32, #tpu.memory_space<smem>>
    %325 = vector.extract_strided_slice %319 {offsets = [1, 0], sizes = [1, 256], strides = [1, 1]} : vector<2x256xf32> to vector<1x256xf32>
    %326 = vector.broadcast %324 : f32 to vector<1x256xf32>
    %327 = arith.mulf %326, %325 : vector<1x256xf32>
    %328 = arith.addf %323, %327 : vector<1x256xf32>
    %c1_157 = arith.constant 1 : index
    %c0_158 = arith.constant 0 : index
    %329 = vector.load %arg8[%c1_157, %c0_158] : memref<7x256xf32, #tpu.memory_space<vmem>>, vector<1x256xf32>
    %330 = arith.mulf %328, %329 : vector<1x256xf32>
    %331 = arith.addf %318, %330 : vector<1x256xf32>
    %c0_159 = arith.constant 0 : index
    %c2_160 = arith.constant 2 : index
    %332 = vector.load %arg13[%c0_159, %c2_160] : memref<2x384xf32, #tpu.memory_space<vmem>>, vector<2x256xf32>
    %c0_161 = arith.constant 0 : index
    %c2_162 = arith.constant 2 : index
    %333 = memref.load %arg9[%c0_161, %c2_162] : memref<2x49xf32, #tpu.memory_space<smem>>
    %334 = vector.extract_strided_slice %332 {offsets = [0, 0], sizes = [1, 256], strides = [1, 1]} : vector<2x256xf32> to vector<1x256xf32>
    %335 = vector.broadcast %333 : f32 to vector<1x256xf32>
    %336 = arith.mulf %335, %334 : vector<1x256xf32>
    %c1_163 = arith.constant 1 : index
    %c2_164 = arith.constant 2 : index
    %337 = memref.load %arg9[%c1_163, %c2_164] : memref<2x49xf32, #tpu.memory_space<smem>>
    %338 = vector.extract_strided_slice %332 {offsets = [1, 0], sizes = [1, 256], strides = [1, 1]} : vector<2x256xf32> to vector<1x256xf32>
    %339 = vector.broadcast %337 : f32 to vector<1x256xf32>
    %340 = arith.mulf %339, %338 : vector<1x256xf32>
    %341 = arith.addf %336, %340 : vector<1x256xf32>
    %c2_165 = arith.constant 2 : index
    %c0_166 = arith.constant 0 : index
    %342 = vector.load %arg8[%c2_165, %c0_166] : memref<7x256xf32, #tpu.memory_space<vmem>>, vector<1x256xf32>
    %343 = arith.mulf %341, %342 : vector<1x256xf32>
    %344 = arith.addf %331, %343 : vector<1x256xf32>
    %c0_167 = arith.constant 0 : index
    %c3_168 = arith.constant 3 : index
    %345 = vector.load %arg13[%c0_167, %c3_168] : memref<2x384xf32, #tpu.memory_space<vmem>>, vector<2x256xf32>
    %c0_169 = arith.constant 0 : index
    %c3_170 = arith.constant 3 : index
    %346 = memref.load %arg9[%c0_169, %c3_170] : memref<2x49xf32, #tpu.memory_space<smem>>
    %347 = vector.extract_strided_slice %345 {offsets = [0, 0], sizes = [1, 256], strides = [1, 1]} : vector<2x256xf32> to vector<1x256xf32>
    %348 = vector.broadcast %346 : f32 to vector<1x256xf32>
    %349 = arith.mulf %348, %347 : vector<1x256xf32>
    %c1_171 = arith.constant 1 : index
    %c3_172 = arith.constant 3 : index
    %350 = memref.load %arg9[%c1_171, %c3_172] : memref<2x49xf32, #tpu.memory_space<smem>>
    %351 = vector.extract_strided_slice %345 {offsets = [1, 0], sizes = [1, 256], strides = [1, 1]} : vector<2x256xf32> to vector<1x256xf32>
    %352 = vector.broadcast %350 : f32 to vector<1x256xf32>
    %353 = arith.mulf %352, %351 : vector<1x256xf32>
    %354 = arith.addf %349, %353 : vector<1x256xf32>
    %c3_173 = arith.constant 3 : index
    %c0_174 = arith.constant 0 : index
    %355 = vector.load %arg8[%c3_173, %c0_174] : memref<7x256xf32, #tpu.memory_space<vmem>>, vector<1x256xf32>
    %356 = arith.mulf %354, %355 : vector<1x256xf32>
    %357 = arith.addf %344, %356 : vector<1x256xf32>
    %c0_175 = arith.constant 0 : index
    %c4_176 = arith.constant 4 : index
    %358 = vector.load %arg13[%c0_175, %c4_176] : memref<2x384xf32, #tpu.memory_space<vmem>>, vector<2x256xf32>
    %c0_177 = arith.constant 0 : index
    %c4_178 = arith.constant 4 : index
    %359 = memref.load %arg9[%c0_177, %c4_178] : memref<2x49xf32, #tpu.memory_space<smem>>
    %360 = vector.extract_strided_slice %358 {offsets = [0, 0], sizes = [1, 256], strides = [1, 1]} : vector<2x256xf32> to vector<1x256xf32>
    %361 = vector.broadcast %359 : f32 to vector<1x256xf32>
    %362 = arith.mulf %361, %360 : vector<1x256xf32>
    %c1_179 = arith.constant 1 : index
    %c4_180 = arith.constant 4 : index
    %363 = memref.load %arg9[%c1_179, %c4_180] : memref<2x49xf32, #tpu.memory_space<smem>>
    %364 = vector.extract_strided_slice %358 {offsets = [1, 0], sizes = [1, 256], strides = [1, 1]} : vector<2x256xf32> to vector<1x256xf32>
    %365 = vector.broadcast %363 : f32 to vector<1x256xf32>
    %366 = arith.mulf %365, %364 : vector<1x256xf32>
    %367 = arith.addf %362, %366 : vector<1x256xf32>
    %c4_181 = arith.constant 4 : index
    %c0_182 = arith.constant 0 : index
    %368 = vector.load %arg8[%c4_181, %c0_182] : memref<7x256xf32, #tpu.memory_space<vmem>>, vector<1x256xf32>
    %369 = arith.mulf %367, %368 : vector<1x256xf32>
    %370 = arith.addf %357, %369 : vector<1x256xf32>
    %c0_183 = arith.constant 0 : index
    %c5_184 = arith.constant 5 : index
    %371 = vector.load %arg13[%c0_183, %c5_184] : memref<2x384xf32, #tpu.memory_space<vmem>>, vector<2x256xf32>
    %c0_185 = arith.constant 0 : index
    %c5_186 = arith.constant 5 : index
    %372 = memref.load %arg9[%c0_185, %c5_186] : memref<2x49xf32, #tpu.memory_space<smem>>
    %373 = vector.extract_strided_slice %371 {offsets = [0, 0], sizes = [1, 256], strides = [1, 1]} : vector<2x256xf32> to vector<1x256xf32>
    %374 = vector.broadcast %372 : f32 to vector<1x256xf32>
    %375 = arith.mulf %374, %373 : vector<1x256xf32>
    %c1_187 = arith.constant 1 : index
    %c5_188 = arith.constant 5 : index
    %376 = memref.load %arg9[%c1_187, %c5_188] : memref<2x49xf32, #tpu.memory_space<smem>>
    %377 = vector.extract_strided_slice %371 {offsets = [1, 0], sizes = [1, 256], strides = [1, 1]} : vector<2x256xf32> to vector<1x256xf32>
    %378 = vector.broadcast %376 : f32 to vector<1x256xf32>
    %379 = arith.mulf %378, %377 : vector<1x256xf32>
    %380 = arith.addf %375, %379 : vector<1x256xf32>
    %c5_189 = arith.constant 5 : index
    %c0_190 = arith.constant 0 : index
    %381 = vector.load %arg8[%c5_189, %c0_190] : memref<7x256xf32, #tpu.memory_space<vmem>>, vector<1x256xf32>
    %382 = arith.mulf %380, %381 : vector<1x256xf32>
    %383 = arith.addf %370, %382 : vector<1x256xf32>
    %c0_191 = arith.constant 0 : index
    %c6_192 = arith.constant 6 : index
    %384 = vector.load %arg13[%c0_191, %c6_192] : memref<2x384xf32, #tpu.memory_space<vmem>>, vector<2x256xf32>
    %c0_193 = arith.constant 0 : index
    %c6_194 = arith.constant 6 : index
    %385 = memref.load %arg9[%c0_193, %c6_194] : memref<2x49xf32, #tpu.memory_space<smem>>
    %386 = vector.extract_strided_slice %384 {offsets = [0, 0], sizes = [1, 256], strides = [1, 1]} : vector<2x256xf32> to vector<1x256xf32>
    %387 = vector.broadcast %385 : f32 to vector<1x256xf32>
    %388 = arith.mulf %387, %386 : vector<1x256xf32>
    %c1_195 = arith.constant 1 : index
    %c6_196 = arith.constant 6 : index
    %389 = memref.load %arg9[%c1_195, %c6_196] : memref<2x49xf32, #tpu.memory_space<smem>>
    %390 = vector.extract_strided_slice %384 {offsets = [1, 0], sizes = [1, 256], strides = [1, 1]} : vector<2x256xf32> to vector<1x256xf32>
    %391 = vector.broadcast %389 : f32 to vector<1x256xf32>
    %392 = arith.mulf %391, %390 : vector<1x256xf32>
    %393 = arith.addf %388, %392 : vector<1x256xf32>
    %c6_197 = arith.constant 6 : index
    %c0_198 = arith.constant 0 : index
    %394 = vector.load %arg8[%c6_197, %c0_198] : memref<7x256xf32, #tpu.memory_space<vmem>>, vector<1x256xf32>
    %395 = arith.mulf %393, %394 : vector<1x256xf32>
    %396 = arith.addf %383, %395 : vector<1x256xf32>
    %c0_199 = arith.constant 0 : index
    %c16_200 = arith.constant 16 : index
    %397 = vector.load %arg13[%c0_199, %c16_200] : memref<2x384xf32, #tpu.memory_space<vmem>>, vector<2x256xf32>
    %c0_201 = arith.constant 0 : index
    %c7 = arith.constant 7 : index
    %398 = memref.load %arg9[%c0_201, %c7] : memref<2x49xf32, #tpu.memory_space<smem>>
    %399 = vector.extract_strided_slice %397 {offsets = [0, 0], sizes = [1, 256], strides = [1, 1]} : vector<2x256xf32> to vector<1x256xf32>
    %400 = vector.broadcast %398 : f32 to vector<1x256xf32>
    %401 = arith.mulf %400, %399 : vector<1x256xf32>
    %c1_202 = arith.constant 1 : index
    %c7_203 = arith.constant 7 : index
    %402 = memref.load %arg9[%c1_202, %c7_203] : memref<2x49xf32, #tpu.memory_space<smem>>
    %403 = vector.extract_strided_slice %397 {offsets = [1, 0], sizes = [1, 256], strides = [1, 1]} : vector<2x256xf32> to vector<1x256xf32>
    %404 = vector.broadcast %402 : f32 to vector<1x256xf32>
    %405 = arith.mulf %404, %403 : vector<1x256xf32>
    %406 = arith.addf %401, %405 : vector<1x256xf32>
    %c0_204 = arith.constant 0 : index
    %c0_205 = arith.constant 0 : index
    %407 = vector.load %arg8[%c0_204, %c0_205] : memref<7x256xf32, #tpu.memory_space<vmem>>, vector<1x256xf32>
    %408 = arith.mulf %406, %407 : vector<1x256xf32>
    %409 = arith.addf %396, %408 : vector<1x256xf32>
    %c0_206 = arith.constant 0 : index
    %c17_207 = arith.constant 17 : index
    %410 = vector.load %arg13[%c0_206, %c17_207] : memref<2x384xf32, #tpu.memory_space<vmem>>, vector<2x256xf32>
    %c0_208 = arith.constant 0 : index
    %c8 = arith.constant 8 : index
    %411 = memref.load %arg9[%c0_208, %c8] : memref<2x49xf32, #tpu.memory_space<smem>>
    %412 = vector.extract_strided_slice %410 {offsets = [0, 0], sizes = [1, 256], strides = [1, 1]} : vector<2x256xf32> to vector<1x256xf32>
    %413 = vector.broadcast %411 : f32 to vector<1x256xf32>
    %414 = arith.mulf %413, %412 : vector<1x256xf32>
    %c1_209 = arith.constant 1 : index
    %c8_210 = arith.constant 8 : index
    %415 = memref.load %arg9[%c1_209, %c8_210] : memref<2x49xf32, #tpu.memory_space<smem>>
    %416 = vector.extract_strided_slice %410 {offsets = [1, 0], sizes = [1, 256], strides = [1, 1]} : vector<2x256xf32> to vector<1x256xf32>
    %417 = vector.broadcast %415 : f32 to vector<1x256xf32>
    %418 = arith.mulf %417, %416 : vector<1x256xf32>
    %419 = arith.addf %414, %418 : vector<1x256xf32>
    %c1_211 = arith.constant 1 : index
    %c0_212 = arith.constant 0 : index
    %420 = vector.load %arg8[%c1_211, %c0_212] : memref<7x256xf32, #tpu.memory_space<vmem>>, vector<1x256xf32>
    %421 = arith.mulf %419, %420 : vector<1x256xf32>
    %422 = arith.addf %409, %421 : vector<1x256xf32>
    %c0_213 = arith.constant 0 : index
    %c18_214 = arith.constant 18 : index
    %423 = vector.load %arg13[%c0_213, %c18_214] : memref<2x384xf32, #tpu.memory_space<vmem>>, vector<2x256xf32>
    %c0_215 = arith.constant 0 : index
    %c9 = arith.constant 9 : index
    %424 = memref.load %arg9[%c0_215, %c9] : memref<2x49xf32, #tpu.memory_space<smem>>
    %425 = vector.extract_strided_slice %423 {offsets = [0, 0], sizes = [1, 256], strides = [1, 1]} : vector<2x256xf32> to vector<1x256xf32>
    %426 = vector.broadcast %424 : f32 to vector<1x256xf32>
    %427 = arith.mulf %426, %425 : vector<1x256xf32>
    %c1_216 = arith.constant 1 : index
    %c9_217 = arith.constant 9 : index
    %428 = memref.load %arg9[%c1_216, %c9_217] : memref<2x49xf32, #tpu.memory_space<smem>>
    %429 = vector.extract_strided_slice %423 {offsets = [1, 0], sizes = [1, 256], strides = [1, 1]} : vector<2x256xf32> to vector<1x256xf32>
    %430 = vector.broadcast %428 : f32 to vector<1x256xf32>
    %431 = arith.mulf %430, %429 : vector<1x256xf32>
    %432 = arith.addf %427, %431 : vector<1x256xf32>
    %c2_218 = arith.constant 2 : index
    %c0_219 = arith.constant 0 : index
    %433 = vector.load %arg8[%c2_218, %c0_219] : memref<7x256xf32, #tpu.memory_space<vmem>>, vector<1x256xf32>
    %434 = arith.mulf %432, %433 : vector<1x256xf32>
    %435 = arith.addf %422, %434 : vector<1x256xf32>
    %c0_220 = arith.constant 0 : index
    %c19_221 = arith.constant 19 : index
    %436 = vector.load %arg13[%c0_220, %c19_221] : memref<2x384xf32, #tpu.memory_space<vmem>>, vector<2x256xf32>
    %c0_222 = arith.constant 0 : index
    %c10 = arith.constant 10 : index
    %437 = memref.load %arg9[%c0_222, %c10] : memref<2x49xf32, #tpu.memory_space<smem>>
    %438 = vector.extract_strided_slice %436 {offsets = [0, 0], sizes = [1, 256], strides = [1, 1]} : vector<2x256xf32> to vector<1x256xf32>
    %439 = vector.broadcast %437 : f32 to vector<1x256xf32>
    %440 = arith.mulf %439, %438 : vector<1x256xf32>
    %c1_223 = arith.constant 1 : index
    %c10_224 = arith.constant 10 : index
    %441 = memref.load %arg9[%c1_223, %c10_224] : memref<2x49xf32, #tpu.memory_space<smem>>
    %442 = vector.extract_strided_slice %436 {offsets = [1, 0], sizes = [1, 256], strides = [1, 1]} : vector<2x256xf32> to vector<1x256xf32>
    %443 = vector.broadcast %441 : f32 to vector<1x256xf32>
    %444 = arith.mulf %443, %442 : vector<1x256xf32>
    %445 = arith.addf %440, %444 : vector<1x256xf32>
    %c3_225 = arith.constant 3 : index
    %c0_226 = arith.constant 0 : index
    %446 = vector.load %arg8[%c3_225, %c0_226] : memref<7x256xf32, #tpu.memory_space<vmem>>, vector<1x256xf32>
    %447 = arith.mulf %445, %446 : vector<1x256xf32>
    %448 = arith.addf %435, %447 : vector<1x256xf32>
    %c0_227 = arith.constant 0 : index
    %c20_228 = arith.constant 20 : index
    %449 = vector.load %arg13[%c0_227, %c20_228] : memref<2x384xf32, #tpu.memory_space<vmem>>, vector<2x256xf32>
    %c0_229 = arith.constant 0 : index
    %c11 = arith.constant 11 : index
    %450 = memref.load %arg9[%c0_229, %c11] : memref<2x49xf32, #tpu.memory_space<smem>>
    %451 = vector.extract_strided_slice %449 {offsets = [0, 0], sizes = [1, 256], strides = [1, 1]} : vector<2x256xf32> to vector<1x256xf32>
    %452 = vector.broadcast %450 : f32 to vector<1x256xf32>
    %453 = arith.mulf %452, %451 : vector<1x256xf32>
    %c1_230 = arith.constant 1 : index
    %c11_231 = arith.constant 11 : index
    %454 = memref.load %arg9[%c1_230, %c11_231] : memref<2x49xf32, #tpu.memory_space<smem>>
    %455 = vector.extract_strided_slice %449 {offsets = [1, 0], sizes = [1, 256], strides = [1, 1]} : vector<2x256xf32> to vector<1x256xf32>
    %456 = vector.broadcast %454 : f32 to vector<1x256xf32>
    %457 = arith.mulf %456, %455 : vector<1x256xf32>
    %458 = arith.addf %453, %457 : vector<1x256xf32>
    %c4_232 = arith.constant 4 : index
    %c0_233 = arith.constant 0 : index
    %459 = vector.load %arg8[%c4_232, %c0_233] : memref<7x256xf32, #tpu.memory_space<vmem>>, vector<1x256xf32>
    %460 = arith.mulf %458, %459 : vector<1x256xf32>
    %461 = arith.addf %448, %460 : vector<1x256xf32>
    %c0_234 = arith.constant 0 : index
    %c21_235 = arith.constant 21 : index
    %462 = vector.load %arg13[%c0_234, %c21_235] : memref<2x384xf32, #tpu.memory_space<vmem>>, vector<2x256xf32>
    %c0_236 = arith.constant 0 : index
    %c12 = arith.constant 12 : index
    %463 = memref.load %arg9[%c0_236, %c12] : memref<2x49xf32, #tpu.memory_space<smem>>
    %464 = vector.extract_strided_slice %462 {offsets = [0, 0], sizes = [1, 256], strides = [1, 1]} : vector<2x256xf32> to vector<1x256xf32>
    %465 = vector.broadcast %463 : f32 to vector<1x256xf32>
    %466 = arith.mulf %465, %464 : vector<1x256xf32>
    %c1_237 = arith.constant 1 : index
    %c12_238 = arith.constant 12 : index
    %467 = memref.load %arg9[%c1_237, %c12_238] : memref<2x49xf32, #tpu.memory_space<smem>>
    %468 = vector.extract_strided_slice %462 {offsets = [1, 0], sizes = [1, 256], strides = [1, 1]} : vector<2x256xf32> to vector<1x256xf32>
    %469 = vector.broadcast %467 : f32 to vector<1x256xf32>
    %470 = arith.mulf %469, %468 : vector<1x256xf32>
    %471 = arith.addf %466, %470 : vector<1x256xf32>
    %c5_239 = arith.constant 5 : index
    %c0_240 = arith.constant 0 : index
    %472 = vector.load %arg8[%c5_239, %c0_240] : memref<7x256xf32, #tpu.memory_space<vmem>>, vector<1x256xf32>
    %473 = arith.mulf %471, %472 : vector<1x256xf32>
    %474 = arith.addf %461, %473 : vector<1x256xf32>
    %c0_241 = arith.constant 0 : index
    %c22_242 = arith.constant 22 : index
    %475 = vector.load %arg13[%c0_241, %c22_242] : memref<2x384xf32, #tpu.memory_space<vmem>>, vector<2x256xf32>
    %c0_243 = arith.constant 0 : index
    %c13 = arith.constant 13 : index
    %476 = memref.load %arg9[%c0_243, %c13] : memref<2x49xf32, #tpu.memory_space<smem>>
    %477 = vector.extract_strided_slice %475 {offsets = [0, 0], sizes = [1, 256], strides = [1, 1]} : vector<2x256xf32> to vector<1x256xf32>
    %478 = vector.broadcast %476 : f32 to vector<1x256xf32>
    %479 = arith.mulf %478, %477 : vector<1x256xf32>
    %c1_244 = arith.constant 1 : index
    %c13_245 = arith.constant 13 : index
    %480 = memref.load %arg9[%c1_244, %c13_245] : memref<2x49xf32, #tpu.memory_space<smem>>
    %481 = vector.extract_strided_slice %475 {offsets = [1, 0], sizes = [1, 256], strides = [1, 1]} : vector<2x256xf32> to vector<1x256xf32>
    %482 = vector.broadcast %480 : f32 to vector<1x256xf32>
    %483 = arith.mulf %482, %481 : vector<1x256xf32>
    %484 = arith.addf %479, %483 : vector<1x256xf32>
    %c6_246 = arith.constant 6 : index
    %c0_247 = arith.constant 0 : index
    %485 = vector.load %arg8[%c6_246, %c0_247] : memref<7x256xf32, #tpu.memory_space<vmem>>, vector<1x256xf32>
    %486 = arith.mulf %484, %485 : vector<1x256xf32>
    %487 = arith.addf %474, %486 : vector<1x256xf32>
    %c0_248 = arith.constant 0 : index
    %c32_249 = arith.constant 32 : index
    %488 = vector.load %arg13[%c0_248, %c32_249] : memref<2x384xf32, #tpu.memory_space<vmem>>, vector<2x256xf32>
    %c0_250 = arith.constant 0 : index
    %c14 = arith.constant 14 : index
    %489 = memref.load %arg9[%c0_250, %c14] : memref<2x49xf32, #tpu.memory_space<smem>>
    %490 = vector.extract_strided_slice %488 {offsets = [0, 0], sizes = [1, 256], strides = [1, 1]} : vector<2x256xf32> to vector<1x256xf32>
    %491 = vector.broadcast %489 : f32 to vector<1x256xf32>
    %492 = arith.mulf %491, %490 : vector<1x256xf32>
    %c1_251 = arith.constant 1 : index
    %c14_252 = arith.constant 14 : index
    %493 = memref.load %arg9[%c1_251, %c14_252] : memref<2x49xf32, #tpu.memory_space<smem>>
    %494 = vector.extract_strided_slice %488 {offsets = [1, 0], sizes = [1, 256], strides = [1, 1]} : vector<2x256xf32> to vector<1x256xf32>
    %495 = vector.broadcast %493 : f32 to vector<1x256xf32>
    %496 = arith.mulf %495, %494 : vector<1x256xf32>
    %497 = arith.addf %492, %496 : vector<1x256xf32>
    %c0_253 = arith.constant 0 : index
    %c0_254 = arith.constant 0 : index
    %498 = vector.load %arg8[%c0_253, %c0_254] : memref<7x256xf32, #tpu.memory_space<vmem>>, vector<1x256xf32>
    %499 = arith.mulf %497, %498 : vector<1x256xf32>
    %500 = arith.addf %487, %499 : vector<1x256xf32>
    %c0_255 = arith.constant 0 : index
    %c33_256 = arith.constant 33 : index
    %501 = vector.load %arg13[%c0_255, %c33_256] : memref<2x384xf32, #tpu.memory_space<vmem>>, vector<2x256xf32>
    %c0_257 = arith.constant 0 : index
    %c15 = arith.constant 15 : index
    %502 = memref.load %arg9[%c0_257, %c15] : memref<2x49xf32, #tpu.memory_space<smem>>
    %503 = vector.extract_strided_slice %501 {offsets = [0, 0], sizes = [1, 256], strides = [1, 1]} : vector<2x256xf32> to vector<1x256xf32>
    %504 = vector.broadcast %502 : f32 to vector<1x256xf32>
    %505 = arith.mulf %504, %503 : vector<1x256xf32>
    %c1_258 = arith.constant 1 : index
    %c15_259 = arith.constant 15 : index
    %506 = memref.load %arg9[%c1_258, %c15_259] : memref<2x49xf32, #tpu.memory_space<smem>>
    %507 = vector.extract_strided_slice %501 {offsets = [1, 0], sizes = [1, 256], strides = [1, 1]} : vector<2x256xf32> to vector<1x256xf32>
    %508 = vector.broadcast %506 : f32 to vector<1x256xf32>
    %509 = arith.mulf %508, %507 : vector<1x256xf32>
    %510 = arith.addf %505, %509 : vector<1x256xf32>
    %c1_260 = arith.constant 1 : index
    %c0_261 = arith.constant 0 : index
    %511 = vector.load %arg8[%c1_260, %c0_261] : memref<7x256xf32, #tpu.memory_space<vmem>>, vector<1x256xf32>
    %512 = arith.mulf %510, %511 : vector<1x256xf32>
    %513 = arith.addf %500, %512 : vector<1x256xf32>
    %c0_262 = arith.constant 0 : index
    %c34_263 = arith.constant 34 : index
    %514 = vector.load %arg13[%c0_262, %c34_263] : memref<2x384xf32, #tpu.memory_space<vmem>>, vector<2x256xf32>
    %c0_264 = arith.constant 0 : index
    %c16_265 = arith.constant 16 : index
    %515 = memref.load %arg9[%c0_264, %c16_265] : memref<2x49xf32, #tpu.memory_space<smem>>
    %516 = vector.extract_strided_slice %514 {offsets = [0, 0], sizes = [1, 256], strides = [1, 1]} : vector<2x256xf32> to vector<1x256xf32>
    %517 = vector.broadcast %515 : f32 to vector<1x256xf32>
    %518 = arith.mulf %517, %516 : vector<1x256xf32>
    %c1_266 = arith.constant 1 : index
    %c16_267 = arith.constant 16 : index
    %519 = memref.load %arg9[%c1_266, %c16_267] : memref<2x49xf32, #tpu.memory_space<smem>>
    %520 = vector.extract_strided_slice %514 {offsets = [1, 0], sizes = [1, 256], strides = [1, 1]} : vector<2x256xf32> to vector<1x256xf32>
    %521 = vector.broadcast %519 : f32 to vector<1x256xf32>
    %522 = arith.mulf %521, %520 : vector<1x256xf32>
    %523 = arith.addf %518, %522 : vector<1x256xf32>
    %c2_268 = arith.constant 2 : index
    %c0_269 = arith.constant 0 : index
    %524 = vector.load %arg8[%c2_268, %c0_269] : memref<7x256xf32, #tpu.memory_space<vmem>>, vector<1x256xf32>
    %525 = arith.mulf %523, %524 : vector<1x256xf32>
    %526 = arith.addf %513, %525 : vector<1x256xf32>
    %c0_270 = arith.constant 0 : index
    %c35_271 = arith.constant 35 : index
    %527 = vector.load %arg13[%c0_270, %c35_271] : memref<2x384xf32, #tpu.memory_space<vmem>>, vector<2x256xf32>
    %c0_272 = arith.constant 0 : index
    %c17_273 = arith.constant 17 : index
    %528 = memref.load %arg9[%c0_272, %c17_273] : memref<2x49xf32, #tpu.memory_space<smem>>
    %529 = vector.extract_strided_slice %527 {offsets = [0, 0], sizes = [1, 256], strides = [1, 1]} : vector<2x256xf32> to vector<1x256xf32>
    %530 = vector.broadcast %528 : f32 to vector<1x256xf32>
    %531 = arith.mulf %530, %529 : vector<1x256xf32>
    %c1_274 = arith.constant 1 : index
    %c17_275 = arith.constant 17 : index
    %532 = memref.load %arg9[%c1_274, %c17_275] : memref<2x49xf32, #tpu.memory_space<smem>>
    %533 = vector.extract_strided_slice %527 {offsets = [1, 0], sizes = [1, 256], strides = [1, 1]} : vector<2x256xf32> to vector<1x256xf32>
    %534 = vector.broadcast %532 : f32 to vector<1x256xf32>
    %535 = arith.mulf %534, %533 : vector<1x256xf32>
    %536 = arith.addf %531, %535 : vector<1x256xf32>
    %c3_276 = arith.constant 3 : index
    %c0_277 = arith.constant 0 : index
    %537 = vector.load %arg8[%c3_276, %c0_277] : memref<7x256xf32, #tpu.memory_space<vmem>>, vector<1x256xf32>
    %538 = arith.mulf %536, %537 : vector<1x256xf32>
    %539 = arith.addf %526, %538 : vector<1x256xf32>
    %c0_278 = arith.constant 0 : index
    %c36_279 = arith.constant 36 : index
    %540 = vector.load %arg13[%c0_278, %c36_279] : memref<2x384xf32, #tpu.memory_space<vmem>>, vector<2x256xf32>
    %c0_280 = arith.constant 0 : index
    %c18_281 = arith.constant 18 : index
    %541 = memref.load %arg9[%c0_280, %c18_281] : memref<2x49xf32, #tpu.memory_space<smem>>
    %542 = vector.extract_strided_slice %540 {offsets = [0, 0], sizes = [1, 256], strides = [1, 1]} : vector<2x256xf32> to vector<1x256xf32>
    %543 = vector.broadcast %541 : f32 to vector<1x256xf32>
    %544 = arith.mulf %543, %542 : vector<1x256xf32>
    %c1_282 = arith.constant 1 : index
    %c18_283 = arith.constant 18 : index
    %545 = memref.load %arg9[%c1_282, %c18_283] : memref<2x49xf32, #tpu.memory_space<smem>>
    %546 = vector.extract_strided_slice %540 {offsets = [1, 0], sizes = [1, 256], strides = [1, 1]} : vector<2x256xf32> to vector<1x256xf32>
    %547 = vector.broadcast %545 : f32 to vector<1x256xf32>
    %548 = arith.mulf %547, %546 : vector<1x256xf32>
    %549 = arith.addf %544, %548 : vector<1x256xf32>
    %c4_284 = arith.constant 4 : index
    %c0_285 = arith.constant 0 : index
    %550 = vector.load %arg8[%c4_284, %c0_285] : memref<7x256xf32, #tpu.memory_space<vmem>>, vector<1x256xf32>
    %551 = arith.mulf %549, %550 : vector<1x256xf32>
    %552 = arith.addf %539, %551 : vector<1x256xf32>
    %c0_286 = arith.constant 0 : index
    %c37_287 = arith.constant 37 : index
    %553 = vector.load %arg13[%c0_286, %c37_287] : memref<2x384xf32, #tpu.memory_space<vmem>>, vector<2x256xf32>
    %c0_288 = arith.constant 0 : index
    %c19_289 = arith.constant 19 : index
    %554 = memref.load %arg9[%c0_288, %c19_289] : memref<2x49xf32, #tpu.memory_space<smem>>
    %555 = vector.extract_strided_slice %553 {offsets = [0, 0], sizes = [1, 256], strides = [1, 1]} : vector<2x256xf32> to vector<1x256xf32>
    %556 = vector.broadcast %554 : f32 to vector<1x256xf32>
    %557 = arith.mulf %556, %555 : vector<1x256xf32>
    %c1_290 = arith.constant 1 : index
    %c19_291 = arith.constant 19 : index
    %558 = memref.load %arg9[%c1_290, %c19_291] : memref<2x49xf32, #tpu.memory_space<smem>>
    %559 = vector.extract_strided_slice %553 {offsets = [1, 0], sizes = [1, 256], strides = [1, 1]} : vector<2x256xf32> to vector<1x256xf32>
    %560 = vector.broadcast %558 : f32 to vector<1x256xf32>
    %561 = arith.mulf %560, %559 : vector<1x256xf32>
    %562 = arith.addf %557, %561 : vector<1x256xf32>
    %c5_292 = arith.constant 5 : index
    %c0_293 = arith.constant 0 : index
    %563 = vector.load %arg8[%c5_292, %c0_293] : memref<7x256xf32, #tpu.memory_space<vmem>>, vector<1x256xf32>
    %564 = arith.mulf %562, %563 : vector<1x256xf32>
    %565 = arith.addf %552, %564 : vector<1x256xf32>
    %c0_294 = arith.constant 0 : index
    %c38_295 = arith.constant 38 : index
    %566 = vector.load %arg13[%c0_294, %c38_295] : memref<2x384xf32, #tpu.memory_space<vmem>>, vector<2x256xf32>
    %c0_296 = arith.constant 0 : index
    %c20_297 = arith.constant 20 : index
    %567 = memref.load %arg9[%c0_296, %c20_297] : memref<2x49xf32, #tpu.memory_space<smem>>
    %568 = vector.extract_strided_slice %566 {offsets = [0, 0], sizes = [1, 256], strides = [1, 1]} : vector<2x256xf32> to vector<1x256xf32>
    %569 = vector.broadcast %567 : f32 to vector<1x256xf32>
    %570 = arith.mulf %569, %568 : vector<1x256xf32>
    %c1_298 = arith.constant 1 : index
    %c20_299 = arith.constant 20 : index
    %571 = memref.load %arg9[%c1_298, %c20_299] : memref<2x49xf32, #tpu.memory_space<smem>>
    %572 = vector.extract_strided_slice %566 {offsets = [1, 0], sizes = [1, 256], strides = [1, 1]} : vector<2x256xf32> to vector<1x256xf32>
    %573 = vector.broadcast %571 : f32 to vector<1x256xf32>
    %574 = arith.mulf %573, %572 : vector<1x256xf32>
    %575 = arith.addf %570, %574 : vector<1x256xf32>
    %c6_300 = arith.constant 6 : index
    %c0_301 = arith.constant 0 : index
    %576 = vector.load %arg8[%c6_300, %c0_301] : memref<7x256xf32, #tpu.memory_space<vmem>>, vector<1x256xf32>
    %577 = arith.mulf %575, %576 : vector<1x256xf32>
    %578 = arith.addf %565, %577 : vector<1x256xf32>
    %c0_302 = arith.constant 0 : index
    %c48_303 = arith.constant 48 : index
    %579 = vector.load %arg13[%c0_302, %c48_303] : memref<2x384xf32, #tpu.memory_space<vmem>>, vector<2x256xf32>
    %c0_304 = arith.constant 0 : index
    %c21_305 = arith.constant 21 : index
    %580 = memref.load %arg9[%c0_304, %c21_305] : memref<2x49xf32, #tpu.memory_space<smem>>
    %581 = vector.extract_strided_slice %579 {offsets = [0, 0], sizes = [1, 256], strides = [1, 1]} : vector<2x256xf32> to vector<1x256xf32>
    %582 = vector.broadcast %580 : f32 to vector<1x256xf32>
    %583 = arith.mulf %582, %581 : vector<1x256xf32>
    %c1_306 = arith.constant 1 : index
    %c21_307 = arith.constant 21 : index
    %584 = memref.load %arg9[%c1_306, %c21_307] : memref<2x49xf32, #tpu.memory_space<smem>>
    %585 = vector.extract_strided_slice %579 {offsets = [1, 0], sizes = [1, 256], strides = [1, 1]} : vector<2x256xf32> to vector<1x256xf32>
    %586 = vector.broadcast %584 : f32 to vector<1x256xf32>
    %587 = arith.mulf %586, %585 : vector<1x256xf32>
    %588 = arith.addf %583, %587 : vector<1x256xf32>
    %c0_308 = arith.constant 0 : index
    %c0_309 = arith.constant 0 : index
    %589 = vector.load %arg8[%c0_308, %c0_309] : memref<7x256xf32, #tpu.memory_space<vmem>>, vector<1x256xf32>
    %590 = arith.mulf %588, %589 : vector<1x256xf32>
    %591 = arith.addf %578, %590 : vector<1x256xf32>
    %c0_310 = arith.constant 0 : index
    %c49_311 = arith.constant 49 : index
    %592 = vector.load %arg13[%c0_310, %c49_311] : memref<2x384xf32, #tpu.memory_space<vmem>>, vector<2x256xf32>
    %c0_312 = arith.constant 0 : index
    %c22_313 = arith.constant 22 : index
    %593 = memref.load %arg9[%c0_312, %c22_313] : memref<2x49xf32, #tpu.memory_space<smem>>
    %594 = vector.extract_strided_slice %592 {offsets = [0, 0], sizes = [1, 256], strides = [1, 1]} : vector<2x256xf32> to vector<1x256xf32>
    %595 = vector.broadcast %593 : f32 to vector<1x256xf32>
    %596 = arith.mulf %595, %594 : vector<1x256xf32>
    %c1_314 = arith.constant 1 : index
    %c22_315 = arith.constant 22 : index
    %597 = memref.load %arg9[%c1_314, %c22_315] : memref<2x49xf32, #tpu.memory_space<smem>>
    %598 = vector.extract_strided_slice %592 {offsets = [1, 0], sizes = [1, 256], strides = [1, 1]} : vector<2x256xf32> to vector<1x256xf32>
    %599 = vector.broadcast %597 : f32 to vector<1x256xf32>
    %600 = arith.mulf %599, %598 : vector<1x256xf32>
    %601 = arith.addf %596, %600 : vector<1x256xf32>
    %c1_316 = arith.constant 1 : index
    %c0_317 = arith.constant 0 : index
    %602 = vector.load %arg8[%c1_316, %c0_317] : memref<7x256xf32, #tpu.memory_space<vmem>>, vector<1x256xf32>
    %603 = arith.mulf %601, %602 : vector<1x256xf32>
    %604 = arith.addf %591, %603 : vector<1x256xf32>
    %c0_318 = arith.constant 0 : index
    %c50_319 = arith.constant 50 : index
    %605 = vector.load %arg13[%c0_318, %c50_319] : memref<2x384xf32, #tpu.memory_space<vmem>>, vector<2x256xf32>
    %c0_320 = arith.constant 0 : index
    %c23 = arith.constant 23 : index
    %606 = memref.load %arg9[%c0_320, %c23] : memref<2x49xf32, #tpu.memory_space<smem>>
    %607 = vector.extract_strided_slice %605 {offsets = [0, 0], sizes = [1, 256], strides = [1, 1]} : vector<2x256xf32> to vector<1x256xf32>
    %608 = vector.broadcast %606 : f32 to vector<1x256xf32>
    %609 = arith.mulf %608, %607 : vector<1x256xf32>
    %c1_321 = arith.constant 1 : index
    %c23_322 = arith.constant 23 : index
    %610 = memref.load %arg9[%c1_321, %c23_322] : memref<2x49xf32, #tpu.memory_space<smem>>
    %611 = vector.extract_strided_slice %605 {offsets = [1, 0], sizes = [1, 256], strides = [1, 1]} : vector<2x256xf32> to vector<1x256xf32>
    %612 = vector.broadcast %610 : f32 to vector<1x256xf32>
    %613 = arith.mulf %612, %611 : vector<1x256xf32>
    %614 = arith.addf %609, %613 : vector<1x256xf32>
    %c2_323 = arith.constant 2 : index
    %c0_324 = arith.constant 0 : index
    %615 = vector.load %arg8[%c2_323, %c0_324] : memref<7x256xf32, #tpu.memory_space<vmem>>, vector<1x256xf32>
    %616 = arith.mulf %614, %615 : vector<1x256xf32>
    %617 = arith.addf %604, %616 : vector<1x256xf32>
    %c0_325 = arith.constant 0 : index
    %c51_326 = arith.constant 51 : index
    %618 = vector.load %arg13[%c0_325, %c51_326] : memref<2x384xf32, #tpu.memory_space<vmem>>, vector<2x256xf32>
    %c0_327 = arith.constant 0 : index
    %c24 = arith.constant 24 : index
    %619 = memref.load %arg9[%c0_327, %c24] : memref<2x49xf32, #tpu.memory_space<smem>>
    %620 = vector.extract_strided_slice %618 {offsets = [0, 0], sizes = [1, 256], strides = [1, 1]} : vector<2x256xf32> to vector<1x256xf32>
    %621 = vector.broadcast %619 : f32 to vector<1x256xf32>
    %622 = arith.mulf %621, %620 : vector<1x256xf32>
    %c1_328 = arith.constant 1 : index
    %c24_329 = arith.constant 24 : index
    %623 = memref.load %arg9[%c1_328, %c24_329] : memref<2x49xf32, #tpu.memory_space<smem>>
    %624 = vector.extract_strided_slice %618 {offsets = [1, 0], sizes = [1, 256], strides = [1, 1]} : vector<2x256xf32> to vector<1x256xf32>
    %625 = vector.broadcast %623 : f32 to vector<1x256xf32>
    %626 = arith.mulf %625, %624 : vector<1x256xf32>
    %627 = arith.addf %622, %626 : vector<1x256xf32>
    %c3_330 = arith.constant 3 : index
    %c0_331 = arith.constant 0 : index
    %628 = vector.load %arg8[%c3_330, %c0_331] : memref<7x256xf32, #tpu.memory_space<vmem>>, vector<1x256xf32>
    %629 = arith.mulf %627, %628 : vector<1x256xf32>
    %630 = arith.addf %617, %629 : vector<1x256xf32>
    %c0_332 = arith.constant 0 : index
    %c52_333 = arith.constant 52 : index
    %631 = vector.load %arg13[%c0_332, %c52_333] : memref<2x384xf32, #tpu.memory_space<vmem>>, vector<2x256xf32>
    %c0_334 = arith.constant 0 : index
    %c25 = arith.constant 25 : index
    %632 = memref.load %arg9[%c0_334, %c25] : memref<2x49xf32, #tpu.memory_space<smem>>
    %633 = vector.extract_strided_slice %631 {offsets = [0, 0], sizes = [1, 256], strides = [1, 1]} : vector<2x256xf32> to vector<1x256xf32>
    %634 = vector.broadcast %632 : f32 to vector<1x256xf32>
    %635 = arith.mulf %634, %633 : vector<1x256xf32>
    %c1_335 = arith.constant 1 : index
    %c25_336 = arith.constant 25 : index
    %636 = memref.load %arg9[%c1_335, %c25_336] : memref<2x49xf32, #tpu.memory_space<smem>>
    %637 = vector.extract_strided_slice %631 {offsets = [1, 0], sizes = [1, 256], strides = [1, 1]} : vector<2x256xf32> to vector<1x256xf32>
    %638 = vector.broadcast %636 : f32 to vector<1x256xf32>
    %639 = arith.mulf %638, %637 : vector<1x256xf32>
    %640 = arith.addf %635, %639 : vector<1x256xf32>
    %c4_337 = arith.constant 4 : index
    %c0_338 = arith.constant 0 : index
    %641 = vector.load %arg8[%c4_337, %c0_338] : memref<7x256xf32, #tpu.memory_space<vmem>>, vector<1x256xf32>
    %642 = arith.mulf %640, %641 : vector<1x256xf32>
    %643 = arith.addf %630, %642 : vector<1x256xf32>
    %c0_339 = arith.constant 0 : index
    %c53_340 = arith.constant 53 : index
    %644 = vector.load %arg13[%c0_339, %c53_340] : memref<2x384xf32, #tpu.memory_space<vmem>>, vector<2x256xf32>
    %c0_341 = arith.constant 0 : index
    %c26 = arith.constant 26 : index
    %645 = memref.load %arg9[%c0_341, %c26] : memref<2x49xf32, #tpu.memory_space<smem>>
    %646 = vector.extract_strided_slice %644 {offsets = [0, 0], sizes = [1, 256], strides = [1, 1]} : vector<2x256xf32> to vector<1x256xf32>
    %647 = vector.broadcast %645 : f32 to vector<1x256xf32>
    %648 = arith.mulf %647, %646 : vector<1x256xf32>
    %c1_342 = arith.constant 1 : index
    %c26_343 = arith.constant 26 : index
    %649 = memref.load %arg9[%c1_342, %c26_343] : memref<2x49xf32, #tpu.memory_space<smem>>
    %650 = vector.extract_strided_slice %644 {offsets = [1, 0], sizes = [1, 256], strides = [1, 1]} : vector<2x256xf32> to vector<1x256xf32>
    %651 = vector.broadcast %649 : f32 to vector<1x256xf32>
    %652 = arith.mulf %651, %650 : vector<1x256xf32>
    %653 = arith.addf %648, %652 : vector<1x256xf32>
    %c5_344 = arith.constant 5 : index
    %c0_345 = arith.constant 0 : index
    %654 = vector.load %arg8[%c5_344, %c0_345] : memref<7x256xf32, #tpu.memory_space<vmem>>, vector<1x256xf32>
    %655 = arith.mulf %653, %654 : vector<1x256xf32>
    %656 = arith.addf %643, %655 : vector<1x256xf32>
    %c0_346 = arith.constant 0 : index
    %c54_347 = arith.constant 54 : index
    %657 = vector.load %arg13[%c0_346, %c54_347] : memref<2x384xf32, #tpu.memory_space<vmem>>, vector<2x256xf32>
    %c0_348 = arith.constant 0 : index
    %c27 = arith.constant 27 : index
    %658 = memref.load %arg9[%c0_348, %c27] : memref<2x49xf32, #tpu.memory_space<smem>>
    %659 = vector.extract_strided_slice %657 {offsets = [0, 0], sizes = [1, 256], strides = [1, 1]} : vector<2x256xf32> to vector<1x256xf32>
    %660 = vector.broadcast %658 : f32 to vector<1x256xf32>
    %661 = arith.mulf %660, %659 : vector<1x256xf32>
    %c1_349 = arith.constant 1 : index
    %c27_350 = arith.constant 27 : index
    %662 = memref.load %arg9[%c1_349, %c27_350] : memref<2x49xf32, #tpu.memory_space<smem>>
    %663 = vector.extract_strided_slice %657 {offsets = [1, 0], sizes = [1, 256], strides = [1, 1]} : vector<2x256xf32> to vector<1x256xf32>
    %664 = vector.broadcast %662 : f32 to vector<1x256xf32>
    %665 = arith.mulf %664, %663 : vector<1x256xf32>
    %666 = arith.addf %661, %665 : vector<1x256xf32>
    %c6_351 = arith.constant 6 : index
    %c0_352 = arith.constant 0 : index
    %667 = vector.load %arg8[%c6_351, %c0_352] : memref<7x256xf32, #tpu.memory_space<vmem>>, vector<1x256xf32>
    %668 = arith.mulf %666, %667 : vector<1x256xf32>
    %669 = arith.addf %656, %668 : vector<1x256xf32>
    %c0_353 = arith.constant 0 : index
    %c64_354 = arith.constant 64 : index
    %670 = vector.load %arg13[%c0_353, %c64_354] : memref<2x384xf32, #tpu.memory_space<vmem>>, vector<2x256xf32>
    %c0_355 = arith.constant 0 : index
    %c28 = arith.constant 28 : index
    %671 = memref.load %arg9[%c0_355, %c28] : memref<2x49xf32, #tpu.memory_space<smem>>
    %672 = vector.extract_strided_slice %670 {offsets = [0, 0], sizes = [1, 256], strides = [1, 1]} : vector<2x256xf32> to vector<1x256xf32>
    %673 = vector.broadcast %671 : f32 to vector<1x256xf32>
    %674 = arith.mulf %673, %672 : vector<1x256xf32>
    %c1_356 = arith.constant 1 : index
    %c28_357 = arith.constant 28 : index
    %675 = memref.load %arg9[%c1_356, %c28_357] : memref<2x49xf32, #tpu.memory_space<smem>>
    %676 = vector.extract_strided_slice %670 {offsets = [1, 0], sizes = [1, 256], strides = [1, 1]} : vector<2x256xf32> to vector<1x256xf32>
    %677 = vector.broadcast %675 : f32 to vector<1x256xf32>
    %678 = arith.mulf %677, %676 : vector<1x256xf32>
    %679 = arith.addf %674, %678 : vector<1x256xf32>
    %c0_358 = arith.constant 0 : index
    %c0_359 = arith.constant 0 : index
    %680 = vector.load %arg8[%c0_358, %c0_359] : memref<7x256xf32, #tpu.memory_space<vmem>>, vector<1x256xf32>
    %681 = arith.mulf %679, %680 : vector<1x256xf32>
    %682 = arith.addf %669, %681 : vector<1x256xf32>
    %c0_360 = arith.constant 0 : index
    %c65_361 = arith.constant 65 : index
    %683 = vector.load %arg13[%c0_360, %c65_361] : memref<2x384xf32, #tpu.memory_space<vmem>>, vector<2x256xf32>
    %c0_362 = arith.constant 0 : index
    %c29 = arith.constant 29 : index
    %684 = memref.load %arg9[%c0_362, %c29] : memref<2x49xf32, #tpu.memory_space<smem>>
    %685 = vector.extract_strided_slice %683 {offsets = [0, 0], sizes = [1, 256], strides = [1, 1]} : vector<2x256xf32> to vector<1x256xf32>
    %686 = vector.broadcast %684 : f32 to vector<1x256xf32>
    %687 = arith.mulf %686, %685 : vector<1x256xf32>
    %c1_363 = arith.constant 1 : index
    %c29_364 = arith.constant 29 : index
    %688 = memref.load %arg9[%c1_363, %c29_364] : memref<2x49xf32, #tpu.memory_space<smem>>
    %689 = vector.extract_strided_slice %683 {offsets = [1, 0], sizes = [1, 256], strides = [1, 1]} : vector<2x256xf32> to vector<1x256xf32>
    %690 = vector.broadcast %688 : f32 to vector<1x256xf32>
    %691 = arith.mulf %690, %689 : vector<1x256xf32>
    %692 = arith.addf %687, %691 : vector<1x256xf32>
    %c1_365 = arith.constant 1 : index
    %c0_366 = arith.constant 0 : index
    %693 = vector.load %arg8[%c1_365, %c0_366] : memref<7x256xf32, #tpu.memory_space<vmem>>, vector<1x256xf32>
    %694 = arith.mulf %692, %693 : vector<1x256xf32>
    %695 = arith.addf %682, %694 : vector<1x256xf32>
    %c0_367 = arith.constant 0 : index
    %c66_368 = arith.constant 66 : index
    %696 = vector.load %arg13[%c0_367, %c66_368] : memref<2x384xf32, #tpu.memory_space<vmem>>, vector<2x256xf32>
    %c0_369 = arith.constant 0 : index
    %c30 = arith.constant 30 : index
    %697 = memref.load %arg9[%c0_369, %c30] : memref<2x49xf32, #tpu.memory_space<smem>>
    %698 = vector.extract_strided_slice %696 {offsets = [0, 0], sizes = [1, 256], strides = [1, 1]} : vector<2x256xf32> to vector<1x256xf32>
    %699 = vector.broadcast %697 : f32 to vector<1x256xf32>
    %700 = arith.mulf %699, %698 : vector<1x256xf32>
    %c1_370 = arith.constant 1 : index
    %c30_371 = arith.constant 30 : index
    %701 = memref.load %arg9[%c1_370, %c30_371] : memref<2x49xf32, #tpu.memory_space<smem>>
    %702 = vector.extract_strided_slice %696 {offsets = [1, 0], sizes = [1, 256], strides = [1, 1]} : vector<2x256xf32> to vector<1x256xf32>
    %703 = vector.broadcast %701 : f32 to vector<1x256xf32>
    %704 = arith.mulf %703, %702 : vector<1x256xf32>
    %705 = arith.addf %700, %704 : vector<1x256xf32>
    %c2_372 = arith.constant 2 : index
    %c0_373 = arith.constant 0 : index
    %706 = vector.load %arg8[%c2_372, %c0_373] : memref<7x256xf32, #tpu.memory_space<vmem>>, vector<1x256xf32>
    %707 = arith.mulf %705, %706 : vector<1x256xf32>
    %708 = arith.addf %695, %707 : vector<1x256xf32>
    %c0_374 = arith.constant 0 : index
    %c67_375 = arith.constant 67 : index
    %709 = vector.load %arg13[%c0_374, %c67_375] : memref<2x384xf32, #tpu.memory_space<vmem>>, vector<2x256xf32>
    %c0_376 = arith.constant 0 : index
    %c31 = arith.constant 31 : index
    %710 = memref.load %arg9[%c0_376, %c31] : memref<2x49xf32, #tpu.memory_space<smem>>
    %711 = vector.extract_strided_slice %709 {offsets = [0, 0], sizes = [1, 256], strides = [1, 1]} : vector<2x256xf32> to vector<1x256xf32>
    %712 = vector.broadcast %710 : f32 to vector<1x256xf32>
    %713 = arith.mulf %712, %711 : vector<1x256xf32>
    %c1_377 = arith.constant 1 : index
    %c31_378 = arith.constant 31 : index
    %714 = memref.load %arg9[%c1_377, %c31_378] : memref<2x49xf32, #tpu.memory_space<smem>>
    %715 = vector.extract_strided_slice %709 {offsets = [1, 0], sizes = [1, 256], strides = [1, 1]} : vector<2x256xf32> to vector<1x256xf32>
    %716 = vector.broadcast %714 : f32 to vector<1x256xf32>
    %717 = arith.mulf %716, %715 : vector<1x256xf32>
    %718 = arith.addf %713, %717 : vector<1x256xf32>
    %c3_379 = arith.constant 3 : index
    %c0_380 = arith.constant 0 : index
    %719 = vector.load %arg8[%c3_379, %c0_380] : memref<7x256xf32, #tpu.memory_space<vmem>>, vector<1x256xf32>
    %720 = arith.mulf %718, %719 : vector<1x256xf32>
    %721 = arith.addf %708, %720 : vector<1x256xf32>
    %c0_381 = arith.constant 0 : index
    %c68_382 = arith.constant 68 : index
    %722 = vector.load %arg13[%c0_381, %c68_382] : memref<2x384xf32, #tpu.memory_space<vmem>>, vector<2x256xf32>
    %c0_383 = arith.constant 0 : index
    %c32_384 = arith.constant 32 : index
    %723 = memref.load %arg9[%c0_383, %c32_384] : memref<2x49xf32, #tpu.memory_space<smem>>
    %724 = vector.extract_strided_slice %722 {offsets = [0, 0], sizes = [1, 256], strides = [1, 1]} : vector<2x256xf32> to vector<1x256xf32>
    %725 = vector.broadcast %723 : f32 to vector<1x256xf32>
    %726 = arith.mulf %725, %724 : vector<1x256xf32>
    %c1_385 = arith.constant 1 : index
    %c32_386 = arith.constant 32 : index
    %727 = memref.load %arg9[%c1_385, %c32_386] : memref<2x49xf32, #tpu.memory_space<smem>>
    %728 = vector.extract_strided_slice %722 {offsets = [1, 0], sizes = [1, 256], strides = [1, 1]} : vector<2x256xf32> to vector<1x256xf32>
    %729 = vector.broadcast %727 : f32 to vector<1x256xf32>
    %730 = arith.mulf %729, %728 : vector<1x256xf32>
    %731 = arith.addf %726, %730 : vector<1x256xf32>
    %c4_387 = arith.constant 4 : index
    %c0_388 = arith.constant 0 : index
    %732 = vector.load %arg8[%c4_387, %c0_388] : memref<7x256xf32, #tpu.memory_space<vmem>>, vector<1x256xf32>
    %733 = arith.mulf %731, %732 : vector<1x256xf32>
    %734 = arith.addf %721, %733 : vector<1x256xf32>
    %c0_389 = arith.constant 0 : index
    %c69_390 = arith.constant 69 : index
    %735 = vector.load %arg13[%c0_389, %c69_390] : memref<2x384xf32, #tpu.memory_space<vmem>>, vector<2x256xf32>
    %c0_391 = arith.constant 0 : index
    %c33_392 = arith.constant 33 : index
    %736 = memref.load %arg9[%c0_391, %c33_392] : memref<2x49xf32, #tpu.memory_space<smem>>
    %737 = vector.extract_strided_slice %735 {offsets = [0, 0], sizes = [1, 256], strides = [1, 1]} : vector<2x256xf32> to vector<1x256xf32>
    %738 = vector.broadcast %736 : f32 to vector<1x256xf32>
    %739 = arith.mulf %738, %737 : vector<1x256xf32>
    %c1_393 = arith.constant 1 : index
    %c33_394 = arith.constant 33 : index
    %740 = memref.load %arg9[%c1_393, %c33_394] : memref<2x49xf32, #tpu.memory_space<smem>>
    %741 = vector.extract_strided_slice %735 {offsets = [1, 0], sizes = [1, 256], strides = [1, 1]} : vector<2x256xf32> to vector<1x256xf32>
    %742 = vector.broadcast %740 : f32 to vector<1x256xf32>
    %743 = arith.mulf %742, %741 : vector<1x256xf32>
    %744 = arith.addf %739, %743 : vector<1x256xf32>
    %c5_395 = arith.constant 5 : index
    %c0_396 = arith.constant 0 : index
    %745 = vector.load %arg8[%c5_395, %c0_396] : memref<7x256xf32, #tpu.memory_space<vmem>>, vector<1x256xf32>
    %746 = arith.mulf %744, %745 : vector<1x256xf32>
    %747 = arith.addf %734, %746 : vector<1x256xf32>
    %c0_397 = arith.constant 0 : index
    %c70_398 = arith.constant 70 : index
    %748 = vector.load %arg13[%c0_397, %c70_398] : memref<2x384xf32, #tpu.memory_space<vmem>>, vector<2x256xf32>
    %c0_399 = arith.constant 0 : index
    %c34_400 = arith.constant 34 : index
    %749 = memref.load %arg9[%c0_399, %c34_400] : memref<2x49xf32, #tpu.memory_space<smem>>
    %750 = vector.extract_strided_slice %748 {offsets = [0, 0], sizes = [1, 256], strides = [1, 1]} : vector<2x256xf32> to vector<1x256xf32>
    %751 = vector.broadcast %749 : f32 to vector<1x256xf32>
    %752 = arith.mulf %751, %750 : vector<1x256xf32>
    %c1_401 = arith.constant 1 : index
    %c34_402 = arith.constant 34 : index
    %753 = memref.load %arg9[%c1_401, %c34_402] : memref<2x49xf32, #tpu.memory_space<smem>>
    %754 = vector.extract_strided_slice %748 {offsets = [1, 0], sizes = [1, 256], strides = [1, 1]} : vector<2x256xf32> to vector<1x256xf32>
    %755 = vector.broadcast %753 : f32 to vector<1x256xf32>
    %756 = arith.mulf %755, %754 : vector<1x256xf32>
    %757 = arith.addf %752, %756 : vector<1x256xf32>
    %c6_403 = arith.constant 6 : index
    %c0_404 = arith.constant 0 : index
    %758 = vector.load %arg8[%c6_403, %c0_404] : memref<7x256xf32, #tpu.memory_space<vmem>>, vector<1x256xf32>
    %759 = arith.mulf %757, %758 : vector<1x256xf32>
    %760 = arith.addf %747, %759 : vector<1x256xf32>
    %c0_405 = arith.constant 0 : index
    %c80_406 = arith.constant 80 : index
    %761 = vector.load %arg13[%c0_405, %c80_406] : memref<2x384xf32, #tpu.memory_space<vmem>>, vector<2x256xf32>
    %c0_407 = arith.constant 0 : index
    %c35_408 = arith.constant 35 : index
    %762 = memref.load %arg9[%c0_407, %c35_408] : memref<2x49xf32, #tpu.memory_space<smem>>
    %763 = vector.extract_strided_slice %761 {offsets = [0, 0], sizes = [1, 256], strides = [1, 1]} : vector<2x256xf32> to vector<1x256xf32>
    %764 = vector.broadcast %762 : f32 to vector<1x256xf32>
    %765 = arith.mulf %764, %763 : vector<1x256xf32>
    %c1_409 = arith.constant 1 : index
    %c35_410 = arith.constant 35 : index
    %766 = memref.load %arg9[%c1_409, %c35_410] : memref<2x49xf32, #tpu.memory_space<smem>>
    %767 = vector.extract_strided_slice %761 {offsets = [1, 0], sizes = [1, 256], strides = [1, 1]} : vector<2x256xf32> to vector<1x256xf32>
    %768 = vector.broadcast %766 : f32 to vector<1x256xf32>
    %769 = arith.mulf %768, %767 : vector<1x256xf32>
    %770 = arith.addf %765, %769 : vector<1x256xf32>
    %c0_411 = arith.constant 0 : index
    %c0_412 = arith.constant 0 : index
    %771 = vector.load %arg8[%c0_411, %c0_412] : memref<7x256xf32, #tpu.memory_space<vmem>>, vector<1x256xf32>
    %772 = arith.mulf %770, %771 : vector<1x256xf32>
    %773 = arith.addf %760, %772 : vector<1x256xf32>
    %c0_413 = arith.constant 0 : index
    %c81_414 = arith.constant 81 : index
    %774 = vector.load %arg13[%c0_413, %c81_414] : memref<2x384xf32, #tpu.memory_space<vmem>>, vector<2x256xf32>
    %c0_415 = arith.constant 0 : index
    %c36_416 = arith.constant 36 : index
    %775 = memref.load %arg9[%c0_415, %c36_416] : memref<2x49xf32, #tpu.memory_space<smem>>
    %776 = vector.extract_strided_slice %774 {offsets = [0, 0], sizes = [1, 256], strides = [1, 1]} : vector<2x256xf32> to vector<1x256xf32>
    %777 = vector.broadcast %775 : f32 to vector<1x256xf32>
    %778 = arith.mulf %777, %776 : vector<1x256xf32>
    %c1_417 = arith.constant 1 : index
    %c36_418 = arith.constant 36 : index
    %779 = memref.load %arg9[%c1_417, %c36_418] : memref<2x49xf32, #tpu.memory_space<smem>>
    %780 = vector.extract_strided_slice %774 {offsets = [1, 0], sizes = [1, 256], strides = [1, 1]} : vector<2x256xf32> to vector<1x256xf32>
    %781 = vector.broadcast %779 : f32 to vector<1x256xf32>
    %782 = arith.mulf %781, %780 : vector<1x256xf32>
    %783 = arith.addf %778, %782 : vector<1x256xf32>
    %c1_419 = arith.constant 1 : index
    %c0_420 = arith.constant 0 : index
    %784 = vector.load %arg8[%c1_419, %c0_420] : memref<7x256xf32, #tpu.memory_space<vmem>>, vector<1x256xf32>
    %785 = arith.mulf %783, %784 : vector<1x256xf32>
    %786 = arith.addf %773, %785 : vector<1x256xf32>
    %c0_421 = arith.constant 0 : index
    %c82_422 = arith.constant 82 : index
    %787 = vector.load %arg13[%c0_421, %c82_422] : memref<2x384xf32, #tpu.memory_space<vmem>>, vector<2x256xf32>
    %c0_423 = arith.constant 0 : index
    %c37_424 = arith.constant 37 : index
    %788 = memref.load %arg9[%c0_423, %c37_424] : memref<2x49xf32, #tpu.memory_space<smem>>
    %789 = vector.extract_strided_slice %787 {offsets = [0, 0], sizes = [1, 256], strides = [1, 1]} : vector<2x256xf32> to vector<1x256xf32>
    %790 = vector.broadcast %788 : f32 to vector<1x256xf32>
    %791 = arith.mulf %790, %789 : vector<1x256xf32>
    %c1_425 = arith.constant 1 : index
    %c37_426 = arith.constant 37 : index
    %792 = memref.load %arg9[%c1_425, %c37_426] : memref<2x49xf32, #tpu.memory_space<smem>>
    %793 = vector.extract_strided_slice %787 {offsets = [1, 0], sizes = [1, 256], strides = [1, 1]} : vector<2x256xf32> to vector<1x256xf32>
    %794 = vector.broadcast %792 : f32 to vector<1x256xf32>
    %795 = arith.mulf %794, %793 : vector<1x256xf32>
    %796 = arith.addf %791, %795 : vector<1x256xf32>
    %c2_427 = arith.constant 2 : index
    %c0_428 = arith.constant 0 : index
    %797 = vector.load %arg8[%c2_427, %c0_428] : memref<7x256xf32, #tpu.memory_space<vmem>>, vector<1x256xf32>
    %798 = arith.mulf %796, %797 : vector<1x256xf32>
    %799 = arith.addf %786, %798 : vector<1x256xf32>
    %c0_429 = arith.constant 0 : index
    %c83_430 = arith.constant 83 : index
    %800 = vector.load %arg13[%c0_429, %c83_430] : memref<2x384xf32, #tpu.memory_space<vmem>>, vector<2x256xf32>
    %c0_431 = arith.constant 0 : index
    %c38_432 = arith.constant 38 : index
    %801 = memref.load %arg9[%c0_431, %c38_432] : memref<2x49xf32, #tpu.memory_space<smem>>
    %802 = vector.extract_strided_slice %800 {offsets = [0, 0], sizes = [1, 256], strides = [1, 1]} : vector<2x256xf32> to vector<1x256xf32>
    %803 = vector.broadcast %801 : f32 to vector<1x256xf32>
    %804 = arith.mulf %803, %802 : vector<1x256xf32>
    %c1_433 = arith.constant 1 : index
    %c38_434 = arith.constant 38 : index
    %805 = memref.load %arg9[%c1_433, %c38_434] : memref<2x49xf32, #tpu.memory_space<smem>>
    %806 = vector.extract_strided_slice %800 {offsets = [1, 0], sizes = [1, 256], strides = [1, 1]} : vector<2x256xf32> to vector<1x256xf32>
    %807 = vector.broadcast %805 : f32 to vector<1x256xf32>
    %808 = arith.mulf %807, %806 : vector<1x256xf32>
    %809 = arith.addf %804, %808 : vector<1x256xf32>
    %c3_435 = arith.constant 3 : index
    %c0_436 = arith.constant 0 : index
    %810 = vector.load %arg8[%c3_435, %c0_436] : memref<7x256xf32, #tpu.memory_space<vmem>>, vector<1x256xf32>
    %811 = arith.mulf %809, %810 : vector<1x256xf32>
    %812 = arith.addf %799, %811 : vector<1x256xf32>
    %c0_437 = arith.constant 0 : index
    %c84_438 = arith.constant 84 : index
    %813 = vector.load %arg13[%c0_437, %c84_438] : memref<2x384xf32, #tpu.memory_space<vmem>>, vector<2x256xf32>
    %c0_439 = arith.constant 0 : index
    %c39 = arith.constant 39 : index
    %814 = memref.load %arg9[%c0_439, %c39] : memref<2x49xf32, #tpu.memory_space<smem>>
    %815 = vector.extract_strided_slice %813 {offsets = [0, 0], sizes = [1, 256], strides = [1, 1]} : vector<2x256xf32> to vector<1x256xf32>
    %816 = vector.broadcast %814 : f32 to vector<1x256xf32>
    %817 = arith.mulf %816, %815 : vector<1x256xf32>
    %c1_440 = arith.constant 1 : index
    %c39_441 = arith.constant 39 : index
    %818 = memref.load %arg9[%c1_440, %c39_441] : memref<2x49xf32, #tpu.memory_space<smem>>
    %819 = vector.extract_strided_slice %813 {offsets = [1, 0], sizes = [1, 256], strides = [1, 1]} : vector<2x256xf32> to vector<1x256xf32>
    %820 = vector.broadcast %818 : f32 to vector<1x256xf32>
    %821 = arith.mulf %820, %819 : vector<1x256xf32>
    %822 = arith.addf %817, %821 : vector<1x256xf32>
    %c4_442 = arith.constant 4 : index
    %c0_443 = arith.constant 0 : index
    %823 = vector.load %arg8[%c4_442, %c0_443] : memref<7x256xf32, #tpu.memory_space<vmem>>, vector<1x256xf32>
    %824 = arith.mulf %822, %823 : vector<1x256xf32>
    %825 = arith.addf %812, %824 : vector<1x256xf32>
    %c0_444 = arith.constant 0 : index
    %c85_445 = arith.constant 85 : index
    %826 = vector.load %arg13[%c0_444, %c85_445] : memref<2x384xf32, #tpu.memory_space<vmem>>, vector<2x256xf32>
    %c0_446 = arith.constant 0 : index
    %c40 = arith.constant 40 : index
    %827 = memref.load %arg9[%c0_446, %c40] : memref<2x49xf32, #tpu.memory_space<smem>>
    %828 = vector.extract_strided_slice %826 {offsets = [0, 0], sizes = [1, 256], strides = [1, 1]} : vector<2x256xf32> to vector<1x256xf32>
    %829 = vector.broadcast %827 : f32 to vector<1x256xf32>
    %830 = arith.mulf %829, %828 : vector<1x256xf32>
    %c1_447 = arith.constant 1 : index
    %c40_448 = arith.constant 40 : index
    %831 = memref.load %arg9[%c1_447, %c40_448] : memref<2x49xf32, #tpu.memory_space<smem>>
    %832 = vector.extract_strided_slice %826 {offsets = [1, 0], sizes = [1, 256], strides = [1, 1]} : vector<2x256xf32> to vector<1x256xf32>
    %833 = vector.broadcast %831 : f32 to vector<1x256xf32>
    %834 = arith.mulf %833, %832 : vector<1x256xf32>
    %835 = arith.addf %830, %834 : vector<1x256xf32>
    %c5_449 = arith.constant 5 : index
    %c0_450 = arith.constant 0 : index
    %836 = vector.load %arg8[%c5_449, %c0_450] : memref<7x256xf32, #tpu.memory_space<vmem>>, vector<1x256xf32>
    %837 = arith.mulf %835, %836 : vector<1x256xf32>
    %838 = arith.addf %825, %837 : vector<1x256xf32>
    %c0_451 = arith.constant 0 : index
    %c86_452 = arith.constant 86 : index
    %839 = vector.load %arg13[%c0_451, %c86_452] : memref<2x384xf32, #tpu.memory_space<vmem>>, vector<2x256xf32>
    %c0_453 = arith.constant 0 : index
    %c41 = arith.constant 41 : index
    %840 = memref.load %arg9[%c0_453, %c41] : memref<2x49xf32, #tpu.memory_space<smem>>
    %841 = vector.extract_strided_slice %839 {offsets = [0, 0], sizes = [1, 256], strides = [1, 1]} : vector<2x256xf32> to vector<1x256xf32>
    %842 = vector.broadcast %840 : f32 to vector<1x256xf32>
    %843 = arith.mulf %842, %841 : vector<1x256xf32>
    %c1_454 = arith.constant 1 : index
    %c41_455 = arith.constant 41 : index
    %844 = memref.load %arg9[%c1_454, %c41_455] : memref<2x49xf32, #tpu.memory_space<smem>>
    %845 = vector.extract_strided_slice %839 {offsets = [1, 0], sizes = [1, 256], strides = [1, 1]} : vector<2x256xf32> to vector<1x256xf32>
    %846 = vector.broadcast %844 : f32 to vector<1x256xf32>
    %847 = arith.mulf %846, %845 : vector<1x256xf32>
    %848 = arith.addf %843, %847 : vector<1x256xf32>
    %c6_456 = arith.constant 6 : index
    %c0_457 = arith.constant 0 : index
    %849 = vector.load %arg8[%c6_456, %c0_457] : memref<7x256xf32, #tpu.memory_space<vmem>>, vector<1x256xf32>
    %850 = arith.mulf %848, %849 : vector<1x256xf32>
    %851 = arith.addf %838, %850 : vector<1x256xf32>
    %c0_458 = arith.constant 0 : index
    %c96_459 = arith.constant 96 : index
    %852 = vector.load %arg13[%c0_458, %c96_459] : memref<2x384xf32, #tpu.memory_space<vmem>>, vector<2x256xf32>
    %c0_460 = arith.constant 0 : index
    %c42 = arith.constant 42 : index
    %853 = memref.load %arg9[%c0_460, %c42] : memref<2x49xf32, #tpu.memory_space<smem>>
    %854 = vector.extract_strided_slice %852 {offsets = [0, 0], sizes = [1, 256], strides = [1, 1]} : vector<2x256xf32> to vector<1x256xf32>
    %855 = vector.broadcast %853 : f32 to vector<1x256xf32>
    %856 = arith.mulf %855, %854 : vector<1x256xf32>
    %c1_461 = arith.constant 1 : index
    %c42_462 = arith.constant 42 : index
    %857 = memref.load %arg9[%c1_461, %c42_462] : memref<2x49xf32, #tpu.memory_space<smem>>
    %858 = vector.extract_strided_slice %852 {offsets = [1, 0], sizes = [1, 256], strides = [1, 1]} : vector<2x256xf32> to vector<1x256xf32>
    %859 = vector.broadcast %857 : f32 to vector<1x256xf32>
    %860 = arith.mulf %859, %858 : vector<1x256xf32>
    %861 = arith.addf %856, %860 : vector<1x256xf32>
    %c0_463 = arith.constant 0 : index
    %c0_464 = arith.constant 0 : index
    %862 = vector.load %arg8[%c0_463, %c0_464] : memref<7x256xf32, #tpu.memory_space<vmem>>, vector<1x256xf32>
    %863 = arith.mulf %861, %862 : vector<1x256xf32>
    %864 = arith.addf %851, %863 : vector<1x256xf32>
    %c0_465 = arith.constant 0 : index
    %c97_466 = arith.constant 97 : index
    %865 = vector.load %arg13[%c0_465, %c97_466] : memref<2x384xf32, #tpu.memory_space<vmem>>, vector<2x256xf32>
    %c0_467 = arith.constant 0 : index
    %c43 = arith.constant 43 : index
    %866 = memref.load %arg9[%c0_467, %c43] : memref<2x49xf32, #tpu.memory_space<smem>>
    %867 = vector.extract_strided_slice %865 {offsets = [0, 0], sizes = [1, 256], strides = [1, 1]} : vector<2x256xf32> to vector<1x256xf32>
    %868 = vector.broadcast %866 : f32 to vector<1x256xf32>
    %869 = arith.mulf %868, %867 : vector<1x256xf32>
    %c1_468 = arith.constant 1 : index
    %c43_469 = arith.constant 43 : index
    %870 = memref.load %arg9[%c1_468, %c43_469] : memref<2x49xf32, #tpu.memory_space<smem>>
    %871 = vector.extract_strided_slice %865 {offsets = [1, 0], sizes = [1, 256], strides = [1, 1]} : vector<2x256xf32> to vector<1x256xf32>
    %872 = vector.broadcast %870 : f32 to vector<1x256xf32>
    %873 = arith.mulf %872, %871 : vector<1x256xf32>
    %874 = arith.addf %869, %873 : vector<1x256xf32>
    %c1_470 = arith.constant 1 : index
    %c0_471 = arith.constant 0 : index
    %875 = vector.load %arg8[%c1_470, %c0_471] : memref<7x256xf32, #tpu.memory_space<vmem>>, vector<1x256xf32>
    %876 = arith.mulf %874, %875 : vector<1x256xf32>
    %877 = arith.addf %864, %876 : vector<1x256xf32>
    %c0_472 = arith.constant 0 : index
    %c98_473 = arith.constant 98 : index
    %878 = vector.load %arg13[%c0_472, %c98_473] : memref<2x384xf32, #tpu.memory_space<vmem>>, vector<2x256xf32>
    %c0_474 = arith.constant 0 : index
    %c44 = arith.constant 44 : index
    %879 = memref.load %arg9[%c0_474, %c44] : memref<2x49xf32, #tpu.memory_space<smem>>
    %880 = vector.extract_strided_slice %878 {offsets = [0, 0], sizes = [1, 256], strides = [1, 1]} : vector<2x256xf32> to vector<1x256xf32>
    %881 = vector.broadcast %879 : f32 to vector<1x256xf32>
    %882 = arith.mulf %881, %880 : vector<1x256xf32>
    %c1_475 = arith.constant 1 : index
    %c44_476 = arith.constant 44 : index
    %883 = memref.load %arg9[%c1_475, %c44_476] : memref<2x49xf32, #tpu.memory_space<smem>>
    %884 = vector.extract_strided_slice %878 {offsets = [1, 0], sizes = [1, 256], strides = [1, 1]} : vector<2x256xf32> to vector<1x256xf32>
    %885 = vector.broadcast %883 : f32 to vector<1x256xf32>
    %886 = arith.mulf %885, %884 : vector<1x256xf32>
    %887 = arith.addf %882, %886 : vector<1x256xf32>
    %c2_477 = arith.constant 2 : index
    %c0_478 = arith.constant 0 : index
    %888 = vector.load %arg8[%c2_477, %c0_478] : memref<7x256xf32, #tpu.memory_space<vmem>>, vector<1x256xf32>
    %889 = arith.mulf %887, %888 : vector<1x256xf32>
    %890 = arith.addf %877, %889 : vector<1x256xf32>
    %c0_479 = arith.constant 0 : index
    %c99_480 = arith.constant 99 : index
    %891 = vector.load %arg13[%c0_479, %c99_480] : memref<2x384xf32, #tpu.memory_space<vmem>>, vector<2x256xf32>
    %c0_481 = arith.constant 0 : index
    %c45 = arith.constant 45 : index
    %892 = memref.load %arg9[%c0_481, %c45] : memref<2x49xf32, #tpu.memory_space<smem>>
    %893 = vector.extract_strided_slice %891 {offsets = [0, 0], sizes = [1, 256], strides = [1, 1]} : vector<2x256xf32> to vector<1x256xf32>
    %894 = vector.broadcast %892 : f32 to vector<1x256xf32>
    %895 = arith.mulf %894, %893 : vector<1x256xf32>
    %c1_482 = arith.constant 1 : index
    %c45_483 = arith.constant 45 : index
    %896 = memref.load %arg9[%c1_482, %c45_483] : memref<2x49xf32, #tpu.memory_space<smem>>
    %897 = vector.extract_strided_slice %891 {offsets = [1, 0], sizes = [1, 256], strides = [1, 1]} : vector<2x256xf32> to vector<1x256xf32>
    %898 = vector.broadcast %896 : f32 to vector<1x256xf32>
    %899 = arith.mulf %898, %897 : vector<1x256xf32>
    %900 = arith.addf %895, %899 : vector<1x256xf32>
    %c3_484 = arith.constant 3 : index
    %c0_485 = arith.constant 0 : index
    %901 = vector.load %arg8[%c3_484, %c0_485] : memref<7x256xf32, #tpu.memory_space<vmem>>, vector<1x256xf32>
    %902 = arith.mulf %900, %901 : vector<1x256xf32>
    %903 = arith.addf %890, %902 : vector<1x256xf32>
    %c0_486 = arith.constant 0 : index
    %c100_487 = arith.constant 100 : index
    %904 = vector.load %arg13[%c0_486, %c100_487] : memref<2x384xf32, #tpu.memory_space<vmem>>, vector<2x256xf32>
    %c0_488 = arith.constant 0 : index
    %c46 = arith.constant 46 : index
    %905 = memref.load %arg9[%c0_488, %c46] : memref<2x49xf32, #tpu.memory_space<smem>>
    %906 = vector.extract_strided_slice %904 {offsets = [0, 0], sizes = [1, 256], strides = [1, 1]} : vector<2x256xf32> to vector<1x256xf32>
    %907 = vector.broadcast %905 : f32 to vector<1x256xf32>
    %908 = arith.mulf %907, %906 : vector<1x256xf32>
    %c1_489 = arith.constant 1 : index
    %c46_490 = arith.constant 46 : index
    %909 = memref.load %arg9[%c1_489, %c46_490] : memref<2x49xf32, #tpu.memory_space<smem>>
    %910 = vector.extract_strided_slice %904 {offsets = [1, 0], sizes = [1, 256], strides = [1, 1]} : vector<2x256xf32> to vector<1x256xf32>
    %911 = vector.broadcast %909 : f32 to vector<1x256xf32>
    %912 = arith.mulf %911, %910 : vector<1x256xf32>
    %913 = arith.addf %908, %912 : vector<1x256xf32>
    %c4_491 = arith.constant 4 : index
    %c0_492 = arith.constant 0 : index
    %914 = vector.load %arg8[%c4_491, %c0_492] : memref<7x256xf32, #tpu.memory_space<vmem>>, vector<1x256xf32>
    %915 = arith.mulf %913, %914 : vector<1x256xf32>
    %916 = arith.addf %903, %915 : vector<1x256xf32>
    %c0_493 = arith.constant 0 : index
    %c101_494 = arith.constant 101 : index
    %917 = vector.load %arg13[%c0_493, %c101_494] : memref<2x384xf32, #tpu.memory_space<vmem>>, vector<2x256xf32>
    %c0_495 = arith.constant 0 : index
    %c47 = arith.constant 47 : index
    %918 = memref.load %arg9[%c0_495, %c47] : memref<2x49xf32, #tpu.memory_space<smem>>
    %919 = vector.extract_strided_slice %917 {offsets = [0, 0], sizes = [1, 256], strides = [1, 1]} : vector<2x256xf32> to vector<1x256xf32>
    %920 = vector.broadcast %918 : f32 to vector<1x256xf32>
    %921 = arith.mulf %920, %919 : vector<1x256xf32>
    %c1_496 = arith.constant 1 : index
    %c47_497 = arith.constant 47 : index
    %922 = memref.load %arg9[%c1_496, %c47_497] : memref<2x49xf32, #tpu.memory_space<smem>>
    %923 = vector.extract_strided_slice %917 {offsets = [1, 0], sizes = [1, 256], strides = [1, 1]} : vector<2x256xf32> to vector<1x256xf32>
    %924 = vector.broadcast %922 : f32 to vector<1x256xf32>
    %925 = arith.mulf %924, %923 : vector<1x256xf32>
    %926 = arith.addf %921, %925 : vector<1x256xf32>
    %c5_498 = arith.constant 5 : index
    %c0_499 = arith.constant 0 : index
    %927 = vector.load %arg8[%c5_498, %c0_499] : memref<7x256xf32, #tpu.memory_space<vmem>>, vector<1x256xf32>
    %928 = arith.mulf %926, %927 : vector<1x256xf32>
    %929 = arith.addf %916, %928 : vector<1x256xf32>
    %c0_500 = arith.constant 0 : index
    %c102_501 = arith.constant 102 : index
    %930 = vector.load %arg13[%c0_500, %c102_501] : memref<2x384xf32, #tpu.memory_space<vmem>>, vector<2x256xf32>
    %c0_502 = arith.constant 0 : index
    %c48_503 = arith.constant 48 : index
    %931 = memref.load %arg9[%c0_502, %c48_503] : memref<2x49xf32, #tpu.memory_space<smem>>
    %932 = vector.extract_strided_slice %930 {offsets = [0, 0], sizes = [1, 256], strides = [1, 1]} : vector<2x256xf32> to vector<1x256xf32>
    %933 = vector.broadcast %931 : f32 to vector<1x256xf32>
    %934 = arith.mulf %933, %932 : vector<1x256xf32>
    %c1_504 = arith.constant 1 : index
    %c48_505 = arith.constant 48 : index
    %935 = memref.load %arg9[%c1_504, %c48_505] : memref<2x49xf32, #tpu.memory_space<smem>>
    %936 = vector.extract_strided_slice %930 {offsets = [1, 0], sizes = [1, 256], strides = [1, 1]} : vector<2x256xf32> to vector<1x256xf32>
    %937 = vector.broadcast %935 : f32 to vector<1x256xf32>
    %938 = arith.mulf %937, %936 : vector<1x256xf32>
    %939 = arith.addf %934, %938 : vector<1x256xf32>
    %c6_506 = arith.constant 6 : index
    %c0_507 = arith.constant 0 : index
    %940 = vector.load %arg8[%c6_506, %c0_507] : memref<7x256xf32, #tpu.memory_space<vmem>>, vector<1x256xf32>
    %941 = arith.mulf %939, %940 : vector<1x256xf32>
    %942 = arith.addf %929, %941 : vector<1x256xf32>
    %cst_508 = arith.constant 0.000000e+00 : f32
    %943 = vector.broadcast %cst_508 : f32 to vector<1x256xf32>
    %944 = arith.subf %943, %942 : vector<1x256xf32>
    %945 = math.exp %944 : vector<1x256xf32>
    %cst_509 = arith.constant 1.000000e+00 : f32
    %946 = vector.broadcast %cst_509 : f32 to vector<1x256xf32>
    %947 = arith.addf %946, %945 : vector<1x256xf32>
    %cst_510 = arith.constant 1.000000e+00 : f32
    %948 = vector.broadcast %cst_510 : f32 to vector<1x256xf32>
    %949 = arith.divf %948, %947 : vector<1x256xf32>
    %950 = vector.broadcast %294 : vector<32x1xf32> to vector<32x256xf32>
    %951 = arith.mulf %258, %950 : vector<32x256xf32>
    %952 = vector.broadcast %949 : vector<1x256xf32> to vector<32x256xf32>
    %953 = arith.mulf %258, %952 : vector<32x256xf32>
    %954 = tpu.concatenate %951, %953 in 0 : vector<32x256xf32>, vector<32x256xf32> -> vector<64x256xf32>
    %955 = arith.truncf %954 : vector<64x256xf32> to vector<64x256xbf16>
    %c0_511 = arith.constant 0 : index
    %c0_512 = arith.constant 0 : index
    %956 = vector.load %arg6[%c0_511, %c0_512] : memref<32x64xbf16, #tpu.memory_space<vmem>>, vector<32x64xbf16>
    %cst_513 = arith.constant dense<0.000000e+00> : vector<32x256xf32>
    %957 = tpu.matmul %956, %955, %cst_513 {dimension_numbers = #tpu.dot_dimension_numbers<[1], [0], [0], [1], [0, 0, 1, 1], [], []>} : vector<32x64xbf16>, vector<64x256xbf16>, vector<32x256xf32> -> vector<32x256xf32>
    %c0_514 = arith.constant 0 : index
    %c0_515 = arith.constant 0 : index
    %958 = vector.load %arg7[%c0_514, %c0_515] : memref<32x1xf32, #tpu.memory_space<vmem>>, vector<32x1xf32>
    %959 = vector.broadcast %958 : vector<32x1xf32> to vector<32x256xf32>
    %960 = arith.addf %957, %959 : vector<32x256xf32>
    %961 = arith.addf %960, %258 : vector<32x256xf32>
    %c0_516 = arith.constant 0 : index
    %c0_517 = arith.constant 0 : index
    %c0_518 = arith.constant 0 : index
    %962 = vector.load %arg10[%c0_516, %c0_517, %c0_518] : memref<1x32x256xf32, #tpu.memory_space<vmem>>, vector<1x32x256xf32>
    %963 = vector.shape_cast %962 : vector<1x32x256xf32> to vector<32x256xf32>
    %964 = vector.shape_cast %961 : vector<32x256xf32> to vector<1x32x256xf32>
    tpu.vector_store %arg10[%c0_516, %c0_517, %c0_518], %964 {strides = array<i32>} : memref<1x32x256xf32, #tpu.memory_space<vmem>>, vector<1x32x256xf32>,
    return
  }
  func.func @transform_0(%arg0: i32) -> (i32, i32, i32) {
    %c0_i32 = arith.constant 0 : i32
    %c0_i32_0 = arith.constant 0 : i32
    %c0_i32_1 = arith.constant 0 : i32
    return %arg0, %c0_i32, %c0_i32_0 : i32, i32, i32
  }
  func.func @transform_1(%arg0: i32) -> (i32, i32) {
    %c0_i32 = arith.constant 0 : i32
    %c0_i32_0 = arith.constant 0 : i32
    %c0_i32_1 = arith.constant 0 : i32
    return %c0_i32, %c0_i32_0 : i32, i32
  }
  func.func @transform_2(%arg0: i32) -> (i32, i32) {
    %c0_i32 = arith.constant 0 : i32
    %c0_i32_0 = arith.constant 0 : i32
    %c0_i32_1 = arith.constant 0 : i32
    return %c0_i32, %c0_i32_0 : i32, i32
  }
  func.func @transform_3(%arg0: i32) -> (i32, i32) {
    %c0_i32 = arith.constant 0 : i32
    %c0_i32_0 = arith.constant 0 : i32
    %c0_i32_1 = arith.constant 0 : i32
    return %c0_i32, %c0_i32_0 : i32, i32
  }
  func.func @transform_4(%arg0: i32) -> (i32, i32) {
    %c0_i32 = arith.constant 0 : i32
    %c0_i32_0 = arith.constant 0 : i32
    %c0_i32_1 = arith.constant 0 : i32
    return %c0_i32, %c0_i32_0 : i32, i32
  }
  func.func @transform_5(%arg0: i32) -> (i32, i32) {
    %c0_i32 = arith.constant 0 : i32
    %c0_i32_0 = arith.constant 0 : i32
    %c0_i32_1 = arith.constant 0 : i32
    return %c0_i32, %c0_i32_0 : i32, i32
  }
  func.func @transform_6(%arg0: i32) -> (i32, i32) {
    %c0_i32 = arith.constant 0 : i32
    %c0_i32_0 = arith.constant 0 : i32
    %c0_i32_1 = arith.constant 0 : i32
    return %c0_i32, %c0_i32_0 : i32, i32
  }
  func.func @transform_7(%arg0: i32) -> (i32, i32) {
    %c0_i32 = arith.constant 0 : i32
    %c0_i32_0 = arith.constant 0 : i32
    %c0_i32_1 = arith.constant 0 : i32
    return %c0_i32, %c0_i32_0 : i32, i32
  }
  func.func @transform_8(%arg0: i32) -> (i32, i32) {
    %c0_i32 = arith.constant 0 : i32
    %c0_i32_0 = arith.constant 0 : i32
    %c0_i32_1 = arith.constant 0 : i32
    return %c0_i32, %c0_i32_0 : i32, i32
  }
  func.func @transform_9(%arg0: i32) -> (i32, i32, i32) {
    %c0_i32 = arith.constant 0 : i32
    %c0_i32_0 = arith.constant 0 : i32
    %c0_i32_1 = arith.constant 0 : i32
    return %arg0, %c0_i32, %c0_i32_0 : i32, i32, i32
  }
}

</mosaic_0001>

<llo_original>
// kernel: _lambda_.1
$region0: #{_lambda_.1}
  #allocation0 [shape = 'u32[]', space=smem, size = 0x4, offset = 0x4, fixed_abs, tag = 'smem constant byte address 0x4 - core index']
  #allocation1 [shape = 'u32[144,128]{1,0:T(1,128)}', space=vmem, size = 0x12000, scoped, tag = 'internal scratch']
  #allocation2 [shape = 'bf16[32,384]{1,0:T(16,128)(2,1)}', space=vmem, size = 0x6000, scoped, tag = 'scratch operand']
  #allocation3 [shape = 'bf16[1568,256]{1,0:T(16,128)(2,1)}', space=vmem, size = 0xc4000, scoped, tag = 'scratch operand']
  #allocation4 [shape = 'f32[2,384]{1,0:T(2,128)}', space=vmem, size = 0xc00, scoped, tag = 'scratch operand']
  %s0 = inlined_call_operand.vmem [shape: f32[2,32,256], index: 0, kind: input, shape index: {}]
  %s1 = inlined_call_operand.vmem [shape: bf16[32,1568], index: 1, kind: input, shape index: {}]
  %s2 = inlined_call_operand.vmem [shape: f32[32,256], index: 2, kind: input, shape index: {}]
  %s3 = inlined_call_operand.vmem [shape: f32[32,2], index: 3, kind: input, shape index: {}]
  %s4 = inlined_call_operand.vmem [shape: f32[32,2], index: 4, kind: input, shape index: {}]
  %s5 = inlined_call_operand.vmem [shape: bf16[32,64], index: 5, kind: input, shape index: {}]
  %s6 = inlined_call_operand.vmem [shape: f32[32,1], index: 6, kind: input, shape index: {}]
  %s7 = inlined_call_operand.vmem [shape: f32[7,256], index: 7, kind: input, shape index: {}]
  %s8 = inlined_call_operand.vmem [shape: f32[2,49], index: 8, kind: input, shape index: {}]
  %s9 = inlined_call_operand.vmem [shape: f32[2,32,256], index: 9, kind: output, shape index: {}]
  %s10 = sld [smem:[#allocation0]]
  $region73: #{_lambda_.1} parent=0
    _
  %s12 = ssub.s32 1, %s10
  %s13 = scalar_select 0, %s12, %s10
  $region1: #{_lambda_.1} parent=0
    #allocation5 [shape = 'u8[1024]{0}', space=smem, size = 0x400, scoped, tag = 'input window, operand 8, single buffered']
    #allocation6 [shape = 's32[2]{0}', space=sflag, size = 0x8, scoped, tag = 'scoped memory for _lambda_.1']
    %14 = vsyncpa [#allocation6], 0
    loop: start=0, step=1, limit=4
    $region2: #{_lambda_.1} parent=1 // loop_pre_header
      _
    $region3: #{_lambda_.1} parent=1 // loop_header
      %s16 = sphi 0, %s20
      %p17 = scmp.ge.s32.totalorder %s16, 4
      %s26 = sphi 0, %s28
      %s29 = sphi 0, %s26
      %s30 = sphi 0, %s29
      %s46 = sphi 0, %s30
      %s50 = sphi 0, %s50
      %s52 = sphi 0, %s50
      %s53 = sphi 0, %s52
      %s67 = sphi 0, %s53
      %s71 = sphi 0, %s71
      %s73 = sphi 0, %s71
      %s74 = sphi 0, %s73
      %s88 = sphi 0, %s74
      %s92 = sphi 0, %s92
      %s94 = sphi 0, %s92
      %s95 = sphi 0, %s94
      %s109 = sphi 0, %s95
      %s113 = sphi 0, %s113
      %s115 = sphi 0, %s113
      %s116 = sphi 0, %s115
      %s130 = sphi 0, %s116
      %s134 = sphi 0, %s134
      %s136 = sphi 0, %s134
      %s137 = sphi 0, %s136
      %s151 = sphi 0, %s137
      %s155 = sphi 0, %s155
      %s157 = sphi 0, %s155
      %s158 = sphi 0, %s157
      %s172 = sphi 0, %s158
      %s176 = sphi 0, %s176
      %s178 = sphi 0, %s176
      %s179 = sphi 0, %s178
      %s193 = sphi 0, %s179
      %s197 = sphi 0, %s197
      %s199 = sphi 0, %s197
      %s200 = sphi 0, %s199
      %s214 = sphi 0, %s200
      %s220 = sphi 0, %s222
      %s223 = sphi 0, %s220
      %s224 = sphi 0, %s223
      %s240 = sphi 0, %s224
    $region4: #{_lambda_.1} parent=1 // loop_header_branch
      %19 = sbr.rel (%p17) target = $region8
    $region5: #{_lambda_.1} parent=1 // loop_body
      %s21 = ssub.s32 %s16, 1
      %s22 = ssub.s32 %s16, 2
      %s23 = sadd.s32 %s16, 1
      %s24 = ssub.s32 %s16, %s23
      %p25 = scmp.eq.s32.totalorder %s24, 0
      %s27 = sadd.s32 %s26, 1
      %s28 = scalar_select %p25, %s26, %s27
      %p31 = pneg %p25
      %p32 = scmp.eq.s32.totalorder %s16, 1
      %p33 = por %p31, %p32
      %p34 = scmp.ne.s32.totalorder %s26, %s29
      %p35 = scmp.eq.s32.totalorder %s16, 0
      %p36 = por %p34, %p35
      %p37 = scmp.ne.s32.totalorder %s26, %s29
      %p38 = scmp.eq.s32.totalorder %s21, 1
      %p39 = por %p37, %p38
      %p40 = scmp.ne.s32.totalorder %s29, %s30
      %p41 = scmp.eq.s32.totalorder %s21, 0
      %p42 = por %p40, %p41
      %p43 = scmp.ne.s32.totalorder %s29, %s30
      %p44 = scmp.eq.s32.totalorder %s22, 1
      %p45 = por %p43, %p44
      %p47 = scmp.ne.s32.totalorder %s30, %s46
      %p48 = scmp.eq.s32.totalorder %s22, 0
      %p49 = por %p47, %p48
      %s51 = sadd.s32 %s50, 1
      %p54 = scmp.eq.s32.totalorder %s16, 1
      %p55 = scmp.ne.s32.totalorder %s50, %s52
      %p56 = scmp.eq.s32.totalorder %s16, 0
      %p57 = por %p55, %p56
      %p58 = scmp.ne.s32.totalorder %s50, %s52
      %p59 = scmp.eq.s32.totalorder %s21, 1
      %p60 = por %p58, %p59
      %p61 = scmp.ne.s32.totalorder %s52, %s53
      %p62 = scmp.eq.s32.totalorder %s21, 0
      %p63 = por %p61, %p62
      %p64 = scmp.ne.s32.totalorder %s52, %s53
      %p65 = scmp.eq.s32.totalorder %s22, 1
      %p66 = por %p64, %p65
      %p68 = scmp.ne.s32.totalorder %s53, %s67
      %p69 = scmp.eq.s32.totalorder %s22, 0
      %p70 = por %p68, %p69
      %s72 = sadd.s32 %s71, 1
      %p75 = scmp.eq.s32.totalorder %s16, 1
      %p76 = scmp.ne.s32.totalorder %s71, %s73
      %p77 = scmp.eq.s32.totalorder %s16, 0
      %p78 = por %p76, %p77
      %p79 = scmp.ne.s32.totalorder %s71, %s73
      %p80 = scmp.eq.s32.totalorder %s21, 1
      %p81 = por %p79, %p80
      %p82 = scmp.ne.s32.totalorder %s73, %s74
      %p83 = scmp.eq.s32.totalorder %s21, 0
      %p84 = por %p82, %p83
      %p85 = scmp.ne.s32.totalorder %s73, %s74
      %p86 = scmp.eq.s32.totalorder %s22, 1
      %p87 = por %p85, %p86
      %p89 = scmp.ne.s32.totalorder %s74, %s88
      %p90 = scmp.eq.s32.totalorder %s22, 0
      %p91 = por %p89, %p90
      %s93 = sadd.s32 %s92, 1
      %p96 = scmp.eq.s32.totalorder %s16, 1
      %p97 = scmp.ne.s32.totalorder %s92, %s94
      %p98 = scmp.eq.s32.totalorder %s16, 0
      %p99 = por %p97, %p98
      %p100 = scmp.ne.s32.totalorder %s92, %s94
      %p101 = scmp.eq.s32.totalorder %s21, 1
      %p102 = por %p100, %p101
      %p103 = scmp.ne.s32.totalorder %s94, %s95
      %p104 = scmp.eq.s32.totalorder %s21, 0
      %p105 = por %p103, %p104
      %p106 = scmp.ne.s32.totalorder %s94, %s95
      %p107 = scmp.eq.s32.totalorder %s22, 1
      %p108 = por %p106, %p107
      %p110 = scmp.ne.s32.totalorder %s95, %s109
      %p111 = scmp.eq.s32.totalorder %s22, 0
      %p112 = por %p110, %p111
      %s114 = sadd.s32 %s113, 1
      %p117 = scmp.eq.s32.totalorder %s16, 1
      %p118 = scmp.ne.s32.totalorder %s113, %s115
      %p119 = scmp.eq.s32.totalorder %s16, 0
      %p120 = por %p118, %p119
      %p121 = scmp.ne.s32.totalorder %s113, %s115
      %p122 = scmp.eq.s32.totalorder %s21, 1
      %p123 = por %p121, %p122
      %p124 = scmp.ne.s32.totalorder %s115, %s116
      %p125 = scmp.eq.s32.totalorder %s21, 0
      %p126 = por %p124, %p125
      %p127 = scmp.ne.s32.totalorder %s115, %s116
      %p128 = scmp.eq.s32.totalorder %s22, 1
      %p129 = por %p127, %p128
      %p131 = scmp.ne.s32.totalorder %s116, %s130
      %p132 = scmp.eq.s32.totalorder %s22, 0
      %p133 = por %p131, %p132
      %s135 = sadd.s32 %s134, 1
      %p138 = scmp.eq.s32.totalorder %s16, 1
      %p139 = scmp.ne.s32.totalorder %s134, %s136
      %p140 = scmp.eq.s32.totalorder %s16, 0
      %p141 = por %p139, %p140
      %p142 = scmp.ne.s32.totalorder %s134, %s136
      %p143 = scmp.eq.s32.totalorder %s21, 1
      %p144 = por %p142, %p143
      %p145 = scmp.ne.s32.totalorder %s136, %s137
      %p146 = scmp.eq.s32.totalorder %s21, 0
      %p147 = por %p145, %p146
      %p148 = scmp.ne.s32.totalorder %s136, %s137
      %p149 = scmp.eq.s32.totalorder %s22, 1
      %p150 = por %p148, %p149
      %p152 = scmp.ne.s32.totalorder %s137, %s151
      %p153 = scmp.eq.s32.totalorder %s22, 0
      %p154 = por %p152, %p153
      %s156 = sadd.s32 %s155, 1
      %p159 = scmp.eq.s32.totalorder %s16, 1
      %p160 = scmp.ne.s32.totalorder %s155, %s157
      %p161 = scmp.eq.s32.totalorder %s16, 0
      %p162 = por %p160, %p161
      %p163 = scmp.ne.s32.totalorder %s155, %s157
      %p164 = scmp.eq.s32.totalorder %s21, 1
      %p165 = por %p163, %p164
      %p166 = scmp.ne.s32.totalorder %s157, %s158
      %p167 = scmp.eq.s32.totalorder %s21, 0
      %p168 = por %p166, %p167
      %p169 = scmp.ne.s32.totalorder %s157, %s158
      %p170 = scmp.eq.s32.totalorder %s22, 1
      %p171 = por %p169, %p170
      %p173 = scmp.ne.s32.totalorder %s158, %s172
      %p174 = scmp.eq.s32.totalorder %s22, 0
      %p175 = por %p173, %p174
      %s177 = sadd.s32 %s176, 1
      %p180 = scmp.eq.s32.totalorder %s16, 1
      %p181 = scmp.ne.s32.totalorder %s176, %s178
      %p182 = scmp.eq.s32.totalorder %s16, 0
      %p183 = por %p181, %p182
      %p184 = scmp.ne.s32.totalorder %s176, %s178
      %p185 = scmp.eq.s32.totalorder %s21, 1
      %p186 = por %p184, %p185
      %p187 = scmp.ne.s32.totalorder %s178, %s179
      %p188 = scmp.eq.s32.totalorder %s21, 0
      %p189 = por %p187, %p188
      %p190 = scmp.ne.s32.totalorder %s178, %s179
      %p191 = scmp.eq.s32.totalorder %s22, 1
      %p192 = por %p190, %p191
      %p194 = scmp.ne.s32.totalorder %s179, %s193
      %p195 = scmp.eq.s32.totalorder %s22, 0
      %p196 = por %p194, %p195
      %s198 = sadd.s32 %s197, 1
      %p201 = scmp.eq.s32.totalorder %s16, 1
      %p202 = scmp.ne.s32.totalorder %s197, %s199
      %p203 = scmp.eq.s32.totalorder %s16, 0
      %p204 = por %p202, %p203
      %p205 = scmp.ne.s32.totalorder %s197, %s199
      %p206 = scmp.eq.s32.totalorder %s21, 1
      %p207 = por %p205, %p206
      %p208 = scmp.ne.s32.totalorder %s199, %s200
      %p209 = scmp.eq.s32.totalorder %s21, 0
      %p210 = por %p208, %p209
      %p211 = scmp.ne.s32.totalorder %s199, %s200
      %p212 = scmp.eq.s32.totalorder %s22, 1
      %p213 = por %p211, %p212
      %p215 = scmp.ne.s32.totalorder %s200, %s214
      %p216 = scmp.eq.s32.totalorder %s22, 0
      %p217 = por %p215, %p216
      %s218 = ssub.s32 %s16, %s23
      %p219 = scmp.eq.s32.totalorder %s218, 0
      %s221 = sadd.s32 %s220, 1
      %s222 = scalar_select %p219, %s220, %s221
      %p225 = pneg %p219
      %p226 = scmp.eq.s32.totalorder %s16, 1
      %p227 = por %p225, %p226
      %p228 = scmp.ne.s32.totalorder %s220, %s223
      %p229 = scmp.eq.s32.totalorder %s16, 0
      %p230 = por %p228, %p229
      %p231 = scmp.ne.s32.totalorder %s220, %s223
      %p232 = scmp.eq.s32.totalorder %s21, 1
      %p233 = por %p231, %p232
      %p234 = scmp.ne.s32.totalorder %s223, %s224
      %p235 = scmp.eq.s32.totalorder %s21, 0
      %p236 = por %p234, %p235
      %p237 = scmp.ne.s32.totalorder %s223, %s224
      %p238 = scmp.eq.s32.totalorder %s22, 1
      %p239 = por %p237, %p238
      %p241 = scmp.ne.s32.totalorder %s224, %s240
      %p242 = scmp.eq.s32.totalorder %s22, 0
      %p243 = por %p241, %p242
      %p244 = scmp.le.s32.totalorder 1, %s16
      %p245 = scmp.lt.s32.totalorder %s16, 3
      %p246 = pnand %p244, %p245
      %p247 = pneg %p246
      // Predicated region
      $region9: #{_lambda_.1} parent=5 // pred_check
        _
      $region10: #{_lambda_.1} parent=5 // pred_check_branch
        %249 = sbr.rel (%p246) target = $region12
      $region11: #{_lambda_.1} parent=5 // pred_region
        %s250 = ssub.s32 %s16, 1
        // Predicated region
        $region13: #{_lambda_.1} parent=11 // pred_check
          %p251 = pneg %p63
        $region14: #{_lambda_.1} parent=11 // pred_check_branch
          %253 = sbr.rel (%p251) target = $region16
        $region15: #{_lambda_.1} parent=11 // pred_region
          _
        $region16: #{_lambda_.1} parent=11 // pred_fallthru
          _
        // Predicated region
        $region17: #{_lambda_.1} parent=11 // pred_check
          %p254 = pneg %p84
        $region18: #{_lambda_.1} parent=11 // pred_check_branch
          %256 = sbr.rel (%p254) target = $region20
        $region19: #{_lambda_.1} parent=11 // pred_region
          _
        $region20: #{_lambda_.1} parent=11 // pred_fallthru
          _
        // Predicated region
        $region21: #{_lambda_.1} parent=11 // pred_check
          %p257 = pneg %p105
        $region22: #{_lambda_.1} parent=11 // pred_check_branch
          %259 = sbr.rel (%p257) target = $region24
        $region23: #{_lambda_.1} parent=11 // pred_region
          _
        $region24: #{_lambda_.1} parent=11 // pred_fallthru
          _
        // Predicated region
        $region25: #{_lambda_.1} parent=11 // pred_check
          %p260 = pneg %p126
        $region26: #{_lambda_.1} parent=11 // pred_check_branch
          %262 = sbr.rel (%p260) target = $region28
        $region27: #{_lambda_.1} parent=11 // pred_region
          _
        $region28: #{_lambda_.1} parent=11 // pred_fallthru
          _
        // Predicated region
        $region29: #{_lambda_.1} parent=11 // pred_check
          %p263 = pneg %p147
        $region30: #{_lambda_.1} parent=11 // pred_check_branch
          %265 = sbr.rel (%p263) target = $region32
        $region31: #{_lambda_.1} parent=11 // pred_region
          _
        $region32: #{_lambda_.1} parent=11 // pred_fallthru
          _
        // Predicated region
        $region33: #{_lambda_.1} parent=11 // pred_check
          %p266 = pneg %p168
        $region34: #{_lambda_.1} parent=11 // pred_check_branch
          %268 = sbr.rel (%p266) target = $region36
        $region35: #{_lambda_.1} parent=11 // pred_region
          _
        $region36: #{_lambda_.1} parent=11 // pred_fallthru
          _
        // Predicated region
        $region37: #{_lambda_.1} parent=11 // pred_check
          %p269 = pneg %p189
        $region38: #{_lambda_.1} parent=11 // pred_check_branch
          %271 = sbr.rel (%p269) target = $region40
        $region39: #{_lambda_.1} parent=11 // pred_region
          _
        $region40: #{_lambda_.1} parent=11 // pred_fallthru
          _
        // Predicated region
        $region41: #{_lambda_.1} parent=11 // pred_check
          %p272 = pneg %p210
        $region42: #{_lambda_.1} parent=11 // pred_check_branch
          %274 = sbr.rel (%p272) target = $region44
        $region43: #{_lambda_.1} parent=11 // pred_region
          %s276 = ssub.s32 32, 32
          %277 = vsyncadd [#allocation6], %s276
          %s279 = sshll.u32 %s8, 4
          %s280 = int_to_ptr.vmem [resolvable:$true] %s279
          %282 = dma.vmem_to_smem %s280, 32, [#allocation5], [#allocation6]
        $region44: #{_lambda_.1} parent=11 // pred_fallthru
          _
      $region12: #{_lambda_.1} parent=5 // pred_fallthru
        _
      %p283 = scmp.lt.s32.totalorder %s16, 2
      // Predicated region
      $region45: #{_lambda_.1} parent=5 // pred_check
        %p284 = pneg %p283
      $region46: #{_lambda_.1} parent=5 // pred_check_branch
        %286 = sbr.rel (%p284) target = $region48
      $region47: #{_lambda_.1} parent=5 // pred_region
        // Predicated region
        $region49: #{_lambda_.1} parent=47 // pred_check
          %p287 = pneg %p36
        $region50: #{_lambda_.1} parent=47 // pred_check_branch
          %289 = sbr.rel (%p287) target = $region52
        $region51: #{_lambda_.1} parent=47 // pred_region
          %p290 = scmp.lt.s32.totalorder %s16, 1
          %s291 = scalar_select %p290, %s16, 1
          %s292 = smul.addr %s291, 8
          %s293 = smul.addr %s292, 8
          %s294 = scalar_lea.vmem %s0, %s293
        $region52: #{_lambda_.1} parent=47 // pred_fallthru
          _
      $region48: #{_lambda_.1} parent=5 // pred_fallthru
        _
      %p295 = scmp.le.s32.totalorder 1, %s16
      %p296 = scmp.lt.s32.totalorder %s16, 3
      %p297 = pnand %p295, %p296
      %p298 = pneg %p297
      // Predicated region
      $region53: #{_lambda_.1} parent=5 // pred_check
        _
      $region54: #{_lambda_.1} parent=5 // pred_check_branch
        %300 = sbr.rel (%p297) target = $region56
      $region55: #{_lambda_.1} parent=5 // pred_region
        %s301 = ssub.s32 %s16, 1
        // Predicated region
        $region57: #{_lambda_.1} parent=55 // pred_check
          %p302 = pneg %p210
        $region58: #{_lambda_.1} parent=55 // pred_check_branch
          %304 = sbr.rel (%p302) target = $region60
        $region59: #{_lambda_.1} parent=55 // pred_region
          %305 = dma.done [#allocation6], 32
        $region60: #{_lambda_.1} parent=55 // pred_fallthru
          _
        %306 = sfence
        %p307 = scmp.lt.s32.totalorder %s21, 1
        %s308 = scalar_select %p307, %s21, 1
        %s309 = smul.addr %s308, 8
        %s310 = smul.addr %s309, 8
        %s311 = scalar_lea.vmem %s0, %s310
        %p312 = pneg %p42
        %p313 = pneg %p39
        %p314 = pneg %p63
        %p315 = pneg %p60
        %p316 = pneg %p84
        %p317 = pneg %p81
        %p318 = pneg %p105
        %p319 = pneg %p102
        %p320 = pneg %p126
        %p321 = pneg %p123
        %p322 = pneg %p147
        %p323 = pneg %p144
        %p324 = pneg %p168
        %p325 = pneg %p165
        %p326 = pneg %p189
        %p327 = pneg %p186
        %p328 = pneg %p210
        %p329 = pneg %p207
        %p330 = pneg %p236
        %p331 = pneg %p233
        %p332 = scmp.lt.s32.totalorder %s21, 1
        %s333 = scalar_select %p332, %s21, 1
        %s334 = smul.addr %s333, 8
        %s335 = smul.addr %s334, 8
        %s336 = scalar_lea.vmem %s9, %s335
        %p337 = scmp.lt.s32.totalorder %s21, 1
        %s338 = scalar_select %p337, %s21, 1
        %s339 = smul.addr %s338, 8
        %s340 = smul.addr %s339, 8
        %s341 = scalar_lea.vmem %s0, %s340
        %p342 = scmp.lt.s32.totalorder %s21, 1
        %s343 = scalar_select %p342, %s21, 1
        %s344 = smul.addr %s343, 8
        %s345 = smul.addr %s344, 8
        %s346 = scalar_lea.vmem %s9, %s345
        %v348 = vld [vmem:[%s341] sm:$0xff]
        %v349 = vld [vmem:[%s341 + $0x8] sm:$0xff]
        %v350 = vld [vmem:[%s341 + $0x10] sm:$0xff]
        %v351 = vld [vmem:[%s341 + $0x18] sm:$0xff]
        %v352 = vld [vmem:[%s341 + $0x20] sm:$0xff]
        %v353 = vld [vmem:[%s341 + $0x28] sm:$0xff]
        %v354 = vld [vmem:[%s341 + $0x30] sm:$0xff]
        %v355 = vld [vmem:[%s341 + $0x38] sm:$0xff]
        %356 = vst [vmem:[#allocation2] sm:$0xff] 0
        %357 = vst [vmem:[#allocation2 + $0x8] sm:$0xff] 0
        %358 = vst [vmem:[#allocation2 + $0x10] sm:$0xff] 0
        %359 = vst [vmem:[#allocation2 + $0x18] sm:$0xff] 0
        %360 = vst [vmem:[#allocation2 + $0x20] sm:$0xff] 0
        %361 = vst [vmem:[#allocation2 + $0x28] sm:$0xff] 0
        %v362 = vpack.c.bf16 %v350, %v348
        %v363 = vpack.c.bf16 %v351, %v349
        %v364 = vpack.c.bf16 %v354, %v352
        %v365 = vpack.c.bf16 %v355, %v353
        %370 = vrot.lane.b32.xlu0 %v362, 51
        %v371 = vpop.permute.xlu0 %370
        %372 = vrot.lane.b32.xlu0 %v363, 51
        %v373 = vpop.permute.xlu0 %372
        %374 = vrot.lane.b32.xlu0 %v364, 51
        %v375 = vpop.permute.xlu0 %374
        %376 = vrot.lane.b32.xlu0 %v365, 51
        %v377 = vpop.permute.xlu0 %376
        %vm378 = vcmask 416768
        %v379 = vsel %vm378, %v371, %v373
        %v380 = vsel %vm378, %v375, %v377
        %vm387 = vcmask 1047960
        %388 = vst.msk [vmem:[#allocation2] sm:$0xff] %vm387, %v371
        %389 = vst [vmem:[#allocation2 + $0x8] sm:$0xff] %v379
        %vm390 = vcmask 416768
        %391 = vst.msk [vmem:[#allocation2 + $0x10] sm:$0xff] %vm390, %v373
        %392 = vst.msk [vmem:[#allocation2 + $0x18] sm:$0xff] %vm387, %v375
        %393 = vst [vmem:[#allocation2 + $0x20] sm:$0xff] %v380
        %394 = vst.msk [vmem:[#allocation2 + $0x28] sm:$0xff] %vm390, %v377
        %v395 = vld [vmem:[%s7] sm:$0x7f]
        %v396 = vld [vmem:[%s7 + $0x8] sm:$0x7f]
        %v397 = vpack.c.bf16 %v395, %v395
        %v398 = vpack.c.bf16 %v396, %v396
        %v399 = vld [vmem:[#allocation2] sm:$0xff]
        %v400 = vld [vmem:[#allocation2 + $0x8] sm:$0xff]
        %v401 = vld [vmem:[#allocation2 + $0x18] sm:$0xff]
        %v402 = vld [vmem:[#allocation2 + $0x20] sm:$0xff]
        %v404 = vpack.i.b16 %v397, %v397
        %v406 = vlaneseq
        %v407 = vshrl.u32 %v406, 7
        %v408 = vsub.s32 0, %v407
        %v409 = vrot.slane %v404, %v408
        %v411 = vpack.i.b16 %v398, %v398
        %v413 = vlaneseq
        %v414 = vshrl.u32 %v413, 7
        %v415 = vsub.s32 0, %v414
        %v416 = vrot.slane %v411, %v415
        %v417 = vmul.bf16 %v399, %v409
        %v418 = vmul.bf16 %v400, %v416
        %v419 = vmul.bf16 %v401, %v409
        %v420 = vmul.bf16 %v402, %v416
        %421 = vst [vmem:[#allocation3] sm:$0xff] %v417
        %422 = vst [vmem:[#allocation3 + $0x8] sm:$0xff] %v418
        %423 = vst [vmem:[#allocation3 + $0x10] sm:$0xff] %v419
        %424 = vst [vmem:[#allocation3 + $0x18] sm:$0xff] %v420
        %v425 = vld [vmem:[#allocation2] sm:$0xff]
        %v426 = vld [vmem:[#allocation2 + $0x8] sm:$0xff]
        %v427 = vld [vmem:[#allocation2 + $0x10] sm:$0xff]
        %v428 = vld [vmem:[#allocation2 + $0x18] sm:$0xff]
        %v429 = vld [vmem:[#allocation2 + $0x20] sm:$0xff]
        %v430 = vld [vmem:[#allocation2 + $0x28] sm:$0xff]
        %v431 = vshrl.u32 %v397, 16
        %v432 = vpack.i.b16 %v431, %v431
        %v434 = vlaneseq
        %v435 = vshrl.u32 %v434, 7
        %v436 = vsub.s32 0, %v435
        %v437 = vrot.slane %v432, %v436
        %v438 = vshrl.u32 %v398, 16
        %v439 = vpack.i.b16 %v438, %v438
        %v441 = vlaneseq
        %v442 = vshrl.u32 %v441, 7
        %v443 = vsub.s32 0, %v442
        %v444 = vrot.slane %v439, %v443
        %447 = vrot.lane.b32.xlu0 %v437, 1
        %v448 = vpop.permute.xlu0 %447
        %449 = vrot.lane.b32.xlu0 %v444, 1
        %v450 = vpop.permute.xlu0 %449
        %vm451 = vcmask 7168
        %v452 = vsel %vm451, %v448, %v450
        %v456 = vmul.bf16 %v425, %v448
        %v457 = vmul.bf16 %v426, %v452
        %v458 = vmul.bf16 %v427, %v450
        %v459 = vmul.bf16 %v428, %v448
        %v460 = vmul.bf16 %v429, %v452
        %v461 = vmul.bf16 %v430, %v450
        %468 = vrot.lane.b32.xlu0 %v456, 127
        %v469 = vpop.permute.xlu0 %468
        %470 = vrot.lane.b32.xlu0 %v457, 127
        %v471 = vpop.permute.xlu0 %470
        %472 = vrot.lane.b32.xlu0 %v458, 127
        %v473 = vpop.permute.xlu0 %472
        %474 = vrot.lane.b32.xlu0 %v459, 127
        %v475 = vpop.permute.xlu0 %474
        %476 = vrot.lane.b32.xlu0 %v460, 127
        %v477 = vpop.permute.xlu0 %476
        %478 = vrot.lane.b32.xlu0 %v461, 127
        %v479 = vpop.permute.xlu0 %478
        %vm480 = vcmask 1039360
        %v481 = vsel %vm480, %v469, %v471
        %v482 = vsel %vm480, %v471, %v473
        %v483 = vsel %vm480, %v475, %v477
        %v484 = vsel %vm480, %v477, %v479
        %489 = vst [vmem:[#allocation3 + $0x20] sm:$0xff] %v481
        %490 = vst [vmem:[#allocation3 + $0x28] sm:$0xff] %v482
        %491 = vst [vmem:[#allocation3 + $0x30] sm:$0xff] %v483
        %492 = vst [vmem:[#allocation3 + $0x38] sm:$0xff] %v484
        %v493 = vld [vmem:[#allocation2] sm:$0xff]
        %v494 = vld [vmem:[#allocation2 + $0x8] sm:$0xff]
        %v495 = vld [vmem:[#allocation2 + $0x10] sm:$0xff]
        %v496 = vld [vmem:[#allocation2 + $0x18] sm:$0xff]
        %v497 = vld [vmem:[#allocation2 + $0x20] sm:$0xff]
        %v498 = vld [vmem:[#allocation2 + $0x28] sm:$0xff]
        %v499 = vlaneseq
        %v500 = vshrl.u32 %v499, 7
        %v501 = vsub.s32 1, %v500
        %v502 = vrot.slane %v404, %v501
        %v503 = vlaneseq
        %v504 = vshrl.u32 %v503, 7
        %v505 = vsub.s32 1, %v504
        %v506 = vrot.slane %v411, %v505
        %509 = vrot.lane.b32.xlu0 %v502, 2
        %v510 = vpop.permute.xlu0 %509
        %511 = vrot.lane.b32.xlu0 %v506, 2
        %v512 = vpop.permute.xlu0 %511
        %vm513 = vcmask 15360
        %v514 = vsel %vm513, %v510, %v512
        %v518 = vmul.bf16 %v493, %v510
        %v519 = vmul.bf16 %v494, %v514
        %v520 = vmul.bf16 %v495, %v512
        %v521 = vmul.bf16 %v496, %v510
        %v522 = vmul.bf16 %v497, %v514
        %v523 = vmul.bf16 %v498, %v512
        %530 = vrot.lane.b32.xlu0 %v518, 126
        %v531 = vpop.permute.xlu0 %530
        %532 = vrot.lane.b32.xlu0 %v519, 126
        %v533 = vpop.permute.xlu0 %532
        %534 = vrot.lane.b32.xlu0 %v520, 126
        %v535 = vpop.permute.xlu0 %534
        %536 = vrot.lane.b32.xlu0 %v521, 126
        %v537 = vpop.permute.xlu0 %536
        %538 = vrot.lane.b32.xlu0 %v522, 126
        %v539 = vpop.permute.xlu0 %538
        %540 = vrot.lane.b32.xlu0 %v523, 126
        %v541 = vpop.permute.xlu0 %540
        %vm542 = vcmask 1031168
        %v543 = vsel %vm542, %v531, %v533
        %v544 = vsel %vm542, %v533, %v535
        %v545 = vsel %vm542, %v537, %v539
        %v546 = vsel %vm542, %v539, %v541
        %551 = vst [vmem:[#allocation3 + $0x40] sm:$0xff] %v543
        %552 = vst [vmem:[#allocation3 + $0x48] sm:$0xff] %v544
        %553 = vst [vmem:[#allocation3 + $0x50] sm:$0xff] %v545
        %554 = vst [vmem:[#allocation3 + $0x58] sm:$0xff] %v546
        %v555 = vld [vmem:[#allocation2] sm:$0xff]
        %v556 = vld [vmem:[#allocation2 + $0x8] sm:$0xff]
        %v557 = vld [vmem:[#allocation2 + $0x10] sm:$0xff]
        %v558 = vld [vmem:[#allocation2 + $0x18] sm:$0xff]
        %v559 = vld [vmem:[#allocation2 + $0x20] sm:$0xff]
        %v560 = vld [vmem:[#allocation2 + $0x28] sm:$0xff]
        %v561 = vlaneseq
        %v562 = vshrl.u32 %v561, 7
        %v563 = vsub.s32 1, %v562
        %v564 = vrot.slane %v432, %v563
        %v565 = vlaneseq
        %v566 = vshrl.u32 %v565, 7
        %v567 = vsub.s32 1, %v566
        %v568 = vrot.slane %v439, %v567
        %571 = vrot.lane.b32.xlu0 %v564, 3
        %v572 = vpop.permute.xlu0 %571
        %573 = vrot.lane.b32.xlu0 %v568, 3
        %v574 = vpop.permute.xlu0 %573
        %vm575 = vcmask 23552
        %v576 = vsel %vm575, %v572, %v574
        %v580 = vmul.bf16 %v555, %v572
        %v581 = vmul.bf16 %v556, %v576
        %v582 = vmul.bf16 %v557, %v574
        %v583 = vmul.bf16 %v558, %v572
        %v584 = vmul.bf16 %v559, %v576
        %v585 = vmul.bf16 %v560, %v574
        %592 = vrot.lane.b32.xlu0 %v580, 125
        %v593 = vpop.permute.xlu0 %592
        %594 = vrot.lane.b32.xlu0 %v581, 125
        %v595 = vpop.permute.xlu0 %594
        %596 = vrot.lane.b32.xlu0 %v582, 125
        %v597 = vpop.permute.xlu0 %596
        %598 = vrot.lane.b32.xlu0 %v583, 125
        %v599 = vpop.permute.xlu0 %598
        %600 = vrot.lane.b32.xlu0 %v584, 125
        %v601 = vpop.permute.xlu0 %600
        %602 = vrot.lane.b32.xlu0 %v585, 125
        %v603 = vpop.permute.xlu0 %602
        %vm604 = vcmask 1022976
        %v605 = vsel %vm604, %v593, %v595
        %v606 = vsel %vm604, %v595, %v597
        %v607 = vsel %vm604, %v599, %v601
        %v608 = vsel %vm604, %v601, %v603
        %613 = vst [vmem:[#allocation3 + $0x60] sm:$0xff] %v605
        %614 = vst [vmem:[#allocation3 + $0x68] sm:$0xff] %v606
        %615 = vst [vmem:[#allocation3 + $0x70] sm:$0xff] %v607
        %616 = vst [vmem:[#allocation3 + $0x78] sm:$0xff] %v608
        %v617 = vld [vmem:[#allocation2] sm:$0xff]
        %v618 = vld [vmem:[#allocation2 + $0x8] sm:$0xff]
        %v619 = vld [vmem:[#allocation2 + $0x10] sm:$0xff]
        %v620 = vld [vmem:[#allocation2 + $0x18] sm:$0xff]
        %v621 = vld [vmem:[#allocation2 + $0x20] sm:$0xff]
        %v622 = vld [vmem:[#allocation2 + $0x28] sm:$0xff]
        %v623 = vlaneseq
        %v624 = vshrl.u32 %v623, 7
        %v625 = vsub.s32 2, %v624
        %v626 = vrot.slane %v404, %v625
        %v627 = vlaneseq
        %v628 = vshrl.u32 %v627, 7
        %v629 = vsub.s32 2, %v628
        %v630 = vrot.slane %v411, %v629
        %633 = vrot.lane.b32.xlu0 %v626, 4
        %v634 = vpop.permute.xlu0 %633
        %635 = vrot.lane.b32.xlu0 %v630, 4
        %v636 = vpop.permute.xlu0 %635
        %vm637 = vcmask 31744
        %v638 = vsel %vm637, %v634, %v636
        %v642 = vmul.bf16 %v617, %v634
        %v643 = vmul.bf16 %v618, %v638
        %v644 = vmul.bf16 %v619, %v636
        %v645 = vmul.bf16 %v620, %v634
        %v646 = vmul.bf16 %v621, %v638
        %v647 = vmul.bf16 %v622, %v636
        %654 = vrot.lane.b32.xlu0 %v642, 124
        %v655 = vpop.permute.xlu0 %654
        %656 = vrot.lane.b32.xlu0 %v643, 124
        %v657 = vpop.permute.xlu0 %656
        %658 = vrot.lane.b32.xlu0 %v644, 124
        %v659 = vpop.permute.xlu0 %658
        %660 = vrot.lane.b32.xlu0 %v645, 124
        %v661 = vpop.permute.xlu0 %660
        %662 = vrot.lane.b32.xlu0 %v646, 124
        %v663 = vpop.permute.xlu0 %662
        %664 = vrot.lane.b32.xlu0 %v647, 124
        %v665 = vpop.permute.xlu0 %664
        %vm666 = vcmask 1014784
        %v667 = vsel %vm666, %v655, %v657
        %v668 = vsel %vm666, %v657, %v659
        %v669 = vsel %vm666, %v661, %v663
        %v670 = vsel %vm666, %v663, %v665
        %675 = vst [vmem:[#allocation3 + $0x80] sm:$0xff] %v667
        %676 = vst [vmem:[#allocation3 + $0x88] sm:$0xff] %v668
        %677 = vst [vmem:[#allocation3 + $0x90] sm:$0xff] %v669
        %678 = vst [vmem:[#allocation3 + $0x98] sm:$0xff] %v670
        %v679 = vld [vmem:[#allocation2] sm:$0xff]
        %v680 = vld [vmem:[#allocation2 + $0x8] sm:$0xff]
        %v681 = vld [vmem:[#allocation2 + $0x10] sm:$0xff]
        %v682 = vld [vmem:[#allocation2 + $0x18] sm:$0xff]
        %v683 = vld [vmem:[#allocation2 + $0x20] sm:$0xff]
        %v684 = vld [vmem:[#allocation2 + $0x28] sm:$0xff]
        %v685 = vlaneseq
        %v686 = vshrl.u32 %v685, 7
        %v687 = vsub.s32 2, %v686
        %v688 = vrot.slane %v432, %v687
        %v689 = vlaneseq
        %v690 = vshrl.u32 %v689, 7
        %v691 = vsub.s32 2, %v690
        %v692 = vrot.slane %v439, %v691
        %695 = vrot.lane.b32.xlu0 %v688, 5
        %v696 = vpop.permute.xlu0 %695
        %697 = vrot.lane.b32.xlu0 %v692, 5
        %v698 = vpop.permute.xlu0 %697
        %vm699 = vcmask 39936
        %v700 = vsel %vm699, %v696, %v698
        %v704 = vmul.bf16 %v679, %v696
        %v705 = vmul.bf16 %v680, %v700
        %v706 = vmul.bf16 %v681, %v698
        %v707 = vmul.bf16 %v682, %v696
        %v708 = vmul.bf16 %v683, %v700
        %v709 = vmul.bf16 %v684, %v698
        %716 = vrot.lane.b32.xlu0 %v704, 123
        %v717 = vpop.permute.xlu0 %716
        %718 = vrot.lane.b32.xlu0 %v705, 123
        %v719 = vpop.permute.xlu0 %718
        %720 = vrot.lane.b32.xlu0 %v706, 123
        %v721 = vpop.permute.xlu0 %720
        %722 = vrot.lane.b32.xlu0 %v707, 123
        %v723 = vpop.permute.xlu0 %722
        %724 = vrot.lane.b32.xlu0 %v708, 123
        %v725 = vpop.permute.xlu0 %724
        %726 = vrot.lane.b32.xlu0 %v709, 123
        %v727 = vpop.permute.xlu0 %726
        %vm728 = vcmask 1006592
        %v729 = vsel %vm728, %v717, %v719
        %v730 = vsel %vm728, %v719, %v721
        %v731 = vsel %vm728, %v723, %v725
        %v732 = vsel %vm728, %v725, %v727
        %737 = vst [vmem:[#allocation3 + $0xa0] sm:$0xff] %v729
        %738 = vst [vmem:[#allocation3 + $0xa8] sm:$0xff] %v730
        %739 = vst [vmem:[#allocation3 + $0xb0] sm:$0xff] %v731
        %740 = vst [vmem:[#allocation3 + $0xb8] sm:$0xff] %v732
        %v741 = vld [vmem:[#allocation2] sm:$0xff]
        %v742 = vld [vmem:[#allocation2 + $0x8] sm:$0xff]
        %v743 = vld [vmem:[#allocation2 + $0x10] sm:$0xff]
        %v744 = vld [vmem:[#allocation2 + $0x18] sm:$0xff]
        %v745 = vld [vmem:[#allocation2 + $0x20] sm:$0xff]
        %v746 = vld [vmem:[#allocation2 + $0x28] sm:$0xff]
        %v747 = vlaneseq
        %v748 = vshrl.u32 %v747, 7
        %v749 = vsub.s32 3, %v748
        %v750 = vrot.slane %v404, %v749
        %v751 = vlaneseq
        %v752 = vshrl.u32 %v751, 7
        %v753 = vsub.s32 3, %v752
        %v754 = vrot.slane %v411, %v753
        %757 = vrot.lane.b32.xlu0 %v750, 6
        %v758 = vpop.permute.xlu0 %757
        %759 = vrot.lane.b32.xlu0 %v754, 6
        %v760 = vpop.permute.xlu0 %759
        %vm761 = vcmask 48128
        %v762 = vsel %vm761, %v758, %v760
        %v766 = vmul.bf16 %v741, %v758
        %v767 = vmul.bf16 %v742, %v762
        %v768 = vmul.bf16 %v743, %v760
        %v769 = vmul.bf16 %v744, %v758
        %v770 = vmul.bf16 %v745, %v762
        %v771 = vmul.bf16 %v746, %v760
        %778 = vrot.lane.b32.xlu0 %v766, 122
        %v779 = vpop.permute.xlu0 %778
        %780 = vrot.lane.b32.xlu0 %v767, 122
        %v781 = vpop.permute.xlu0 %780
        %782 = vrot.lane.b32.xlu0 %v768, 122
        %v783 = vpop.permute.xlu0 %782
        %784 = vrot.lane.b32.xlu0 %v769, 122
        %v785 = vpop.permute.xlu0 %784
        %786 = vrot.lane.b32.xlu0 %v770, 122
        %v787 = vpop.permute.xlu0 %786
        %788 = vrot.lane.b32.xlu0 %v771, 122
        %v789 = vpop.permute.xlu0 %788
        %vm790 = vcmask 998400
        %v791 = vsel %vm790, %v779, %v781
        %v792 = vsel %vm790, %v781, %v783
        %v793 = vsel %vm790, %v785, %v787
        %v794 = vsel %vm790, %v787, %v789
        %799 = vst [vmem:[#allocation3 + $0xc0] sm:$0xff] %v791
        %800 = vst [vmem:[#allocation3 + $0xc8] sm:$0xff] %v792
        %801 = vst [vmem:[#allocation3 + $0xd0] sm:$0xff] %v793
        %802 = vst [vmem:[#allocation3 + $0xd8] sm:$0xff] %v794
        %v803 = vld [vmem:[#allocation2] sm:$0xff]
        %v804 = vld [vmem:[#allocation2 + $0x8] sm:$0xff]
        %v805 = vld [vmem:[#allocation2 + $0x10] sm:$0xff]
        %v806 = vld [vmem:[#allocation2 + $0x18] sm:$0xff]
        %v807 = vld [vmem:[#allocation2 + $0x20] sm:$0xff]
        %v808 = vld [vmem:[#allocation2 + $0x28] sm:$0xff]
        %811 = vrot.lane.b32.xlu0 %v409, 16
        %v812 = vpop.permute.xlu0 %811
        %813 = vrot.lane.b32.xlu0 %v416, 16
        %v814 = vpop.permute.xlu0 %813
        %vm815 = vcmask 130048
        %v816 = vsel %vm815, %v812, %v814
        %v820 = vmul.bf16 %v803, %v812
        %v821 = vmul.bf16 %v804, %v816
        %v822 = vmul.bf16 %v805, %v814
        %v823 = vmul.bf16 %v806, %v812
        %v824 = vmul.bf16 %v807, %v816
        %v825 = vmul.bf16 %v808, %v814
        %832 = vrot.lane.b32.xlu0 %v820, 112
        %v833 = vpop.permute.xlu0 %832
        %834 = vrot.lane.b32.xlu0 %v821, 112
        %v835 = vpop.permute.xlu0 %834
        %836 = vrot.lane.b32.xlu0 %v822, 112
        %v837 = vpop.permute.xlu0 %836
        %838 = vrot.lane.b32.xlu0 %v823, 112
        %v839 = vpop.permute.xlu0 %838
        %840 = vrot.lane.b32.xlu0 %v824, 112
        %v841 = vpop.permute.xlu0 %840
        %842 = vrot.lane.b32.xlu0 %v825, 112
        %v843 = vpop.permute.xlu0 %842
        %vm844 = vcmask 916480
        %v845 = vsel %vm844, %v833, %v835
        %v846 = vsel %vm844, %v835, %v837
        %v847 = vsel %vm844, %v839, %v841
        %v848 = vsel %vm844, %v841, %v843
        %853 = vst [vmem:[#allocation3 + $0xe0] sm:$0xff] %v845
        %854 = vst [vmem:[#allocation3 + $0xe8] sm:$0xff] %v846
        %855 = vst [vmem:[#allocation3 + $0xf0] sm:$0xff] %v847
        %856 = vst [vmem:[#allocation3 + $0xf8] sm:$0xff] %v848
        %v857 = vld [vmem:[#allocation2] sm:$0xff]
        %v858 = vld [vmem:[#allocation2 + $0x8] sm:$0xff]
        %v859 = vld [vmem:[#allocation2 + $0x10] sm:$0xff]
        %v860 = vld [vmem:[#allocation2 + $0x18] sm:$0xff]
        %v861 = vld [vmem:[#allocation2 + $0x20] sm:$0xff]
        %v862 = vld [vmem:[#allocation2 + $0x28] sm:$0xff]
        %863 = vrot.lane.b32.xlu0 %v437, 17
        %v864 = vpop.permute.xlu0 %863
        %865 = vrot.lane.b32.xlu0 %v444, 17
        %v866 = vpop.permute.xlu0 %865
        %vm867 = vcmask 138240
        %v868 = vsel %vm867, %v864, %v866
        %v872 = vmul.bf16 %v857, %v864
        %v873 = vmul.bf16 %v858, %v868
        %v874 = vmul.bf16 %v859, %v866
        %v875 = vmul.bf16 %v860, %v864
        %v876 = vmul.bf16 %v861, %v868
        %v877 = vmul.bf16 %v862, %v866
        %884 = vrot.lane.b32.xlu0 %v872, 111
        %v885 = vpop.permute.xlu0 %884
        %886 = vrot.lane.b32.xlu0 %v873, 111
        %v887 = vpop.permute.xlu0 %886
        %888 = vrot.lane.b32.xlu0 %v874, 111
        %v889 = vpop.permute.xlu0 %888
        %890 = vrot.lane.b32.xlu0 %v875, 111
        %v891 = vpop.permute.xlu0 %890
        %892 = vrot.lane.b32.xlu0 %v876, 111
        %v893 = vpop.permute.xlu0 %892
        %894 = vrot.lane.b32.xlu0 %v877, 111
        %v895 = vpop.permute.xlu0 %894
        %vm896 = vcmask 908288
        %v897 = vsel %vm896, %v885, %v887
        %v898 = vsel %vm896, %v887, %v889
        %v899 = vsel %vm896, %v891, %v893
        %v900 = vsel %vm896, %v893, %v895
        %905 = vst [vmem:[#allocation3 + $0x100] sm:$0xff] %v897
        %906 = vst [vmem:[#allocation3 + $0x108] sm:$0xff] %v898
        %907 = vst [vmem:[#allocation3 + $0x110] sm:$0xff] %v899
        %908 = vst [vmem:[#allocation3 + $0x118] sm:$0xff] %v900
        %v909 = vld [vmem:[#allocation2] sm:$0xff]
        %v910 = vld [vmem:[#allocation2 + $0x8] sm:$0xff]
        %v911 = vld [vmem:[#allocation2 + $0x10] sm:$0xff]
        %v912 = vld [vmem:[#allocation2 + $0x18] sm:$0xff]
        %v913 = vld [vmem:[#allocation2 + $0x20] sm:$0xff]
        %v914 = vld [vmem:[#allocation2 + $0x28] sm:$0xff]
        %915 = vrot.lane.b32.xlu0 %v502, 18
        %v916 = vpop.permute.xlu0 %915
        %917 = vrot.lane.b32.xlu0 %v506, 18
        %v918 = vpop.permute.xlu0 %917
        %vm919 = vcmask 146432
        %v920 = vsel %vm919, %v916, %v918
        %v924 = vmul.bf16 %v909, %v916
        %v925 = vmul.bf16 %v910, %v920
        %v926 = vmul.bf16 %v911, %v918
        %v927 = vmul.bf16 %v912, %v916
        %v928 = vmul.bf16 %v913, %v920
        %v929 = vmul.bf16 %v914, %v918
        %936 = vrot.lane.b32.xlu0 %v924, 110
        %v937 = vpop.permute.xlu0 %936
        %938 = vrot.lane.b32.xlu0 %v925, 110
        %v939 = vpop.permute.xlu0 %938
        %940 = vrot.lane.b32.xlu0 %v926, 110
        %v941 = vpop.permute.xlu0 %940
        %942 = vrot.lane.b32.xlu0 %v927, 110
        %v943 = vpop.permute.xlu0 %942
        %944 = vrot.lane.b32.xlu0 %v928, 110
        %v945 = vpop.permute.xlu0 %944
        %946 = vrot.lane.b32.xlu0 %v929, 110
        %v947 = vpop.permute.xlu0 %946
        %vm948 = vcmask 900096
        %v949 = vsel %vm948, %v937, %v939
        %v950 = vsel %vm948, %v939, %v941
        %v951 = vsel %vm948, %v943, %v945
        %v952 = vsel %vm948, %v945, %v947
        %957 = vst [vmem:[#allocation3 + $0x120] sm:$0xff] %v949
        %958 = vst [vmem:[#allocation3 + $0x128] sm:$0xff] %v950
        %959 = vst [vmem:[#allocation3 + $0x130] sm:$0xff] %v951
        %960 = vst [vmem:[#allocation3 + $0x138] sm:$0xff] %v952
        %v961 = vld [vmem:[#allocation2] sm:$0xff]
        %v962 = vld [vmem:[#allocation2 + $0x8] sm:$0xff]
        %v963 = vld [vmem:[#allocation2 + $0x10] sm:$0xff]
        %v964 = vld [vmem:[#allocation2 + $0x18] sm:$0xff]
        %v965 = vld [vmem:[#allocation2 + $0x20] sm:$0xff]
        %v966 = vld [vmem:[#allocation2 + $0x28] sm:$0xff]
        %967 = vrot.lane.b32.xlu0 %v564, 19
        %v968 = vpop.permute.xlu0 %967
        %969 = vrot.lane.b32.xlu0 %v568, 19
        %v970 = vpop.permute.xlu0 %969
        %vm971 = vcmask 154624
        %v972 = vsel %vm971, %v968, %v970
        %v976 = vmul.bf16 %v961, %v968
        %v977 = vmul.bf16 %v962, %v972
        %v978 = vmul.bf16 %v963, %v970
        %v979 = vmul.bf16 %v964, %v968
        %v980 = vmul.bf16 %v965, %v972
        %v981 = vmul.bf16 %v966, %v970
        %988 = vrot.lane.b32.xlu0 %v976, 109
        %v989 = vpop.permute.xlu0 %988
        %990 = vrot.lane.b32.xlu0 %v977, 109
        %v991 = vpop.permute.xlu0 %990
        %992 = vrot.lane.b32.xlu0 %v978, 109
        %v993 = vpop.permute.xlu0 %992
        %994 = vrot.lane.b32.xlu0 %v979, 109
        %v995 = vpop.permute.xlu0 %994
        %996 = vrot.lane.b32.xlu0 %v980, 109
        %v997 = vpop.permute.xlu0 %996
        %998 = vrot.lane.b32.xlu0 %v981, 109
        %v999 = vpop.permute.xlu0 %998
        %vm1000 = vcmask 891904
        %v1001 = vsel %vm1000, %v989, %v991
        %v1002 = vsel %vm1000, %v991, %v993
        %v1003 = vsel %vm1000, %v995, %v997
        %v1004 = vsel %vm1000, %v997, %v999
        %1009 = vst [vmem:[#allocation3 + $0x140] sm:$0xff] %v1001
        %1010 = vst [vmem:[#allocation3 + $0x148] sm:$0xff] %v1002
        %1011 = vst [vmem:[#allocation3 + $0x150] sm:$0xff] %v1003
        %1012 = vst [vmem:[#allocation3 + $0x158] sm:$0xff] %v1004
        %v1013 = vld [vmem:[#allocation2] sm:$0xff]
        %v1014 = vld [vmem:[#allocation2 + $0x8] sm:$0xff]
        %v1015 = vld [vmem:[#allocation2 + $0x10] sm:$0xff]
        %v1016 = vld [vmem:[#allocation2 + $0x18] sm:$0xff]
        %v1017 = vld [vmem:[#allocation2 + $0x20] sm:$0xff]
        %v1018 = vld [vmem:[#allocation2 + $0x28] sm:$0xff]
        %1019 = vrot.lane.b32.xlu0 %v626, 20
        %v1020 = vpop.permute.xlu0 %1019
        %1021 = vrot.lane.b32.xlu0 %v630, 20
        %v1022 = vpop.permute.xlu0 %1021
        %vm1023 = vcmask 162816
        %v1024 = vsel %vm1023, %v1020, %v1022
        %v1028 = vmul.bf16 %v1013, %v1020
        %v1029 = vmul.bf16 %v1014, %v1024
        %v1030 = vmul.bf16 %v1015, %v1022
        %v1031 = vmul.bf16 %v1016, %v1020
        %v1032 = vmul.bf16 %v1017, %v1024
        %v1033 = vmul.bf16 %v1018, %v1022
        %1040 = vrot.lane.b32.xlu0 %v1028, 108
        %v1041 = vpop.permute.xlu0 %1040
        %1042 = vrot.lane.b32.xlu0 %v1029, 108
        %v1043 = vpop.permute.xlu0 %1042
        %1044 = vrot.lane.b32.xlu0 %v1030, 108
        %v1045 = vpop.permute.xlu0 %1044
        %1046 = vrot.lane.b32.xlu0 %v1031, 108
        %v1047 = vpop.permute.xlu0 %1046
        %1048 = vrot.lane.b32.xlu0 %v1032, 108
        %v1049 = vpop.permute.xlu0 %1048
        %1050 = vrot.lane.b32.xlu0 %v1033, 108
        %v1051 = vpop.permute.xlu0 %1050
        %vm1052 = vcmask 883712
        %v1053 = vsel %vm1052, %v1041, %v1043
        %v1054 = vsel %vm1052, %v1043, %v1045
        %v1055 = vsel %vm1052, %v1047, %v1049
        %v1056 = vsel %vm1052, %v1049, %v1051
        %1061 = vst [vmem:[#allocation3 + $0x160] sm:$0xff] %v1053
        %1062 = vst [vmem:[#allocation3 + $0x168] sm:$0xff] %v1054
        %1063 = vst [vmem:[#allocation3 + $0x170] sm:$0xff] %v1055
        %1064 = vst [vmem:[#allocation3 + $0x178] sm:$0xff] %v1056
        %v1065 = vld [vmem:[#allocation2] sm:$0xff]
        %v1066 = vld [vmem:[#allocation2 + $0x8] sm:$0xff]
        %v1067 = vld [vmem:[#allocation2 + $0x10] sm:$0xff]
        %v1068 = vld [vmem:[#allocation2 + $0x18] sm:$0xff]
        %v1069 = vld [vmem:[#allocation2 + $0x20] sm:$0xff]
        %v1070 = vld [vmem:[#allocation2 + $0x28] sm:$0xff]
        %1071 = vrot.lane.b32.xlu0 %v688, 21
        %v1072 = vpop.permute.xlu0 %1071
        %1073 = vrot.lane.b32.xlu0 %v692, 21
        %v1074 = vpop.permute.xlu0 %1073
        %vm1075 = vcmask 171008
        %v1076 = vsel %vm1075, %v1072, %v1074
        %v1080 = vmul.bf16 %v1065, %v1072
        %v1081 = vmul.bf16 %v1066, %v1076
        %v1082 = vmul.bf16 %v1067, %v1074
        %v1083 = vmul.bf16 %v1068, %v1072
        %v1084 = vmul.bf16 %v1069, %v1076
        %v1085 = vmul.bf16 %v1070, %v1074
        %1092 = vrot.lane.b32.xlu0 %v1080, 107
        %v1093 = vpop.permute.xlu0 %1092
        %1094 = vrot.lane.b32.xlu0 %v1081, 107
        %v1095 = vpop.permute.xlu0 %1094
        %1096 = vrot.lane.b32.xlu0 %v1082, 107
        %v1097 = vpop.permute.xlu0 %1096
        %1098 = vrot.lane.b32.xlu0 %v1083, 107
        %v1099 = vpop.permute.xlu0 %1098
        %1100 = vrot.lane.b32.xlu0 %v1084, 107
        %v1101 = vpop.permute.xlu0 %1100
        %1102 = vrot.lane.b32.xlu0 %v1085, 107
        %v1103 = vpop.permute.xlu0 %1102
        %vm1104 = vcmask 875520
        %v1105 = vsel %vm1104, %v1093, %v1095
        %v1106 = vsel %vm1104, %v1095, %v1097
        %v1107 = vsel %vm1104, %v1099, %v1101
        %v1108 = vsel %vm1104, %v1101, %v1103
        %1113 = vst [vmem:[#allocation3 + $0x180] sm:$0xff] %v1105
        %1114 = vst [vmem:[#allocation3 + $0x188] sm:$0xff] %v1106
        %1115 = vst [vmem:[#allocation3 + $0x190] sm:$0xff] %v1107
        %1116 = vst [vmem:[#allocation3 + $0x198] sm:$0xff] %v1108
        %v1117 = vld [vmem:[#allocation2] sm:$0xff]
        %v1118 = vld [vmem:[#allocation2 + $0x8] sm:$0xff]
        %v1119 = vld [vmem:[#allocation2 + $0x10] sm:$0xff]
        %v1120 = vld [vmem:[#allocation2 + $0x18] sm:$0xff]
        %v1121 = vld [vmem:[#allocation2 + $0x20] sm:$0xff]
        %v1122 = vld [vmem:[#allocation2 + $0x28] sm:$0xff]
        %1123 = vrot.lane.b32.xlu0 %v750, 22
        %v1124 = vpop.permute.xlu0 %1123
        %1125 = vrot.lane.b32.xlu0 %v754, 22
        %v1126 = vpop.permute.xlu0 %1125
        %vm1127 = vcmask 179200
        %v1128 = vsel %vm1127, %v1124, %v1126
        %v1132 = vmul.bf16 %v1117, %v1124
        %v1133 = vmul.bf16 %v1118, %v1128
        %v1134 = vmul.bf16 %v1119, %v1126
        %v1135 = vmul.bf16 %v1120, %v1124
        %v1136 = vmul.bf16 %v1121, %v1128
        %v1137 = vmul.bf16 %v1122, %v1126
        %1144 = vrot.lane.b32.xlu0 %v1132, 106
        %v1145 = vpop.permute.xlu0 %1144
        %1146 = vrot.lane.b32.xlu0 %v1133, 106
        %v1147 = vpop.permute.xlu0 %1146
        %1148 = vrot.lane.b32.xlu0 %v1134, 106
        %v1149 = vpop.permute.xlu0 %1148
        %1150 = vrot.lane.b32.xlu0 %v1135, 106
        %v1151 = vpop.permute.xlu0 %1150
        %1152 = vrot.lane.b32.xlu0 %v1136, 106
        %v1153 = vpop.permute.xlu0 %1152
        %1154 = vrot.lane.b32.xlu0 %v1137, 106
        %v1155 = vpop.permute.xlu0 %1154
        %vm1156 = vcmask 867328
        %v1157 = vsel %vm1156, %v1145, %v1147
        %v1158 = vsel %vm1156, %v1147, %v1149
        %v1159 = vsel %vm1156, %v1151, %v1153
        %v1160 = vsel %vm1156, %v1153, %v1155
        %1165 = vst [vmem:[#allocation3 + $0x1a0] sm:$0xff] %v1157
        %1166 = vst [vmem:[#allocation3 + $0x1a8] sm:$0xff] %v1158
        %1167 = vst [vmem:[#allocation3 + $0x1b0] sm:$0xff] %v1159
        %1168 = vst [vmem:[#allocation3 + $0x1b8] sm:$0xff] %v1160
        %v1169 = vld [vmem:[#allocation2] sm:$0xff]
        %v1170 = vld [vmem:[#allocation2 + $0x8] sm:$0xff]
        %v1171 = vld [vmem:[#allocation2 + $0x10] sm:$0xff]
        %v1172 = vld [vmem:[#allocation2 + $0x18] sm:$0xff]
        %v1173 = vld [vmem:[#allocation2 + $0x20] sm:$0xff]
        %v1174 = vld [vmem:[#allocation2 + $0x28] sm:$0xff]
        %1175 = vrot.lane.b32.xlu0 %v409, 32
        %v1176 = vpop.permute.xlu0 %1175
        %1177 = vrot.lane.b32.xlu0 %v416, 32
        %v1178 = vpop.permute.xlu0 %1177
        %vm1179 = vcmask 261120
        %v1180 = vsel %vm1179, %v1176, %v1178
        %v1184 = vmul.bf16 %v1169, %v1176
        %v1185 = vmul.bf16 %v1170, %v1180
        %v1186 = vmul.bf16 %v1171, %v1178
        %v1187 = vmul.bf16 %v1172, %v1176
        %v1188 = vmul.bf16 %v1173, %v1180
        %v1189 = vmul.bf16 %v1174, %v1178
        %1196 = vrot.lane.b32.xlu0 %v1184, 96
        %v1197 = vpop.permute.xlu0 %1196
        %1198 = vrot.lane.b32.xlu0 %v1185, 96
        %v1199 = vpop.permute.xlu0 %1198
        %1200 = vrot.lane.b32.xlu0 %v1186, 96
        %v1201 = vpop.permute.xlu0 %1200
        %1202 = vrot.lane.b32.xlu0 %v1187, 96
        %v1203 = vpop.permute.xlu0 %1202
        %1204 = vrot.lane.b32.xlu0 %v1188, 96
        %v1205 = vpop.permute.xlu0 %1204
        %1206 = vrot.lane.b32.xlu0 %v1189, 96
        %v1207 = vpop.permute.xlu0 %1206
        %vm1208 = vcmask 785408
        %v1209 = vsel %vm1208, %v1197, %v1199
        %v1210 = vsel %vm1208, %v1199, %v1201
        %v1211 = vsel %vm1208, %v1203, %v1205
        %v1212 = vsel %vm1208, %v1205, %v1207
        %1217 = vst [vmem:[#allocation3 + $0x1c0] sm:$0xff] %v1209
        %1218 = vst [vmem:[#allocation3 + $0x1c8] sm:$0xff] %v1210
        %1219 = vst [vmem:[#allocation3 + $0x1d0] sm:$0xff] %v1211
        %1220 = vst [vmem:[#allocation3 + $0x1d8] sm:$0xff] %v1212
        %v1221 = vld [vmem:[#allocation2] sm:$0xff]
        %v1222 = vld [vmem:[#allocation2 + $0x8] sm:$0xff]
        %v1223 = vld [vmem:[#allocation2 + $0x10] sm:$0xff]
        %v1224 = vld [vmem:[#allocation2 + $0x18] sm:$0xff]
        %v1225 = vld [vmem:[#allocation2 + $0x20] sm:$0xff]
        %v1226 = vld [vmem:[#allocation2 + $0x28] sm:$0xff]
        %1227 = vrot.lane.b32.xlu0 %v437, 33
        %v1228 = vpop.permute.xlu0 %1227
        %1229 = vrot.lane.b32.xlu0 %v444, 33
        %v1230 = vpop.permute.xlu0 %1229
        %vm1231 = vcmask 269312
        %v1232 = vsel %vm1231, %v1228, %v1230
        %v1236 = vmul.bf16 %v1221, %v1228
        %v1237 = vmul.bf16 %v1222, %v1232
        %v1238 = vmul.bf16 %v1223, %v1230
        %v1239 = vmul.bf16 %v1224, %v1228
        %v1240 = vmul.bf16 %v1225, %v1232
        %v1241 = vmul.bf16 %v1226, %v1230
        %1248 = vrot.lane.b32.xlu0 %v1236, 95
        %v1249 = vpop.permute.xlu0 %1248
        %1250 = vrot.lane.b32.xlu0 %v1237, 95
        %v1251 = vpop.permute.xlu0 %1250
        %1252 = vrot.lane.b32.xlu0 %v1238, 95
        %v1253 = vpop.permute.xlu0 %1252
        %1254 = vrot.lane.b32.xlu0 %v1239, 95
        %v1255 = vpop.permute.xlu0 %1254
        %1256 = vrot.lane.b32.xlu0 %v1240, 95
        %v1257 = vpop.permute.xlu0 %1256
        %1258 = vrot.lane.b32.xlu0 %v1241, 95
        %v1259 = vpop.permute.xlu0 %1258
        %vm1260 = vcmask 777216
        %v1261 = vsel %vm1260, %v1249, %v1251
        %v1262 = vsel %vm1260, %v1251, %v1253
        %v1263 = vsel %vm1260, %v1255, %v1257
        %v1264 = vsel %vm1260, %v1257, %v1259
        %1269 = vst [vmem:[#allocation3 + $0x1e0] sm:$0xff] %v1261
        %1270 = vst [vmem:[#allocation3 + $0x1e8] sm:$0xff] %v1262
        %1271 = vst [vmem:[#allocation3 + $0x1f0] sm:$0xff] %v1263
        %1272 = vst [vmem:[#allocation3 + $0x1f8] sm:$0xff] %v1264
        %v1273 = vld [vmem:[#allocation2] sm:$0xff]
        %v1274 = vld [vmem:[#allocation2 + $0x8] sm:$0xff]
        %v1275 = vld [vmem:[#allocation2 + $0x10] sm:$0xff]
        %v1276 = vld [vmem:[#allocation2 + $0x18] sm:$0xff]
        %v1277 = vld [vmem:[#allocation2 + $0x20] sm:$0xff]
        %v1278 = vld [vmem:[#allocation2 + $0x28] sm:$0xff]
        %1279 = vrot.lane.b32.xlu0 %v502, 34
        %v1280 = vpop.permute.xlu0 %1279
        %1281 = vrot.lane.b32.xlu0 %v506, 34
        %v1282 = vpop.permute.xlu0 %1281
        %vm1283 = vcmask 277504
        %v1284 = vsel %vm1283, %v1280, %v1282
        %v1288 = vmul.bf16 %v1273, %v1280
        %v1289 = vmul.bf16 %v1274, %v1284
        %v1290 = vmul.bf16 %v1275, %v1282
        %v1291 = vmul.bf16 %v1276, %v1280
        %v1292 = vmul.bf16 %v1277, %v1284
        %v1293 = vmul.bf16 %v1278, %v1282
        %1300 = vrot.lane.b32.xlu0 %v1288, 94
        %v1301 = vpop.permute.xlu0 %1300
        %1302 = vrot.lane.b32.xlu0 %v1289, 94
        %v1303 = vpop.permute.xlu0 %1302
        %1304 = vrot.lane.b32.xlu0 %v1290, 94
        %v1305 = vpop.permute.xlu0 %1304
        %1306 = vrot.lane.b32.xlu0 %v1291, 94
        %v1307 = vpop.permute.xlu0 %1306
        %1308 = vrot.lane.b32.xlu0 %v1292, 94
        %v1309 = vpop.permute.xlu0 %1308
        %1310 = vrot.lane.b32.xlu0 %v1293, 94
        %v1311 = vpop.permute.xlu0 %1310
        %vm1312 = vcmask 769024
        %v1313 = vsel %vm1312, %v1301, %v1303
        %v1314 = vsel %vm1312, %v1303, %v1305
        %v1315 = vsel %vm1312, %v1307, %v1309
        %v1316 = vsel %vm1312, %v1309, %v1311
        %1321 = vst [vmem:[#allocation3 + $0x200] sm:$0xff] %v1313
        %1322 = vst [vmem:[#allocation3 + $0x208] sm:$0xff] %v1314
        %1323 = vst [vmem:[#allocation3 + $0x210] sm:$0xff] %v1315
        %1324 = vst [vmem:[#allocation3 + $0x218] sm:$0xff] %v1316
        %v1325 = vld [vmem:[#allocation2] sm:$0xff]
        %v1326 = vld [vmem:[#allocation2 + $0x8] sm:$0xff]
        %v1327 = vld [vmem:[#allocation2 + $0x10] sm:$0xff]
        %v1328 = vld [vmem:[#allocation2 + $0x18] sm:$0xff]
        %v1329 = vld [vmem:[#allocation2 + $0x20] sm:$0xff]
        %v1330 = vld [vmem:[#allocation2 + $0x28] sm:$0xff]
        %1331 = vrot.lane.b32.xlu0 %v564, 35
        %v1332 = vpop.permute.xlu0 %1331
        %1333 = vrot.lane.b32.xlu0 %v568, 35
        %v1334 = vpop.permute.xlu0 %1333
        %vm1335 = vcmask 285696
        %v1336 = vsel %vm1335, %v1332, %v1334
        %v1340 = vmul.bf16 %v1325, %v1332
        %v1341 = vmul.bf16 %v1326, %v1336
        %v1342 = vmul.bf16 %v1327, %v1334
        %v1343 = vmul.bf16 %v1328, %v1332
        %v1344 = vmul.bf16 %v1329, %v1336
        %v1345 = vmul.bf16 %v1330, %v1334
        %1352 = vrot.lane.b32.xlu0 %v1340, 93
        %v1353 = vpop.permute.xlu0 %1352
        %1354 = vrot.lane.b32.xlu0 %v1341, 93
        %v1355 = vpop.permute.xlu0 %1354
        %1356 = vrot.lane.b32.xlu0 %v1342, 93
        %v1357 = vpop.permute.xlu0 %1356
        %1358 = vrot.lane.b32.xlu0 %v1343, 93
        %v1359 = vpop.permute.xlu0 %1358
        %1360 = vrot.lane.b32.xlu0 %v1344, 93
        %v1361 = vpop.permute.xlu0 %1360
        %1362 = vrot.lane.b32.xlu0 %v1345, 93
        %v1363 = vpop.permute.xlu0 %1362
        %vm1364 = vcmask 760832
        %v1365 = vsel %vm1364, %v1353, %v1355
        %v1366 = vsel %vm1364, %v1355, %v1357
        %v1367 = vsel %vm1364, %v1359, %v1361
        %v1368 = vsel %vm1364, %v1361, %v1363
        %1373 = vst [vmem:[#allocation3 + $0x220] sm:$0xff] %v1365
        %1374 = vst [vmem:[#allocation3 + $0x228] sm:$0xff] %v1366
        %1375 = vst [vmem:[#allocation3 + $0x230] sm:$0xff] %v1367
        %1376 = vst [vmem:[#allocation3 + $0x238] sm:$0xff] %v1368
        %v1377 = vld [vmem:[#allocation2] sm:$0xff]
        %v1378 = vld [vmem:[#allocation2 + $0x8] sm:$0xff]
        %v1379 = vld [vmem:[#allocation2 + $0x10] sm:$0xff]
        %v1380 = vld [vmem:[#allocation2 + $0x18] sm:$0xff]
        %v1381 = vld [vmem:[#allocation2 + $0x20] sm:$0xff]
        %v1382 = vld [vmem:[#allocation2 + $0x28] sm:$0xff]
        %1383 = vrot.lane.b32.xlu0 %v626, 36
        %v1384 = vpop.permute.xlu0 %1383
        %1385 = vrot.lane.b32.xlu0 %v630, 36
        %v1386 = vpop.permute.xlu0 %1385
        %vm1387 = vcmask 293888
        %v1388 = vsel %vm1387, %v1384, %v1386
        %v1392 = vmul.bf16 %v1377, %v1384
        %v1393 = vmul.bf16 %v1378, %v1388
        %v1394 = vmul.bf16 %v1379, %v1386
        %v1395 = vmul.bf16 %v1380, %v1384
        %v1396 = vmul.bf16 %v1381, %v1388
        %v1397 = vmul.bf16 %v1382, %v1386
        %1404 = vrot.lane.b32.xlu0 %v1392, 92
        %v1405 = vpop.permute.xlu0 %1404
        %1406 = vrot.lane.b32.xlu0 %v1393, 92
        %v1407 = vpop.permute.xlu0 %1406
        %1408 = vrot.lane.b32.xlu0 %v1394, 92
        %v1409 = vpop.permute.xlu0 %1408
        %1410 = vrot.lane.b32.xlu0 %v1395, 92
        %v1411 = vpop.permute.xlu0 %1410
        %1412 = vrot.lane.b32.xlu0 %v1396, 92
        %v1413 = vpop.permute.xlu0 %1412
        %1414 = vrot.lane.b32.xlu0 %v1397, 92
        %v1415 = vpop.permute.xlu0 %1414
        %vm1416 = vcmask 752640
        %v1417 = vsel %vm1416, %v1405, %v1407
        %v1418 = vsel %vm1416, %v1407, %v1409
        %v1419 = vsel %vm1416, %v1411, %v1413
        %v1420 = vsel %vm1416, %v1413, %v1415
        %1425 = vst [vmem:[#allocation3 + $0x240] sm:$0xff] %v1417
        %1426 = vst [vmem:[#allocation3 + $0x248] sm:$0xff] %v1418
        %1427 = vst [vmem:[#allocation3 + $0x250] sm:$0xff] %v1419
        %1428 = vst [vmem:[#allocation3 + $0x258] sm:$0xff] %v1420
        %v1429 = vld [vmem:[#allocation2] sm:$0xff]
        %v1430 = vld [vmem:[#allocation2 + $0x8] sm:$0xff]
        %v1431 = vld [vmem:[#allocation2 + $0x10] sm:$0xff]
        %v1432 = vld [vmem:[#allocation2 + $0x18] sm:$0xff]
        %v1433 = vld [vmem:[#allocation2 + $0x20] sm:$0xff]
        %v1434 = vld [vmem:[#allocation2 + $0x28] sm:$0xff]
        %1435 = vrot.lane.b32.xlu0 %v688, 37
        %v1436 = vpop.permute.xlu0 %1435
        %1437 = vrot.lane.b32.xlu0 %v692, 37
        %v1438 = vpop.permute.xlu0 %1437
        %vm1439 = vcmask 302080
        %v1440 = vsel %vm1439, %v1436, %v1438
        %v1444 = vmul.bf16 %v1429, %v1436
        %v1445 = vmul.bf16 %v1430, %v1440
        %v1446 = vmul.bf16 %v1431, %v1438
        %v1447 = vmul.bf16 %v1432, %v1436
        %v1448 = vmul.bf16 %v1433, %v1440
        %v1449 = vmul.bf16 %v1434, %v1438
        %1456 = vrot.lane.b32.xlu0 %v1444, 91
        %v1457 = vpop.permute.xlu0 %1456
        %1458 = vrot.lane.b32.xlu0 %v1445, 91
        %v1459 = vpop.permute.xlu0 %1458
        %1460 = vrot.lane.b32.xlu0 %v1446, 91
        %v1461 = vpop.permute.xlu0 %1460
        %1462 = vrot.lane.b32.xlu0 %v1447, 91
        %v1463 = vpop.permute.xlu0 %1462
        %1464 = vrot.lane.b32.xlu0 %v1448, 91
        %v1465 = vpop.permute.xlu0 %1464
        %1466 = vrot.lane.b32.xlu0 %v1449, 91
        %v1467 = vpop.permute.xlu0 %1466
        %vm1468 = vcmask 744448
        %v1469 = vsel %vm1468, %v1457, %v1459
        %v1470 = vsel %vm1468, %v1459, %v1461
        %v1471 = vsel %vm1468, %v1463, %v1465
        %v1472 = vsel %vm1468, %v1465, %v1467
        %1477 = vst [vmem:[#allocation3 + $0x260] sm:$0xff] %v1469
        %1478 = vst [vmem:[#allocation3 + $0x268] sm:$0xff] %v1470
        %1479 = vst [vmem:[#allocation3 + $0x270] sm:$0xff] %v1471
        %1480 = vst [vmem:[#allocation3 + $0x278] sm:$0xff] %v1472
        %v1481 = vld [vmem:[#allocation2] sm:$0xff]
        %v1482 = vld [vmem:[#allocation2 + $0x8] sm:$0xff]
        %v1483 = vld [vmem:[#allocation2 + $0x10] sm:$0xff]
        %v1484 = vld [vmem:[#allocation2 + $0x18] sm:$0xff]
        %v1485 = vld [vmem:[#allocation2 + $0x20] sm:$0xff]
        %v1486 = vld [vmem:[#allocation2 + $0x28] sm:$0xff]
        %1487 = vrot.lane.b32.xlu0 %v750, 38
        %v1488 = vpop.permute.xlu0 %1487
        %1489 = vrot.lane.b32.xlu0 %v754, 38
        %v1490 = vpop.permute.xlu0 %1489
        %vm1491 = vcmask 310272
        %v1492 = vsel %vm1491, %v1488, %v1490
        %v1496 = vmul.bf16 %v1481, %v1488
        %v1497 = vmul.bf16 %v1482, %v1492
        %v1498 = vmul.bf16 %v1483, %v1490
        %v1499 = vmul.bf16 %v1484, %v1488
        %v1500 = vmul.bf16 %v1485, %v1492
        %v1501 = vmul.bf16 %v1486, %v1490
        %1508 = vrot.lane.b32.xlu0 %v1496, 90
        %v1509 = vpop.permute.xlu0 %1508
        %1510 = vrot.lane.b32.xlu0 %v1497, 90
        %v1511 = vpop.permute.xlu0 %1510
        %1512 = vrot.lane.b32.xlu0 %v1498, 90
        %v1513 = vpop.permute.xlu0 %1512
        %1514 = vrot.lane.b32.xlu0 %v1499, 90
        %v1515 = vpop.permute.xlu0 %1514
        %1516 = vrot.lane.b32.xlu0 %v1500, 90
        %v1517 = vpop.permute.xlu0 %1516
        %1518 = vrot.lane.b32.xlu0 %v1501, 90
        %v1519 = vpop.permute.xlu0 %1518
        %vm1520 = vcmask 736256
        %v1521 = vsel %vm1520, %v1509, %v1511
        %v1522 = vsel %vm1520, %v1511, %v1513
        %v1523 = vsel %vm1520, %v1515, %v1517
        %v1524 = vsel %vm1520, %v1517, %v1519
        %1529 = vst [vmem:[#allocation3 + $0x280] sm:$0xff] %v1521
        %1530 = vst [vmem:[#allocation3 + $0x288] sm:$0xff] %v1522
        %1531 = vst [vmem:[#allocation3 + $0x290] sm:$0xff] %v1523
        %1532 = vst [vmem:[#allocation3 + $0x298] sm:$0xff] %v1524
        %v1533 = vld [vmem:[#allocation2] sm:$0xff]
        %v1534 = vld [vmem:[#allocation2 + $0x8] sm:$0xff]
        %v1535 = vld [vmem:[#allocation2 + $0x10] sm:$0xff]
        %v1536 = vld [vmem:[#allocation2 + $0x18] sm:$0xff]
        %v1537 = vld [vmem:[#allocation2 + $0x20] sm:$0xff]
        %v1538 = vld [vmem:[#allocation2 + $0x28] sm:$0xff]
        %1539 = vrot.lane.b32.xlu0 %v409, 48
        %v1540 = vpop.permute.xlu0 %1539
        %1541 = vrot.lane.b32.xlu0 %v416, 48
        %v1542 = vpop.permute.xlu0 %1541
        %vm1543 = vcmask 392192
        %v1544 = vsel %vm1543, %v1540, %v1542
        %v1548 = vmul.bf16 %v1533, %v1540
        %v1549 = vmul.bf16 %v1534, %v1544
        %v1550 = vmul.bf16 %v1535, %v1542
        %v1551 = vmul.bf16 %v1536, %v1540
        %v1552 = vmul.bf16 %v1537, %v1544
        %v1553 = vmul.bf16 %v1538, %v1542
        %1560 = vrot.lane.b32.xlu0 %v1548, 80
        %v1561 = vpop.permute.xlu0 %1560
        %1562 = vrot.lane.b32.xlu0 %v1549, 80
        %v1563 = vpop.permute.xlu0 %1562
        %1564 = vrot.lane.b32.xlu0 %v1550, 80
        %v1565 = vpop.permute.xlu0 %1564
        %1566 = vrot.lane.b32.xlu0 %v1551, 80
        %v1567 = vpop.permute.xlu0 %1566
        %1568 = vrot.lane.b32.xlu0 %v1552, 80
        %v1569 = vpop.permute.xlu0 %1568
        %1570 = vrot.lane.b32.xlu0 %v1553, 80
        %v1571 = vpop.permute.xlu0 %1570
        %vm1572 = vcmask 654336
        %v1573 = vsel %vm1572, %v1561, %v1563
        %v1574 = vsel %vm1572, %v1563, %v1565
        %v1575 = vsel %vm1572, %v1567, %v1569
        %v1576 = vsel %vm1572, %v1569, %v1571
        %1581 = vst [vmem:[#allocation3 + $0x2a0] sm:$0xff] %v1573
        %1582 = vst [vmem:[#allocation3 + $0x2a8] sm:$0xff] %v1574
        %1583 = vst [vmem:[#allocation3 + $0x2b0] sm:$0xff] %v1575
        %1584 = vst [vmem:[#allocation3 + $0x2b8] sm:$0xff] %v1576
        %v1585 = vld [vmem:[#allocation2] sm:$0xff]
        %v1586 = vld [vmem:[#allocation2 + $0x8] sm:$0xff]
        %v1587 = vld [vmem:[#allocation2 + $0x10] sm:$0xff]
        %v1588 = vld [vmem:[#allocation2 + $0x18] sm:$0xff]
        %v1589 = vld [vmem:[#allocation2 + $0x20] sm:$0xff]
        %v1590 = vld [vmem:[#allocation2 + $0x28] sm:$0xff]
        %1591 = vrot.lane.b32.xlu0 %v437, 49
        %v1592 = vpop.permute.xlu0 %1591
        %1593 = vrot.lane.b32.xlu0 %v444, 49
        %v1594 = vpop.permute.xlu0 %1593
        %vm1595 = vcmask 400384
        %v1596 = vsel %vm1595, %v1592, %v1594
        %v1600 = vmul.bf16 %v1585, %v1592
        %v1601 = vmul.bf16 %v1586, %v1596
        %v1602 = vmul.bf16 %v1587, %v1594
        %v1603 = vmul.bf16 %v1588, %v1592
        %v1604 = vmul.bf16 %v1589, %v1596
        %v1605 = vmul.bf16 %v1590, %v1594
        %1612 = vrot.lane.b32.xlu0 %v1600, 79
        %v1613 = vpop.permute.xlu0 %1612
        %1614 = vrot.lane.b32.xlu0 %v1601, 79
        %v1615 = vpop.permute.xlu0 %1614
        %1616 = vrot.lane.b32.xlu0 %v1602, 79
        %v1617 = vpop.permute.xlu0 %1616
        %1618 = vrot.lane.b32.xlu0 %v1603, 79
        %v1619 = vpop.permute.xlu0 %1618
        %1620 = vrot.lane.b32.xlu0 %v1604, 79
        %v1621 = vpop.permute.xlu0 %1620
        %1622 = vrot.lane.b32.xlu0 %v1605, 79
        %v1623 = vpop.permute.xlu0 %1622
        %vm1624 = vcmask 646144
        %v1625 = vsel %vm1624, %v1613, %v1615
        %v1626 = vsel %vm1624, %v1615, %v1617
        %v1627 = vsel %vm1624, %v1619, %v1621
        %v1628 = vsel %vm1624, %v1621, %v1623
        %1633 = vst [vmem:[#allocation3 + $0x2c0] sm:$0xff] %v1625
        %1634 = vst [vmem:[#allocation3 + $0x2c8] sm:$0xff] %v1626
        %1635 = vst [vmem:[#allocation3 + $0x2d0] sm:$0xff] %v1627
        %1636 = vst [vmem:[#allocation3 + $0x2d8] sm:$0xff] %v1628
        %v1637 = vld [vmem:[#allocation2] sm:$0xff]
        %v1638 = vld [vmem:[#allocation2 + $0x8] sm:$0xff]
        %v1639 = vld [vmem:[#allocation2 + $0x10] sm:$0xff]
        %v1640 = vld [vmem:[#allocation2 + $0x18] sm:$0xff]
        %v1641 = vld [vmem:[#allocation2 + $0x20] sm:$0xff]
        %v1642 = vld [vmem:[#allocation2 + $0x28] sm:$0xff]
        %1643 = vrot.lane.b32.xlu0 %v502, 50
        %v1644 = vpop.permute.xlu0 %1643
        %1645 = vrot.lane.b32.xlu0 %v506, 50
        %v1646 = vpop.permute.xlu0 %1645
        %vm1647 = vcmask 408576
        %v1648 = vsel %vm1647, %v1644, %v1646
        %v1652 = vmul.bf16 %v1637, %v1644
        %v1653 = vmul.bf16 %v1638, %v1648
        %v1654 = vmul.bf16 %v1639, %v1646
        %v1655 = vmul.bf16 %v1640, %v1644
        %v1656 = vmul.bf16 %v1641, %v1648
        %v1657 = vmul.bf16 %v1642, %v1646
        %1664 = vrot.lane.b32.xlu0 %v1652, 78
        %v1665 = vpop.permute.xlu0 %1664
        %1666 = vrot.lane.b32.xlu0 %v1653, 78
        %v1667 = vpop.permute.xlu0 %1666
        %1668 = vrot.lane.b32.xlu0 %v1654, 78
        %v1669 = vpop.permute.xlu0 %1668
        %1670 = vrot.lane.b32.xlu0 %v1655, 78
        %v1671 = vpop.permute.xlu0 %1670
        %1672 = vrot.lane.b32.xlu0 %v1656, 78
        %v1673 = vpop.permute.xlu0 %1672
        %1674 = vrot.lane.b32.xlu0 %v1657, 78
        %v1675 = vpop.permute.xlu0 %1674
        %vm1676 = vcmask 637952
        %v1677 = vsel %vm1676, %v1665, %v1667
        %v1678 = vsel %vm1676, %v1667, %v1669
        %v1679 = vsel %vm1676, %v1671, %v1673
        %v1680 = vsel %vm1676, %v1673, %v1675
        %1685 = vst [vmem:[#allocation3 + $0x2e0] sm:$0xff] %v1677
        %1686 = vst [vmem:[#allocation3 + $0x2e8] sm:$0xff] %v1678
        %1687 = vst [vmem:[#allocation3 + $0x2f0] sm:$0xff] %v1679
        %1688 = vst [vmem:[#allocation3 + $0x2f8] sm:$0xff] %v1680
        %v1689 = vld [vmem:[#allocation2] sm:$0xff]
        %v1690 = vld [vmem:[#allocation2 + $0x8] sm:$0xff]
        %v1691 = vld [vmem:[#allocation2 + $0x10] sm:$0xff]
        %v1692 = vld [vmem:[#allocation2 + $0x18] sm:$0xff]
        %v1693 = vld [vmem:[#allocation2 + $0x20] sm:$0xff]
        %v1694 = vld [vmem:[#allocation2 + $0x28] sm:$0xff]
        %1695 = vrot.lane.b32.xlu0 %v564, 51
        %v1696 = vpop.permute.xlu0 %1695
        %1697 = vrot.lane.b32.xlu0 %v568, 51
        %v1698 = vpop.permute.xlu0 %1697
        %v1699 = vsel %vm378, %v1696, %v1698
        %v1703 = vmul.bf16 %v1689, %v1696
        %v1704 = vmul.bf16 %v1690, %v1699
        %v1705 = vmul.bf16 %v1691, %v1698
        %v1706 = vmul.bf16 %v1692, %v1696
        %v1707 = vmul.bf16 %v1693, %v1699
        %v1708 = vmul.bf16 %v1694, %v1698
        %1715 = vrot.lane.b32.xlu0 %v1703, 77
        %v1716 = vpop.permute.xlu0 %1715
        %1717 = vrot.lane.b32.xlu0 %v1704, 77
        %v1718 = vpop.permute.xlu0 %1717
        %1719 = vrot.lane.b32.xlu0 %v1705, 77
        %v1720 = vpop.permute.xlu0 %1719
        %1721 = vrot.lane.b32.xlu0 %v1706, 77
        %v1722 = vpop.permute.xlu0 %1721
        %1723 = vrot.lane.b32.xlu0 %v1707, 77
        %v1724 = vpop.permute.xlu0 %1723
        %1725 = vrot.lane.b32.xlu0 %v1708, 77
        %v1726 = vpop.permute.xlu0 %1725
        %vm1727 = vcmask 629760
        %v1728 = vsel %vm1727, %v1716, %v1718
        %v1729 = vsel %vm1727, %v1718, %v1720
        %v1730 = vsel %vm1727, %v1722, %v1724
        %v1731 = vsel %vm1727, %v1724, %v1726
        %1736 = vst [vmem:[#allocation3 + $0x300] sm:$0xff] %v1728
        %1737 = vst [vmem:[#allocation3 + $0x308] sm:$0xff] %v1729
        %1738 = vst [vmem:[#allocation3 + $0x310] sm:$0xff] %v1730
        %1739 = vst [vmem:[#allocation3 + $0x318] sm:$0xff] %v1731
        %v1740 = vld [vmem:[#allocation2] sm:$0xff]
        %v1741 = vld [vmem:[#allocation2 + $0x8] sm:$0xff]
        %v1742 = vld [vmem:[#allocation2 + $0x10] sm:$0xff]
        %v1743 = vld [vmem:[#allocation2 + $0x18] sm:$0xff]
        %v1744 = vld [vmem:[#allocation2 + $0x20] sm:$0xff]
        %v1745 = vld [vmem:[#allocation2 + $0x28] sm:$0xff]
        %1746 = vrot.lane.b32.xlu0 %v626, 52
        %v1747 = vpop.permute.xlu0 %1746
        %1748 = vrot.lane.b32.xlu0 %v630, 52
        %v1749 = vpop.permute.xlu0 %1748
        %vm1750 = vcmask 424960
        %v1751 = vsel %vm1750, %v1747, %v1749
        %v1755 = vmul.bf16 %v1740, %v1747
        %v1756 = vmul.bf16 %v1741, %v1751
        %v1757 = vmul.bf16 %v1742, %v1749
        %v1758 = vmul.bf16 %v1743, %v1747
        %v1759 = vmul.bf16 %v1744, %v1751
        %v1760 = vmul.bf16 %v1745, %v1749
        %1767 = vrot.lane.b32.xlu0 %v1755, 76
        %v1768 = vpop.permute.xlu0 %1767
        %1769 = vrot.lane.b32.xlu0 %v1756, 76
        %v1770 = vpop.permute.xlu0 %1769
        %1771 = vrot.lane.b32.xlu0 %v1757, 76
        %v1772 = vpop.permute.xlu0 %1771
        %1773 = vrot.lane.b32.xlu0 %v1758, 76
        %v1774 = vpop.permute.xlu0 %1773
        %1775 = vrot.lane.b32.xlu0 %v1759, 76
        %v1776 = vpop.permute.xlu0 %1775
        %1777 = vrot.lane.b32.xlu0 %v1760, 76
        %v1778 = vpop.permute.xlu0 %1777
        %vm1779 = vcmask 621568
        %v1780 = vsel %vm1779, %v1768, %v1770
        %v1781 = vsel %vm1779, %v1770, %v1772
        %v1782 = vsel %vm1779, %v1774, %v1776
        %v1783 = vsel %vm1779, %v1776, %v1778
        %1788 = vst [vmem:[#allocation3 + $0x320] sm:$0xff] %v1780
        %1789 = vst [vmem:[#allocation3 + $0x328] sm:$0xff] %v1781
        %1790 = vst [vmem:[#allocation3 + $0x330] sm:$0xff] %v1782
        %1791 = vst [vmem:[#allocation3 + $0x338] sm:$0xff] %v1783
        %v1792 = vld [vmem:[#allocation2] sm:$0xff]
        %v1793 = vld [vmem:[#allocation2 + $0x8] sm:$0xff]
        %v1794 = vld [vmem:[#allocation2 + $0x10] sm:$0xff]
        %v1795 = vld [vmem:[#allocation2 + $0x18] sm:$0xff]
        %v1796 = vld [vmem:[#allocation2 + $0x20] sm:$0xff]
        %v1797 = vld [vmem:[#allocation2 + $0x28] sm:$0xff]
        %1798 = vrot.lane.b32.xlu0 %v688, 53
        %v1799 = vpop.permute.xlu0 %1798
        %1800 = vrot.lane.b32.xlu0 %v692, 53
        %v1801 = vpop.permute.xlu0 %1800
        %vm1802 = vcmask 433152
        %v1803 = vsel %vm1802, %v1799, %v1801
        %v1807 = vmul.bf16 %v1792, %v1799
        %v1808 = vmul.bf16 %v1793, %v1803
        %v1809 = vmul.bf16 %v1794, %v1801
        %v1810 = vmul.bf16 %v1795, %v1799
        %v1811 = vmul.bf16 %v1796, %v1803
        %v1812 = vmul.bf16 %v1797, %v1801
        %1819 = vrot.lane.b32.xlu0 %v1807, 75
        %v1820 = vpop.permute.xlu0 %1819
        %1821 = vrot.lane.b32.xlu0 %v1808, 75
        %v1822 = vpop.permute.xlu0 %1821
        %1823 = vrot.lane.b32.xlu0 %v1809, 75
        %v1824 = vpop.permute.xlu0 %1823
        %1825 = vrot.lane.b32.xlu0 %v1810, 75
        %v1826 = vpop.permute.xlu0 %1825
        %1827 = vrot.lane.b32.xlu0 %v1811, 75
        %v1828 = vpop.permute.xlu0 %1827
        %1829 = vrot.lane.b32.xlu0 %v1812, 75
        %v1830 = vpop.permute.xlu0 %1829
        %vm1831 = vcmask 613376
        %v1832 = vsel %vm1831, %v1820, %v1822
        %v1833 = vsel %vm1831, %v1822, %v1824
        %v1834 = vsel %vm1831, %v1826, %v1828
        %v1835 = vsel %vm1831, %v1828, %v1830
        %1840 = vst [vmem:[#allocation3 + $0x340] sm:$0xff] %v1832
        %1841 = vst [vmem:[#allocation3 + $0x348] sm:$0xff] %v1833
        %1842 = vst [vmem:[#allocation3 + $0x350] sm:$0xff] %v1834
        %1843 = vst [vmem:[#allocation3 + $0x358] sm:$0xff] %v1835
        %v1844 = vld [vmem:[#allocation2] sm:$0xff]
        %v1845 = vld [vmem:[#allocation2 + $0x8] sm:$0xff]
        %v1846 = vld [vmem:[#allocation2 + $0x10] sm:$0xff]
        %v1847 = vld [vmem:[#allocation2 + $0x18] sm:$0xff]
        %v1848 = vld [vmem:[#allocation2 + $0x20] sm:$0xff]
        %v1849 = vld [vmem:[#allocation2 + $0x28] sm:$0xff]
        %1850 = vrot.lane.b32.xlu0 %v750, 54
        %v1851 = vpop.permute.xlu0 %1850
        %1852 = vrot.lane.b32.xlu0 %v754, 54
        %v1853 = vpop.permute.xlu0 %1852
        %vm1854 = vcmask 441344
        %v1855 = vsel %vm1854, %v1851, %v1853
        %v1859 = vmul.bf16 %v1844, %v1851
        %v1860 = vmul.bf16 %v1845, %v1855
        %v1861 = vmul.bf16 %v1846, %v1853
        %v1862 = vmul.bf16 %v1847, %v1851
        %v1863 = vmul.bf16 %v1848, %v1855
        %v1864 = vmul.bf16 %v1849, %v1853
        %1871 = vrot.lane.b32.xlu0 %v1859, 74
        %v1872 = vpop.permute.xlu0 %1871
        %1873 = vrot.lane.b32.xlu0 %v1860, 74
        %v1874 = vpop.permute.xlu0 %1873
        %1875 = vrot.lane.b32.xlu0 %v1861, 74
        %v1876 = vpop.permute.xlu0 %1875
        %1877 = vrot.lane.b32.xlu0 %v1862, 74
        %v1878 = vpop.permute.xlu0 %1877
        %1879 = vrot.lane.b32.xlu0 %v1863, 74
        %v1880 = vpop.permute.xlu0 %1879
        %1881 = vrot.lane.b32.xlu0 %v1864, 74
        %v1882 = vpop.permute.xlu0 %1881
        %vm1883 = vcmask 605184
        %v1884 = vsel %vm1883, %v1872, %v1874
        %v1885 = vsel %vm1883, %v1874, %v1876
        %v1886 = vsel %vm1883, %v1878, %v1880
        %v1887 = vsel %vm1883, %v1880, %v1882
        %1892 = vst [vmem:[#allocation3 + $0x360] sm:$0xff] %v1884
        %1893 = vst [vmem:[#allocation3 + $0x368] sm:$0xff] %v1885
        %1894 = vst [vmem:[#allocation3 + $0x370] sm:$0xff] %v1886
        %1895 = vst [vmem:[#allocation3 + $0x378] sm:$0xff] %v1887
        %v1896 = vld [vmem:[#allocation2] sm:$0xff]
        %v1897 = vld [vmem:[#allocation2 + $0x8] sm:$0xff]
        %v1898 = vld [vmem:[#allocation2 + $0x10] sm:$0xff]
        %v1899 = vld [vmem:[#allocation2 + $0x18] sm:$0xff]
        %v1900 = vld [vmem:[#allocation2 + $0x20] sm:$0xff]
        %v1901 = vld [vmem:[#allocation2 + $0x28] sm:$0xff]
        %1902 = vrot.lane.b32.xlu0 %v409, 64
        %v1903 = vpop.permute.xlu0 %1902
        %1904 = vrot.lane.b32.xlu0 %v416, 64
        %v1905 = vpop.permute.xlu0 %1904
        %vm1906 = vcmask 523264
        %v1907 = vsel %vm1906, %v1903, %v1905
        %v1911 = vmul.bf16 %v1896, %v1903
        %v1912 = vmul.bf16 %v1897, %v1907
        %v1913 = vmul.bf16 %v1898, %v1905
        %v1914 = vmul.bf16 %v1899, %v1903
        %v1915 = vmul.bf16 %v1900, %v1907
        %v1916 = vmul.bf16 %v1901, %v1905
        %1923 = vrot.lane.b32.xlu0 %v1911, 64
        %v1924 = vpop.permute.xlu0 %1923
        %1925 = vrot.lane.b32.xlu0 %v1912, 64
        %v1926 = vpop.permute.xlu0 %1925
        %1927 = vrot.lane.b32.xlu0 %v1913, 64
        %v1928 = vpop.permute.xlu0 %1927
        %1929 = vrot.lane.b32.xlu0 %v1914, 64
        %v1930 = vpop.permute.xlu0 %1929
        %1931 = vrot.lane.b32.xlu0 %v1915, 64
        %v1932 = vpop.permute.xlu0 %1931
        %1933 = vrot.lane.b32.xlu0 %v1916, 64
        %v1934 = vpop.permute.xlu0 %1933
        %v1935 = vsel %vm1906, %v1924, %v1926
        %v1936 = vsel %vm1906, %v1926, %v1928
        %v1937 = vsel %vm1906, %v1930, %v1932
        %v1938 = vsel %vm1906, %v1932, %v1934
        %1943 = vst [vmem:[#allocation3 + $0x380] sm:$0xff] %v1935
        %1944 = vst [vmem:[#allocation3 + $0x388] sm:$0xff] %v1936
        %1945 = vst [vmem:[#allocation3 + $0x390] sm:$0xff] %v1937
        %1946 = vst [vmem:[#allocation3 + $0x398] sm:$0xff] %v1938
        %v1947 = vld [vmem:[#allocation2] sm:$0xff]
        %v1948 = vld [vmem:[#allocation2 + $0x8] sm:$0xff]
        %v1949 = vld [vmem:[#allocation2 + $0x10] sm:$0xff]
        %v1950 = vld [vmem:[#allocation2 + $0x18] sm:$0xff]
        %v1951 = vld [vmem:[#allocation2 + $0x20] sm:$0xff]
        %v1952 = vld [vmem:[#allocation2 + $0x28] sm:$0xff]
        %1953 = vrot.lane.b32.xlu0 %v437, 65
        %v1954 = vpop.permute.xlu0 %1953
        %1955 = vrot.lane.b32.xlu0 %v444, 65
        %v1956 = vpop.permute.xlu0 %1955
        %vm1957 = vcmask 531456
        %v1958 = vsel %vm1957, %v1954, %v1956
        %v1962 = vmul.bf16 %v1947, %v1954
        %v1963 = vmul.bf16 %v1948, %v1958
        %v1964 = vmul.bf16 %v1949, %v1956
        %v1965 = vmul.bf16 %v1950, %v1954
        %v1966 = vmul.bf16 %v1951, %v1958
        %v1967 = vmul.bf16 %v1952, %v1956
        %1974 = vrot.lane.b32.xlu0 %v1962, 63
        %v1975 = vpop.permute.xlu0 %1974
        %1976 = vrot.lane.b32.xlu0 %v1963, 63
        %v1977 = vpop.permute.xlu0 %1976
        %1978 = vrot.lane.b32.xlu0 %v1964, 63
        %v1979 = vpop.permute.xlu0 %1978
        %1980 = vrot.lane.b32.xlu0 %v1965, 63
        %v1981 = vpop.permute.xlu0 %1980
        %1982 = vrot.lane.b32.xlu0 %v1966, 63
        %v1983 = vpop.permute.xlu0 %1982
        %1984 = vrot.lane.b32.xlu0 %v1967, 63
        %v1985 = vpop.permute.xlu0 %1984
        %vm1986 = vcmask 515072
        %v1987 = vsel %vm1986, %v1975, %v1977
        %v1988 = vsel %vm1986, %v1977, %v1979
        %v1989 = vsel %vm1986, %v1981, %v1983
        %v1990 = vsel %vm1986, %v1983, %v1985
        %1995 = vst [vmem:[#allocation3 + $0x3a0] sm:$0xff] %v1987
        %1996 = vst [vmem:[#allocation3 + $0x3a8] sm:$0xff] %v1988
        %1997 = vst [vmem:[#allocation3 + $0x3b0] sm:$0xff] %v1989
        %1998 = vst [vmem:[#allocation3 + $0x3b8] sm:$0xff] %v1990
        %v1999 = vld [vmem:[#allocation2] sm:$0xff]
        %v2000 = vld [vmem:[#allocation2 + $0x8] sm:$0xff]
        %v2001 = vld [vmem:[#allocation2 + $0x10] sm:$0xff]
        %v2002 = vld [vmem:[#allocation2 + $0x18] sm:$0xff]
        %v2003 = vld [vmem:[#allocation2 + $0x20] sm:$0xff]
        %v2004 = vld [vmem:[#allocation2 + $0x28] sm:$0xff]
        %2005 = vrot.lane.b32.xlu0 %v502, 66
        %v2006 = vpop.permute.xlu0 %2005
        %2007 = vrot.lane.b32.xlu0 %v506, 66
        %v2008 = vpop.permute.xlu0 %2007
        %vm2009 = vcmask 539648
        %v2010 = vsel %vm2009, %v2006, %v2008
        %v2014 = vmul.bf16 %v1999, %v2006
        %v2015 = vmul.bf16 %v2000, %v2010
        %v2016 = vmul.bf16 %v2001, %v2008
        %v2017 = vmul.bf16 %v2002, %v2006
        %v2018 = vmul.bf16 %v2003, %v2010
        %v2019 = vmul.bf16 %v2004, %v2008
        %2026 = vrot.lane.b32.xlu0 %v2014, 62
        %v2027 = vpop.permute.xlu0 %2026
        %2028 = vrot.lane.b32.xlu0 %v2015, 62
        %v2029 = vpop.permute.xlu0 %2028
        %2030 = vrot.lane.b32.xlu0 %v2016, 62
        %v2031 = vpop.permute.xlu0 %2030
        %2032 = vrot.lane.b32.xlu0 %v2017, 62
        %v2033 = vpop.permute.xlu0 %2032
        %2034 = vrot.lane.b32.xlu0 %v2018, 62
        %v2035 = vpop.permute.xlu0 %2034
        %2036 = vrot.lane.b32.xlu0 %v2019, 62
        %v2037 = vpop.permute.xlu0 %2036
        %vm2038 = vcmask 506880
        %v2039 = vsel %vm2038, %v2027, %v2029
        %v2040 = vsel %vm2038, %v2029, %v2031
        %v2041 = vsel %vm2038, %v2033, %v2035
        %v2042 = vsel %vm2038, %v2035, %v2037
        %2047 = vst [vmem:[#allocation3 + $0x3c0] sm:$0xff] %v2039
        %2048 = vst [vmem:[#allocation3 + $0x3c8] sm:$0xff] %v2040
        %2049 = vst [vmem:[#allocation3 + $0x3d0] sm:$0xff] %v2041
        %2050 = vst [vmem:[#allocation3 + $0x3d8] sm:$0xff] %v2042
        %v2051 = vld [vmem:[#allocation2] sm:$0xff]
        %v2052 = vld [vmem:[#allocation2 + $0x8] sm:$0xff]
        %v2053 = vld [vmem:[#allocation2 + $0x10] sm:$0xff]
        %v2054 = vld [vmem:[#allocation2 + $0x18] sm:$0xff]
        %v2055 = vld [vmem:[#allocation2 + $0x20] sm:$0xff]
        %v2056 = vld [vmem:[#allocation2 + $0x28] sm:$0xff]
        %2057 = vrot.lane.b32.xlu0 %v564, 67
        %v2058 = vpop.permute.xlu0 %2057
        %2059 = vrot.lane.b32.xlu0 %v568, 67
        %v2060 = vpop.permute.xlu0 %2059
        %vm2061 = vcmask 547840
        %v2062 = vsel %vm2061, %v2058, %v2060
        %v2066 = vmul.bf16 %v2051, %v2058
        %v2067 = vmul.bf16 %v2052, %v2062
        %v2068 = vmul.bf16 %v2053, %v2060
        %v2069 = vmul.bf16 %v2054, %v2058
        %v2070 = vmul.bf16 %v2055, %v2062
        %v2071 = vmul.bf16 %v2056, %v2060
        %2078 = vrot.lane.b32.xlu0 %v2066, 61
        %v2079 = vpop.permute.xlu0 %2078
        %2080 = vrot.lane.b32.xlu0 %v2067, 61
        %v2081 = vpop.permute.xlu0 %2080
        %2082 = vrot.lane.b32.xlu0 %v2068, 61
        %v2083 = vpop.permute.xlu0 %2082
        %2084 = vrot.lane.b32.xlu0 %v2069, 61
        %v2085 = vpop.permute.xlu0 %2084
        %2086 = vrot.lane.b32.xlu0 %v2070, 61
        %v2087 = vpop.permute.xlu0 %2086
        %2088 = vrot.lane.b32.xlu0 %v2071, 61
        %v2089 = vpop.permute.xlu0 %2088
        %vm2090 = vcmask 498688
        %v2091 = vsel %vm2090, %v2079, %v2081
        %v2092 = vsel %vm2090, %v2081, %v2083
        %v2093 = vsel %vm2090, %v2085, %v2087
        %v2094 = vsel %vm2090, %v2087, %v2089
        %2099 = vst [vmem:[#allocation3 + $0x3e0] sm:$0xff] %v2091
        %2100 = vst [vmem:[#allocation3 + $0x3e8] sm:$0xff] %v2092
        %2101 = vst [vmem:[#allocation3 + $0x3f0] sm:$0xff] %v2093
        %2102 = vst [vmem:[#allocation3 + $0x3f8] sm:$0xff] %v2094
        %v2103 = vld [vmem:[#allocation2] sm:$0xff]
        %v2104 = vld [vmem:[#allocation2 + $0x8] sm:$0xff]
        %v2105 = vld [vmem:[#allocation2 + $0x10] sm:$0xff]
        %v2106 = vld [vmem:[#allocation2 + $0x18] sm:$0xff]
        %v2107 = vld [vmem:[#allocation2 + $0x20] sm:$0xff]
        %v2108 = vld [vmem:[#allocation2 + $0x28] sm:$0xff]
        %2109 = vrot.lane.b32.xlu0 %v626, 68
        %v2110 = vpop.permute.xlu0 %2109
        %2111 = vrot.lane.b32.xlu0 %v630, 68
        %v2112 = vpop.permute.xlu0 %2111
        %vm2113 = vcmask 556032
        %v2114 = vsel %vm2113, %v2110, %v2112
        %v2118 = vmul.bf16 %v2103, %v2110
        %v2119 = vmul.bf16 %v2104, %v2114
        %v2120 = vmul.bf16 %v2105, %v2112
        %v2121 = vmul.bf16 %v2106, %v2110
        %v2122 = vmul.bf16 %v2107, %v2114
        %v2123 = vmul.bf16 %v2108, %v2112
        %2130 = vrot.lane.b32.xlu0 %v2118, 60
        %v2131 = vpop.permute.xlu0 %2130
        %2132 = vrot.lane.b32.xlu0 %v2119, 60
        %v2133 = vpop.permute.xlu0 %2132
        %2134 = vrot.lane.b32.xlu0 %v2120, 60
        %v2135 = vpop.permute.xlu0 %2134
        %2136 = vrot.lane.b32.xlu0 %v2121, 60
        %v2137 = vpop.permute.xlu0 %2136
        %2138 = vrot.lane.b32.xlu0 %v2122, 60
        %v2139 = vpop.permute.xlu0 %2138
        %2140 = vrot.lane.b32.xlu0 %v2123, 60
        %v2141 = vpop.permute.xlu0 %2140
        %vm2142 = vcmask 490496
        %v2143 = vsel %vm2142, %v2131, %v2133
        %v2144 = vsel %vm2142, %v2133, %v2135
        %v2145 = vsel %vm2142, %v2137, %v2139
        %v2146 = vsel %vm2142, %v2139, %v2141
        %2151 = vst [vmem:[#allocation3 + $0x400] sm:$0xff] %v2143
        %2152 = vst [vmem:[#allocation3 + $0x408] sm:$0xff] %v2144
        %2153 = vst [vmem:[#allocation3 + $0x410] sm:$0xff] %v2145
        %2154 = vst [vmem:[#allocation3 + $0x418] sm:$0xff] %v2146
        %v2155 = vld [vmem:[#allocation2] sm:$0xff]
        %v2156 = vld [vmem:[#allocation2 + $0x8] sm:$0xff]
        %v2157 = vld [vmem:[#allocation2 + $0x10] sm:$0xff]
        %v2158 = vld [vmem:[#allocation2 + $0x18] sm:$0xff]
        %v2159 = vld [vmem:[#allocation2 + $0x20] sm:$0xff]
        %v2160 = vld [vmem:[#allocation2 + $0x28] sm:$0xff]
        %2161 = vrot.lane.b32.xlu0 %v688, 69
        %v2162 = vpop.permute.xlu0 %2161
        %2163 = vrot.lane.b32.xlu0 %v692, 69
        %v2164 = vpop.permute.xlu0 %2163
        %vm2165 = vcmask 564224
        %v2166 = vsel %vm2165, %v2162, %v2164
        %v2170 = vmul.bf16 %v2155, %v2162
        %v2171 = vmul.bf16 %v2156, %v2166
        %v2172 = vmul.bf16 %v2157, %v2164
        %v2173 = vmul.bf16 %v2158, %v2162
        %v2174 = vmul.bf16 %v2159, %v2166
        %v2175 = vmul.bf16 %v2160, %v2164
        %2182 = vrot.lane.b32.xlu0 %v2170, 59
        %v2183 = vpop.permute.xlu0 %2182
        %2184 = vrot.lane.b32.xlu0 %v2171, 59
        %v2185 = vpop.permute.xlu0 %2184
        %2186 = vrot.lane.b32.xlu0 %v2172, 59
        %v2187 = vpop.permute.xlu0 %2186
        %2188 = vrot.lane.b32.xlu0 %v2173, 59
        %v2189 = vpop.permute.xlu0 %2188
        %2190 = vrot.lane.b32.xlu0 %v2174, 59
        %v2191 = vpop.permute.xlu0 %2190
        %2192 = vrot.lane.b32.xlu0 %v2175, 59
        %v2193 = vpop.permute.xlu0 %2192
        %vm2194 = vcmask 482304
        %v2195 = vsel %vm2194, %v2183, %v2185
        %v2196 = vsel %vm2194, %v2185, %v2187
        %v2197 = vsel %vm2194, %v2189, %v2191
        %v2198 = vsel %vm2194, %v2191, %v2193
        %2203 = vst [vmem:[#allocation3 + $0x420] sm:$0xff] %v2195
        %2204 = vst [vmem:[#allocation3 + $0x428] sm:$0xff] %v2196
        %2205 = vst [vmem:[#allocation3 + $0x430] sm:$0xff] %v2197
        %2206 = vst [vmem:[#allocation3 + $0x438] sm:$0xff] %v2198
        %v2207 = vld [vmem:[#allocation2] sm:$0xff]
        %v2208 = vld [vmem:[#allocation2 + $0x8] sm:$0xff]
        %v2209 = vld [vmem:[#allocation2 + $0x10] sm:$0xff]
        %v2210 = vld [vmem:[#allocation2 + $0x18] sm:$0xff]
        %v2211 = vld [vmem:[#allocation2 + $0x20] sm:$0xff]
        %v2212 = vld [vmem:[#allocation2 + $0x28] sm:$0xff]
        %2213 = vrot.lane.b32.xlu0 %v750, 70
        %v2214 = vpop.permute.xlu0 %2213
        %2215 = vrot.lane.b32.xlu0 %v754, 70
        %v2216 = vpop.permute.xlu0 %2215
        %vm2217 = vcmask 572416
        %v2218 = vsel %vm2217, %v2214, %v2216
        %v2222 = vmul.bf16 %v2207, %v2214
        %v2223 = vmul.bf16 %v2208, %v2218
        %v2224 = vmul.bf16 %v2209, %v2216
        %v2225 = vmul.bf16 %v2210, %v2214
        %v2226 = vmul.bf16 %v2211, %v2218
        %v2227 = vmul.bf16 %v2212, %v2216
        %2234 = vrot.lane.b32.xlu0 %v2222, 58
        %v2235 = vpop.permute.xlu0 %2234
        %2236 = vrot.lane.b32.xlu0 %v2223, 58
        %v2237 = vpop.permute.xlu0 %2236
        %2238 = vrot.lane.b32.xlu0 %v2224, 58
        %v2239 = vpop.permute.xlu0 %2238
        %2240 = vrot.lane.b32.xlu0 %v2225, 58
        %v2241 = vpop.permute.xlu0 %2240
        %2242 = vrot.lane.b32.xlu0 %v2226, 58
        %v2243 = vpop.permute.xlu0 %2242
        %2244 = vrot.lane.b32.xlu0 %v2227, 58
        %v2245 = vpop.permute.xlu0 %2244
        %vm2246 = vcmask 474112
        %v2247 = vsel %vm2246, %v2235, %v2237
        %v2248 = vsel %vm2246, %v2237, %v2239
        %v2249 = vsel %vm2246, %v2241, %v2243
        %v2250 = vsel %vm2246, %v2243, %v2245
        %2255 = vst [vmem:[#allocation3 + $0x440] sm:$0xff] %v2247
        %2256 = vst [vmem:[#allocation3 + $0x448] sm:$0xff] %v2248
        %2257 = vst [vmem:[#allocation3 + $0x450] sm:$0xff] %v2249
        %2258 = vst [vmem:[#allocation3 + $0x458] sm:$0xff] %v2250
        %v2259 = vld [vmem:[#allocation2] sm:$0xff]
        %v2260 = vld [vmem:[#allocation2 + $0x8] sm:$0xff]
        %v2261 = vld [vmem:[#allocation2 + $0x10] sm:$0xff]
        %v2262 = vld [vmem:[#allocation2 + $0x18] sm:$0xff]
        %v2263 = vld [vmem:[#allocation2 + $0x20] sm:$0xff]
        %v2264 = vld [vmem:[#allocation2 + $0x28] sm:$0xff]
        %2265 = vrot.lane.b32.xlu0 %v409, 80
        %v2266 = vpop.permute.xlu0 %2265
        %2267 = vrot.lane.b32.xlu0 %v416, 80
        %v2268 = vpop.permute.xlu0 %2267
        %v2269 = vsel %vm1572, %v2266, %v2268
        %v2273 = vmul.bf16 %v2259, %v2266
        %v2274 = vmul.bf16 %v2260, %v2269
        %v2275 = vmul.bf16 %v2261, %v2268
        %v2276 = vmul.bf16 %v2262, %v2266
        %v2277 = vmul.bf16 %v2263, %v2269
        %v2278 = vmul.bf16 %v2264, %v2268
        %2285 = vrot.lane.b32.xlu0 %v2273, 48
        %v2286 = vpop.permute.xlu0 %2285
        %2287 = vrot.lane.b32.xlu0 %v2274, 48
        %v2288 = vpop.permute.xlu0 %2287
        %2289 = vrot.lane.b32.xlu0 %v2275, 48
        %v2290 = vpop.permute.xlu0 %2289
        %2291 = vrot.lane.b32.xlu0 %v2276, 48
        %v2292 = vpop.permute.xlu0 %2291
        %2293 = vrot.lane.b32.xlu0 %v2277, 48
        %v2294 = vpop.permute.xlu0 %2293
        %2295 = vrot.lane.b32.xlu0 %v2278, 48
        %v2296 = vpop.permute.xlu0 %2295
        %v2297 = vsel %vm1543, %v2286, %v2288
        %v2298 = vsel %vm1543, %v2288, %v2290
        %v2299 = vsel %vm1543, %v2292, %v2294
        %v2300 = vsel %vm1543, %v2294, %v2296
        %2305 = vst [vmem:[#allocation3 + $0x460] sm:$0xff] %v2297
        %2306 = vst [vmem:[#allocation3 + $0x468] sm:$0xff] %v2298
        %2307 = vst [vmem:[#allocation3 + $0x470] sm:$0xff] %v2299
        %2308 = vst [vmem:[#allocation3 + $0x478] sm:$0xff] %v2300
        %v2309 = vld [vmem:[#allocation2] sm:$0xff]
        %v2310 = vld [vmem:[#allocation2 + $0x8] sm:$0xff]
        %v2311 = vld [vmem:[#allocation2 + $0x10] sm:$0xff]
        %v2312 = vld [vmem:[#allocation2 + $0x18] sm:$0xff]
        %v2313 = vld [vmem:[#allocation2 + $0x20] sm:$0xff]
        %v2314 = vld [vmem:[#allocation2 + $0x28] sm:$0xff]
        %2315 = vrot.lane.b32.xlu0 %v437, 81
        %v2316 = vpop.permute.xlu0 %2315
        %2317 = vrot.lane.b32.xlu0 %v444, 81
        %v2318 = vpop.permute.xlu0 %2317
        %vm2319 = vcmask 662528
        %v2320 = vsel %vm2319, %v2316, %v2318
        %v2324 = vmul.bf16 %v2309, %v2316
        %v2325 = vmul.bf16 %v2310, %v2320
        %v2326 = vmul.bf16 %v2311, %v2318
        %v2327 = vmul.bf16 %v2312, %v2316
        %v2328 = vmul.bf16 %v2313, %v2320
        %v2329 = vmul.bf16 %v2314, %v2318
        %2336 = vrot.lane.b32.xlu0 %v2324, 47
        %v2337 = vpop.permute.xlu0 %2336
        %2338 = vrot.lane.b32.xlu0 %v2325, 47
        %v2339 = vpop.permute.xlu0 %2338
        %2340 = vrot.lane.b32.xlu0 %v2326, 47
        %v2341 = vpop.permute.xlu0 %2340
        %2342 = vrot.lane.b32.xlu0 %v2327, 47
        %v2343 = vpop.permute.xlu0 %2342
        %2344 = vrot.lane.b32.xlu0 %v2328, 47
        %v2345 = vpop.permute.xlu0 %2344
        %2346 = vrot.lane.b32.xlu0 %v2329, 47
        %v2347 = vpop.permute.xlu0 %2346
        %vm2348 = vcmask 384000
        %v2349 = vsel %vm2348, %v2337, %v2339
        %v2350 = vsel %vm2348, %v2339, %v2341
        %v2351 = vsel %vm2348, %v2343, %v2345
        %v2352 = vsel %vm2348, %v2345, %v2347
        %2357 = vst [vmem:[#allocation3 + $0x480] sm:$0xff] %v2349
        %2358 = vst [vmem:[#allocation3 + $0x488] sm:$0xff] %v2350
        %2359 = vst [vmem:[#allocation3 + $0x490] sm:$0xff] %v2351
        %2360 = vst [vmem:[#allocation3 + $0x498] sm:$0xff] %v2352
        %v2361 = vld [vmem:[#allocation2] sm:$0xff]
        %v2362 = vld [vmem:[#allocation2 + $0x8] sm:$0xff]
        %v2363 = vld [vmem:[#allocation2 + $0x10] sm:$0xff]
        %v2364 = vld [vmem:[#allocation2 + $0x18] sm:$0xff]
        %v2365 = vld [vmem:[#allocation2 + $0x20] sm:$0xff]
        %v2366 = vld [vmem:[#allocation2 + $0x28] sm:$0xff]
        %2367 = vrot.lane.b32.xlu0 %v502, 82
        %v2368 = vpop.permute.xlu0 %2367
        %2369 = vrot.lane.b32.xlu0 %v506, 82
        %v2370 = vpop.permute.xlu0 %2369
        %vm2371 = vcmask 670720
        %v2372 = vsel %vm2371, %v2368, %v2370
        %v2376 = vmul.bf16 %v2361, %v2368
        %v2377 = vmul.bf16 %v2362, %v2372
        %v2378 = vmul.bf16 %v2363, %v2370
        %v2379 = vmul.bf16 %v2364, %v2368
        %v2380 = vmul.bf16 %v2365, %v2372
        %v2381 = vmul.bf16 %v2366, %v2370
        %2388 = vrot.lane.b32.xlu0 %v2376, 46
        %v2389 = vpop.permute.xlu0 %2388
        %2390 = vrot.lane.b32.xlu0 %v2377, 46
        %v2391 = vpop.permute.xlu0 %2390
        %2392 = vrot.lane.b32.xlu0 %v2378, 46
        %v2393 = vpop.permute.xlu0 %2392
        %2394 = vrot.lane.b32.xlu0 %v2379, 46
        %v2395 = vpop.permute.xlu0 %2394
        %2396 = vrot.lane.b32.xlu0 %v2380, 46
        %v2397 = vpop.permute.xlu0 %2396
        %2398 = vrot.lane.b32.xlu0 %v2381, 46
        %v2399 = vpop.permute.xlu0 %2398
        %vm2400 = vcmask 375808
        %v2401 = vsel %vm2400, %v2389, %v2391
        %v2402 = vsel %vm2400, %v2391, %v2393
        %v2403 = vsel %vm2400, %v2395, %v2397
        %v2404 = vsel %vm2400, %v2397, %v2399
        %2409 = vst [vmem:[#allocation3 + $0x4a0] sm:$0xff] %v2401
        %2410 = vst [vmem:[#allocation3 + $0x4a8] sm:$0xff] %v2402
        %2411 = vst [vmem:[#allocation3 + $0x4b0] sm:$0xff] %v2403
        %2412 = vst [vmem:[#allocation3 + $0x4b8] sm:$0xff] %v2404
        %v2413 = vld [vmem:[#allocation2] sm:$0xff]
        %v2414 = vld [vmem:[#allocation2 + $0x8] sm:$0xff]
        %v2415 = vld [vmem:[#allocation2 + $0x10] sm:$0xff]
        %v2416 = vld [vmem:[#allocation2 + $0x18] sm:$0xff]
        %v2417 = vld [vmem:[#allocation2 + $0x20] sm:$0xff]
        %v2418 = vld [vmem:[#allocation2 + $0x28] sm:$0xff]
        %2419 = vrot.lane.b32.xlu0 %v564, 83
        %v2420 = vpop.permute.xlu0 %2419
        %2421 = vrot.lane.b32.xlu0 %v568, 83
        %v2422 = vpop.permute.xlu0 %2421
        %vm2423 = vcmask 678912
        %v2424 = vsel %vm2423, %v2420, %v2422
        %v2428 = vmul.bf16 %v2413, %v2420
        %v2429 = vmul.bf16 %v2414, %v2424
        %v2430 = vmul.bf16 %v2415, %v2422
        %v2431 = vmul.bf16 %v2416, %v2420
        %v2432 = vmul.bf16 %v2417, %v2424
        %v2433 = vmul.bf16 %v2418, %v2422
        %2440 = vrot.lane.b32.xlu0 %v2428, 45
        %v2441 = vpop.permute.xlu0 %2440
        %2442 = vrot.lane.b32.xlu0 %v2429, 45
        %v2443 = vpop.permute.xlu0 %2442
        %2444 = vrot.lane.b32.xlu0 %v2430, 45
        %v2445 = vpop.permute.xlu0 %2444
        %2446 = vrot.lane.b32.xlu0 %v2431, 45
        %v2447 = vpop.permute.xlu0 %2446
        %2448 = vrot.lane.b32.xlu0 %v2432, 45
        %v2449 = vpop.permute.xlu0 %2448
        %2450 = vrot.lane.b32.xlu0 %v2433, 45
        %v2451 = vpop.permute.xlu0 %2450
        %vm2452 = vcmask 367616
        %v2453 = vsel %vm2452, %v2441, %v2443
        %v2454 = vsel %vm2452, %v2443, %v2445
        %v2455 = vsel %vm2452, %v2447, %v2449
        %v2456 = vsel %vm2452, %v2449, %v2451
        %2461 = vst [vmem:[#allocation3 + $0x4c0] sm:$0xff] %v2453
        %2462 = vst [vmem:[#allocation3 + $0x4c8] sm:$0xff] %v2454
        %2463 = vst [vmem:[#allocation3 + $0x4d0] sm:$0xff] %v2455
        %2464 = vst [vmem:[#allocation3 + $0x4d8] sm:$0xff] %v2456
        %v2465 = vld [vmem:[#allocation2] sm:$0xff]
        %v2466 = vld [vmem:[#allocation2 + $0x8] sm:$0xff]
        %v2467 = vld [vmem:[#allocation2 + $0x10] sm:$0xff]
        %v2468 = vld [vmem:[#allocation2 + $0x18] sm:$0xff]
        %v2469 = vld [vmem:[#allocation2 + $0x20] sm:$0xff]
        %v2470 = vld [vmem:[#allocation2 + $0x28] sm:$0xff]
        %2471 = vrot.lane.b32.xlu0 %v626, 84
        %v2472 = vpop.permute.xlu0 %2471
        %2473 = vrot.lane.b32.xlu0 %v630, 84
        %v2474 = vpop.permute.xlu0 %2473
        %vm2475 = vcmask 687104
        %v2476 = vsel %vm2475, %v2472, %v2474
        %v2480 = vmul.bf16 %v2465, %v2472
        %v2481 = vmul.bf16 %v2466, %v2476
        %v2482 = vmul.bf16 %v2467, %v2474
        %v2483 = vmul.bf16 %v2468, %v2472
        %v2484 = vmul.bf16 %v2469, %v2476
        %v2485 = vmul.bf16 %v2470, %v2474
        %2492 = vrot.lane.b32.xlu0 %v2480, 44
        %v2493 = vpop.permute.xlu0 %2492
        %2494 = vrot.lane.b32.xlu0 %v2481, 44
        %v2495 = vpop.permute.xlu0 %2494
        %2496 = vrot.lane.b32.xlu0 %v2482, 44
        %v2497 = vpop.permute.xlu0 %2496
        %2498 = vrot.lane.b32.xlu0 %v2483, 44
        %v2499 = vpop.permute.xlu0 %2498
        %2500 = vrot.lane.b32.xlu0 %v2484, 44
        %v2501 = vpop.permute.xlu0 %2500
        %2502 = vrot.lane.b32.xlu0 %v2485, 44
        %v2503 = vpop.permute.xlu0 %2502
        %vm2504 = vcmask 359424
        %v2505 = vsel %vm2504, %v2493, %v2495
        %v2506 = vsel %vm2504, %v2495, %v2497
        %v2507 = vsel %vm2504, %v2499, %v2501
        %v2508 = vsel %vm2504, %v2501, %v2503
        %2513 = vst [vmem:[#allocation3 + $0x4e0] sm:$0xff] %v2505
        %2514 = vst [vmem:[#allocation3 + $0x4e8] sm:$0xff] %v2506
        %2515 = vst [vmem:[#allocation3 + $0x4f0] sm:$0xff] %v2507
        %2516 = vst [vmem:[#allocation3 + $0x4f8] sm:$0xff] %v2508
        %v2517 = vld [vmem:[#allocation2] sm:$0xff]
        %v2518 = vld [vmem:[#allocation2 + $0x8] sm:$0xff]
        %v2519 = vld [vmem:[#allocation2 + $0x10] sm:$0xff]
        %v2520 = vld [vmem:[#allocation2 + $0x18] sm:$0xff]
        %v2521 = vld [vmem:[#allocation2 + $0x20] sm:$0xff]
        %v2522 = vld [vmem:[#allocation2 + $0x28] sm:$0xff]
        %2523 = vrot.lane.b32.xlu0 %v688, 85
        %v2524 = vpop.permute.xlu0 %2523
        %2525 = vrot.lane.b32.xlu0 %v692, 85
        %v2526 = vpop.permute.xlu0 %2525
        %vm2527 = vcmask 695296
        %v2528 = vsel %vm2527, %v2524, %v2526
        %v2532 = vmul.bf16 %v2517, %v2524
        %v2533 = vmul.bf16 %v2518, %v2528
        %v2534 = vmul.bf16 %v2519, %v2526
        %v2535 = vmul.bf16 %v2520, %v2524
        %v2536 = vmul.bf16 %v2521, %v2528
        %v2537 = vmul.bf16 %v2522, %v2526
        %2544 = vrot.lane.b32.xlu0 %v2532, 43
        %v2545 = vpop.permute.xlu0 %2544
        %2546 = vrot.lane.b32.xlu0 %v2533, 43
        %v2547 = vpop.permute.xlu0 %2546
        %2548 = vrot.lane.b32.xlu0 %v2534, 43
        %v2549 = vpop.permute.xlu0 %2548
        %2550 = vrot.lane.b32.xlu0 %v2535, 43
        %v2551 = vpop.permute.xlu0 %2550
        %2552 = vrot.lane.b32.xlu0 %v2536, 43
        %v2553 = vpop.permute.xlu0 %2552
        %2554 = vrot.lane.b32.xlu0 %v2537, 43
        %v2555 = vpop.permute.xlu0 %2554
        %vm2556 = vcmask 351232
        %v2557 = vsel %vm2556, %v2545, %v2547
        %v2558 = vsel %vm2556, %v2547, %v2549
        %v2559 = vsel %vm2556, %v2551, %v2553
        %v2560 = vsel %vm2556, %v2553, %v2555
        %2565 = vst [vmem:[#allocation3 + $0x500] sm:$0xff] %v2557
        %2566 = vst [vmem:[#allocation3 + $0x508] sm:$0xff] %v2558
        %2567 = vst [vmem:[#allocation3 + $0x510] sm:$0xff] %v2559
        %2568 = vst [vmem:[#allocation3 + $0x518] sm:$0xff] %v2560
        %v2569 = vld [vmem:[#allocation2] sm:$0xff]
        %v2570 = vld [vmem:[#allocation2 + $0x8] sm:$0xff]
        %v2571 = vld [vmem:[#allocation2 + $0x10] sm:$0xff]
        %v2572 = vld [vmem:[#allocation2 + $0x18] sm:$0xff]
        %v2573 = vld [vmem:[#allocation2 + $0x20] sm:$0xff]
        %v2574 = vld [vmem:[#allocation2 + $0x28] sm:$0xff]
        %2575 = vrot.lane.b32.xlu0 %v750, 86
        %v2576 = vpop.permute.xlu0 %2575
        %2577 = vrot.lane.b32.xlu0 %v754, 86
        %v2578 = vpop.permute.xlu0 %2577
        %vm2579 = vcmask 703488
        %v2580 = vsel %vm2579, %v2576, %v2578
        %v2584 = vmul.bf16 %v2569, %v2576
        %v2585 = vmul.bf16 %v2570, %v2580
        %v2586 = vmul.bf16 %v2571, %v2578
        %v2587 = vmul.bf16 %v2572, %v2576
        %v2588 = vmul.bf16 %v2573, %v2580
        %v2589 = vmul.bf16 %v2574, %v2578
        %2596 = vrot.lane.b32.xlu0 %v2584, 42
        %v2597 = vpop.permute.xlu0 %2596
        %2598 = vrot.lane.b32.xlu0 %v2585, 42
        %v2599 = vpop.permute.xlu0 %2598
        %2600 = vrot.lane.b32.xlu0 %v2586, 42
        %v2601 = vpop.permute.xlu0 %2600
        %2602 = vrot.lane.b32.xlu0 %v2587, 42
        %v2603 = vpop.permute.xlu0 %2602
        %2604 = vrot.lane.b32.xlu0 %v2588, 42
        %v2605 = vpop.permute.xlu0 %2604
        %2606 = vrot.lane.b32.xlu0 %v2589, 42
        %v2607 = vpop.permute.xlu0 %2606
        %vm2608 = vcmask 343040
        %v2609 = vsel %vm2608, %v2597, %v2599
        %v2610 = vsel %vm2608, %v2599, %v2601
        %v2611 = vsel %vm2608, %v2603, %v2605
        %v2612 = vsel %vm2608, %v2605, %v2607
        %2617 = vst [vmem:[#allocation3 + $0x520] sm:$0xff] %v2609
        %2618 = vst [vmem:[#allocation3 + $0x528] sm:$0xff] %v2610
        %2619 = vst [vmem:[#allocation3 + $0x530] sm:$0xff] %v2611
        %2620 = vst [vmem:[#allocation3 + $0x538] sm:$0xff] %v2612
        %v2621 = vld [vmem:[#allocation2] sm:$0xff]
        %v2622 = vld [vmem:[#allocation2 + $0x8] sm:$0xff]
        %v2623 = vld [vmem:[#allocation2 + $0x10] sm:$0xff]
        %v2624 = vld [vmem:[#allocation2 + $0x18] sm:$0xff]
        %v2625 = vld [vmem:[#allocation2 + $0x20] sm:$0xff]
        %v2626 = vld [vmem:[#allocation2 + $0x28] sm:$0xff]
        %2627 = vrot.lane.b32.xlu0 %v409, 96
        %v2628 = vpop.permute.xlu0 %2627
        %2629 = vrot.lane.b32.xlu0 %v416, 96
        %v2630 = vpop.permute.xlu0 %2629
        %v2631 = vsel %vm1208, %v2628, %v2630
        %v2635 = vmul.bf16 %v2621, %v2628
        %v2636 = vmul.bf16 %v2622, %v2631
        %v2637 = vmul.bf16 %v2623, %v2630
        %v2638 = vmul.bf16 %v2624, %v2628
        %v2639 = vmul.bf16 %v2625, %v2631
        %v2640 = vmul.bf16 %v2626, %v2630
        %2647 = vrot.lane.b32.xlu0 %v2635, 32
        %v2648 = vpop.permute.xlu0 %2647
        %2649 = vrot.lane.b32.xlu0 %v2636, 32
        %v2650 = vpop.permute.xlu0 %2649
        %2651 = vrot.lane.b32.xlu0 %v2637, 32
        %v2652 = vpop.permute.xlu0 %2651
        %2653 = vrot.lane.b32.xlu0 %v2638, 32
        %v2654 = vpop.permute.xlu0 %2653
        %2655 = vrot.lane.b32.xlu0 %v2639, 32
        %v2656 = vpop.permute.xlu0 %2655
        %2657 = vrot.lane.b32.xlu0 %v2640, 32
        %v2658 = vpop.permute.xlu0 %2657
        %v2659 = vsel %vm1179, %v2648, %v2650
        %v2660 = vsel %vm1179, %v2650, %v2652
        %v2661 = vsel %vm1179, %v2654, %v2656
        %v2662 = vsel %vm1179, %v2656, %v2658
        %2667 = vst [vmem:[#allocation3 + $0x540] sm:$0xff] %v2659
        %2668 = vst [vmem:[#allocation3 + $0x548] sm:$0xff] %v2660
        %2669 = vst [vmem:[#allocation3 + $0x550] sm:$0xff] %v2661
        %2670 = vst [vmem:[#allocation3 + $0x558] sm:$0xff] %v2662
        %v2671 = vld [vmem:[#allocation2] sm:$0xff]
        %v2672 = vld [vmem:[#allocation2 + $0x8] sm:$0xff]
        %v2673 = vld [vmem:[#allocation2 + $0x10] sm:$0xff]
        %v2674 = vld [vmem:[#allocation2 + $0x18] sm:$0xff]
        %v2675 = vld [vmem:[#allocation2 + $0x20] sm:$0xff]
        %v2676 = vld [vmem:[#allocation2 + $0x28] sm:$0xff]
        %2677 = vrot.lane.b32.xlu0 %v437, 97
        %v2678 = vpop.permute.xlu0 %2677
        %2679 = vrot.lane.b32.xlu0 %v444, 97
        %v2680 = vpop.permute.xlu0 %2679
        %vm2681 = vcmask 793600
        %v2682 = vsel %vm2681, %v2678, %v2680
        %v2686 = vmul.bf16 %v2671, %v2678
        %v2687 = vmul.bf16 %v2672, %v2682
        %v2688 = vmul.bf16 %v2673, %v2680
        %v2689 = vmul.bf16 %v2674, %v2678
        %v2690 = vmul.bf16 %v2675, %v2682
        %v2691 = vmul.bf16 %v2676, %v2680
        %2698 = vrot.lane.b32.xlu0 %v2686, 31
        %v2699 = vpop.permute.xlu0 %2698
        %2700 = vrot.lane.b32.xlu0 %v2687, 31
        %v2701 = vpop.permute.xlu0 %2700
        %2702 = vrot.lane.b32.xlu0 %v2688, 31
        %v2703 = vpop.permute.xlu0 %2702
        %2704 = vrot.lane.b32.xlu0 %v2689, 31
        %v2705 = vpop.permute.xlu0 %2704
        %2706 = vrot.lane.b32.xlu0 %v2690, 31
        %v2707 = vpop.permute.xlu0 %2706
        %2708 = vrot.lane.b32.xlu0 %v2691, 31
        %v2709 = vpop.permute.xlu0 %2708
        %vm2710 = vcmask 252928
        %v2711 = vsel %vm2710, %v2699, %v2701
        %v2712 = vsel %vm2710, %v2701, %v2703
        %v2713 = vsel %vm2710, %v2705, %v2707
        %v2714 = vsel %vm2710, %v2707, %v2709
        %2719 = vst [vmem:[#allocation3 + $0x560] sm:$0xff] %v2711
        %2720 = vst [vmem:[#allocation3 + $0x568] sm:$0xff] %v2712
        %2721 = vst [vmem:[#allocation3 + $0x570] sm:$0xff] %v2713
        %2722 = vst [vmem:[#allocation3 + $0x578] sm:$0xff] %v2714
        %v2723 = vld [vmem:[#allocation2] sm:$0xff]
        %v2724 = vld [vmem:[#allocation2 + $0x8] sm:$0xff]
        %v2725 = vld [vmem:[#allocation2 + $0x10] sm:$0xff]
        %v2726 = vld [vmem:[#allocation2 + $0x18] sm:$0xff]
        %v2727 = vld [vmem:[#allocation2 + $0x20] sm:$0xff]
        %v2728 = vld [vmem:[#allocation2 + $0x28] sm:$0xff]
        %2729 = vrot.lane.b32.xlu0 %v502, 98
        %v2730 = vpop.permute.xlu0 %2729
        %2731 = vrot.lane.b32.xlu0 %v506, 98
        %v2732 = vpop.permute.xlu0 %2731
        %vm2733 = vcmask 801792
        %v2734 = vsel %vm2733, %v2730, %v2732
        %v2738 = vmul.bf16 %v2723, %v2730
        %v2739 = vmul.bf16 %v2724, %v2734
        %v2740 = vmul.bf16 %v2725, %v2732
        %v2741 = vmul.bf16 %v2726, %v2730
        %v2742 = vmul.bf16 %v2727, %v2734
        %v2743 = vmul.bf16 %v2728, %v2732
        %2750 = vrot.lane.b32.xlu0 %v2738, 30
        %v2751 = vpop.permute.xlu0 %2750
        %2752 = vrot.lane.b32.xlu0 %v2739, 30
        %v2753 = vpop.permute.xlu0 %2752
        %2754 = vrot.lane.b32.xlu0 %v2740, 30
        %v2755 = vpop.permute.xlu0 %2754
        %2756 = vrot.lane.b32.xlu0 %v2741, 30
        %v2757 = vpop.permute.xlu0 %2756
        %2758 = vrot.lane.b32.xlu0 %v2742, 30
        %v2759 = vpop.permute.xlu0 %2758
        %2760 = vrot.lane.b32.xlu0 %v2743, 30
        %v2761 = vpop.permute.xlu0 %2760
        %vm2762 = vcmask 244736
        %v2763 = vsel %vm2762, %v2751, %v2753
        %v2764 = vsel %vm2762, %v2753, %v2755
        %v2765 = vsel %vm2762, %v2757, %v2759
        %v2766 = vsel %vm2762, %v2759, %v2761
        %2771 = vst [vmem:[#allocation3 + $0x580] sm:$0xff] %v2763
        %2772 = vst [vmem:[#allocation3 + $0x588] sm:$0xff] %v2764
        %2773 = vst [vmem:[#allocation3 + $0x590] sm:$0xff] %v2765
        %2774 = vst [vmem:[#allocation3 + $0x598] sm:$0xff] %v2766
        %v2775 = vld [vmem:[#allocation2] sm:$0xff]
        %v2776 = vld [vmem:[#allocation2 + $0x8] sm:$0xff]
        %v2777 = vld [vmem:[#allocation2 + $0x10] sm:$0xff]
        %v2778 = vld [vmem:[#allocation2 + $0x18] sm:$0xff]
        %v2779 = vld [vmem:[#allocation2 + $0x20] sm:$0xff]
        %v2780 = vld [vmem:[#allocation2 + $0x28] sm:$0xff]
        %2781 = vrot.lane.b32.xlu0 %v564, 99
        %v2782 = vpop.permute.xlu0 %2781
        %2783 = vrot.lane.b32.xlu0 %v568, 99
        %v2784 = vpop.permute.xlu0 %2783
        %vm2785 = vcmask 809984
        %v2786 = vsel %vm2785, %v2782, %v2784
        %v2790 = vmul.bf16 %v2775, %v2782
        %v2791 = vmul.bf16 %v2776, %v2786
        %v2792 = vmul.bf16 %v2777, %v2784
        %v2793 = vmul.bf16 %v2778, %v2782
        %v2794 = vmul.bf16 %v2779, %v2786
        %v2795 = vmul.bf16 %v2780, %v2784
        %2802 = vrot.lane.b32.xlu0 %v2790, 29
        %v2803 = vpop.permute.xlu0 %2802
        %2804 = vrot.lane.b32.xlu0 %v2791, 29
        %v2805 = vpop.permute.xlu0 %2804
        %2806 = vrot.lane.b32.xlu0 %v2792, 29
        %v2807 = vpop.permute.xlu0 %2806
        %2808 = vrot.lane.b32.xlu0 %v2793, 29
        %v2809 = vpop.permute.xlu0 %2808
        %2810 = vrot.lane.b32.xlu0 %v2794, 29
        %v2811 = vpop.permute.xlu0 %2810
        %2812 = vrot.lane.b32.xlu0 %v2795, 29
        %v2813 = vpop.permute.xlu0 %2812
        %vm2814 = vcmask 236544
        %v2815 = vsel %vm2814, %v2803, %v2805
        %v2816 = vsel %vm2814, %v2805, %v2807
        %v2817 = vsel %vm2814, %v2809, %v2811
        %v2818 = vsel %vm2814, %v2811, %v2813
        %2823 = vst [vmem:[#allocation3 + $0x5a0] sm:$0xff] %v2815
        %2824 = vst [vmem:[#allocation3 + $0x5a8] sm:$0xff] %v2816
        %2825 = vst [vmem:[#allocation3 + $0x5b0] sm:$0xff] %v2817
        %2826 = vst [vmem:[#allocation3 + $0x5b8] sm:$0xff] %v2818
        %v2827 = vld [vmem:[#allocation2] sm:$0xff]
        %v2828 = vld [vmem:[#allocation2 + $0x8] sm:$0xff]
        %v2829 = vld [vmem:[#allocation2 + $0x10] sm:$0xff]
        %v2830 = vld [vmem:[#allocation2 + $0x18] sm:$0xff]
        %v2831 = vld [vmem:[#allocation2 + $0x20] sm:$0xff]
        %v2832 = vld [vmem:[#allocation2 + $0x28] sm:$0xff]
        %2833 = vrot.lane.b32.xlu0 %v626, 100
        %v2834 = vpop.permute.xlu0 %2833
        %2835 = vrot.lane.b32.xlu0 %v630, 100
        %v2836 = vpop.permute.xlu0 %2835
        %vm2837 = vcmask 818176
        %v2838 = vsel %vm2837, %v2834, %v2836
        %v2842 = vmul.bf16 %v2827, %v2834
        %v2843 = vmul.bf16 %v2828, %v2838
        %v2844 = vmul.bf16 %v2829, %v2836
        %v2845 = vmul.bf16 %v2830, %v2834
        %v2846 = vmul.bf16 %v2831, %v2838
        %v2847 = vmul.bf16 %v2832, %v2836
        %2854 = vrot.lane.b32.xlu0 %v2842, 28
        %v2855 = vpop.permute.xlu0 %2854
        %2856 = vrot.lane.b32.xlu0 %v2843, 28
        %v2857 = vpop.permute.xlu0 %2856
        %2858 = vrot.lane.b32.xlu0 %v2844, 28
        %v2859 = vpop.permute.xlu0 %2858
        %2860 = vrot.lane.b32.xlu0 %v2845, 28
        %v2861 = vpop.permute.xlu0 %2860
        %2862 = vrot.lane.b32.xlu0 %v2846, 28
        %v2863 = vpop.permute.xlu0 %2862
        %2864 = vrot.lane.b32.xlu0 %v2847, 28
        %v2865 = vpop.permute.xlu0 %2864
        %vm2866 = vcmask 228352
        %v2867 = vsel %vm2866, %v2855, %v2857
        %v2868 = vsel %vm2866, %v2857, %v2859
        %v2869 = vsel %vm2866, %v2861, %v2863
        %v2870 = vsel %vm2866, %v2863, %v2865
        %2875 = vst [vmem:[#allocation3 + $0x5c0] sm:$0xff] %v2867
        %2876 = vst [vmem:[#allocation3 + $0x5c8] sm:$0xff] %v2868
        %2877 = vst [vmem:[#allocation3 + $0x5d0] sm:$0xff] %v2869
        %2878 = vst [vmem:[#allocation3 + $0x5d8] sm:$0xff] %v2870
        %v2879 = vld [vmem:[#allocation2] sm:$0xff]
        %v2880 = vld [vmem:[#allocation2 + $0x8] sm:$0xff]
        %v2881 = vld [vmem:[#allocation2 + $0x10] sm:$0xff]
        %v2882 = vld [vmem:[#allocation2 + $0x18] sm:$0xff]
        %v2883 = vld [vmem:[#allocation2 + $0x20] sm:$0xff]
        %v2884 = vld [vmem:[#allocation2 + $0x28] sm:$0xff]
        %2885 = vrot.lane.b32.xlu0 %v688, 101
        %v2886 = vpop.permute.xlu0 %2885
        %2887 = vrot.lane.b32.xlu0 %v692, 101
        %v2888 = vpop.permute.xlu0 %2887
        %vm2889 = vcmask 826368
        %v2890 = vsel %vm2889, %v2886, %v2888
        %v2894 = vmul.bf16 %v2879, %v2886
        %v2895 = vmul.bf16 %v2880, %v2890
        %v2896 = vmul.bf16 %v2881, %v2888
        %v2897 = vmul.bf16 %v2882, %v2886
        %v2898 = vmul.bf16 %v2883, %v2890
        %v2899 = vmul.bf16 %v2884, %v2888
        %2906 = vrot.lane.b32.xlu0 %v2894, 27
        %v2907 = vpop.permute.xlu0 %2906
        %2908 = vrot.lane.b32.xlu0 %v2895, 27
        %v2909 = vpop.permute.xlu0 %2908
        %2910 = vrot.lane.b32.xlu0 %v2896, 27
        %v2911 = vpop.permute.xlu0 %2910
        %2912 = vrot.lane.b32.xlu0 %v2897, 27
        %v2913 = vpop.permute.xlu0 %2912
        %2914 = vrot.lane.b32.xlu0 %v2898, 27
        %v2915 = vpop.permute.xlu0 %2914
        %2916 = vrot.lane.b32.xlu0 %v2899, 27
        %v2917 = vpop.permute.xlu0 %2916
        %vm2918 = vcmask 220160
        %v2919 = vsel %vm2918, %v2907, %v2909
        %v2920 = vsel %vm2918, %v2909, %v2911
        %v2921 = vsel %vm2918, %v2913, %v2915
        %v2922 = vsel %vm2918, %v2915, %v2917
        %2927 = vst [vmem:[#allocation3 + $0x5e0] sm:$0xff] %v2919
        %2928 = vst [vmem:[#allocation3 + $0x5e8] sm:$0xff] %v2920
        %2929 = vst [vmem:[#allocation3 + $0x5f0] sm:$0xff] %v2921
        %2930 = vst [vmem:[#allocation3 + $0x5f8] sm:$0xff] %v2922
        %v2931 = vld [vmem:[#allocation2] sm:$0xff]
        %v2932 = vld [vmem:[#allocation2 + $0x8] sm:$0xff]
        %v2933 = vld [vmem:[#allocation2 + $0x10] sm:$0xff]
        %v2934 = vld [vmem:[#allocation2 + $0x18] sm:$0xff]
        %v2935 = vld [vmem:[#allocation2 + $0x20] sm:$0xff]
        %v2936 = vld [vmem:[#allocation2 + $0x28] sm:$0xff]
        %2937 = vrot.lane.b32.xlu0 %v750, 102
        %v2938 = vpop.permute.xlu0 %2937
        %2939 = vrot.lane.b32.xlu0 %v754, 102
        %v2940 = vpop.permute.xlu0 %2939
        %vm2941 = vcmask 834560
        %v2942 = vsel %vm2941, %v2938, %v2940
        %v2946 = vmul.bf16 %v2931, %v2938
        %v2947 = vmul.bf16 %v2932, %v2942
        %v2948 = vmul.bf16 %v2933, %v2940
        %v2949 = vmul.bf16 %v2934, %v2938
        %v2950 = vmul.bf16 %v2935, %v2942
        %v2951 = vmul.bf16 %v2936, %v2940
        %2958 = vrot.lane.b32.xlu0 %v2946, 26
        %v2959 = vpop.permute.xlu0 %2958
        %2960 = vrot.lane.b32.xlu0 %v2947, 26
        %v2961 = vpop.permute.xlu0 %2960
        %2962 = vrot.lane.b32.xlu0 %v2948, 26
        %v2963 = vpop.permute.xlu0 %2962
        %2964 = vrot.lane.b32.xlu0 %v2949, 26
        %v2965 = vpop.permute.xlu0 %2964
        %2966 = vrot.lane.b32.xlu0 %v2950, 26
        %v2967 = vpop.permute.xlu0 %2966
        %2968 = vrot.lane.b32.xlu0 %v2951, 26
        %v2969 = vpop.permute.xlu0 %2968
        %vm2970 = vcmask 211968
        %v2971 = vsel %vm2970, %v2959, %v2961
        %v2972 = vsel %vm2970, %v2961, %v2963
        %v2973 = vsel %vm2970, %v2965, %v2967
        %v2974 = vsel %vm2970, %v2967, %v2969
        %2979 = vst [vmem:[#allocation3 + $0x600] sm:$0xff] %v2971
        %2980 = vst [vmem:[#allocation3 + $0x608] sm:$0xff] %v2972
        %2981 = vst [vmem:[#allocation3 + $0x610] sm:$0xff] %v2973
        %2982 = vst [vmem:[#allocation3 + $0x618] sm:$0xff] %v2974
        %v2983 = vld [vmem:[%s1] sm:$0xff]
        %v2984 = vld [vmem:[%s1 + $0x8] sm:$0xff]
        %v2985 = vld [vmem:[%s1 + $0x10] sm:$0xff]
        %v2986 = vld [vmem:[%s1 + $0x18] sm:$0xff]
        %v2987 = vld [vmem:[%s1 + $0x20] sm:$0xff]
        %v2988 = vld [vmem:[%s1 + $0x28] sm:$0xff]
        %v2989 = vld [vmem:[%s1 + $0x30] sm:$0xf]
        %v2990 = vld [vmem:[%s1 + $0x34] sm:$0xff]
        %v2991 = vld [vmem:[%s1 + $0x3c] sm:$0xff]
        %v2992 = vld [vmem:[%s1 + $0x44] sm:$0xff]
        %v2993 = vld [vmem:[%s1 + $0x4c] sm:$0xff]
        %v2994 = vld [vmem:[%s1 + $0x54] sm:$0xff]
        %v2995 = vld [vmem:[%s1 + $0x5c] sm:$0xff]
        %v2996 = vld [vmem:[%s1 + $0x64] sm:$0xf]
        %v2997 = vld [vmem:[%s1 + $0x68] sm:$0xff]
        %v2998 = vld [vmem:[%s1 + $0x70] sm:$0xff]
        %v2999 = vld [vmem:[%s1 + $0x78] sm:$0xff]
        %v3000 = vld [vmem:[%s1 + $0x80] sm:$0xff]
        %v3001 = vld [vmem:[%s1 + $0x88] sm:$0xff]
        %v3002 = vld [vmem:[%s1 + $0x90] sm:$0xff]
        %v3003 = vld [vmem:[%s1 + $0x98] sm:$0xf]
        %v3004 = vld [vmem:[%s1 + $0x9c] sm:$0xff]
        %v3005 = vld [vmem:[%s1 + $0xa4] sm:$0xff]
        %v3006 = vld [vmem:[%s1 + $0xac] sm:$0xff]
        %v3007 = vld [vmem:[%s1 + $0xb4] sm:$0xff]
        %v3008 = vld [vmem:[%s1 + $0xbc] sm:$0xff]
        %v3009 = vld [vmem:[%s1 + $0xc4] sm:$0xff]
        %v3010 = vld [vmem:[%s1 + $0xcc] sm:$0xf]
        %v3011 = vld [vmem:[#allocation3] sm:$0xff]
        %v3012 = vld [vmem:[#allocation3 + $0x8] sm:$0xff]
        %v3013 = vld [vmem:[#allocation3 + $0x10] sm:$0xff]
        %v3014 = vld [vmem:[#allocation3 + $0x18] sm:$0xff]
        %v3015 = vld [vmem:[#allocation3 + $0x20] sm:$0xff]
        %v3016 = vld [vmem:[#allocation3 + $0x28] sm:$0xff]
        %v3017 = vld [vmem:[#allocation3 + $0x30] sm:$0xff]
        %v3018 = vld [vmem:[#allocation3 + $0x38] sm:$0xff]
        %v3019 = vld [vmem:[#allocation3 + $0x40] sm:$0xff]
        %v3020 = vld [vmem:[#allocation3 + $0x48] sm:$0xff]
        %v3021 = vld [vmem:[#allocation3 + $0x50] sm:$0xff]
        %v3022 = vld [vmem:[#allocation3 + $0x58] sm:$0xff]
        %v3023 = vld [vmem:[#allocation3 + $0x60] sm:$0xff]
        %v3024 = vld [vmem:[#allocation3 + $0x68] sm:$0xff]
        %v3025 = vld [vmem:[#allocation3 + $0x70] sm:$0xff]
        %v3026 = vld [vmem:[#allocation3 + $0x78] sm:$0xff]
        %v3027 = vld [vmem:[#allocation3 + $0x80] sm:$0xff]
        %v3028 = vld [vmem:[#allocation3 + $0x88] sm:$0xff]
        %v3029 = vld [vmem:[#allocation3 + $0x90] sm:$0xff]
        %v3030 = vld [vmem:[#allocation3 + $0x98] sm:$0xff]
        %v3031 = vld [vmem:[#allocation3 + $0xa0] sm:$0xff]
        %v3032 = vld [vmem:[#allocation3 + $0xa8] sm:$0xff]
        %v3033 = vld [vmem:[#allocation3 + $0xb0] sm:$0xff]
        %v3034 = vld [vmem:[#allocation3 + $0xb8] sm:$0xff]
        %v3035 = vld [vmem:[#allocation3 + $0xc0] sm:$0xff]
        %v3036 = vld [vmem:[#allocation3 + $0xc8] sm:$0xff]
        %v3037 = vld [vmem:[#allocation3 + $0xd0] sm:$0xff]
        %v3038 = vld [vmem:[#allocation3 + $0xd8] sm:$0xff]
        %v3039 = vld [vmem:[#allocation3 + $0xe0] sm:$0xff]
        %v3040 = vld [vmem:[#allocation3 + $0xe8] sm:$0xff]
        %v3041 = vld [vmem:[#allocation3 + $0xf0] sm:$0xff]
        %v3042 = vld [vmem:[#allocation3 + $0xf8] sm:$0xff]
        %v3043 = vld [vmem:[#allocation3 + $0x100] sm:$0xff]
        %v3044 = vld [vmem:[#allocation3 + $0x108] sm:$0xff]
        %v3045 = vld [vmem:[#allocation3 + $0x110] sm:$0xff]
        %v3046 = vld [vmem:[#allocation3 + $0x118] sm:$0xff]
        %v3047 = vld [vmem:[#allocation3 + $0x120] sm:$0xff]
        %v3048 = vld [vmem:[#allocation3 + $0x128] sm:$0xff]
        %v3049 = vld [vmem:[#allocation3 + $0x130] sm:$0xff]
        %v3050 = vld [vmem:[#allocation3 + $0x138] sm:$0xff]
        %v3051 = vld [vmem:[#allocation3 + $0x140] sm:$0xff]
        %v3052 = vld [vmem:[#allocation3 + $0x148] sm:$0xff]
        %v3053 = vld [vmem:[#allocation3 + $0x150] sm:$0xff]
        %v3054 = vld [vmem:[#allocation3 + $0x158] sm:$0xff]
        %v3055 = vld [vmem:[#allocation3 + $0x160] sm:$0xff]
        %v3056 = vld [vmem:[#allocation3 + $0x168] sm:$0xff]
        %v3057 = vld [vmem:[#allocation3 + $0x170] sm:$0xff]
        %v3058 = vld [vmem:[#allocation3 + $0x178] sm:$0xff]
        %v3059 = vld [vmem:[#allocation3 + $0x180] sm:$0xff]
        %v3060 = vld [vmem:[#allocation3 + $0x188] sm:$0xff]
        %v3061 = vld [vmem:[#allocation3 + $0x190] sm:$0xff]
        %v3062 = vld [vmem:[#allocation3 + $0x198] sm:$0xff]
        %v3063 = vld [vmem:[#allocation3 + $0x1a0] sm:$0xff]
        %v3064 = vld [vmem:[#allocation3 + $0x1a8] sm:$0xff]
        %v3065 = vld [vmem:[#allocation3 + $0x1b0] sm:$0xff]
        %v3066 = vld [vmem:[#allocation3 + $0x1b8] sm:$0xff]
        %v3067 = vld [vmem:[#allocation3 + $0x1c0] sm:$0xff]
        %v3068 = vld [vmem:[#allocation3 + $0x1c8] sm:$0xff]
        %v3069 = vld [vmem:[#allocation3 + $0x1d0] sm:$0xff]
        %v3070 = vld [vmem:[#allocation3 + $0x1d8] sm:$0xff]
        %v3071 = vld [vmem:[#allocation3 + $0x1e0] sm:$0xff]
        %v3072 = vld [vmem:[#allocation3 + $0x1e8] sm:$0xff]
        %v3073 = vld [vmem:[#allocation3 + $0x1f0] sm:$0xff]
        %v3074 = vld [vmem:[#allocation3 + $0x1f8] sm:$0xff]
        %v3075 = vld [vmem:[#allocation3 + $0x200] sm:$0xff]
        %v3076 = vld [vmem:[#allocation3 + $0x208] sm:$0xff]
        %v3077 = vld [vmem:[#allocation3 + $0x210] sm:$0xff]
        %v3078 = vld [vmem:[#allocation3 + $0x218] sm:$0xff]
        %v3079 = vld [vmem:[#allocation3 + $0x220] sm:$0xff]
        %v3080 = vld [vmem:[#allocation3 + $0x228] sm:$0xff]
        %v3081 = vld [vmem:[#allocation3 + $0x230] sm:$0xff]
        %v3082 = vld [vmem:[#allocation3 + $0x238] sm:$0xff]
        %v3083 = vld [vmem:[#allocation3 + $0x240] sm:$0xff]
        %v3084 = vld [vmem:[#allocation3 + $0x248] sm:$0xff]
        %v3085 = vld [vmem:[#allocation3 + $0x250] sm:$0xff]
        %v3086 = vld [vmem:[#allocation3 + $0x258] sm:$0xff]
        %v3087 = vld [vmem:[#allocation3 + $0x260] sm:$0xff]
        %v3088 = vld [vmem:[#allocation3 + $0x268] sm:$0xff]
        %v3089 = vld [vmem:[#allocation3 + $0x270] sm:$0xff]
        %v3090 = vld [vmem:[#allocation3 + $0x278] sm:$0xff]
        %v3091 = vld [vmem:[#allocation3 + $0x280] sm:$0xff]
        %v3092 = vld [vmem:[#allocation3 + $0x288] sm:$0xff]
        %v3093 = vld [vmem:[#allocation3 + $0x290] sm:$0xff]
        %v3094 = vld [vmem:[#allocation3 + $0x298] sm:$0xff]
        %v3095 = vld [vmem:[#allocation3 + $0x2a0] sm:$0xff]
        %v3096 = vld [vmem:[#allocation3 + $0x2a8] sm:$0xff]
        %v3097 = vld [vmem:[#allocation3 + $0x2b0] sm:$0xff]
        %v3098 = vld [vmem:[#allocation3 + $0x2b8] sm:$0xff]
        %v3099 = vld [vmem:[#allocation3 + $0x2c0] sm:$0xff]
        %v3100 = vld [vmem:[#allocation3 + $0x2c8] sm:$0xff]
        %v3101 = vld [vmem:[#allocation3 + $0x2d0] sm:$0xff]
        %v3102 = vld [vmem:[#allocation3 + $0x2d8] sm:$0xff]
        %v3103 = vld [vmem:[#allocation3 + $0x2e0] sm:$0xff]
        %v3104 = vld [vmem:[#allocation3 + $0x2e8] sm:$0xff]
        %v3105 = vld [vmem:[#allocation3 + $0x2f0] sm:$0xff]
        %v3106 = vld [vmem:[#allocation3 + $0x2f8] sm:$0xff]
        %v3107 = vld [vmem:[#allocation3 + $0x300] sm:$0xff]
        %v3108 = vld [vmem:[#allocation3 + $0x308] sm:$0xff]
        %v3109 = vld [vmem:[#allocation3 + $0x310] sm:$0xff]
        %v3110 = vld [vmem:[#allocation3 + $0x318] sm:$0xff]
        %v3111 = vld [vmem:[#allocation3 + $0x320] sm:$0xff]
        %v3112 = vld [vmem:[#allocation3 + $0x328] sm:$0xff]
        %v3113 = vld [vmem:[#allocation3 + $0x330] sm:$0xff]
        %v3114 = vld [vmem:[#allocation3 + $0x338] sm:$0xff]
        %v3115 = vld [vmem:[#allocation3 + $0x340] sm:$0xff]
        %v3116 = vld [vmem:[#allocation3 + $0x348] sm:$0xff]
        %v3117 = vld [vmem:[#allocation3 + $0x350] sm:$0xff]
        %v3118 = vld [vmem:[#allocation3 + $0x358] sm:$0xff]
        %v3119 = vld [vmem:[#allocation3 + $0x360] sm:$0xff]
        %v3120 = vld [vmem:[#allocation3 + $0x368] sm:$0xff]
        %v3121 = vld [vmem:[#allocation3 + $0x370] sm:$0xff]
        %v3122 = vld [vmem:[#allocation3 + $0x378] sm:$0xff]
        %v3123 = vld [vmem:[#allocation3 + $0x380] sm:$0xff]
        %v3124 = vld [vmem:[#allocation3 + $0x388] sm:$0xff]
        %v3125 = vld [vmem:[#allocation3 + $0x390] sm:$0xff]
        %v3126 = vld [vmem:[#allocation3 + $0x398] sm:$0xff]
        %v3127 = vld [vmem:[#allocation3 + $0x3a0] sm:$0xff]
        %v3128 = vld [vmem:[#allocation3 + $0x3a8] sm:$0xff]
        %v3129 = vld [vmem:[#allocation3 + $0x3b0] sm:$0xff]
        %v3130 = vld [vmem:[#allocation3 + $0x3b8] sm:$0xff]
        %v3131 = vld [vmem:[#allocation3 + $0x3c0] sm:$0xff]
        %v3132 = vld [vmem:[#allocation3 + $0x3c8] sm:$0xff]
        %v3133 = vld [vmem:[#allocation3 + $0x3d0] sm:$0xff]
        %v3134 = vld [vmem:[#allocation3 + $0x3d8] sm:$0xff]
        %v3135 = vld [vmem:[#allocation3 + $0x3e0] sm:$0xff]
        %v3136 = vld [vmem:[#allocation3 + $0x3e8] sm:$0xff]
        %v3137 = vld [vmem:[#allocation3 + $0x3f0] sm:$0xff]
        %v3138 = vld [vmem:[#allocation3 + $0x3f8] sm:$0xff]
        %v3139 = vld [vmem:[#allocation3 + $0x400] sm:$0xff]
        %v3140 = vld [vmem:[#allocation3 + $0x408] sm:$0xff]
        %v3141 = vld [vmem:[#allocation3 + $0x410] sm:$0xff]
        %v3142 = vld [vmem:[#allocation3 + $0x418] sm:$0xff]
        %v3143 = vld [vmem:[#allocation3 + $0x420] sm:$0xff]
        %v3144 = vld [vmem:[#allocation3 + $0x428] sm:$0xff]
        %v3145 = vld [vmem:[#allocation3 + $0x430] sm:$0xff]
        %v3146 = vld [vmem:[#allocation3 + $0x438] sm:$0xff]
        %v3147 = vld [vmem:[#allocation3 + $0x440] sm:$0xff]
        %v3148 = vld [vmem:[#allocation3 + $0x448] sm:$0xff]
        %v3149 = vld [vmem:[#allocation3 + $0x450] sm:$0xff]
        %v3150 = vld [vmem:[#allocation3 + $0x458] sm:$0xff]
        %v3151 = vld [vmem:[#allocation3 + $0x460] sm:$0xff]
        %v3152 = vld [vmem:[#allocation3 + $0x468] sm:$0xff]
        %v3153 = vld [vmem:[#allocation3 + $0x470] sm:$0xff]
        %v3154 = vld [vmem:[#allocation3 + $0x478] sm:$0xff]
        %v3155 = vld [vmem:[#allocation3 + $0x480] sm:$0xff]
        %v3156 = vld [vmem:[#allocation3 + $0x488] sm:$0xff]
        %v3157 = vld [vmem:[#allocation3 + $0x490] sm:$0xff]
        %v3158 = vld [vmem:[#allocation3 + $0x498] sm:$0xff]
        %v3159 = vld [vmem:[#allocation3 + $0x4a0] sm:$0xff]
        %v3160 = vld [vmem:[#allocation3 + $0x4a8] sm:$0xff]
        %v3161 = vld [vmem:[#allocation3 + $0x4b0] sm:$0xff]
        %v3162 = vld [vmem:[#allocation3 + $0x4b8] sm:$0xff]
        %v3163 = vld [vmem:[#allocation3 + $0x4c0] sm:$0xff]
        %v3164 = vld [vmem:[#allocation3 + $0x4c8] sm:$0xff]
        %v3165 = vld [vmem:[#allocation3 + $0x4d0] sm:$0xff]
        %v3166 = vld [vmem:[#allocation3 + $0x4d8] sm:$0xff]
        %v3167 = vld [vmem:[#allocation3 + $0x4e0] sm:$0xff]
        %v3168 = vld [vmem:[#allocation3 + $0x4e8] sm:$0xff]
        %v3169 = vld [vmem:[#allocation3 + $0x4f0] sm:$0xff]
        %v3170 = vld [vmem:[#allocation3 + $0x4f8] sm:$0xff]
        %v3171 = vld [vmem:[#allocation3 + $0x500] sm:$0xff]
        %v3172 = vld [vmem:[#allocation3 + $0x508] sm:$0xff]
        %v3173 = vld [vmem:[#allocation3 + $0x510] sm:$0xff]
        %v3174 = vld [vmem:[#allocation3 + $0x518] sm:$0xff]
        %v3175 = vld [vmem:[#allocation3 + $0x520] sm:$0xff]
        %v3176 = vld [vmem:[#allocation3 + $0x528] sm:$0xff]
        %v3177 = vld [vmem:[#allocation3 + $0x530] sm:$0xff]
        %v3178 = vld [vmem:[#allocation3 + $0x538] sm:$0xff]
        %v3179 = vld [vmem:[#allocation3 + $0x540] sm:$0xff]
        %v3180 = vld [vmem:[#allocation3 + $0x548] sm:$0xff]
        %v3181 = vld [vmem:[#allocation3 + $0x550] sm:$0xff]
        %v3182 = vld [vmem:[#allocation3 + $0x558] sm:$0xff]
        %v3183 = vld [vmem:[#allocation3 + $0x560] sm:$0xff]
        %v3184 = vld [vmem:[#allocation3 + $0x568] sm:$0xff]
        %v3185 = vld [vmem:[#allocation3 + $0x570] sm:$0xff]
        %v3186 = vld [vmem:[#allocation3 + $0x578] sm:$0xff]
        %v3187 = vld [vmem:[#allocation3 + $0x580] sm:$0xff]
        %v3188 = vld [vmem:[#allocation3 + $0x588] sm:$0xff]
        %v3189 = vld [vmem:[#allocation3 + $0x590] sm:$0xff]
        %v3190 = vld [vmem:[#allocation3 + $0x598] sm:$0xff]
        %v3191 = vld [vmem:[#allocation3 + $0x5a0] sm:$0xff]
        %v3192 = vld [vmem:[#allocation3 + $0x5a8] sm:$0xff]
        %v3193 = vld [vmem:[#allocation3 + $0x5b0] sm:$0xff]
        %v3194 = vld [vmem:[#allocation3 + $0x5b8] sm:$0xff]
        %v3195 = vld [vmem:[#allocation3 + $0x5c0] sm:$0xff]
        %v3196 = vld [vmem:[#allocation3 + $0x5c8] sm:$0xff]
        %v3197 = vld [vmem:[#allocation3 + $0x5d0] sm:$0xff]
        %v3198 = vld [vmem:[#allocation3 + $0x5d8] sm:$0xff]
        %v3199 = vld [vmem:[#allocation3 + $0x5e0] sm:$0xff]
        %v3200 = vld [vmem:[#allocation3 + $0x5e8] sm:$0xff]
        %v3201 = vld [vmem:[#allocation3 + $0x5f0] sm:$0xff]
        %v3202 = vld [vmem:[#allocation3 + $0x5f8] sm:$0xff]
        %v3203 = vld [vmem:[#allocation3 + $0x600] sm:$0xff]
        %v3204 = vld [vmem:[#allocation3 + $0x608] sm:$0xff]
        %v3205 = vld [vmem:[#allocation3 + $0x610] sm:$0xff]
        %v3206 = vld [vmem:[#allocation3 + $0x618] sm:$0xff]
        %v3207 = vld [vmem:[%s2] sm:$0xff]
        %v3208 = vld [vmem:[%s2 + $0x8] sm:$0xff]
        %v3209 = vld [vmem:[%s2 + $0x10] sm:$0xff]
        %v3210 = vld [vmem:[%s2 + $0x18] sm:$0xff]
        %v3211 = vld [vmem:[%s2 + $0x20] sm:$0xff]
        %v3212 = vld [vmem:[%s2 + $0x28] sm:$0xff]
        %v3213 = vld [vmem:[%s2 + $0x30] sm:$0xff]
        %v3214 = vld [vmem:[%s2 + $0x38] sm:$0xff]
        %v3243 = vunpack.c.l.b16 %v2983
        %v3244 = vunpack.c.h.b16 %v2983
        %v3245 = vunpack.c.l.b16 %v2984
        %v3246 = vunpack.c.h.b16 %v2984
        %v3247 = vunpack.c.l.b16 %v2985
        %v3248 = vunpack.c.h.b16 %v2985
        %v3249 = vunpack.c.l.b16 %v2986
        %v3250 = vunpack.c.h.b16 %v2986
        %v3251 = vunpack.c.l.b16 %v2987
        %v3252 = vunpack.c.h.b16 %v2987
        %v3253 = vunpack.c.l.b16 %v2988
        %v3254 = vunpack.c.h.b16 %v2988
        %v3255 = vunpack.c.l.b16 %v2989
        %v3256 = vunpack.c.l.b16 %v2990
        %v3257 = vunpack.c.h.b16 %v2990
        %v3258 = vunpack.c.l.b16 %v2991
        %v3259 = vunpack.c.h.b16 %v2991
        %v3260 = vunpack.c.l.b16 %v2992
        %v3261 = vunpack.c.h.b16 %v2992
        %v3262 = vunpack.c.l.b16 %v2993
        %v3263 = vunpack.c.h.b16 %v2993
        %v3264 = vunpack.c.l.b16 %v2994
        %v3265 = vunpack.c.h.b16 %v2994
        %v3266 = vunpack.c.l.b16 %v2995
        %v3267 = vunpack.c.h.b16 %v2995
        %v3268 = vunpack.c.l.b16 %v2996
        %v3269 = vunpack.c.l.b16 %v2997
        %v3270 = vunpack.c.h.b16 %v2997
        %v3271 = vunpack.c.l.b16 %v2998
        %v3272 = vunpack.c.h.b16 %v2998
        %v3273 = vunpack.c.l.b16 %v2999
        %v3274 = vunpack.c.h.b16 %v2999
        %v3275 = vunpack.c.l.b16 %v3000
        %v3276 = vunpack.c.h.b16 %v3000
        %v3277 = vunpack.c.l.b16 %v3001
        %v3278 = vunpack.c.h.b16 %v3001
        %v3279 = vunpack.c.l.b16 %v3002
        %v3280 = vunpack.c.h.b16 %v3002
        %v3281 = vunpack.c.l.b16 %v3003
        %v3282 = vunpack.c.l.b16 %v3004
        %v3283 = vunpack.c.h.b16 %v3004
        %v3284 = vunpack.c.l.b16 %v3005
        %v3285 = vunpack.c.h.b16 %v3005
        %v3286 = vunpack.c.l.b16 %v3006
        %v3287 = vunpack.c.h.b16 %v3006
        %v3288 = vunpack.c.l.b16 %v3007
        %v3289 = vunpack.c.h.b16 %v3007
        %v3290 = vunpack.c.l.b16 %v3008
        %v3291 = vunpack.c.h.b16 %v3008
        %v3292 = vunpack.c.l.b16 %v3009
        %v3293 = vunpack.c.h.b16 %v3009
        %v3294 = vunpack.c.l.b16 %v3010
        %v3295 = vpack.c.b16 %v3256, %v3243
        %v3296 = vpack.c.b16 %v3257, %v3244
        %v3297 = vpack.c.b16 %v3258, %v3245
        %v3298 = vpack.c.b16 %v3259, %v3246
        %v3299 = vpack.c.b16 %v3260, %v3247
        %v3300 = vpack.c.b16 %v3261, %v3248
        %v3301 = vpack.c.b16 %v3262, %v3249
        %v3302 = vpack.c.b16 %v3263, %v3250
        %v3303 = vpack.c.b16 %v3264, %v3251
        %v3304 = vpack.c.b16 %v3265, %v3252
        %v3305 = vpack.c.b16 %v3266, %v3253
        %v3306 = vpack.c.b16 %v3267, %v3254
        %v3307 = vpack.c.b16 %v3268, %v3255
        %v3308 = vpack.c.b16 %v3282, %v3269
        %v3309 = vpack.c.b16 %v3283, %v3270
        %v3310 = vpack.c.b16 %v3284, %v3271
        %v3311 = vpack.c.b16 %v3285, %v3272
        %v3312 = vpack.c.b16 %v3286, %v3273
        %v3313 = vpack.c.b16 %v3287, %v3274
        %v3314 = vpack.c.b16 %v3288, %v3275
        %v3315 = vpack.c.b16 %v3289, %v3276
        %v3316 = vpack.c.b16 %v3290, %v3277
        %v3317 = vpack.c.b16 %v3291, %v3278
        %v3318 = vpack.c.b16 %v3292, %v3279
        %v3319 = vpack.c.b16 %v3293, %v3280
        %v3320 = vpack.c.b16 %v3294, %v3281
        %vm3345 = vcmask 261120
        %v3347 = vsel %vm3345, %v3307, 0
        %v3350 = vsel %vm3345, %v3320, 0
        %3352 = vmatprep.subr.bf16.mxu0 %v3012
        %3353 = vmatpush1.bf16.msra.mxu0 %v3011
        %3354 = vmatprep.subr.bf16.mxu0 %v3014
        %3355 = vmatpush1.bf16.msra.mxu0 %v3013
        %3356 = vmatprep.subr.bf16.mxu0 %v3016
        %3357 = vmatpush1.bf16.msra.mxu0 %v3015
        %3358 = vmatprep.subr.bf16.mxu0 %v3018
        %3359 = vmatpush1.bf16.msra.mxu0 %v3017
        %3360 = vmatprep.subr.bf16.mxu0 %v3020
        %3361 = vmatpush1.bf16.msra.mxu0 %v3019
        %3362 = vmatprep.subr.bf16.mxu0 %v3022
        %3363 = vmatpush1.bf16.msra.mxu0 %v3021
        %3364 = vmatprep.subr.bf16.mxu0 %v3024
        %3365 = vmatpush1.bf16.msra.mxu0 %v3023
        %3366 = vmatprep.subr.bf16.mxu0 %v3026
        %3367 = vmatpush1.bf16.msra.mxu0 %v3025
        %3368 = vmatprep.subr.bf16.mxu0 %v3028
        %3369 = vmatpush1.bf16.msra.mxu0 %v3027
        %3370 = vmatprep.subr.bf16.mxu0 %v3030
        %3371 = vmatpush1.bf16.msra.mxu0 %v3029
        %3372 = vmatprep.subr.bf16.mxu0 %v3032
        %3373 = vmatpush1.bf16.msra.mxu0 %v3031
        %3374 = vmatprep.subr.bf16.mxu0 %v3034
        %3375 = vmatpush1.bf16.msra.mxu0 %v3033
        %3376 = vmatprep.subr.bf16.mxu0 %v3036
        %3377 = vmatpush1.bf16.msra.mxu0 %v3035
        %3378 = vmatprep.subr.bf16.mxu0 %v3038
        %3379 = vmatpush1.bf16.msra.mxu0 %v3037
        %3380 = vmatprep.subr.bf16.mxu0 %v3040
        %3381 = vmatpush1.bf16.msra.mxu0 %v3039
        %3382 = vmatprep.subr.bf16.mxu0 %v3042
        %3383 = vmatpush1.bf16.msra.mxu0 %v3041
        %3384 = vmatprep.mubr.bf16.mxu0 %v3296
        %3385 = vmatmul.mubr.bf16.gmra.mrb[0].mxu0 %v3295
        %v3386 = vpop.f32.mrb[0].mxu0
        %v3387 = vadd.f32 %v3207, %v3386
        %v3388 = vpop.f32.mrb[0].mxu0
        %v3389 = vadd.f32 %v3208, %v3388
        %v3390 = vpop.f32.mrb[0].mxu0
        %v3391 = vadd.f32 %v3209, %v3390
        %v3392 = vpop.f32.mrb[0].mxu0
        %v3393 = vadd.f32 %v3210, %v3392
        %3394 = vmatprep.mubr.bf16.mxu0 %v3309
        %3395 = vmatmul.mubr.bf16.gmra.mrb[0].mxu0 %v3308
        %v3396 = vpop.f32.mrb[0].mxu0
        %v3397 = vadd.f32 %v3211, %v3396
        %v3398 = vpop.f32.mrb[0].mxu0
        %v3399 = vadd.f32 %v3212, %v3398
        %v3400 = vpop.f32.mrb[0].mxu0
        %v3401 = vadd.f32 %v3213, %v3400
        %v3402 = vpop.f32.mrb[0].mxu0
        %v3403 = vadd.f32 %v3214, %v3402
        %3404 = vdwg.mxu0
        %3405 = vmatprep.subr.bf16.mxu0 %v3044
        %3406 = vmatpush1.bf16.msra.mxu0 %v3043
        %3407 = vmatprep.subr.bf16.mxu0 %v3046
        %3408 = vmatpush1.bf16.msra.mxu0 %v3045
        %3409 = vmatprep.subr.bf16.mxu0 %v3048
        %3410 = vmatpush1.bf16.msra.mxu0 %v3047
        %3411 = vmatprep.subr.bf16.mxu0 %v3050
        %3412 = vmatpush1.bf16.msra.mxu0 %v3049
        %3413 = vmatprep.subr.bf16.mxu0 %v3052
        %3414 = vmatpush1.bf16.msra.mxu0 %v3051
        %3415 = vmatprep.subr.bf16.mxu0 %v3054
        %3416 = vmatpush1.bf16.msra.mxu0 %v3053
        %3417 = vmatprep.subr.bf16.mxu0 %v3056
        %3418 = vmatpush1.bf16.msra.mxu0 %v3055
        %3419 = vmatprep.subr.bf16.mxu0 %v3058
        %3420 = vmatpush1.bf16.msra.mxu0 %v3057
        %3421 = vmatprep.subr.bf16.mxu0 %v3060
        %3422 = vmatpush1.bf16.msra.mxu0 %v3059
        %3423 = vmatprep.subr.bf16.mxu0 %v3062
        %3424 = vmatpush1.bf16.msra.mxu0 %v3061
        %3425 = vmatprep.subr.bf16.mxu0 %v3064
        %3426 = vmatpush1.bf16.msra.mxu0 %v3063
        %3427 = vmatprep.subr.bf16.mxu0 %v3066
        %3428 = vmatpush1.bf16.msra.mxu0 %v3065
        %3429 = vmatprep.subr.bf16.mxu0 %v3068
        %3430 = vmatpush1.bf16.msra.mxu0 %v3067
        %3431 = vmatprep.subr.bf16.mxu0 %v3070
        %3432 = vmatpush1.bf16.msra.mxu0 %v3069
        %3433 = vmatprep.subr.bf16.mxu0 %v3072
        %3434 = vmatpush1.bf16.msra.mxu0 %v3071
        %3435 = vmatprep.subr.bf16.mxu0 %v3074
        %3436 = vmatpush1.bf16.msra.mxu0 %v3073
        %3437 = vmatprep.mubr.bf16.mxu0 %v3298
        %3438 = vmatmul.mubr.bf16.gmra.mrb[0].mxu0 %v3297
        %v3439 = vpop.f32.mrb[0].mxu0
        %v3440 = vadd.f32 %v3387, %v3439
        %v3441 = vpop.f32.mrb[0].mxu0
        %v3442 = vadd.f32 %v3389, %v3441
        %v3443 = vpop.f32.mrb[0].mxu0
        %v3444 = vadd.f32 %v3391, %v3443
        %v3445 = vpop.f32.mrb[0].mxu0
        %v3446 = vadd.f32 %v3393, %v3445
        %3447 = vmatprep.mubr.bf16.mxu0 %v3311
        %3448 = vmatmul.mubr.bf16.gmra.mrb[0].mxu0 %v3310
        %v3449 = vpop.f32.mrb[0].mxu0
        %v3450 = vadd.f32 %v3397, %v3449
        %v3451 = vpop.f32.mrb[0].mxu0
        %v3452 = vadd.f32 %v3399, %v3451
        %v3453 = vpop.f32.mrb[0].mxu0
        %v3454 = vadd.f32 %v3401, %v3453
        %v3455 = vpop.f32.mrb[0].mxu0
        %v3456 = vadd.f32 %v3403, %v3455
        %3457 = vdwg.mxu0
        %3458 = vmatprep.subr.bf16.mxu0 %v3076
        %3459 = vmatpush1.bf16.msra.mxu0 %v3075
        %3460 = vmatprep.subr.bf16.mxu0 %v3078
        %3461 = vmatpush1.bf16.msra.mxu0 %v3077
        %3462 = vmatprep.subr.bf16.mxu0 %v3080
        %3463 = vmatpush1.bf16.msra.mxu0 %v3079
        %3464 = vmatprep.subr.bf16.mxu0 %v3082
        %3465 = vmatpush1.bf16.msra.mxu0 %v3081
        %3466 = vmatprep.subr.bf16.mxu0 %v3084
        %3467 = vmatpush1.bf16.msra.mxu0 %v3083
        %3468 = vmatprep.subr.bf16.mxu0 %v3086
        %3469 = vmatpush1.bf16.msra.mxu0 %v3085
        %3470 = vmatprep.subr.bf16.mxu0 %v3088
        %3471 = vmatpush1.bf16.msra.mxu0 %v3087
        %3472 = vmatprep.subr.bf16.mxu0 %v3090
        %3473 = vmatpush1.bf16.msra.mxu0 %v3089
        %3474 = vmatprep.subr.bf16.mxu0 %v3092
        %3475 = vmatpush1.bf16.msra.mxu0 %v3091
        %3476 = vmatprep.subr.bf16.mxu0 %v3094
        %3477 = vmatpush1.bf16.msra.mxu0 %v3093
        %3478 = vmatprep.subr.bf16.mxu0 %v3096
        %3479 = vmatpush1.bf16.msra.mxu0 %v3095
        %3480 = vmatprep.subr.bf16.mxu0 %v3098
        %3481 = vmatpush1.bf16.msra.mxu0 %v3097
        %3482 = vmatprep.subr.bf16.mxu0 %v3100
        %3483 = vmatpush1.bf16.msra.mxu0 %v3099
        %3484 = vmatprep.subr.bf16.mxu0 %v3102
        %3485 = vmatpush1.bf16.msra.mxu0 %v3101
        %3486 = vmatprep.subr.bf16.mxu0 %v3104
        %3487 = vmatpush1.bf16.msra.mxu0 %v3103
        %3488 = vmatprep.subr.bf16.mxu0 %v3106
        %3489 = vmatpush1.bf16.msra.mxu0 %v3105
        %3490 = vmatprep.mubr.bf16.mxu0 %v3300
        %3491 = vmatmul.mubr.bf16.gmra.mrb[0].mxu0 %v3299
        %v3492 = vpop.f32.mrb[0].mxu0
        %v3493 = vadd.f32 %v3440, %v3492
        %v3494 = vpop.f32.mrb[0].mxu0
        %v3495 = vadd.f32 %v3442, %v3494
        %v3496 = vpop.f32.mrb[0].mxu0
        %v3497 = vadd.f32 %v3444, %v3496
        %v3498 = vpop.f32.mrb[0].mxu0
        %v3499 = vadd.f32 %v3446, %v3498
        %3500 = vmatprep.mubr.bf16.mxu0 %v3313
        %3501 = vmatmul.mubr.bf16.gmra.mrb[0].mxu0 %v3312
        %v3502 = vpop.f32.mrb[0].mxu0
        %v3503 = vadd.f32 %v3450, %v3502
        %v3504 = vpop.f32.mrb[0].mxu0
        %v3505 = vadd.f32 %v3452, %v3504
        %v3506 = vpop.f32.mrb[0].mxu0
        %v3507 = vadd.f32 %v3454, %v3506
        %v3508 = vpop.f32.mrb[0].mxu0
        %v3509 = vadd.f32 %v3456, %v3508
        %3510 = vdwg.mxu0
        %3511 = vmatprep.subr.bf16.mxu0 %v3108
        %3512 = vmatpush1.bf16.msra.mxu0 %v3107
        %3513 = vmatprep.subr.bf16.mxu0 %v3110
        %3514 = vmatpush1.bf16.msra.mxu0 %v3109
        %3515 = vmatprep.subr.bf16.mxu0 %v3112
        %3516 = vmatpush1.bf16.msra.mxu0 %v3111
        %3517 = vmatprep.subr.bf16.mxu0 %v3114
        %3518 = vmatpush1.bf16.msra.mxu0 %v3113
        %3519 = vmatprep.subr.bf16.mxu0 %v3116
        %3520 = vmatpush1.bf16.msra.mxu0 %v3115
        %3521 = vmatprep.subr.bf16.mxu0 %v3118
        %3522 = vmatpush1.bf16.msra.mxu0 %v3117
        %3523 = vmatprep.subr.bf16.mxu0 %v3120
        %3524 = vmatpush1.bf16.msra.mxu0 %v3119
        %3525 = vmatprep.subr.bf16.mxu0 %v3122
        %3526 = vmatpush1.bf16.msra.mxu0 %v3121
        %3527 = vmatprep.subr.bf16.mxu0 %v3124
        %3528 = vmatpush1.bf16.msra.mxu0 %v3123
        %3529 = vmatprep.subr.bf16.mxu0 %v3126
        %3530 = vmatpush1.bf16.msra.mxu0 %v3125
        %3531 = vmatprep.subr.bf16.mxu0 %v3128
        %3532 = vmatpush1.bf16.msra.mxu0 %v3127
        %3533 = vmatprep.subr.bf16.mxu0 %v3130
        %3534 = vmatpush1.bf16.msra.mxu0 %v3129
        %3535 = vmatprep.subr.bf16.mxu0 %v3132
        %3536 = vmatpush1.bf16.msra.mxu0 %v3131
        %3537 = vmatprep.subr.bf16.mxu0 %v3134
        %3538 = vmatpush1.bf16.msra.mxu0 %v3133
        %3539 = vmatprep.subr.bf16.mxu0 %v3136
        %3540 = vmatpush1.bf16.msra.mxu0 %v3135
        %3541 = vmatprep.subr.bf16.mxu0 %v3138
        %3542 = vmatpush1.bf16.msra.mxu0 %v3137
        %3543 = vmatprep.mubr.bf16.mxu0 %v3302
        %3544 = vmatmul.mubr.bf16.gmra.mrb[0].mxu0 %v3301
        %v3545 = vpop.f32.mrb[0].mxu0
        %v3546 = vadd.f32 %v3493, %v3545
        %v3547 = vpop.f32.mrb[0].mxu0
        %v3548 = vadd.f32 %v3495, %v3547
        %v3549 = vpop.f32.mrb[0].mxu0
        %v3550 = vadd.f32 %v3497, %v3549
        %v3551 = vpop.f32.mrb[0].mxu0
        %v3552 = vadd.f32 %v3499, %v3551
        %3553 = vmatprep.mubr.bf16.mxu0 %v3315
        %3554 = vmatmul.mubr.bf16.gmra.mrb[0].mxu0 %v3314
        %v3555 = vpop.f32.mrb[0].mxu0
        %v3556 = vadd.f32 %v3503, %v3555
        %v3557 = vpop.f32.mrb[0].mxu0
        %v3558 = vadd.f32 %v3505, %v3557
        %v3559 = vpop.f32.mrb[0].mxu0
        %v3560 = vadd.f32 %v3507, %v3559
        %v3561 = vpop.f32.mrb[0].mxu0
        %v3562 = vadd.f32 %v3509, %v3561
        %3563 = vdwg.mxu0
        %3564 = vmatprep.subr.bf16.mxu0 %v3140
        %3565 = vmatpush1.bf16.msra.mxu0 %v3139
        %3566 = vmatprep.subr.bf16.mxu0 %v3142
        %3567 = vmatpush1.bf16.msra.mxu0 %v3141
        %3568 = vmatprep.subr.bf16.mxu0 %v3144
        %3569 = vmatpush1.bf16.msra.mxu0 %v3143
        %3570 = vmatprep.subr.bf16.mxu0 %v3146
        %3571 = vmatpush1.bf16.msra.mxu0 %v3145
        %3572 = vmatprep.subr.bf16.mxu0 %v3148
        %3573 = vmatpush1.bf16.msra.mxu0 %v3147
        %3574 = vmatprep.subr.bf16.mxu0 %v3150
        %3575 = vmatpush1.bf16.msra.mxu0 %v3149
        %3576 = vmatprep.subr.bf16.mxu0 %v3152
        %3577 = vmatpush1.bf16.msra.mxu0 %v3151
        %3578 = vmatprep.subr.bf16.mxu0 %v3154
        %3579 = vmatpush1.bf16.msra.mxu0 %v3153
        %3580 = vmatprep.subr.bf16.mxu0 %v3156
        %3581 = vmatpush1.bf16.msra.mxu0 %v3155
        %3582 = vmatprep.subr.bf16.mxu0 %v3158
        %3583 = vmatpush1.bf16.msra.mxu0 %v3157
        %3584 = vmatprep.subr.bf16.mxu0 %v3160
        %3585 = vmatpush1.bf16.msra.mxu0 %v3159
        %3586 = vmatprep.subr.bf16.mxu0 %v3162
        %3587 = vmatpush1.bf16.msra.mxu0 %v3161
        %3588 = vmatprep.subr.bf16.mxu0 %v3164
        %3589 = vmatpush1.bf16.msra.mxu0 %v3163
        %3590 = vmatprep.subr.bf16.mxu0 %v3166
        %3591 = vmatpush1.bf16.msra.mxu0 %v3165
        %3592 = vmatprep.subr.bf16.mxu0 %v3168
        %3593 = vmatpush1.bf16.msra.mxu0 %v3167
        %3594 = vmatprep.subr.bf16.mxu0 %v3170
        %3595 = vmatpush1.bf16.msra.mxu0 %v3169
        %3596 = vmatprep.mubr.bf16.mxu0 %v3304
        %3597 = vmatmul.mubr.bf16.gmra.mrb[0].mxu0 %v3303
        %v3598 = vpop.f32.mrb[0].mxu0
        %v3599 = vadd.f32 %v3546, %v3598
        %v3600 = vpop.f32.mrb[0].mxu0
        %v3601 = vadd.f32 %v3548, %v3600
        %v3602 = vpop.f32.mrb[0].mxu0
        %v3603 = vadd.f32 %v3550, %v3602
        %v3604 = vpop.f32.mrb[0].mxu0
        %v3605 = vadd.f32 %v3552, %v3604
        %3606 = vmatprep.mubr.bf16.mxu0 %v3317
        %3607 = vmatmul.mubr.bf16.gmra.mrb[0].mxu0 %v3316
        %v3608 = vpop.f32.mrb[0].mxu0
        %v3609 = vadd.f32 %v3556, %v3608
        %v3610 = vpop.f32.mrb[0].mxu0
        %v3611 = vadd.f32 %v3558, %v3610
        %v3612 = vpop.f32.mrb[0].mxu0
        %v3613 = vadd.f32 %v3560, %v3612
        %v3614 = vpop.f32.mrb[0].mxu0
        %v3615 = vadd.f32 %v3562, %v3614
        %3616 = vdwg.mxu0
        %3617 = vmatprep.subr.bf16.mxu0 %v3172
        %3618 = vmatpush1.bf16.msra.mxu0 %v3171
        %3619 = vmatprep.subr.bf16.mxu0 %v3174
        %3620 = vmatpush1.bf16.msra.mxu0 %v3173
        %3621 = vmatprep.subr.bf16.mxu0 %v3176
        %3622 = vmatpush1.bf16.msra.mxu0 %v3175
        %3623 = vmatprep.subr.bf16.mxu0 %v3178
        %3624 = vmatpush1.bf16.msra.mxu0 %v3177
        %3625 = vmatprep.subr.bf16.mxu0 %v3180
        %3626 = vmatpush1.bf16.msra.mxu0 %v3179
        %3627 = vmatprep.subr.bf16.mxu0 %v3182
        %3628 = vmatpush1.bf16.msra.mxu0 %v3181
        %3629 = vmatprep.subr.bf16.mxu0 %v3184
        %3630 = vmatpush1.bf16.msra.mxu0 %v3183
        %3631 = vmatprep.subr.bf16.mxu0 %v3186
        %3632 = vmatpush1.bf16.msra.mxu0 %v3185
        %3633 = vmatprep.subr.bf16.mxu0 %v3188
        %3634 = vmatpush1.bf16.msra.mxu0 %v3187
        %3635 = vmatprep.subr.bf16.mxu0 %v3190
        %3636 = vmatpush1.bf16.msra.mxu0 %v3189
        %3637 = vmatprep.subr.bf16.mxu0 %v3192
        %3638 = vmatpush1.bf16.msra.mxu0 %v3191
        %3639 = vmatprep.subr.bf16.mxu0 %v3194
        %3640 = vmatpush1.bf16.msra.mxu0 %v3193
        %3641 = vmatprep.subr.bf16.mxu0 %v3196
        %3642 = vmatpush1.bf16.msra.mxu0 %v3195
        %3643 = vmatprep.subr.bf16.mxu0 %v3198
        %3644 = vmatpush1.bf16.msra.mxu0 %v3197
        %3645 = vmatprep.subr.bf16.mxu0 %v3200
        %3646 = vmatpush1.bf16.msra.mxu0 %v3199
        %3647 = vmatprep.subr.bf16.mxu0 %v3202
        %3648 = vmatpush1.bf16.msra.mxu0 %v3201
        %3649 = vmatprep.mubr.bf16.mxu0 %v3306
        %3650 = vmatmul.mubr.bf16.gmra.mrb[0].mxu0 %v3305
        %v3651 = vpop.f32.mrb[0].mxu0
        %v3652 = vadd.f32 %v3599, %v3651
        %v3653 = vpop.f32.mrb[0].mxu0
        %v3654 = vadd.f32 %v3601, %v3653
        %v3655 = vpop.f32.mrb[0].mxu0
        %v3656 = vadd.f32 %v3603, %v3655
        %v3657 = vpop.f32.mrb[0].mxu0
        %v3658 = vadd.f32 %v3605, %v3657
        %3659 = vmatprep.mubr.bf16.mxu0 %v3319
        %3660 = vmatmul.mubr.bf16.gmra.mrb[0].mxu0 %v3318
        %v3661 = vpop.f32.mrb[0].mxu0
        %v3662 = vadd.f32 %v3609, %v3661
        %v3663 = vpop.f32.mrb[0].mxu0
        %v3664 = vadd.f32 %v3611, %v3663
        %v3665 = vpop.f32.mrb[0].mxu0
        %v3666 = vadd.f32 %v3613, %v3665
        %v3667 = vpop.f32.mrb[0].mxu0
        %v3668 = vadd.f32 %v3615, %v3667
        %3669 = vdwg.mxu0
        %3670 = vmatprep.subr.bf16.mxu0 %v3204
        %3671 = vmatpush1.bf16.msra.mxu0 %v3203
        %3672 = vmatprep.subr.bf16.mxu0 %v3206
        %3673 = vmatpush1.bf16.msra.mxu0 %v3205
        %3674 = vmatprep.subr.bf16.mxu0 0
        %3675 = vmatpush1.bf16.msra.mxu0 0
        %3676 = vmatprep.subr.bf16.mxu0 0
        %3677 = vmatpush1.bf16.msra.mxu0 0
        %3678 = vmatprep.subr.bf16.mxu0 0
        %3679 = vmatpush1.bf16.msra.mxu0 0
        %3680 = vmatprep.subr.bf16.mxu0 0
        %3681 = vmatpush1.bf16.msra.mxu0 0
        %3682 = vmatprep.subr.bf16.mxu0 0
        %3683 = vmatpush1.bf16.msra.mxu0 0
        %3684 = vmatprep.subr.bf16.mxu0 0
        %3685 = vmatpush1.bf16.msra.mxu0 0
        %3686 = vmatprep.subr.bf16.mxu0 0
        %3687 = vmatpush1.bf16.msra.mxu0 0
        %3688 = vmatprep.subr.bf16.mxu0 0
        %3689 = vmatpush1.bf16.msra.mxu0 0
        %3690 = vmatprep.subr.bf16.mxu0 0
        %3691 = vmatpush1.bf16.msra.mxu0 0
        %3692 = vmatprep.subr.bf16.mxu0 0
        %3693 = vmatpush1.bf16.msra.mxu0 0
        %3694 = vmatprep.subr.bf16.mxu0 0
        %3695 = vmatpush1.bf16.msra.mxu0 0
        %3696 = vmatprep.subr.bf16.mxu0 0
        %3697 = vmatpush1.bf16.msra.mxu0 0
        %3698 = vmatprep.subr.bf16.mxu0 0
        %3699 = vmatpush1.bf16.msra.mxu0 0
        %3700 = vmatprep.subr.bf16.mxu0 0
        %3701 = vmatpush1.bf16.msra.mxu0 0
        %3702 = vmatprep.mubr.bf16.mxu0 0
        %3703 = vmatmul.mubr.bf16.gmra.mrb[0].mxu0 %v3347
        %v3704 = vpop.f32.mrb[0].mxu0
        %v3705 = vadd.f32 %v3652, %v3704
        %v3706 = vpop.f32.mrb[0].mxu0
        %v3707 = vadd.f32 %v3654, %v3706
        %v3708 = vpop.f32.mrb[0].mxu0
        %v3709 = vadd.f32 %v3656, %v3708
        %v3710 = vpop.f32.mrb[0].mxu0
        %v3711 = vadd.f32 %v3658, %v3710
        %3712 = vmatprep.mubr.bf16.mxu0 0
        %3713 = vmatmul.mubr.bf16.gmra.mrb[0].mxu0 %v3350
        %v3714 = vpop.f32.mrb[0].mxu0
        %v3715 = vadd.f32 %v3662, %v3714
        %v3716 = vpop.f32.mrb[0].mxu0
        %v3717 = vadd.f32 %v3664, %v3716
        %v3718 = vpop.f32.mrb[0].mxu0
        %v3719 = vadd.f32 %v3666, %v3718
        %v3720 = vpop.f32.mrb[0].mxu0
        %v3721 = vadd.f32 %v3668, %v3720
        %3722 = vdwg.mxu0
        %v3723 = vadd.f32 %v3705, %v348
        %v3724 = vadd.f32 %v3707, %v349
        %v3725 = vadd.f32 %v3709, %v350
        %v3726 = vadd.f32 %v3711, %v351
        %v3727 = vadd.f32 %v3715, %v352
        %v3728 = vadd.f32 %v3717, %v353
        %v3729 = vadd.f32 %v3719, %v354
        %v3730 = vadd.f32 %v3721, %v355
        %v3731 = vadd.f32 %v3723, %v3724
        %3732 = vadd.xlane.f32.xlu0 %v3731
        %v3733 = vpop.xlane.xlu0 %3732
        %v3734 = vadd.f32 %v3725, %v3726
        %3735 = vadd.xlane.f32.xlu0 %v3734
        %v3736 = vpop.xlane.xlu0 %3735
        %v3737 = vadd.f32 %v3727, %v3728
        %3738 = vadd.xlane.f32.xlu0 %v3737
        %v3739 = vpop.xlane.xlu0 %3738
        %v3740 = vadd.f32 %v3729, %v3730
        %3741 = vadd.xlane.f32.xlu0 %v3740
        %v3742 = vpop.xlane.xlu0 %3741
        %v3743 = vrcp.pop 256.0
        %v3744 = vmul.f32 %v3733, %v3743
        %v3745 = vmul.f32 %v3736, %v3743
        %v3746 = vmul.f32 %v3739, %v3743
        %v3747 = vmul.f32 %v3742, %v3743
        %v3748 = vmax.f32 %v3723, %v3724
        %3749 = vmax.xlane.f32.xlu0 %v3748
        %v3750 = vpop.xlane.xlu0 %3749
        %v3751 = vmax.f32 %v3725, %v3726
        %3752 = vmax.xlane.f32.xlu0 %v3751
        %v3753 = vpop.xlane.xlu0 %3752
        %v3754 = vmax.f32 %v3727, %v3728
        %3755 = vmax.xlane.f32.xlu0 %v3754
        %v3756 = vpop.xlane.xlu0 %3755
        %v3757 = vmax.f32 %v3729, %v3730
        %3758 = vmax.xlane.f32.xlu0 %v3757
        %v3759 = vpop.xlane.xlu0 %3758
        %v3760 = vld [vmem:[%s3] sm:$0xff]
        %v3761 = vld [vmem:[%s3 + $0x8] sm:$0xff]
        %v3762 = vld [vmem:[%s3 + $0x10] sm:$0xff]
        %v3763 = vld [vmem:[%s3 + $0x18] sm:$0xff]
        %v3764 = vld [vmem:[%s4] sm:$0xff]
        %v3765 = vld [vmem:[%s4 + $0x8] sm:$0xff]
        %v3766 = vld [vmem:[%s4 + $0x10] sm:$0xff]
        %v3767 = vld [vmem:[%s4 + $0x18] sm:$0xff]
        %v3768 = vmul.f32 %v3760, %v3744
        %v3769 = vmul.f32 %v3761, %v3745
        %v3770 = vmul.f32 %v3762, %v3746
        %v3771 = vmul.f32 %v3763, %v3747
        %vm3772 = vcmask 15360
        %v3773 = vsel %vm3772, %v3768, 0.0
        %v3774 = vsel %vm3772, %v3769, 0.0
        %v3775 = vadd.f32 %v3773, %v3774
        %v3776 = vsel %vm3772, %v3770, 0.0
        %v3777 = vadd.f32 %v3775, %v3776
        %v3778 = vsel %vm3772, %v3771, 0.0
        %v3779 = vadd.f32 %v3777, %v3778
        %v3780 = vrot.slane %v3779, 4
        %v3781 = vadd.f32 %v3779, %v3780
        %v3782 = vrot.slane %v3781, 2
        %v3783 = vadd.f32 %v3781, %v3782
        %v3784 = vrot.slane %v3783, 1
        %v3785 = vadd.f32 %v3783, %v3784
        %v3786 = vmax.f32 %v3785, 0.0
        %v3787 = vmul.f32 %v3760, %v3750
        %v3788 = vmul.f32 %v3761, %v3753
        %v3789 = vmul.f32 %v3762, %v3756
        %v3790 = vmul.f32 %v3763, %v3759
        %v3791 = vsel %vm3772, %v3787, 0.0
        %v3792 = vsel %vm3772, %v3788, 0.0
        %v3793 = vadd.f32 %v3791, %v3792
        %v3794 = vsel %vm3772, %v3789, 0.0
        %v3795 = vadd.f32 %v3793, %v3794
        %v3796 = vsel %vm3772, %v3790, 0.0
        %v3797 = vadd.f32 %v3795, %v3796
        %v3798 = vrot.slane %v3797, 4
        %v3799 = vadd.f32 %v3797, %v3798
        %v3800 = vrot.slane %v3799, 2
        %v3801 = vadd.f32 %v3799, %v3800
        %v3802 = vrot.slane %v3801, 1
        %v3803 = vadd.f32 %v3801, %v3802
        %v3804 = vmax.f32 %v3803, 0.0
        %v3805 = vmul.f32 %v3764, %v3786
        %v3806 = vmul.f32 %v3765, %v3786
        %v3807 = vmul.f32 %v3766, %v3786
        %v3808 = vmul.f32 %v3767, %v3786
        %v3809 = vsel %vm3772, %v3805, 0.0
        %3810 = vadd.xlane.f32.xlu0 %v3809
        %v3811 = vpop.xlane.xlu0 %3810
        %v3812 = vsel %vm3772, %v3806, 0.0
        %3813 = vadd.xlane.f32.xlu0 %v3812
        %v3814 = vpop.xlane.xlu0 %3813
        %v3815 = vsel %vm3772, %v3807, 0.0
        %3816 = vadd.xlane.f32.xlu0 %v3815
        %v3817 = vpop.xlane.xlu0 %3816
        %v3818 = vsel %vm3772, %v3808, 0.0
        %3819 = vadd.xlane.f32.xlu0 %v3818
        %v3820 = vpop.xlane.xlu0 %3819
        %v3821 = vmul.f32 %v3764, %v3804
        %v3822 = vmul.f32 %v3765, %v3804
        %v3823 = vmul.f32 %v3766, %v3804
        %v3824 = vmul.f32 %v3767, %v3804
        %v3825 = vsel %vm3772, %v3821, 0.0
        %3826 = vadd.xlane.f32.xlu0 %v3825
        %v3827 = vpop.xlane.xlu0 %3826
        %v3828 = vsel %vm3772, %v3822, 0.0
        %3829 = vadd.xlane.f32.xlu0 %v3828
        %v3830 = vpop.xlane.xlu0 %3829
        %v3831 = vsel %vm3772, %v3823, 0.0
        %3832 = vadd.xlane.f32.xlu0 %v3831
        %v3833 = vpop.xlane.xlu0 %3832
        %v3834 = vsel %vm3772, %v3824, 0.0
        %3835 = vadd.xlane.f32.xlu0 %v3834
        %v3836 = vpop.xlane.xlu0 %3835
        %v3837 = vadd.f32 %v3811, %v3827
        %v3838 = vadd.f32 %v3814, %v3830
        %v3839 = vadd.f32 %v3817, %v3833
        %v3840 = vadd.f32 %v3820, %v3836
        %v3841 = vsub.f32 0.0, %v3837
        %v3842 = vsub.f32 0.0, %v3838
        %v3843 = vsub.f32 0.0, %v3839
        %v3844 = vsub.f32 0.0, %v3840
        %v3845 = vmul.f32 %v3841, 1.442695
        %v3846 = vpow.pop %v3845
        %v3847 = vmul.f32 %v3842, 1.442695
        %v3848 = vpow.pop %v3847
        %v3849 = vmul.f32 %v3843, 1.442695
        %v3850 = vpow.pop %v3849
        %v3851 = vmul.f32 %v3844, 1.442695
        %v3852 = vpow.pop %v3851
        %v3853 = vadd.f32 %v3846, 1.0
        %v3854 = vadd.f32 %v3848, 1.0
        %v3855 = vadd.f32 %v3850, 1.0
        %v3856 = vadd.f32 %v3852, 1.0
        %v3857 = vrcp.pop %v3853
        %v3858 = vmul.f32 1.0, %v3857
        %v3859 = vrcp.pop %v3854
        %v3860 = vmul.f32 1.0, %v3859
        %v3861 = vrcp.pop %v3855
        %v3862 = vmul.f32 1.0, %v3861
        %v3863 = vrcp.pop %v3856
        %v3864 = vmul.f32 1.0, %v3863
        %3865 = vst [vmem:[#allocation4] sm:$0x3f] 0.0
        %v3866 = vadd.f32 %v3723, %v3725
        %v3867 = vadd.f32 %v3866, %v3727
        %v3868 = vadd.f32 %v3867, %v3729
        %v3869 = vrot.slane %v3868, 4
        %v3870 = vadd.f32 %v3868, %v3869
        %v3871 = vrot.slane %v3870, 2
        %v3872 = vadd.f32 %v3870, %v3871
        %v3873 = vrot.slane %v3872, 1
        %v3874 = vadd.f32 %v3872, %v3873
        %v3875 = vadd.f32 %v3724, %v3726
        %v3876 = vadd.f32 %v3875, %v3728
        %v3877 = vadd.f32 %v3876, %v3730
        %v3878 = vrot.slane %v3877, 4
        %v3879 = vadd.f32 %v3877, %v3878
        %v3880 = vrot.slane %v3879, 2
        %v3881 = vadd.f32 %v3879, %v3880
        %v3882 = vrot.slane %v3881, 1
        %v3883 = vadd.f32 %v3881, %v3882
        %v3884 = vrcp.pop 32.0
        %v3885 = vmul.f32 %v3874, %v3884
        %v3886 = vmul.f32 %v3883, %v3884
        %v3887 = vmax.f32 %v3723, %v3727
        %v3888 = vmax.f32 %v3725, %v3729
        %v3889 = vmax.f32 %v3887, %v3888
        %v3890 = vrot.slane %v3889, 4
        %v3891 = vmax.f32 %v3889, %v3890
        %v3892 = vrot.slane %v3891, 2
        %v3893 = vmax.f32 %v3891, %v3892
        %v3894 = vrot.slane %v3893, 1
        %v3895 = vmax.f32 %v3893, %v3894
        %v3896 = vmax.f32 %v3724, %v3728
        %v3897 = vmax.f32 %v3726, %v3730
        %v3898 = vmax.f32 %v3896, %v3897
        %v3899 = vrot.slane %v3898, 4
        %v3900 = vmax.f32 %v3898, %v3899
        %v3901 = vrot.slane %v3900, 2
        %v3902 = vmax.f32 %v3900, %v3901
        %v3903 = vrot.slane %v3902, 1
        %v3904 = vmax.f32 %v3902, %v3903
        %vm3905 = vcmask 1040384
        %v3906 = vsel %vm3905, %v3885, %v3895
        %v3907 = vsel %vm3905, %v3886, %v3904
        %v3910 = vcombine.low %v3906, %v3907
        %v3912 = vunpack.c.l.s4 1983009808
        %v3913 = vunpack.c.0.s8 %v3912
        %v3914 = vlaneseq
        %v3915 = vshrl.u32 %v3914, 7
        %v3916 = vsub.s32 %v3913, %v3915
        %v3917 = vrot.slane %v3910, %v3916
        %3918 = vrot.lane.b32.xlu0 %v3917, 51
        %v3919 = vpop.permute.xlu0 %3918
        %v3920 = vrot.slane %v3919, 6
        %v3921 = vsel %vm390, %v3920, %v3919
        %vm3923 = vcmask 1041816
        %vm3924 = vcmask 1043458
        %vm3925 = vmor %vm3924, %vm3923
        %vm3926 = vcmask 414724
        %vm3927 = vmor %vm3926, %vm3925
        %3928 = vst.msk [vmem:[#allocation4] sm:$0x3f] %vm3927, %v3921
        %v3929 = vld [vmem:[#allocation4] sm:$0xf]
        %s3930 = sld [smem:[#allocation5]]
        %v3931 = vstv %s3930
        %v3932 = vmul.f32 %v3931, %v3929
        %s3933 = sld [smem:[#allocation5 + $0x80]]
        %v3934 = vstv %s3933
        %v3935 = vmul.f32 %v3934, %v3929
        %v3937 = vrot.slane %v3935, 7
        %v3938 = vrot.slane %v3937, 2
        %v3940 = vadd.f32 %v3932, %v3938
        %v3941 = vld [vmem:[%s7] ss:$8 sm:$0x3]
        %v3944 = vunpack.c.l.s4 857870592
        %v3945 = vunpack.c.0.s8 %v3944
        %v3946 = vlaneseq
        %v3947 = vshrl.u32 %v3946, 7
        %v3948 = vsub.s32 %v3945, %v3947
        %v3949 = vrot.slane %v3941, %v3948
        %v3951 = vmul.f32 %v3940, %v3949
        %v3952 = vadd.f32 %v3951, 0.0
        %v3953 = vld [vmem:[#allocation4] sm:$0x3f]
        %s3954 = sld [smem:[#allocation5 + $0x1]]
        %v3955 = vstv %s3954
        %v3956 = vmul.f32 %v3955, %v3953
        %s3957 = sld [smem:[#allocation5 + $0x81]]
        %v3958 = vstv %s3957
        %v3959 = vmul.f32 %v3958, %v3953
        %v3961 = vrot.slane %v3959, 7
        %v3962 = vrot.slane %v3961, 2
        %v3964 = vadd.f32 %v3956, %v3962
        %s3965 = scalar_lea.vmem %s7, 1
        %v3966 = vld [vmem:[%s3965] ss:$8 sm:$0x3]
        %v3969 = vunpack.c.l.s4 857870592
        %v3970 = vunpack.c.0.s8 %v3969
        %v3971 = vlaneseq
        %v3972 = vshrl.u32 %v3971, 7
        %v3973 = vsub.s32 %v3970, %v3972
        %v3974 = vrot.slane %v3966, %v3973
        %3975 = vrot.lane.b32.xlu0 %v3974, 1
        %v3976 = vpop.permute.xlu0 %3975
        %v3977 = vrot.slane %v3976, 6
        %vm3978 = vcmask 7168
        %v3979 = vsel %vm3978, %v3977, %v3976
        %v3981 = vmul.f32 %v3964, %v3979
        %3983 = vrot.lane.b32.xlu0 %v3981, 127
        %v3984 = vpop.permute.xlu0 %3983
        %v3985 = vrot.slane %v3984, 2
        %vm3986 = vcmask 1039360
        %v3987 = vsel %vm3986, %v3984, %v3985
        %v3989 = vadd.f32 %v3952, %v3987
        %s3990 = sld [smem:[#allocation5 + $0x2]]
        %v3991 = vstv %s3990
        %v3992 = vmul.f32 %v3991, %v3953
        %s3993 = sld [smem:[#allocation5 + $0x82]]
        %v3994 = vstv %s3993
        %v3995 = vmul.f32 %v3994, %v3953
        %v3997 = vrot.slane %v3995, 7
        %v3998 = vrot.slane %v3997, 2
        %v4000 = vadd.f32 %v3992, %v3998
        %s4001 = scalar_lea.vmem %s7, 2
        %v4002 = vld [vmem:[%s4001] ss:$8 sm:$0x3]
        %v4005 = vunpack.c.l.s4 857870592
        %v4006 = vunpack.c.0.s8 %v4005
        %v4007 = vlaneseq
        %v4008 = vshrl.u32 %v4007, 7
        %v4009 = vsub.s32 %v4006, %v4008
        %v4010 = vrot.slane %v4002, %v4009
        %4011 = vrot.lane.b32.xlu0 %v4010, 2
        %v4012 = vpop.permute.xlu0 %4011
        %v4013 = vrot.slane %v4012, 6
        %v4014 = vsel %vm3772, %v4013, %v4012
        %v4016 = vmul.f32 %v4000, %v4014
        %4018 = vrot.lane.b32.xlu0 %v4016, 126
        %v4019 = vpop.permute.xlu0 %4018
        %v4020 = vrot.slane %v4019, 2
        %vm4021 = vcmask 1031168
        %v4022 = vsel %vm4021, %v4019, %v4020
        %v4024 = vadd.f32 %v3989, %v4022
        %s4025 = sld [smem:[#allocation5 + $0x3]]
        %v4026 = vstv %s4025
        %v4027 = vmul.f32 %v4026, %v3953
        %s4028 = sld [smem:[#allocation5 + $0x83]]
        %v4029 = vstv %s4028
        %v4030 = vmul.f32 %v4029, %v3953
        %v4032 = vrot.slane %v4030, 7
        %v4033 = vrot.slane %v4032, 2
        %v4035 = vadd.f32 %v4027, %v4033
        %s4036 = scalar_lea.vmem %s7, 3
        %v4037 = vld [vmem:[%s4036] ss:$8 sm:$0x3]
        %v4040 = vunpack.c.l.s4 857870592
        %v4041 = vunpack.c.0.s8 %v4040
        %v4042 = vlaneseq
        %v4043 = vshrl.u32 %v4042, 7
        %v4044 = vsub.s32 %v4041, %v4043
        %v4045 = vrot.slane %v4037, %v4044
        %4046 = vrot.lane.b32.xlu0 %v4045, 3
        %v4047 = vpop.permute.xlu0 %4046
        %v4048 = vrot.slane %v4047, 6
        %vm4049 = vcmask 23552
        %v4050 = vsel %vm4049, %v4048, %v4047
        %v4052 = vmul.f32 %v4035, %v4050
        %4054 = vrot.lane.b32.xlu0 %v4052, 125
        %v4055 = vpop.permute.xlu0 %4054
        %v4056 = vrot.slane %v4055, 2
        %vm4057 = vcmask 1022976
        %v4058 = vsel %vm4057, %v4055, %v4056
        %v4060 = vadd.f32 %v4024, %v4058
        %s4061 = sld [smem:[#allocation5 + $0x4]]
        %v4062 = vstv %s4061
        %v4063 = vmul.f32 %v4062, %v3953
        %s4064 = sld [smem:[#allocation5 + $0x84]]
        %v4065 = vstv %s4064
        %v4066 = vmul.f32 %v4065, %v3953
        %v4068 = vrot.slane %v4066, 7
        %v4069 = vrot.slane %v4068, 2
        %v4071 = vadd.f32 %v4063, %v4069
        %s4072 = scalar_lea.vmem %s7, 4
        %v4073 = vld [vmem:[%s4072] ss:$8 sm:$0x3]
        %v4076 = vunpack.c.l.s4 857870592
        %v4077 = vunpack.c.0.s8 %v4076
        %v4078 = vlaneseq
        %v4079 = vshrl.u32 %v4078, 7
        %v4080 = vsub.s32 %v4077, %v4079
        %v4081 = vrot.slane %v4073, %v4080
        %4082 = vrot.lane.b32.xlu0 %v4081, 4
        %v4083 = vpop.permute.xlu0 %4082
        %v4084 = vrot.slane %v4083, 6
        %vm4085 = vcmask 31744
        %v4086 = vsel %vm4085, %v4084, %v4083
        %v4088 = vmul.f32 %v4071, %v4086
        %4090 = vrot.lane.b32.xlu0 %v4088, 124
        %v4091 = vpop.permute.xlu0 %4090
        %v4092 = vrot.slane %v4091, 2
        %vm4093 = vcmask 1014784
        %v4094 = vsel %vm4093, %v4091, %v4092
        %v4096 = vadd.f32 %v4060, %v4094
        %s4097 = sld [smem:[#allocation5 + $0x5]]
        %v4098 = vstv %s4097
        %v4099 = vmul.f32 %v4098, %v3953
        %s4100 = sld [smem:[#allocation5 + $0x85]]
        %v4101 = vstv %s4100
        %v4102 = vmul.f32 %v4101, %v3953
        %v4104 = vrot.slane %v4102, 7
        %v4105 = vrot.slane %v4104, 2
        %v4107 = vadd.f32 %v4099, %v4105
        %s4108 = scalar_lea.vmem %s7, 5
        %v4109 = vld [vmem:[%s4108] ss:$8 sm:$0x3]
        %v4112 = vunpack.c.l.s4 857870592
        %v4113 = vunpack.c.0.s8 %v4112
        %v4114 = vlaneseq
        %v4115 = vshrl.u32 %v4114, 7
        %v4116 = vsub.s32 %v4113, %v4115
        %v4117 = vrot.slane %v4109, %v4116
        %4118 = vrot.lane.b32.xlu0 %v4117, 5
        %v4119 = vpop.permute.xlu0 %4118
        %v4120 = vrot.slane %v4119, 6
        %vm4121 = vcmask 39936
        %v4122 = vsel %vm4121, %v4120, %v4119
        %v4124 = vmul.f32 %v4107, %v4122
        %4126 = vrot.lane.b32.xlu0 %v4124, 123
        %v4127 = vpop.permute.xlu0 %4126
        %v4128 = vrot.slane %v4127, 2
        %vm4129 = vcmask 1006592
        %v4130 = vsel %vm4129, %v4127, %v4128
        %v4132 = vadd.f32 %v4096, %v4130
        %s4133 = sld [smem:[#allocation5 + $0x6]]
        %v4134 = vstv %s4133
        %v4135 = vmul.f32 %v4134, %v3953
        %s4136 = sld [smem:[#allocation5 + $0x86]]
        %v4137 = vstv %s4136
        %v4138 = vmul.f32 %v4137, %v3953
        %v4140 = vrot.slane %v4138, 7
        %v4141 = vrot.slane %v4140, 2
        %v4143 = vadd.f32 %v4135, %v4141
        %s4144 = scalar_lea.vmem %s7, 6
        %v4145 = vld [vmem:[%s4144] ss:$8 sm:$0x3]
        %v4148 = vunpack.c.l.s4 857870592
        %v4149 = vunpack.c.0.s8 %v4148
        %v4150 = vlaneseq
        %v4151 = vshrl.u32 %v4150, 7
        %v4152 = vsub.s32 %v4149, %v4151
        %v4153 = vrot.slane %v4145, %v4152
        %4154 = vrot.lane.b32.xlu0 %v4153, 6
        %v4155 = vpop.permute.xlu0 %4154
        %v4156 = vrot.slane %v4155, 6
        %vm4157 = vcmask 48128
        %v4158 = vsel %vm4157, %v4156, %v4155
        %v4160 = vmul.f32 %v4143, %v4158
        %4162 = vrot.lane.b32.xlu0 %v4160, 122
        %v4163 = vpop.permute.xlu0 %4162
        %v4164 = vrot.slane %v4163, 2
        %vm4165 = vcmask 998400
        %v4166 = vsel %vm4165, %v4163, %v4164
        %v4168 = vadd.f32 %v4132, %v4166
        %s4169 = sld [smem:[#allocation5 + $0x7]]
        %v4170 = vstv %s4169
        %v4171 = vmul.f32 %v4170, %v3953
        %s4172 = sld [smem:[#allocation5 + $0x87]]
        %v4173 = vstv %s4172
        %v4174 = vmul.f32 %v4173, %v3953
        %v4176 = vrot.slane %v4174, 7
        %v4177 = vrot.slane %v4176, 2
        %v4179 = vadd.f32 %v4171, %v4177
        %4180 = vrot.lane.b32.xlu0 %v3949, 16
        %v4181 = vpop.permute.xlu0 %4180
        %v4182 = vrot.slane %v4181, 6
        %vm4183 = vcmask 130048
        %v4184 = vsel %vm4183, %v4182, %v4181
        %v4186 = vmul.f32 %v4179, %v4184
        %4188 = vrot.lane.b32.xlu0 %v4186, 112
        %v4189 = vpop.permute.xlu0 %4188
        %v4190 = vrot.slane %v4189, 2
        %vm4191 = vcmask 916480
        %v4192 = vsel %vm4191, %v4189, %v4190
        %v4194 = vadd.f32 %v4168, %v4192
        %s4195 = sld [smem:[#allocation5 + $0x8]]
        %v4196 = vstv %s4195
        %v4197 = vmul.f32 %v4196, %v3953
        %s4198 = sld [smem:[#allocation5 + $0x88]]
        %v4199 = vstv %s4198
        %v4200 = vmul.f32 %v4199, %v3953
        %v4202 = vrot.slane %v4200, 7
        %v4203 = vrot.slane %v4202, 2
        %v4205 = vadd.f32 %v4197, %v4203
        %4206 = vrot.lane.b32.xlu0 %v3974, 17
        %v4207 = vpop.permute.xlu0 %4206
        %v4208 = vrot.slane %v4207, 6
        %vm4209 = vcmask 138240
        %v4210 = vsel %vm4209, %v4208, %v4207
        %v4212 = vmul.f32 %v4205, %v4210
        %4214 = vrot.lane.b32.xlu0 %v4212, 111
        %v4215 = vpop.permute.xlu0 %4214
        %v4216 = vrot.slane %v4215, 2
        %vm4217 = vcmask 908288
        %v4218 = vsel %vm4217, %v4215, %v4216
        %v4220 = vadd.f32 %v4194, %v4218
        %s4221 = sld [smem:[#allocation5 + $0x9]]
        %v4222 = vstv %s4221
        %v4223 = vmul.f32 %v4222, %v3953
        %s4224 = sld [smem:[#allocation5 + $0x89]]
        %v4225 = vstv %s4224
        %v4226 = vmul.f32 %v4225, %v3953
        %v4228 = vrot.slane %v4226, 7
        %v4229 = vrot.slane %v4228, 2
        %v4231 = vadd.f32 %v4223, %v4229
        %4232 = vrot.lane.b32.xlu0 %v4010, 18
        %v4233 = vpop.permute.xlu0 %4232
        %v4234 = vrot.slane %v4233, 6
        %vm4235 = vcmask 146432
        %v4236 = vsel %vm4235, %v4234, %v4233
        %v4238 = vmul.f32 %v4231, %v4236
        %4240 = vrot.lane.b32.xlu0 %v4238, 110
        %v4241 = vpop.permute.xlu0 %4240
        %v4242 = vrot.slane %v4241, 2
        %vm4243 = vcmask 900096
        %v4244 = vsel %vm4243, %v4241, %v4242
        %v4246 = vadd.f32 %v4220, %v4244
        %s4247 = sld [smem:[#allocation5 + $0xa]]
        %v4248 = vstv %s4247
        %v4249 = vmul.f32 %v4248, %v3953
        %s4250 = sld [smem:[#allocation5 + $0x8a]]
        %v4251 = vstv %s4250
        %v4252 = vmul.f32 %v4251, %v3953
        %v4254 = vrot.slane %v4252, 7
        %v4255 = vrot.slane %v4254, 2
        %v4257 = vadd.f32 %v4249, %v4255
        %4258 = vrot.lane.b32.xlu0 %v4045, 19
        %v4259 = vpop.permute.xlu0 %4258
        %v4260 = vrot.slane %v4259, 6
        %vm4261 = vcmask 154624
        %v4262 = vsel %vm4261, %v4260, %v4259
        %v4264 = vmul.f32 %v4257, %v4262
        %4266 = vrot.lane.b32.xlu0 %v4264, 109
        %v4267 = vpop.permute.xlu0 %4266
        %v4268 = vrot.slane %v4267, 2
        %vm4269 = vcmask 891904
        %v4270 = vsel %vm4269, %v4267, %v4268
        %v4272 = vadd.f32 %v4246, %v4270
        %s4273 = sld [smem:[#allocation5 + $0xb]]
        %v4274 = vstv %s4273
        %v4275 = vmul.f32 %v4274, %v3953
        %s4276 = sld [smem:[#allocation5 + $0x8b]]
        %v4277 = vstv %s4276
        %v4278 = vmul.f32 %v4277, %v3953
        %v4280 = vrot.slane %v4278, 7
        %v4281 = vrot.slane %v4280, 2
        %v4283 = vadd.f32 %v4275, %v4281
        %4284 = vrot.lane.b32.xlu0 %v4081, 20
        %v4285 = vpop.permute.xlu0 %4284
        %v4286 = vrot.slane %v4285, 6
        %vm4287 = vcmask 162816
        %v4288 = vsel %vm4287, %v4286, %v4285
        %v4290 = vmul.f32 %v4283, %v4288
        %4292 = vrot.lane.b32.xlu0 %v4290, 108
        %v4293 = vpop.permute.xlu0 %4292
        %v4294 = vrot.slane %v4293, 2
        %vm4295 = vcmask 883712
        %v4296 = vsel %vm4295, %v4293, %v4294
        %v4298 = vadd.f32 %v4272, %v4296
        %s4299 = sld [smem:[#allocation5 + $0xc]]
        %v4300 = vstv %s4299
        %v4301 = vmul.f32 %v4300, %v3953
        %s4302 = sld [smem:[#allocation5 + $0x8c]]
        %v4303 = vstv %s4302
        %v4304 = vmul.f32 %v4303, %v3953
        %v4306 = vrot.slane %v4304, 7
        %v4307 = vrot.slane %v4306, 2
        %v4309 = vadd.f32 %v4301, %v4307
        %4310 = vrot.lane.b32.xlu0 %v4117, 21
        %v4311 = vpop.permute.xlu0 %4310
        %v4312 = vrot.slane %v4311, 6
        %vm4313 = vcmask 171008
        %v4314 = vsel %vm4313, %v4312, %v4311
        %v4316 = vmul.f32 %v4309, %v4314
        %4318 = vrot.lane.b32.xlu0 %v4316, 107
        %v4319 = vpop.permute.xlu0 %4318
        %v4320 = vrot.slane %v4319, 2
        %vm4321 = vcmask 875520
        %v4322 = vsel %vm4321, %v4319, %v4320
        %v4324 = vadd.f32 %v4298, %v4322
        %s4325 = sld [smem:[#allocation5 + $0xd]]
        %v4326 = vstv %s4325
        %v4327 = vmul.f32 %v4326, %v3953
        %s4328 = sld [smem:[#allocation5 + $0x8d]]
        %v4329 = vstv %s4328
        %v4330 = vmul.f32 %v4329, %v3953
        %v4332 = vrot.slane %v4330, 7
        %v4333 = vrot.slane %v4332, 2
        %v4335 = vadd.f32 %v4327, %v4333
        %4336 = vrot.lane.b32.xlu0 %v4153, 22
        %v4337 = vpop.permute.xlu0 %4336
        %v4338 = vrot.slane %v4337, 6
        %vm4339 = vcmask 179200
        %v4340 = vsel %vm4339, %v4338, %v4337
        %v4342 = vmul.f32 %v4335, %v4340
        %4344 = vrot.lane.b32.xlu0 %v4342, 106
        %v4345 = vpop.permute.xlu0 %4344
        %v4346 = vrot.slane %v4345, 2
        %vm4347 = vcmask 867328
        %v4348 = vsel %vm4347, %v4345, %v4346
        %v4350 = vadd.f32 %v4324, %v4348
        %s4351 = sld [smem:[#allocation5 + $0xe]]
        %v4352 = vstv %s4351
        %v4353 = vmul.f32 %v4352, %v3953
        %s4354 = sld [smem:[#allocation5 + $0x8e]]
        %v4355 = vstv %s4354
        %v4356 = vmul.f32 %v4355, %v3953
        %v4358 = vrot.slane %v4356, 7
        %v4359 = vrot.slane %v4358, 2
        %v4361 = vadd.f32 %v4353, %v4359
        %4362 = vrot.lane.b32.xlu0 %v3949, 32
        %v4363 = vpop.permute.xlu0 %4362
        %v4364 = vrot.slane %v4363, 6
        %v4365 = vsel %vm3345, %v4364, %v4363
        %v4367 = vmul.f32 %v4361, %v4365
        %4369 = vrot.lane.b32.xlu0 %v4367, 96
        %v4370 = vpop.permute.xlu0 %4369
        %v4371 = vrot.slane %v4370, 2
        %vm4372 = vcmask 785408
        %v4373 = vsel %vm4372, %v4370, %v4371
        %v4375 = vadd.f32 %v4350, %v4373
        %s4376 = sld [smem:[#allocation5 + $0xf]]
        %v4377 = vstv %s4376
        %v4378 = vmul.f32 %v4377, %v3953
        %s4379 = sld [smem:[#allocation5 + $0x8f]]
        %v4380 = vstv %s4379
        %v4381 = vmul.f32 %v4380, %v3953
        %v4383 = vrot.slane %v4381, 7
        %v4384 = vrot.slane %v4383, 2
        %v4386 = vadd.f32 %v4378, %v4384
        %4387 = vrot.lane.b32.xlu0 %v3974, 33
        %v4388 = vpop.permute.xlu0 %4387
        %v4389 = vrot.slane %v4388, 6
        %vm4390 = vcmask 269312
        %v4391 = vsel %vm4390, %v4389, %v4388
        %v4393 = vmul.f32 %v4386, %v4391
        %4395 = vrot.lane.b32.xlu0 %v4393, 95
        %v4396 = vpop.permute.xlu0 %4395
        %v4397 = vrot.slane %v4396, 2
        %vm4398 = vcmask 777216
        %v4399 = vsel %vm4398, %v4396, %v4397
        %v4401 = vadd.f32 %v4375, %v4399
        %s4402 = sld [smem:[#allocation5 + $0x10]]
        %v4403 = vstv %s4402
        %v4404 = vmul.f32 %v4403, %v3953
        %s4405 = sld [smem:[#allocation5 + $0x90]]
        %v4406 = vstv %s4405
        %v4407 = vmul.f32 %v4406, %v3953
        %v4409 = vrot.slane %v4407, 7
        %v4410 = vrot.slane %v4409, 2
        %v4412 = vadd.f32 %v4404, %v4410
        %4413 = vrot.lane.b32.xlu0 %v4010, 34
        %v4414 = vpop.permute.xlu0 %4413
        %v4415 = vrot.slane %v4414, 6
        %vm4416 = vcmask 277504
        %v4417 = vsel %vm4416, %v4415, %v4414
        %v4419 = vmul.f32 %v4412, %v4417
        %4421 = vrot.lane.b32.xlu0 %v4419, 94
        %v4422 = vpop.permute.xlu0 %4421
        %v4423 = vrot.slane %v4422, 2
        %vm4424 = vcmask 769024
        %v4425 = vsel %vm4424, %v4422, %v4423
        %v4427 = vadd.f32 %v4401, %v4425
        %s4428 = sld [smem:[#allocation5 + $0x11]]
        %v4429 = vstv %s4428
        %v4430 = vmul.f32 %v4429, %v3953
        %s4431 = sld [smem:[#allocation5 + $0x91]]
        %v4432 = vstv %s4431
        %v4433 = vmul.f32 %v4432, %v3953
        %v4435 = vrot.slane %v4433, 7
        %v4436 = vrot.slane %v4435, 2
        %v4438 = vadd.f32 %v4430, %v4436
        %4439 = vrot.lane.b32.xlu0 %v4045, 35
        %v4440 = vpop.permute.xlu0 %4439
        %v4441 = vrot.slane %v4440, 6
        %vm4442 = vcmask 285696
        %v4443 = vsel %vm4442, %v4441, %v4440
        %v4445 = vmul.f32 %v4438, %v4443
        %4447 = vrot.lane.b32.xlu0 %v4445, 93
        %v4448 = vpop.permute.xlu0 %4447
        %v4449 = vrot.slane %v4448, 2
        %vm4450 = vcmask 760832
        %v4451 = vsel %vm4450, %v4448, %v4449
        %v4453 = vadd.f32 %v4427, %v4451
        %s4454 = sld [smem:[#allocation5 + $0x12]]
        %v4455 = vstv %s4454
        %v4456 = vmul.f32 %v4455, %v3953
        %s4457 = sld [smem:[#allocation5 + $0x92]]
        %v4458 = vstv %s4457
        %v4459 = vmul.f32 %v4458, %v3953
        %v4461 = vrot.slane %v4459, 7
        %v4462 = vrot.slane %v4461, 2
        %v4464 = vadd.f32 %v4456, %v4462
        %4465 = vrot.lane.b32.xlu0 %v4081, 36
        %v4466 = vpop.permute.xlu0 %4465
        %v4467 = vrot.slane %v4466, 6
        %vm4468 = vcmask 293888
        %v4469 = vsel %vm4468, %v4467, %v4466
        %v4471 = vmul.f32 %v4464, %v4469
        %4473 = vrot.lane.b32.xlu0 %v4471, 92
        %v4474 = vpop.permute.xlu0 %4473
        %v4475 = vrot.slane %v4474, 2
        %vm4476 = vcmask 752640
        %v4477 = vsel %vm4476, %v4474, %v4475
        %v4479 = vadd.f32 %v4453, %v4477
        %s4480 = sld [smem:[#allocation5 + $0x13]]
        %v4481 = vstv %s4480
        %v4482 = vmul.f32 %v4481, %v3953
        %s4483 = sld [smem:[#allocation5 + $0x93]]
        %v4484 = vstv %s4483
        %v4485 = vmul.f32 %v4484, %v3953
        %v4487 = vrot.slane %v4485, 7
        %v4488 = vrot.slane %v4487, 2
        %v4490 = vadd.f32 %v4482, %v4488
        %4491 = vrot.lane.b32.xlu0 %v4117, 37
        %v4492 = vpop.permute.xlu0 %4491
        %v4493 = vrot.slane %v4492, 6
        %vm4494 = vcmask 302080
        %v4495 = vsel %vm4494, %v4493, %v4492
        %v4497 = vmul.f32 %v4490, %v4495
        %4499 = vrot.lane.b32.xlu0 %v4497, 91
        %v4500 = vpop.permute.xlu0 %4499
        %v4501 = vrot.slane %v4500, 2
        %vm4502 = vcmask 744448
        %v4503 = vsel %vm4502, %v4500, %v4501
        %v4505 = vadd.f32 %v4479, %v4503
        %s4506 = sld [smem:[#allocation5 + $0x14]]
        %v4507 = vstv %s4506
        %v4508 = vmul.f32 %v4507, %v3953
        %s4509 = sld [smem:[#allocation5 + $0x94]]
        %v4510 = vstv %s4509
        %v4511 = vmul.f32 %v4510, %v3953
        %v4513 = vrot.slane %v4511, 7
        %v4514 = vrot.slane %v4513, 2
        %v4516 = vadd.f32 %v4508, %v4514
        %4517 = vrot.lane.b32.xlu0 %v4153, 38
        %v4518 = vpop.permute.xlu0 %4517
        %v4519 = vrot.slane %v4518, 6
        %vm4520 = vcmask 310272
        %v4521 = vsel %vm4520, %v4519, %v4518
        %v4523 = vmul.f32 %v4516, %v4521
        %4525 = vrot.lane.b32.xlu0 %v4523, 90
        %v4526 = vpop.permute.xlu0 %4525
        %v4527 = vrot.slane %v4526, 2
        %vm4528 = vcmask 736256
        %v4529 = vsel %vm4528, %v4526, %v4527
        %v4531 = vadd.f32 %v4505, %v4529
        %s4532 = sld [smem:[#allocation5 + $0x15]]
        %v4533 = vstv %s4532
        %v4534 = vmul.f32 %v4533, %v3953
        %s4535 = sld [smem:[#allocation5 + $0x95]]
        %v4536 = vstv %s4535
        %v4537 = vmul.f32 %v4536, %v3953
        %v4539 = vrot.slane %v4537, 7
        %v4540 = vrot.slane %v4539, 2
        %v4542 = vadd.f32 %v4534, %v4540
        %4543 = vrot.lane.b32.xlu0 %v3949, 48
        %v4544 = vpop.permute.xlu0 %4543
        %v4545 = vrot.slane %v4544, 6
        %vm4546 = vcmask 392192
        %v4547 = vsel %vm4546, %v4545, %v4544
        %v4549 = vmul.f32 %v4542, %v4547
        %4551 = vrot.lane.b32.xlu0 %v4549, 80
        %v4552 = vpop.permute.xlu0 %4551
        %v4553 = vrot.slane %v4552, 2
        %vm4554 = vcmask 654336
        %v4555 = vsel %vm4554, %v4552, %v4553
        %v4557 = vadd.f32 %v4531, %v4555
        %s4558 = sld [smem:[#allocation5 + $0x16]]
        %v4559 = vstv %s4558
        %v4560 = vmul.f32 %v4559, %v3953
        %s4561 = sld [smem:[#allocation5 + $0x96]]
        %v4562 = vstv %s4561
        %v4563 = vmul.f32 %v4562, %v3953
        %v4565 = vrot.slane %v4563, 7
        %v4566 = vrot.slane %v4565, 2
        %v4568 = vadd.f32 %v4560, %v4566
        %4569 = vrot.lane.b32.xlu0 %v3974, 49
        %v4570 = vpop.permute.xlu0 %4569
        %v4571 = vrot.slane %v4570, 6
        %vm4572 = vcmask 400384
        %v4573 = vsel %vm4572, %v4571, %v4570
        %v4575 = vmul.f32 %v4568, %v4573
        %4577 = vrot.lane.b32.xlu0 %v4575, 79
        %v4578 = vpop.permute.xlu0 %4577
        %v4579 = vrot.slane %v4578, 2
        %vm4580 = vcmask 646144
        %v4581 = vsel %vm4580, %v4578, %v4579
        %v4583 = vadd.f32 %v4557, %v4581
        %s4584 = sld [smem:[#allocation5 + $0x17]]
        %v4585 = vstv %s4584
        %v4586 = vmul.f32 %v4585, %v3953
        %s4587 = sld [smem:[#allocation5 + $0x97]]
        %v4588 = vstv %s4587
        %v4589 = vmul.f32 %v4588, %v3953
        %v4591 = vrot.slane %v4589, 7
        %v4592 = vrot.slane %v4591, 2
        %v4594 = vadd.f32 %v4586, %v4592
        %4595 = vrot.lane.b32.xlu0 %v4010, 50
        %v4596 = vpop.permute.xlu0 %4595
        %v4597 = vrot.slane %v4596, 6
        %vm4598 = vcmask 408576
        %v4599 = vsel %vm4598, %v4597, %v4596
        %v4601 = vmul.f32 %v4594, %v4599
        %4603 = vrot.lane.b32.xlu0 %v4601, 78
        %v4604 = vpop.permute.xlu0 %4603
        %v4605 = vrot.slane %v4604, 2
        %vm4606 = vcmask 637952
        %v4607 = vsel %vm4606, %v4604, %v4605
        %v4609 = vadd.f32 %v4583, %v4607
        %s4610 = sld [smem:[#allocation5 + $0x18]]
        %v4611 = vstv %s4610
        %v4612 = vmul.f32 %v4611, %v3953
        %s4613 = sld [smem:[#allocation5 + $0x98]]
        %v4614 = vstv %s4613
        %v4615 = vmul.f32 %v4614, %v3953
        %v4617 = vrot.slane %v4615, 7
        %v4618 = vrot.slane %v4617, 2
        %v4620 = vadd.f32 %v4612, %v4618
        %4621 = vrot.lane.b32.xlu0 %v4045, 51
        %v4622 = vpop.permute.xlu0 %4621
        %v4623 = vrot.slane %v4622, 6
        %v4624 = vsel %vm390, %v4623, %v4622
        %v4626 = vmul.f32 %v4620, %v4624
        %4628 = vrot.lane.b32.xlu0 %v4626, 77
        %v4629 = vpop.permute.xlu0 %4628
        %v4630 = vrot.slane %v4629, 2
        %vm4631 = vcmask 629760
        %v4632 = vsel %vm4631, %v4629, %v4630
        %v4634 = vadd.f32 %v4609, %v4632
        %s4635 = sld [smem:[#allocation5 + $0x19]]
        %v4636 = vstv %s4635
        %v4637 = vmul.f32 %v4636, %v3953
        %s4638 = sld [smem:[#allocation5 + $0x99]]
        %v4639 = vstv %s4638
        %v4640 = vmul.f32 %v4639, %v3953
        %v4642 = vrot.slane %v4640, 7
        %v4643 = vrot.slane %v4642, 2
        %v4645 = vadd.f32 %v4637, %v4643
        %4646 = vrot.lane.b32.xlu0 %v4081, 52
        %v4647 = vpop.permute.xlu0 %4646
        %v4648 = vrot.slane %v4647, 6
        %vm4649 = vcmask 424960
        %v4650 = vsel %vm4649, %v4648, %v4647
        %v4652 = vmul.f32 %v4645, %v4650
        %4654 = vrot.lane.b32.xlu0 %v4652, 76
        %v4655 = vpop.permute.xlu0 %4654
        %v4656 = vrot.slane %v4655, 2
        %vm4657 = vcmask 621568
        %v4658 = vsel %vm4657, %v4655, %v4656
        %v4660 = vadd.f32 %v4634, %v4658
        %s4661 = sld [smem:[#allocation5 + $0x1a]]
        %v4662 = vstv %s4661
        %v4663 = vmul.f32 %v4662, %v3953
        %s4664 = sld [smem:[#allocation5 + $0x9a]]
        %v4665 = vstv %s4664
        %v4666 = vmul.f32 %v4665, %v3953
        %v4668 = vrot.slane %v4666, 7
        %v4669 = vrot.slane %v4668, 2
        %v4671 = vadd.f32 %v4663, %v4669
        %4672 = vrot.lane.b32.xlu0 %v4117, 53
        %v4673 = vpop.permute.xlu0 %4672
        %v4674 = vrot.slane %v4673, 6
        %vm4675 = vcmask 433152
        %v4676 = vsel %vm4675, %v4674, %v4673
        %v4678 = vmul.f32 %v4671, %v4676
        %4680 = vrot.lane.b32.xlu0 %v4678, 75
        %v4681 = vpop.permute.xlu0 %4680
        %v4682 = vrot.slane %v4681, 2
        %vm4683 = vcmask 613376
        %v4684 = vsel %vm4683, %v4681, %v4682
        %v4686 = vadd.f32 %v4660, %v4684
        %s4687 = sld [smem:[#allocation5 + $0x1b]]
        %v4688 = vstv %s4687
        %v4689 = vmul.f32 %v4688, %v3953
        %s4690 = sld [smem:[#allocation5 + $0x9b]]
        %v4691 = vstv %s4690
        %v4692 = vmul.f32 %v4691, %v3953
        %v4694 = vrot.slane %v4692, 7
        %v4695 = vrot.slane %v4694, 2
        %v4697 = vadd.f32 %v4689, %v4695
        %4698 = vrot.lane.b32.xlu0 %v4153, 54
        %v4699 = vpop.permute.xlu0 %4698
        %v4700 = vrot.slane %v4699, 6
        %vm4701 = vcmask 441344
        %v4702 = vsel %vm4701, %v4700, %v4699
        %v4704 = vmul.f32 %v4697, %v4702
        %4706 = vrot.lane.b32.xlu0 %v4704, 74
        %v4707 = vpop.permute.xlu0 %4706
        %v4708 = vrot.slane %v4707, 2
        %vm4709 = vcmask 605184
        %v4710 = vsel %vm4709, %v4707, %v4708
        %v4712 = vadd.f32 %v4686, %v4710
        %s4713 = sld [smem:[#allocation5 + $0x1c]]
        %v4714 = vstv %s4713
        %v4715 = vmul.f32 %v4714, %v3953
        %s4716 = sld [smem:[#allocation5 + $0x9c]]
        %v4717 = vstv %s4716
        %v4718 = vmul.f32 %v4717, %v3953
        %v4720 = vrot.slane %v4718, 7
        %v4721 = vrot.slane %v4720, 2
        %v4723 = vadd.f32 %v4715, %v4721
        %4724 = vrot.lane.b32.xlu0 %v3949, 64
        %v4725 = vpop.permute.xlu0 %4724
        %v4726 = vrot.slane %v4725, 6
        %vm4727 = vcmask 523264
        %v4728 = vsel %vm4727, %v4726, %v4725
        %v4730 = vmul.f32 %v4723, %v4728
        %4732 = vrot.lane.b32.xlu0 %v4730, 64
        %v4733 = vpop.permute.xlu0 %4732
        %v4734 = vrot.slane %v4733, 2
        %v4735 = vsel %vm4727, %v4733, %v4734
        %v4737 = vadd.f32 %v4712, %v4735
        %s4738 = sld [smem:[#allocation5 + $0x1d]]
        %v4739 = vstv %s4738
        %v4740 = vmul.f32 %v4739, %v3953
        %s4741 = sld [smem:[#allocation5 + $0x9d]]
        %v4742 = vstv %s4741
        %v4743 = vmul.f32 %v4742, %v3953
        %v4745 = vrot.slane %v4743, 7
        %v4746 = vrot.slane %v4745, 2
        %v4748 = vadd.f32 %v4740, %v4746
        %4749 = vrot.lane.b32.xlu0 %v3974, 65
        %v4750 = vpop.permute.xlu0 %4749
        %v4751 = vrot.slane %v4750, 6
        %vm4752 = vcmask 531456
        %v4753 = vsel %vm4752, %v4751, %v4750
        %v4755 = vmul.f32 %v4748, %v4753
        %4757 = vrot.lane.b32.xlu0 %v4755, 63
        %v4758 = vpop.permute.xlu0 %4757
        %v4759 = vrot.slane %v4758, 2
        %vm4760 = vcmask 515072
        %v4761 = vsel %vm4760, %v4758, %v4759
        %v4763 = vadd.f32 %v4737, %v4761
        %s4764 = sld [smem:[#allocation5 + $0x1e]]
        %v4765 = vstv %s4764
        %v4766 = vmul.f32 %v4765, %v3953
        %s4767 = sld [smem:[#allocation5 + $0x9e]]
        %v4768 = vstv %s4767
        %v4769 = vmul.f32 %v4768, %v3953
        %v4771 = vrot.slane %v4769, 7
        %v4772 = vrot.slane %v4771, 2
        %v4774 = vadd.f32 %v4766, %v4772
        %4775 = vrot.lane.b32.xlu0 %v4010, 66
        %v4776 = vpop.permute.xlu0 %4775
        %v4777 = vrot.slane %v4776, 6
        %vm4778 = vcmask 539648
        %v4779 = vsel %vm4778, %v4777, %v4776
        %v4781 = vmul.f32 %v4774, %v4779
        %4783 = vrot.lane.b32.xlu0 %v4781, 62
        %v4784 = vpop.permute.xlu0 %4783
        %v4785 = vrot.slane %v4784, 2
        %vm4786 = vcmask 506880
        %v4787 = vsel %vm4786, %v4784, %v4785
        %v4789 = vadd.f32 %v4763, %v4787
        %s4790 = sld [smem:[#allocation5 + $0x1f]]
        %v4791 = vstv %s4790
        %v4792 = vmul.f32 %v4791, %v3953
        %s4793 = sld [smem:[#allocation5 + $0x9f]]
        %v4794 = vstv %s4793
        %v4795 = vmul.f32 %v4794, %v3953
        %v4797 = vrot.slane %v4795, 7
        %v4798 = vrot.slane %v4797, 2
        %v4800 = vadd.f32 %v4792, %v4798
        %4801 = vrot.lane.b32.xlu0 %v4045, 67
        %v4802 = vpop.permute.xlu0 %4801
        %v4803 = vrot.slane %v4802, 6
        %vm4804 = vcmask 547840
        %v4805 = vsel %vm4804, %v4803, %v4802
        %v4807 = vmul.f32 %v4800, %v4805
        %4809 = vrot.lane.b32.xlu0 %v4807, 61
        %v4810 = vpop.permute.xlu0 %4809
        %v4811 = vrot.slane %v4810, 2
        %vm4812 = vcmask 498688
        %v4813 = vsel %vm4812, %v4810, %v4811
        %v4815 = vadd.f32 %v4789, %v4813
        %s4816 = sld [smem:[#allocation5 + $0x20]]
        %v4817 = vstv %s4816
        %v4818 = vmul.f32 %v4817, %v3953
        %s4819 = sld [smem:[#allocation5 + $0xa0]]
        %v4820 = vstv %s4819
        %v4821 = vmul.f32 %v4820, %v3953
        %v4823 = vrot.slane %v4821, 7
        %v4824 = vrot.slane %v4823, 2
        %v4826 = vadd.f32 %v4818, %v4824
        %4827 = vrot.lane.b32.xlu0 %v4081, 68
        %v4828 = vpop.permute.xlu0 %4827
        %v4829 = vrot.slane %v4828, 6
        %vm4830 = vcmask 556032
        %v4831 = vsel %vm4830, %v4829, %v4828
        %v4833 = vmul.f32 %v4826, %v4831
        %4835 = vrot.lane.b32.xlu0 %v4833, 60
        %v4836 = vpop.permute.xlu0 %4835
        %v4837 = vrot.slane %v4836, 2
        %vm4838 = vcmask 490496
        %v4839 = vsel %vm4838, %v4836, %v4837
        %v4841 = vadd.f32 %v4815, %v4839
        %s4842 = sld [smem:[#allocation5 + $0x21]]
        %v4843 = vstv %s4842
        %v4844 = vmul.f32 %v4843, %v3953
        %s4845 = sld [smem:[#allocation5 + $0xa1]]
        %v4846 = vstv %s4845
        %v4847 = vmul.f32 %v4846, %v3953
        %v4849 = vrot.slane %v4847, 7
        %v4850 = vrot.slane %v4849, 2
        %v4852 = vadd.f32 %v4844, %v4850
        %4853 = vrot.lane.b32.xlu0 %v4117, 69
        %v4854 = vpop.permute.xlu0 %4853
        %v4855 = vrot.slane %v4854, 6
        %vm4856 = vcmask 564224
        %v4857 = vsel %vm4856, %v4855, %v4854
        %v4859 = vmul.f32 %v4852, %v4857
        %4861 = vrot.lane.b32.xlu0 %v4859, 59
        %v4862 = vpop.permute.xlu0 %4861
        %v4863 = vrot.slane %v4862, 2
        %vm4864 = vcmask 482304
        %v4865 = vsel %vm4864, %v4862, %v4863
        %v4867 = vadd.f32 %v4841, %v4865
        %s4868 = sld [smem:[#allocation5 + $0x22]]
        %v4869 = vstv %s4868
        %v4870 = vmul.f32 %v4869, %v3953
        %s4871 = sld [smem:[#allocation5 + $0xa2]]
        %v4872 = vstv %s4871
        %v4873 = vmul.f32 %v4872, %v3953
        %v4875 = vrot.slane %v4873, 7
        %v4876 = vrot.slane %v4875, 2
        %v4878 = vadd.f32 %v4870, %v4876
        %4879 = vrot.lane.b32.xlu0 %v4153, 70
        %v4880 = vpop.permute.xlu0 %4879
        %v4881 = vrot.slane %v4880, 6
        %vm4882 = vcmask 572416
        %v4883 = vsel %vm4882, %v4881, %v4880
        %v4885 = vmul.f32 %v4878, %v4883
        %4887 = vrot.lane.b32.xlu0 %v4885, 58
        %v4888 = vpop.permute.xlu0 %4887
        %v4889 = vrot.slane %v4888, 2
        %vm4890 = vcmask 474112
        %v4891 = vsel %vm4890, %v4888, %v4889
        %v4893 = vadd.f32 %v4867, %v4891
        %s4894 = sld [smem:[#allocation5 + $0x23]]
        %v4895 = vstv %s4894
        %v4896 = vmul.f32 %v4895, %v3953
        %s4897 = sld [smem:[#allocation5 + $0xa3]]
        %v4898 = vstv %s4897
        %v4899 = vmul.f32 %v4898, %v3953
        %v4901 = vrot.slane %v4899, 7
        %v4902 = vrot.slane %v4901, 2
        %v4904 = vadd.f32 %v4896, %v4902
        %4905 = vrot.lane.b32.xlu0 %v3949, 80
        %v4906 = vpop.permute.xlu0 %4905
        %v4907 = vrot.slane %v4906, 6
        %v4908 = vsel %vm4554, %v4907, %v4906
        %v4910 = vmul.f32 %v4904, %v4908
        %4912 = vrot.lane.b32.xlu0 %v4910, 48
        %v4913 = vpop.permute.xlu0 %4912
        %v4914 = vrot.slane %v4913, 2
        %v4915 = vsel %vm4546, %v4913, %v4914
        %v4917 = vadd.f32 %v4893, %v4915
        %s4918 = sld [smem:[#allocation5 + $0x24]]
        %v4919 = vstv %s4918
        %v4920 = vmul.f32 %v4919, %v3953
        %s4921 = sld [smem:[#allocation5 + $0xa4]]
        %v4922 = vstv %s4921
        %v4923 = vmul.f32 %v4922, %v3953
        %v4925 = vrot.slane %v4923, 7
        %v4926 = vrot.slane %v4925, 2
        %v4928 = vadd.f32 %v4920, %v4926
        %4929 = vrot.lane.b32.xlu0 %v3974, 81
        %v4930 = vpop.permute.xlu0 %4929
        %v4931 = vrot.slane %v4930, 6
        %vm4932 = vcmask 662528
        %v4933 = vsel %vm4932, %v4931, %v4930
        %v4935 = vmul.f32 %v4928, %v4933
        %4937 = vrot.lane.b32.xlu0 %v4935, 47
        %v4938 = vpop.permute.xlu0 %4937
        %v4939 = vrot.slane %v4938, 2
        %vm4940 = vcmask 384000
        %v4941 = vsel %vm4940, %v4938, %v4939
        %v4943 = vadd.f32 %v4917, %v4941
        %s4944 = sld [smem:[#allocation5 + $0x25]]
        %v4945 = vstv %s4944
        %v4946 = vmul.f32 %v4945, %v3953
        %s4947 = sld [smem:[#allocation5 + $0xa5]]
        %v4948 = vstv %s4947
        %v4949 = vmul.f32 %v4948, %v3953
        %v4951 = vrot.slane %v4949, 7
        %v4952 = vrot.slane %v4951, 2
        %v4954 = vadd.f32 %v4946, %v4952
        %4955 = vrot.lane.b32.xlu0 %v4010, 82
        %v4956 = vpop.permute.xlu0 %4955
        %v4957 = vrot.slane %v4956, 6
        %vm4958 = vcmask 670720
        %v4959 = vsel %vm4958, %v4957, %v4956
        %v4961 = vmul.f32 %v4954, %v4959
        %4963 = vrot.lane.b32.xlu0 %v4961, 46
        %v4964 = vpop.permute.xlu0 %4963
        %v4965 = vrot.slane %v4964, 2
        %vm4966 = vcmask 375808
        %v4967 = vsel %vm4966, %v4964, %v4965
        %v4969 = vadd.f32 %v4943, %v4967
        %s4970 = sld [smem:[#allocation5 + $0x26]]
        %v4971 = vstv %s4970
        %v4972 = vmul.f32 %v4971, %v3953
        %s4973 = sld [smem:[#allocation5 + $0xa6]]
        %v4974 = vstv %s4973
        %v4975 = vmul.f32 %v4974, %v3953
        %v4977 = vrot.slane %v4975, 7
        %v4978 = vrot.slane %v4977, 2
        %v4980 = vadd.f32 %v4972, %v4978
        %4981 = vrot.lane.b32.xlu0 %v4045, 83
        %v4982 = vpop.permute.xlu0 %4981
        %v4983 = vrot.slane %v4982, 6
        %vm4984 = vcmask 678912
        %v4985 = vsel %vm4984, %v4983, %v4982
        %v4987 = vmul.f32 %v4980, %v4985
        %4989 = vrot.lane.b32.xlu0 %v4987, 45
        %v4990 = vpop.permute.xlu0 %4989
        %v4991 = vrot.slane %v4990, 2
        %vm4992 = vcmask 367616
        %v4993 = vsel %vm4992, %v4990, %v4991
        %v4995 = vadd.f32 %v4969, %v4993
        %s4996 = sld [smem:[#allocation5 + $0x27]]
        %v4997 = vstv %s4996
        %v4998 = vmul.f32 %v4997, %v3953
        %s4999 = sld [smem:[#allocation5 + $0xa7]]
        %v5000 = vstv %s4999
        %v5001 = vmul.f32 %v5000, %v3953
        %v5003 = vrot.slane %v5001, 7
        %v5004 = vrot.slane %v5003, 2
        %v5006 = vadd.f32 %v4998, %v5004
        %5007 = vrot.lane.b32.xlu0 %v4081, 84
        %v5008 = vpop.permute.xlu0 %5007
        %v5009 = vrot.slane %v5008, 6
        %vm5010 = vcmask 687104
        %v5011 = vsel %vm5010, %v5009, %v5008
        %v5013 = vmul.f32 %v5006, %v5011
        %5015 = vrot.lane.b32.xlu0 %v5013, 44
        %v5016 = vpop.permute.xlu0 %5015
        %v5017 = vrot.slane %v5016, 2
        %vm5018 = vcmask 359424
        %v5019 = vsel %vm5018, %v5016, %v5017
        %v5021 = vadd.f32 %v4995, %v5019
        %s5022 = sld [smem:[#allocation5 + $0x28]]
        %v5023 = vstv %s5022
        %v5024 = vmul.f32 %v5023, %v3953
        %s5025 = sld [smem:[#allocation5 + $0xa8]]
        %v5026 = vstv %s5025
        %v5027 = vmul.f32 %v5026, %v3953
        %v5029 = vrot.slane %v5027, 7
        %v5030 = vrot.slane %v5029, 2
        %v5032 = vadd.f32 %v5024, %v5030
        %5033 = vrot.lane.b32.xlu0 %v4117, 85
        %v5034 = vpop.permute.xlu0 %5033
        %v5035 = vrot.slane %v5034, 6
        %vm5036 = vcmask 695296
        %v5037 = vsel %vm5036, %v5035, %v5034
        %v5039 = vmul.f32 %v5032, %v5037
        %5041 = vrot.lane.b32.xlu0 %v5039, 43
        %v5042 = vpop.permute.xlu0 %5041
        %v5043 = vrot.slane %v5042, 2
        %vm5044 = vcmask 351232
        %v5045 = vsel %vm5044, %v5042, %v5043
        %v5047 = vadd.f32 %v5021, %v5045
        %s5048 = sld [smem:[#allocation5 + $0x29]]
        %v5049 = vstv %s5048
        %v5050 = vmul.f32 %v5049, %v3953
        %s5051 = sld [smem:[#allocation5 + $0xa9]]
        %v5052 = vstv %s5051
        %v5053 = vmul.f32 %v5052, %v3953
        %v5055 = vrot.slane %v5053, 7
        %v5056 = vrot.slane %v5055, 2
        %v5058 = vadd.f32 %v5050, %v5056
        %5059 = vrot.lane.b32.xlu0 %v4153, 86
        %v5060 = vpop.permute.xlu0 %5059
        %v5061 = vrot.slane %v5060, 6
        %vm5062 = vcmask 703488
        %v5063 = vsel %vm5062, %v5061, %v5060
        %v5065 = vmul.f32 %v5058, %v5063
        %5067 = vrot.lane.b32.xlu0 %v5065, 42
        %v5068 = vpop.permute.xlu0 %5067
        %v5069 = vrot.slane %v5068, 2
        %vm5070 = vcmask 343040
        %v5071 = vsel %vm5070, %v5068, %v5069
        %v5073 = vadd.f32 %v5047, %v5071
        %s5074 = sld [smem:[#allocation5 + $0x2a]]
        %v5075 = vstv %s5074
        %v5076 = vmul.f32 %v5075, %v3953
        %s5077 = sld [smem:[#allocation5 + $0xaa]]
        %v5078 = vstv %s5077
        %v5079 = vmul.f32 %v5078, %v3953
        %v5081 = vrot.slane %v5079, 7
        %v5082 = vrot.slane %v5081, 2
        %v5084 = vadd.f32 %v5076, %v5082
        %5085 = vrot.lane.b32.xlu0 %v3949, 96
        %v5086 = vpop.permute.xlu0 %5085
        %v5087 = vrot.slane %v5086, 6
        %v5088 = vsel %vm4372, %v5087, %v5086
        %v5090 = vmul.f32 %v5084, %v5088
        %5092 = vrot.lane.b32.xlu0 %v5090, 32
        %v5093 = vpop.permute.xlu0 %5092
        %v5094 = vrot.slane %v5093, 2
        %v5095 = vsel %vm3345, %v5093, %v5094
        %v5097 = vadd.f32 %v5073, %v5095
        %s5098 = sld [smem:[#allocation5 + $0x2b]]
        %v5099 = vstv %s5098
        %v5100 = vmul.f32 %v5099, %v3953
        %s5101 = sld [smem:[#allocation5 + $0xab]]
        %v5102 = vstv %s5101
        %v5103 = vmul.f32 %v5102, %v3953
        %v5105 = vrot.slane %v5103, 7
        %v5106 = vrot.slane %v5105, 2
        %v5108 = vadd.f32 %v5100, %v5106
        %5109 = vrot.lane.b32.xlu0 %v3974, 97
        %v5110 = vpop.permute.xlu0 %5109
        %v5111 = vrot.slane %v5110, 6
        %vm5112 = vcmask 793600
        %v5113 = vsel %vm5112, %v5111, %v5110
        %v5115 = vmul.f32 %v5108, %v5113
        %5117 = vrot.lane.b32.xlu0 %v5115, 31
        %v5118 = vpop.permute.xlu0 %5117
        %v5119 = vrot.slane %v5118, 2
        %vm5120 = vcmask 252928
        %v5121 = vsel %vm5120, %v5118, %v5119
        %v5123 = vadd.f32 %v5097, %v5121
        %s5124 = sld [smem:[#allocation5 + $0x2c]]
        %v5125 = vstv %s5124
        %v5126 = vmul.f32 %v5125, %v3953
        %s5127 = sld [smem:[#allocation5 + $0xac]]
        %v5128 = vstv %s5127
        %v5129 = vmul.f32 %v5128, %v3953
        %v5131 = vrot.slane %v5129, 7
        %v5132 = vrot.slane %v5131, 2
        %v5134 = vadd.f32 %v5126, %v5132
        %5135 = vrot.lane.b32.xlu0 %v4010, 98
        %v5136 = vpop.permute.xlu0 %5135
        %v5137 = vrot.slane %v5136, 6
        %vm5138 = vcmask 801792
        %v5139 = vsel %vm5138, %v5137, %v5136
        %v5141 = vmul.f32 %v5134, %v5139
        %5143 = vrot.lane.b32.xlu0 %v5141, 30
        %v5144 = vpop.permute.xlu0 %5143
        %v5145 = vrot.slane %v5144, 2
        %vm5146 = vcmask 244736
        %v5147 = vsel %vm5146, %v5144, %v5145
        %v5149 = vadd.f32 %v5123, %v5147
        %s5150 = sld [smem:[#allocation5 + $0x2d]]
        %v5151 = vstv %s5150
        %v5152 = vmul.f32 %v5151, %v3953
        %s5153 = sld [smem:[#allocation5 + $0xad]]
        %v5154 = vstv %s5153
        %v5155 = vmul.f32 %v5154, %v3953
        %v5157 = vrot.slane %v5155, 7
        %v5158 = vrot.slane %v5157, 2
        %v5160 = vadd.f32 %v5152, %v5158
        %5161 = vrot.lane.b32.xlu0 %v4045, 99
        %v5162 = vpop.permute.xlu0 %5161
        %v5163 = vrot.slane %v5162, 6
        %vm5164 = vcmask 809984
        %v5165 = vsel %vm5164, %v5163, %v5162
        %v5167 = vmul.f32 %v5160, %v5165
        %5169 = vrot.lane.b32.xlu0 %v5167, 29
        %v5170 = vpop.permute.xlu0 %5169
        %v5171 = vrot.slane %v5170, 2
        %vm5172 = vcmask 236544
        %v5173 = vsel %vm5172, %v5170, %v5171
        %v5175 = vadd.f32 %v5149, %v5173
        %s5176 = sld [smem:[#allocation5 + $0x2e]]
        %v5177 = vstv %s5176
        %v5178 = vmul.f32 %v5177, %v3953
        %s5179 = sld [smem:[#allocation5 + $0xae]]
        %v5180 = vstv %s5179
        %v5181 = vmul.f32 %v5180, %v3953
        %v5183 = vrot.slane %v5181, 7
        %v5184 = vrot.slane %v5183, 2
        %v5186 = vadd.f32 %v5178, %v5184
        %5187 = vrot.lane.b32.xlu0 %v4081, 100
        %v5188 = vpop.permute.xlu0 %5187
        %v5189 = vrot.slane %v5188, 6
        %vm5190 = vcmask 818176
        %v5191 = vsel %vm5190, %v5189, %v5188
        %v5193 = vmul.f32 %v5186, %v5191
        %5195 = vrot.lane.b32.xlu0 %v5193, 28
        %v5196 = vpop.permute.xlu0 %5195
        %v5197 = vrot.slane %v5196, 2
        %vm5198 = vcmask 228352
        %v5199 = vsel %vm5198, %v5196, %v5197
        %v5201 = vadd.f32 %v5175, %v5199
        %s5202 = sld [smem:[#allocation5 + $0x2f]]
        %v5203 = vstv %s5202
        %v5204 = vmul.f32 %v5203, %v3953
        %s5205 = sld [smem:[#allocation5 + $0xaf]]
        %v5206 = vstv %s5205
        %v5207 = vmul.f32 %v5206, %v3953
        %v5209 = vrot.slane %v5207, 7
        %v5210 = vrot.slane %v5209, 2
        %v5212 = vadd.f32 %v5204, %v5210
        %5213 = vrot.lane.b32.xlu0 %v4117, 101
        %v5214 = vpop.permute.xlu0 %5213
        %v5215 = vrot.slane %v5214, 6
        %vm5216 = vcmask 826368
        %v5217 = vsel %vm5216, %v5215, %v5214
        %v5219 = vmul.f32 %v5212, %v5217
        %5221 = vrot.lane.b32.xlu0 %v5219, 27
        %v5222 = vpop.permute.xlu0 %5221
        %v5223 = vrot.slane %v5222, 2
        %vm5224 = vcmask 220160
        %v5225 = vsel %vm5224, %v5222, %v5223
        %v5227 = vadd.f32 %v5201, %v5225
        %s5228 = sld [smem:[#allocation5 + $0x30]]
        %v5229 = vstv %s5228
        %v5230 = vmul.f32 %v5229, %v3953
        %s5231 = sld [smem:[#allocation5 + $0xb0]]
        %v5232 = vstv %s5231
        %v5233 = vmul.f32 %v5232, %v3953
        %v5235 = vrot.slane %v5233, 7
        %v5236 = vrot.slane %v5235, 2
        %v5238 = vadd.f32 %v5230, %v5236
        %5239 = vrot.lane.b32.xlu0 %v4153, 102
        %v5240 = vpop.permute.xlu0 %5239
        %v5241 = vrot.slane %v5240, 6
        %vm5242 = vcmask 834560
        %v5243 = vsel %vm5242, %v5241, %v5240
        %v5245 = vmul.f32 %v5238, %v5243
        %5247 = vrot.lane.b32.xlu0 %v5245, 26
        %v5248 = vpop.permute.xlu0 %5247
        %v5249 = vrot.slane %v5248, 2
        %vm5250 = vcmask 211968
        %v5251 = vsel %vm5250, %v5248, %v5249
        %v5253 = vadd.f32 %v5227, %v5251
        %v5254 = vsub.f32 0.0, %v5253
        %v5255 = vmul.f32 %v5254, 1.442695
        %v5256 = vpow.pop %v5255
        %v5257 = vadd.f32 %v5256, 1.0
        %v5258 = vrcp.pop %v5257
        %v5259 = vmul.f32 1.0, %v5258
        %v5260 = vmul.f32 %v3723, %v3858
        %v5261 = vmul.f32 %v3724, %v3858
        %v5262 = vmul.f32 %v3725, %v3860
        %v5263 = vmul.f32 %v3726, %v3860
        %v5264 = vmul.f32 %v3727, %v3862
        %v5265 = vmul.f32 %v3728, %v3862
        %v5266 = vmul.f32 %v3729, %v3864
        %v5267 = vmul.f32 %v3730, %v3864
        %v5269 = vlaneseq
        %v5270 = vshrl.u32 %v5269, 7
        %v5271 = vsub.s32 0, %v5270
        %v5272 = vrot.slane %v5259, %v5271
        %v5273 = vlaneseq
        %v5274 = vshrl.u32 %v5273, 7
        %v5275 = vsub.s32 2, %v5274
        %v5276 = vrot.slane %v5259, %v5275
        %v5279 = vlaneseq
        %v5280 = vshrl.u32 %v5279, 7
        %v5281 = vsub.s32 0, %v5280
        %v5282 = vrot.slane %v5272, %v5281
        %v5283 = vlaneseq
        %v5284 = vshrl.u32 %v5283, 7
        %v5285 = vsub.s32 0, %v5284
        %v5286 = vrot.slane %v5276, %v5285
        %v5287 = vmul.f32 %v3723, %v5282
        %v5288 = vmul.f32 %v3724, %v5286
        %v5289 = vmul.f32 %v3725, %v5282
        %v5290 = vmul.f32 %v3726, %v5286
        %v5291 = vmul.f32 %v3727, %v5282
        %v5292 = vmul.f32 %v3728, %v5286
        %v5293 = vmul.f32 %v3729, %v5282
        %v5294 = vmul.f32 %v3730, %v5286
        %v5295 = vpack.c.bf16 %v5262, %v5260
        %v5296 = vpack.c.bf16 %v5263, %v5261
        %v5297 = vpack.c.bf16 %v5266, %v5264
        %v5298 = vpack.c.bf16 %v5267, %v5265
        %v5299 = vpack.c.bf16 %v5289, %v5287
        %v5300 = vpack.c.bf16 %v5290, %v5288
        %v5301 = vpack.c.bf16 %v5293, %v5291
        %v5302 = vpack.c.bf16 %v5294, %v5292
        %v5303 = vld [vmem:[%s5] sm:$0xf]
        %v5304 = vld [vmem:[%s5 + $0x4] sm:$0xf]
        %v5305 = vld [vmem:[%s5 + $0x8] sm:$0xf]
        %v5306 = vld [vmem:[%s5 + $0xc] sm:$0xf]
        %v5307 = vld [vmem:[%s6] sm:$0xff]
        %v5308 = vld [vmem:[%s6 + $0x8] sm:$0xff]
        %v5309 = vld [vmem:[%s6 + $0x10] sm:$0xff]
        %v5310 = vld [vmem:[%s6 + $0x18] sm:$0xff]
        %5312 = vset.pattern.permute.xlu0 0
        %5313 = vperm.xlu0 %5312, %v5307
        %v5314 = vpop.permute.xlu0 %5313
        %5317 = vset.pattern.permute.xlu0 0
        %5318 = vperm.xlu0 %5317, %v5308
        %v5319 = vpop.permute.xlu0 %5318
        %5322 = vset.pattern.permute.xlu0 0
        %5323 = vperm.xlu0 %5322, %v5309
        %v5324 = vpop.permute.xlu0 %5323
        %5327 = vset.pattern.permute.xlu0 0
        %5328 = vperm.xlu0 %5327, %v5310
        %v5329 = vpop.permute.xlu0 %5328
        %v5335 = vunpack.c.l.b16 %v5303
        %v5336 = vunpack.c.l.b16 %v5304
        %v5337 = vunpack.c.l.b16 %v5305
        %v5338 = vunpack.c.l.b16 %v5306
        %v5339 = vpack.c.b16 %v5336, %v5335
        %v5340 = vpack.c.b16 %v5338, %v5337
        %v5342 = vsel %vm4727, %v5339, 0
        %v5345 = vsel %vm4727, %v5340, 0
        %5347 = vmatprep.subr.bf16.mxu0 %v5296
        %5348 = vmatpush1.bf16.msra.mxu0 %v5295
        %5349 = vmatprep.subr.bf16.mxu0 %v5298
        %5350 = vmatpush1.bf16.msra.mxu0 %v5297
        %5351 = vmatprep.subr.bf16.mxu0 %v5300
        %5352 = vmatpush1.bf16.msra.mxu0 %v5299
        %5353 = vmatprep.subr.bf16.mxu0 %v5302
        %5354 = vmatpush1.bf16.msra.mxu0 %v5301
        %5355 = vmatprep.subr.bf16.mxu0 0
        %5356 = vmatpush1.bf16.msra.mxu0 0
        %5357 = vmatprep.subr.bf16.mxu0 0
        %5358 = vmatpush1.bf16.msra.mxu0 0
        %5359 = vmatprep.subr.bf16.mxu0 0
        %5360 = vmatpush1.bf16.msra.mxu0 0
        %5361 = vmatprep.subr.bf16.mxu0 0
        %5362 = vmatpush1.bf16.msra.mxu0 0
        %5363 = vmatprep.subr.bf16.mxu0 0
        %5364 = vmatpush1.bf16.msra.mxu0 0
        %5365 = vmatprep.subr.bf16.mxu0 0
        %5366 = vmatpush1.bf16.msra.mxu0 0
        %5367 = vmatprep.subr.bf16.mxu0 0
        %5368 = vmatpush1.bf16.msra.mxu0 0
        %5369 = vmatprep.subr.bf16.mxu0 0
        %5370 = vmatpush1.bf16.msra.mxu0 0
        %5371 = vmatprep.subr.bf16.mxu0 0
        %5372 = vmatpush1.bf16.msra.mxu0 0
        %5373 = vmatprep.subr.bf16.mxu0 0
        %5374 = vmatpush1.bf16.msra.mxu0 0
        %5375 = vmatprep.subr.bf16.mxu0 0
        %5376 = vmatpush1.bf16.msra.mxu0 0
        %5377 = vmatprep.subr.bf16.mxu0 0
        %5378 = vmatpush1.bf16.msra.mxu0 0
        %5379 = vmatprep.mubr.bf16.mxu0 0
        %5380 = vmatmul.mubr.bf16.gmra.mrb[0].mxu0 %v5342
        %v5381 = vpop.f32.mrb[0].mxu0
        %v5382 = vadd.f32 %v5314, %v5381
        %v5383 = vpop.f32.mrb[0].mxu0
        %v5384 = vadd.f32 %v5314, %v5383
        %v5385 = vpop.f32.mrb[0].mxu0
        %v5386 = vadd.f32 %v5319, %v5385
        %v5387 = vpop.f32.mrb[0].mxu0
        %v5388 = vadd.f32 %v5319, %v5387
        %5389 = vmatprep.mubr.bf16.mxu0 0
        %5390 = vmatmul.mubr.bf16.gmra.mrb[0].mxu0 %v5345
        %v5391 = vpop.f32.mrb[0].mxu0
        %v5392 = vadd.f32 %v5324, %v5391
        %v5393 = vpop.f32.mrb[0].mxu0
        %v5394 = vadd.f32 %v5324, %v5393
        %v5395 = vpop.f32.mrb[0].mxu0
        %v5396 = vadd.f32 %v5329, %v5395
        %v5397 = vpop.f32.mrb[0].mxu0
        %v5398 = vadd.f32 %v5329, %v5397
        %5399 = vdwg.mxu0
        %v5400 = vadd.f32 %v5382, %v3723
        %v5401 = vadd.f32 %v5384, %v3724
        %v5402 = vadd.f32 %v5386, %v3725
        %v5403 = vadd.f32 %v5388, %v3726
        %v5404 = vadd.f32 %v5392, %v3727
        %v5405 = vadd.f32 %v5394, %v3728
        %v5406 = vadd.f32 %v5396, %v3729
        %v5407 = vadd.f32 %v5398, %v3730
        %5408 = vst [vmem:[%s346] sm:$0xff] %v5400
        %5409 = vst [vmem:[%s346 + $0x8] sm:$0xff] %v5401
        %5410 = vst [vmem:[%s346 + $0x10] sm:$0xff] %v5402
        %5411 = vst [vmem:[%s346 + $0x18] sm:$0xff] %v5403
        %5412 = vst [vmem:[%s346 + $0x20] sm:$0xff] %v5404
        %5413 = vst [vmem:[%s346 + $0x28] sm:$0xff] %v5405
        %5414 = vst [vmem:[%s346 + $0x30] sm:$0xff] %v5406
        %5415 = vst [vmem:[%s346 + $0x38] sm:$0xff] %v5407
        %p5416 = scmp.lt.s32.totalorder %s21, 1
        %s5417 = scalar_select %p5416, %s21, 1
        %s5418 = smul.addr %s5417, 8
        %s5419 = smul.addr %s5418, 8
        %s5420 = scalar_lea.vmem %s9, %s5419
        // Predicated region
        $region61: #{_lambda_.1} parent=55 // pred_check
          %p5421 = pneg %p233
        $region62: #{_lambda_.1} parent=55 // pred_check_branch
          %5423 = sbr.rel (%p5421) target = $region64
        $region63: #{_lambda_.1} parent=55 // pred_region
          _
        $region64: #{_lambda_.1} parent=55 // pred_fallthru
          _
      $region56: #{_lambda_.1} parent=5 // pred_fallthru
        _
      %p5424 = scmp.le.s32.totalorder 2, %s16
      // Predicated region
      $region65: #{_lambda_.1} parent=5 // pred_check
        %p5425 = pneg %p5424
      $region66: #{_lambda_.1} parent=5 // pred_check_branch
        %5427 = sbr.rel (%p5425) target = $region68
      $region67: #{_lambda_.1} parent=5 // pred_region
        %s5428 = ssub.s32 %s16, 2
        // Predicated region
        $region69: #{_lambda_.1} parent=67 // pred_check
          %p5429 = pneg %p239
        $region70: #{_lambda_.1} parent=67 // pred_check_branch
          %5431 = sbr.rel (%p5429) target = $region72
        $region71: #{_lambda_.1} parent=67 // pred_region
          %p5432 = scmp.lt.s32.totalorder %s22, 1
          %s5433 = scalar_select %p5432, %s22, 1
          %s5434 = smul.addr %s5433, 8
          %s5435 = smul.addr %s5434, 8
          %s5436 = scalar_lea.vmem %s9, %s5435
        $region72: #{_lambda_.1} parent=67 // pred_fallthru
          _
      $region68: #{_lambda_.1} parent=5 // pred_fallthru
        _
    $region6: #{_lambda_.1} parent=1 // loop_footer
      %s20 = sadd.s32 1, %s16
    $region7: #{_lambda_.1} parent=1 // loop_footer_branch
      %15 = sbr.rel target = $region3
    $region8: #{_lambda_.1} parent=1 // loop_exit
      _
    %5437 = vsyncpa [#allocation6], 1
    %s5438 = scalar_lea.sflag [#allocation6], 1
    %5439 = vsyncpa %s5438, 1

</llo_original>
